<compile_context>
chip_gen: v5e
topology: v5e:2x2
jax: 0.10.0
libtpu: 0.0.40
codegen_flags: <defaults>
</compile_context>

<pallas_src>
import functools

import jax
import jax.numpy as jnp
from jax.experimental import pallas as pl
from jax.experimental.pallas import tpu as pltpu

# Matmul operand dtype: bf16 halves HBM traffic and uses the native MXU path
# on v5e/v6e/v7x; accumulation stays f32 via preferred_element_type.
MATMUL_DTYPE = jnp.bfloat16


def _round_up(x, m):
    return ((x + m - 1) // m) * m


def _vmem_limit_bytes():
    """Generation-aware scoped-VMEM budget: ~3/4 of physical, capped at 100 MiB
    (=> ~96 MiB on v5e/v6e's 128 MiB, ~48 MiB on v7x's 64 MiB)."""
    cap = 128 * 1024 * 1024
    try:
        info = pltpu.get_tpu_info()
        cap = int(getattr(info, "vmem_capacity_bytes", cap))
    except Exception:
        pass
    return int(min(100 * 1024 * 1024, max(32 * 1024 * 1024, cap * 3 // 4)))


VMEM_LIMIT_BYTES = _vmem_limit_bytes()


# ----------------------------------------------------------------------------
# Tiled linear kernel: y = x @ w + b (optional fused ReLU)
# ----------------------------------------------------------------------------
def _matmul_kernel(x_ref, w_ref, b_ref, o_ref, acc_ref, *, relu):
    @pl.when(pl.program_id(2) == 0)
    def _():
        acc_ref[...] = jnp.zeros_like(acc_ref)

    acc_ref[...] += jnp.dot(x_ref[...], w_ref[...],
                            preferred_element_type=jnp.float32)

    @pl.when(pl.program_id(2) == pl.num_programs(2) - 1)
    def _():
        out = acc_ref[...] + b_ref[...]
        if relu:
            out = jnp.maximum(out, 0.0)
        o_ref[...] = out.astype(o_ref.dtype)


def pallas_linear(x, w, b, relu=False):
    """x:(M,K) w:(K,N) b:(N,) -> (M,N).  Lane-dense 128-multiple tiles, bf16
    operands, f32 VMEM accumulator over the K grid axis; pads M/K/N with zeros
    and slices the result back."""
    M, K = x.shape
    N = w.shape[1]
    # tm matches M (8-aligned) when small to avoid dead MXU rows; 256 otherwise.
    tm = _round_up(M, 8) if M <= 512 else 256
    tk = min(1024, _round_up(K, 128))
    tn = min(1024, _round_up(N, 128))
    Mp, Kp, Np = _round_up(M, tm), _round_up(K, tk), _round_up(N, tn)

    xp = jnp.pad(x.astype(MATMUL_DTYPE), ((0, Mp - M), (0, Kp - K)))
    wp = jnp.pad(w.astype(MATMUL_DTYPE), ((0, Kp - K), (0, Np - N)))
    bp = jnp.pad(b.astype(jnp.float32), (0, Np - N)).reshape(1, Np)

    out = pl.pallas_call(
        functools.partial(_matmul_kernel, relu=relu),
        out_shape=jax.ShapeDtypeStruct((Mp, Np), jnp.float32),
        grid_spec=pltpu.PrefetchScalarGridSpec(
            num_scalar_prefetch=0,
            grid=(Mp // tm, Np // tn, Kp // tk),
            in_specs=[
                pl.BlockSpec((tm, tk), lambda i, j, k: (i, k)),
                pl.BlockSpec((tk, tn), lambda i, j, k: (k, j)),
                pl.BlockSpec((1, tn), lambda i, j, k: (0, j)),
            ],
            out_specs=pl.BlockSpec((tm, tn), lambda i, j, k: (i, j)),
            scratch_shapes=[pltpu.VMEM((tm, tn), jnp.float32)],
        ),
        compiler_params=pltpu.CompilerParams(
            dimension_semantics=("parallel", "parallel", "arbitrary"),
            vmem_limit_bytes=VMEM_LIMIT_BYTES),
    )(xp, wp, bp)
    return out[:M, :N]


# ----------------------------------------------------------------------------
# Fused conv-as-matmul + ReLU + global-average-pool kernel
# ----------------------------------------------------------------------------
def _conv_gap_kernel(p_ref, w_ref, b_ref, o_ref, acc_ref, *, inv_s, sublane_acc):
    s = pl.program_id(1)

    @pl.when(s == 0)
    def _():
        acc_ref[...] = jnp.zeros_like(acc_ref)

    y = jnp.dot(p_ref[0], w_ref[...], preferred_element_type=jnp.float32)
    y = jnp.maximum(y + b_ref[...], 0.0)
    if sublane_acc:
        # (ts, C) -> (ts//8, 8, C); reducing the leading axis is pure VPU adds
        # into an (8, C) sublane-dense accumulator (no per-step XLU reduce).
        ts, C = y.shape
        acc_ref[...] += jnp.sum(y.reshape(ts // 8, 8, C), axis=0)
    else:
        acc_ref[0:1, :] = acc_ref[0:1, :] + jnp.sum(y, axis=0, keepdims=True)

    @pl.when(s == pl.num_programs(1) - 1)
    def _():
        o_ref[0] = (jnp.sum(acc_ref[...], axis=0, keepdims=True)
                    * inv_s).astype(o_ref.dtype)


def pallas_conv_gap(patches, w, b):
    """patches:(B,S,K) w:(K,C) b:(C,) -> pooled (B,C).  Conv activations stay
    in VMEM; only the (B,C) pooled result is written to HBM."""
    B, S, K = patches.shape
    C = w.shape[1]
    ts = 128 if S % 128 == 0 else S          # spatial tile (mult of 128 or full)
    sublane_acc = (ts % 8 == 0)
    out = pl.pallas_call(
        functools.partial(_conv_gap_kernel, inv_s=1.0 / S,
                          sublane_acc=sublane_acc),
        out_shape=jax.ShapeDtypeStruct((B, 1, C), jnp.float32),
        grid_spec=pltpu.PrefetchScalarGridSpec(
            num_scalar_prefetch=0,
            grid=(B, S // ts),
            in_specs=[
                pl.BlockSpec((1, ts, K), lambda bb, ss: (bb, ss, 0)),
                pl.BlockSpec((K, C), lambda bb, ss: (0, 0)),
                pl.BlockSpec((1, C), lambda bb, ss: (0, 0)),
            ],
            out_specs=pl.BlockSpec((1, 1, C), lambda bb, ss: (bb, 0, 0)),
            scratch_shapes=[pltpu.VMEM((8, C), jnp.float32)],
        ),
        compiler_params=pltpu.CompilerParams(
            dimension_semantics=("parallel", "arbitrary"),
            vmem_limit_bytes=VMEM_LIMIT_BYTES),
    )(patches.astype(jnp.float32), w.astype(jnp.float32),
      b.astype(jnp.float32).reshape(1, C))
    return out[:, 0, :]


# ----------------------------------------------------------------------------
# Fused multi-layer LSTM kernel (batch-chunk grid, in-kernel unrolled time loop)
# ----------------------------------------------------------------------------
def _fused_lstm_kernel(*refs, seq_len, num_layers):
    if num_layers > 1:
        gx0_ref, whh_ref, wih_ref, bias_ref, o_ref, h_sc, c_sc = refs
    else:
        gx0_ref, whh_ref, o_ref, h_sc, c_sc = refs
        wih_ref = bias_ref = None

    hp = h_sc.shape[-1]
    wdt = whh_ref.dtype

    def apply_gates(gates, t):
        # gate order i, f, g, o (PyTorch); each gate is a 128-aligned slab
        i_g = jax.nn.sigmoid(gates[:, 0 * hp:1 * hp])
        f_g = jax.nn.sigmoid(gates[:, 1 * hp:2 * hp])
        g_g = jnp.tanh(gates[:, 2 * hp:3 * hp])
        o_g = jax.nn.sigmoid(gates[:, 3 * hp:4 * hp])
        c_new = f_g * c_sc[...] + i_g * g_g
        h_new = o_g * jnp.tanh(c_new)
        c_sc[...] = c_new
        h_sc[...] = h_new
        o_ref[t] = h_new.astype(o_ref.dtype)   # hidden sequence lives in o_ref

    # ---- layer 0: input-gate projection was hoisted outside (gx0) ----------
    h_sc[...] = jnp.zeros_like(h_sc)
    c_sc[...] = jnp.zeros_like(c_sc)

    def step0(t, carry):
        gates = gx0_ref[t] + jnp.dot(h_sc[...].astype(wdt), whh_ref[0],
                                     preferred_element_type=jnp.float32)
        apply_gates(gates, t)
        return carry

    jax.lax.fori_loop(0, seq_len, step0, 0, unroll=True)

    # ---- layers 1..L-1: per-step input projection, hidden seq rewritten ----
    for l in range(1, num_layers):
        h_sc[...] = jnp.zeros_like(h_sc)
        c_sc[...] = jnp.zeros_like(c_sc)

        def step(t, carry, l=l):
            x_t = o_ref[t].astype(wdt)         # previous layer's h at time t
            gates = (jnp.dot(x_t, wih_ref[l - 1],
                             preferred_element_type=jnp.float32)
                     + bias_ref[l - 1]
                     + jnp.dot(h_sc[...].astype(wdt), whh_ref[l],
                               preferred_element_type=jnp.float32))
            apply_gates(gates, t)
            return carry

        jax.lax.fori_loop(0, seq_len, step, 0, unroll=True)


def pallas_fused_lstm(gx0, whh_all, wih_rest, bias_rest,
                      *, seq_len, bp, bc, hp, num_layers):
    """gx0:(T,bp,4hp) precomputed layer-0 gates; whh_all:(L,hp,4hp) bf16;
    wih_rest:(L-1,hp,4hp) bf16 / bias_rest:(L-1,1,4hp) f32 (or None when L==1).
    Returns the final layer hidden sequence (T, bp, hp) f32."""
    in_specs = [
        pl.BlockSpec((seq_len, bc, 4 * hp), lambda i: (0, i, 0)),
        pl.BlockSpec((num_layers, hp, 4 * hp), lambda i: (0, 0, 0)),
    ]
    args = [gx0, whh_all]
    if num_layers > 1:
        in_specs += [
            pl.BlockSpec((num_layers - 1, hp, 4 * hp), lambda i: (0, 0, 0)),
            pl.BlockSpec((num_layers - 1, 1, 4 * hp), lambda i: (0, 0, 0)),
        ]
        args += [wih_rest, bias_rest]

    return pl.pallas_call(
        functools.partial(_fused_lstm_kernel, seq_len=seq_len,
                          num_layers=num_layers),
        out_shape=jax.ShapeDtypeStruct((seq_len, bp, hp), jnp.float32),
        grid_spec=pltpu.PrefetchScalarGridSpec(
            num_scalar_prefetch=0,
            grid=(bp // bc,),                     # batch chunks -> megacore
            in_specs=in_specs,
            out_specs=pl.BlockSpec((seq_len, bc, hp), lambda i: (0, i, 0)),
            scratch_shapes=[
                pltpu.VMEM((bc, hp), jnp.float32),   # h state (per chunk)
                pltpu.VMEM((bc, hp), jnp.float32),   # c state (per chunk)
            ],
        ),
        compiler_params=pltpu.CompilerParams(
            dimension_semantics=("parallel",),
            vmem_limit_bytes=VMEM_LIMIT_BYTES),
    )(*args)


# ----------------------------------------------------------------------------
# Parameter padding helpers (gate blocks aligned to 128 lanes) -- run ONCE at
# parameter-load time via prepare_params, never inside the jitted forward.
# ----------------------------------------------------------------------------
def _pad_gate_matrix(w_t, h, hp, rows_p=None):
    """(rows, 4h) -> (rows_p, 4hp): gate k's h real columns placed at k*hp."""
    rows = w_t.shape[0]
    rows_p = rows if rows_p is None else rows_p
    out = jnp.zeros((rows_p, 4 * hp), jnp.float32)
    for k in range(4):
        out = out.at[:rows, k * hp:k * hp + h].set(w_t[:, k * h:(k + 1) * h])
    return out


def _pad_gate_bias(bias, h, hp):
    out = jnp.zeros((4 * hp,), jnp.float32)
    for k in range(4):
        out = out.at[k * hp:k * hp + h].set(bias[k * h:(k + 1) * h])
    return out


def prepare_params(raw):
    """One-time (outside jit) weight prep: gate padding, stacking, bf16 casts,
    lin_w row padding to hp."""
    enc = raw["encoder"]
    enc_p = {
        "conv_w": enc["conv_w"].astype(jnp.float32),   # small K=9*Cin; keep f32
        "conv_b": enc["conv_b"].astype(jnp.float32),
        "fc_w": enc["fc_w"].astype(MATMUL_DTYPE),
        "fc_b": enc["fc_b"].astype(jnp.float32),
    }

    dec = raw["decoder"]
    lstm = dec["lstm"]
    num_layers = len(lstm)
    hidden = lstm[0]["w_hh"].shape[1]
    hp = _round_up(hidden, 128)
    vocab = dec["lin_w"].shape[1]

    w_ih0_p = _pad_gate_matrix(lstm[0]["w_ih"].T, hidden, hp).astype(MATMUL_DTYPE)
    b0_p = _pad_gate_bias(lstm[0]["b_ih"] + lstm[0]["b_hh"], hidden, hp)
    whh_all = jnp.stack([_pad_gate_matrix(l["w_hh"].T, hidden, hp, rows_p=hp)
                         for l in lstm]).astype(MATMUL_DTYPE)
    lin_w_p = (jnp.zeros((hp, vocab), jnp.float32)
               .at[:hidden].set(dec["lin_w"]).astype(MATMUL_DTYPE))

    dec_p = {
        "embed": dec["embed"].astype(jnp.float32),
        "w_ih0_p": w_ih0_p,
        "b0_p": b0_p,
        "whh_all": whh_all,
        "lin_w_p": lin_w_p,
        "lin_b": dec["lin_b"].astype(jnp.float32),
    }
    if num_layers > 1:
        dec_p["wih_rest"] = jnp.stack(
            [_pad_gate_matrix(l["w_ih"].T, hidden, hp, rows_p=hp)
             for l in lstm[1:]]).astype(MATMUL_DTYPE)
        dec_p["bias_rest"] = jnp.stack(
            [_pad_gate_bias(l["b_ih"] + l["b_hh"], hidden, hp).reshape(1, 4 * hp)
             for l in lstm[1:]])
    return {"encoder": enc_p, "decoder": dec_p}


# ----------------------------------------------------------------------------
# Model glue (im2col, embedding lookup) in plain JAX
# ----------------------------------------------------------------------------
def im2col_3x3_same(images):
    """NCHW (B,Cin,H,W) -> lane-dense patches (B, H*W, 9*Cin) for 3x3/s1/p1."""
    B, Cin, H, W = images.shape
    x = jnp.transpose(images, (0, 2, 3, 1))                      # NHWC
    xp = jnp.pad(x, ((0, 0), (1, 1), (1, 1), (0, 0)))
    cols = [xp[:, ky:ky + H, kx:kx + W, :]
            for ky in range(3) for kx in range(3)]
    patches = jnp.concatenate(cols, axis=-1)                     # (B,H,W,9*Cin)
    # TODO(synk): fuse the 9 shifted-window gathers into the conv kernel so the
    # 9x-expanded patch tensor never hits HBM at real image sizes.
    return patches.reshape(B, H * W, 9 * Cin)


def encoder_cnn_forward(images, enc):
    """EncoderCNN: (stand-in backbone conv+GAP) -> fc(embed) -> ReLU -> dropout."""
    patches = im2col_3x3_same(images)                            # (B, S, 9*Cin)
    pooled = pallas_conv_gap(patches, enc["conv_w"], enc["conv_b"])
    # EncoderCNN.forward: dropout(relu(inception.fc(...))); dropout is identity
    return pallas_linear(pooled, enc["fc_w"], enc["fc_b"], relu=True)


def decoder_rnn_forward(features, captions, dec):
    """DecoderRNN: embed -> cat(features, embeds) -> num_layers LSTM -> Linear."""
    # TODO(synk): embedding gather + concat stay in plain JAX; they could be
    # folded into the gate-precompute kernel via scalar-prefetched caption ids.
    embeds = jnp.take(dec["embed"], captions, axis=0)            # (T, B, E)
    x = jnp.concatenate([features[None, :, :], embeds], axis=0)  # (T+1, B, E)
    seq_len, batch, embed = x.shape

    num_layers, hp, _ = dec["whh_all"].shape
    vocab = dec["lin_w_p"].shape[1]

    # Batch chunking: sublane-aligned, >=2 chunks for larger batches so v7x's
    # second TensorCore gets work ("parallel" grid axis in the LSTM kernel).
    bc = 32 if batch > 32 else _round_up(batch, 8)
    bp = _round_up(batch, bc)

    # Hoisted layer-0 input projection: one tiled matmul over all time steps.
    x_pad = jnp.pad(x, ((0, 0), (0, bp - batch), (0, 0)))
    gx0 = pallas_linear(x_pad.reshape(seq_len * bp, embed),
                        dec["w_ih0_p"], dec["b0_p"])
    gx0 = gx0.reshape(seq_len, bp, 4 * hp)

    hseq = pallas_fused_lstm(gx0, dec["whh_all"],
                             dec.get("wih_rest"), dec.get("bias_rest"),
                             seq_len=seq_len, bp=bp, bc=bc, hp=hp,
                             num_layers=num_layers)              # (T, bp, hp)

    # Padded slab straight into the logits matmul (lin_w rows zero-padded to hp);
    # only the final logits are sliced back to (T, B, vocab).
    logits = pallas_linear(hseq.reshape(seq_len * bp, hp),
                           dec["lin_w_p"], dec["lin_b"])
    return logits.reshape(seq_len, bp, vocab)[:, :batch, :]


def cnn_to_rnn_forward(images, captions, params):
    features = encoder_cnn_forward(images, params["encoder"])
    return decoder_rnn_forward(features, captions, params["decoder"])


# ----------------------------------------------------------------------------
# Deterministic parameter construction (PyTorch-layout raw weights)
# ----------------------------------------------------------------------------
def make_params(key, *, cin, c_feat, embed_size, hidden_size, vocab_size,
                num_layers):
    ks = iter(jax.random.split(key, 16 + 4 * num_layers))

    def nrm(shape, scale=0.02):
        return (scale * jax.random.normal(next(ks), shape)).astype(jnp.float32)

    enc = {
        "conv_w": nrm((cin * 9, c_feat)),        # im2col matmul layout
        "conv_b": nrm((c_feat,)),
        "fc_w": nrm((c_feat, embed_size)),       # inception.fc: in_features->embed
        "fc_b": nrm((embed_size,)),
    }
    lstm_layers = []
    for l in range(num_layers):
        in_dim = embed_size if l == 0 else hidden_size
        lstm_layers.append({
            "w_ih": nrm((4 * hidden_size, in_dim)),
            "w_hh": nrm((4 * hidden_size, hidden_size)),
            "b_ih": nrm((4 * hidden_size,)),
            "b_hh": nrm((4 * hidden_size,)),
        })
    dec = {
        "embed": nrm((vocab_size, embed_size)),
        "lstm": lstm_layers,
        "lin_w": nrm((hidden_size, vocab_size)),
        "lin_b": nrm((vocab_size,)),
    }
    return {"encoder": enc, "decoder": dec}


# ----------------------------------------------------------------------------
if __name__ == "__main__":
    # small shapes consistent with the module
    B, CIN, HW = 2, 3, 16            # images: NCHW
    T = 8                            # caption length
    EMBED, HIDDEN, VOCAB, NUM_LAYERS = 32, 32, 128, 2
    C_FEAT = 128                     # stand-in for inception.fc.in_features

    key = jax.random.PRNGKey(0)
    k_img, k_cap, k_par = jax.random.split(key, 3)

    images = jax.random.normal(k_img, (B, CIN, HW, HW), dtype=jnp.float32)
    captions = jax.random.randint(k_cap, (T, B), 0, VOCAB, dtype=jnp.int32)
    raw_params = make_params(k_par, cin=CIN, c_feat=C_FEAT, embed_size=EMBED,
                             hidden_size=HIDDEN, vocab_size=VOCAB,
                             num_layers=NUM_LAYERS)
    params = prepare_params(raw_params)          # one-time weight prep (no jit)

    forward = jax.jit(cnn_to_rnn_forward)
    outputs = jax.block_until_ready(forward(images, captions, params))

    assert outputs.shape == (T + 1, B, VOCAB), outputs.shape
    assert bool(jnp.all(jnp.isfinite(outputs)))
    print("KERNEL_OK")
</pallas_src>

<mosaic_0001>
module attributes {stable_mosaic.version = 11 : i64} {
  func.func @_conv_gap_kernel(%arg0: i32, %arg1: i32, %arg2: memref<1x128x27xf32, #tpu.memory_space<vmem>>, %arg3: memref<27x128xf32, #tpu.memory_space<vmem>>, %arg4: memref<1x128xf32, #tpu.memory_space<vmem>>, %arg5: memref<1x1x128xf32, #tpu.memory_space<vmem>>, %arg6: memref<8x128xf32, #tpu.memory_space<vmem>>) attributes {dimension_semantics = [#tpu.dimension_semantics<parallel>, #tpu.dimension_semantics<arbitrary>], iteration_bounds = array<i64: 2, 2>, scalar_prefetch = 0 : i64, scratch_operands = 1 : i64, tpu.core_type = #tpu.core_type<tc>, window_params = [{transform_indices = @transform_0, window_bounds = array<i64: 1, 128, 27>}, {pipeline_mode = #tpu.pipeline_mode<synchronous>, transform_indices = @transform_1, window_bounds = array<i64: 27, 128>}, {pipeline_mode = #tpu.pipeline_mode<synchronous>, transform_indices = @transform_2, window_bounds = array<i64: 1, 128>}, {transform_indices = @transform_3, window_bounds = array<i64: 1, 1, 128>}]} {
    %c0_i32 = arith.constant 0 : i32
    %0 = arith.cmpi eq, %arg1, %c0_i32 : i32
    %1 = arith.extui %0 : i1 to i32
    %c0_i32_0 = arith.constant 0 : i32
    %2 = arith.cmpi ne, %1, %c0_i32_0 : i32
    scf.if %2 {
      %cst_14 = arith.constant 0.000000e+00 : f32
      %20 = vector.broadcast %cst_14 : f32 to vector<8x128xf32>
      %c0_15 = arith.constant 0 : index
      %c0_16 = arith.constant 0 : index
      %21 = vector.load %arg6[%c0_15, %c0_16] : memref<8x128xf32, #tpu.memory_space<vmem>>, vector<8x128xf32>
      tpu.vector_store %arg6[%c0_15, %c0_16], %20 {strides = array<i32>} : memref<8x128xf32, #tpu.memory_space<vmem>>, vector<8x128xf32>,
    } else {
    }
    %c0 = arith.constant 0 : index
    %c0_1 = arith.constant 0 : index
    %c0_2 = arith.constant 0 : index
    %3 = vector.load %arg2[%c0, %c0_1, %c0_2] : memref<1x128x27xf32, #tpu.memory_space<vmem>>, vector<1x128x27xf32>
    %4 = vector.shape_cast %3 : vector<1x128x27xf32> to vector<128x27xf32>
    %c0_3 = arith.constant 0 : index
    %c0_4 = arith.constant 0 : index
    %5 = vector.load %arg3[%c0_3, %c0_4] : memref<27x128xf32, #tpu.memory_space<vmem>>, vector<27x128xf32>
    %cst = arith.constant dense<0.000000e+00> : vector<128x128xf32>
    %6 = tpu.matmul %4, %5, %cst {dimension_numbers = #tpu.dot_dimension_numbers<[1], [0], [0], [1], [0, 0, 1, 1], [], []>} : vector<128x27xf32>, vector<27x128xf32>, vector<128x128xf32> -> vector<128x128xf32>
    %c0_5 = arith.constant 0 : index
    %c0_6 = arith.constant 0 : index
    %7 = vector.load %arg4[%c0_5, %c0_6] : memref<1x128xf32, #tpu.memory_space<vmem>>, vector<1x128xf32>
    %8 = vector.broadcast %7 : vector<1x128xf32> to vector<128x128xf32>
    %9 = arith.addf %6, %8 : vector<128x128xf32>
    %cst_7 = arith.constant 0.000000e+00 : f32
    %10 = vector.broadcast %cst_7 : f32 to vector<128x128xf32>
    %11 = arith.maximumf %9, %10 : vector<128x128xf32>
    %c0_8 = arith.constant 0 : index
    %c0_9 = arith.constant 0 : index
    %12 = vector.load %arg6[%c0_8, %c0_9] : memref<8x128xf32, #tpu.memory_space<vmem>>, vector<8x128xf32>
    %13 = vector.shape_cast %11 : vector<128x128xf32> to vector<16x8x128xf32>
    %cst_10 = arith.constant dense<0.000000e+00> : vector<8x128xf32>
    %14 = vector.multi_reduction <add>, %13, %cst_10 [0] : vector<16x8x128xf32> to vector<8x128xf32>
    %15 = arith.addf %12, %14 : vector<8x128xf32>
    %c0_11 = arith.constant 0 : index
    %c0_12 = arith.constant 0 : index
    %16 = vector.load %arg6[%c0_11, %c0_12] : memref<8x128xf32, #tpu.memory_space<vmem>>, vector<8x128xf32>
    tpu.vector_store %arg6[%c0_11, %c0_12], %15 {strides = array<i32>} : memref<8x128xf32, #tpu.memory_space<vmem>>, vector<8x128xf32>,
    %c1_i32 = arith.constant 1 : i32
    %17 = arith.cmpi eq, %arg1, %c1_i32 : i32
    %18 = arith.extui %17 : i1 to i32
    %c0_i32_13 = arith.constant 0 : i32
    %19 = arith.cmpi ne, %18, %c0_i32_13 : i32
    scf.if %19 {
      %c0_14 = arith.constant 0 : index
      %c0_15 = arith.constant 0 : index
      %20 = vector.load %arg6[%c0_14, %c0_15] : memref<8x128xf32, #tpu.memory_space<vmem>>, vector<8x128xf32>
      %cst_16 = arith.constant dense<0.000000e+00> : vector<128xf32>
      %21 = vector.multi_reduction <add>, %20, %cst_16 [0] : vector<8x128xf32> to vector<128xf32>
      %22 = vector.shape_cast %21 : vector<128xf32> to vector<1x128xf32>
      %cst_17 = arith.constant 3.906250e-03 : f32
      %23 = vector.broadcast %cst_17 : f32 to vector<1x128xf32>
      %24 = arith.mulf %22, %23 : vector<1x128xf32>
      %c0_18 = arith.constant 0 : index
      %c0_19 = arith.constant 0 : index
      %c0_20 = arith.constant 0 : index
      %25 = vector.load %arg5[%c0_18, %c0_19, %c0_20] : memref<1x1x128xf32, #tpu.memory_space<vmem>>, vector<1x1x128xf32>
      %26 = vector.shape_cast %25 : vector<1x1x128xf32> to vector<1x128xf32>
      %27 = vector.shape_cast %24 : vector<1x128xf32> to vector<1x1x128xf32>
      tpu.vector_store %arg5[%c0_18, %c0_19, %c0_20], %27 {strides = array<i32>} : memref<1x1x128xf32, #tpu.memory_space<vmem>>, vector<1x1x128xf32>,
    } else {
    }
    return
  }
  func.func @transform_0(%arg0: i32, %arg1: i32) -> (i32, i32, i32) {
    %c0_i32 = arith.constant 0 : i32
    %c0_i32_0 = arith.constant 0 : i32
    return %arg0, %arg1, %c0_i32 : i32, i32, i32
  }
  func.func @transform_1(%arg0: i32, %arg1: i32) -> (i32, i32) {
    %c0_i32 = arith.constant 0 : i32
    %c0_i32_0 = arith.constant 0 : i32
    %c0_i32_1 = arith.constant 0 : i32
    return %c0_i32, %c0_i32_0 : i32, i32
  }
  func.func @transform_2(%arg0: i32, %arg1: i32) -> (i32, i32) {
    %c0_i32 = arith.constant 0 : i32
    %c0_i32_0 = arith.constant 0 : i32
    %c0_i32_1 = arith.constant 0 : i32
    return %c0_i32, %c0_i32_0 : i32, i32
  }
  func.func @transform_3(%arg0: i32, %arg1: i32) -> (i32, i32, i32) {
    %c0_i32 = arith.constant 0 : i32
    %c0_i32_0 = arith.constant 0 : i32
    %c0_i32_1 = arith.constant 0 : i32
    return %arg0, %c0_i32, %c0_i32_0 : i32, i32, i32
  }
}

module attributes {stable_mosaic.version = 11 : i64} {
  func.func @_matmul_kernel(%arg0: i32, %arg1: i32, %arg2: i32, %arg3: memref<8x128xbf16, #tpu.memory_space<vmem>>, %arg4: memref<128x128xbf16, #tpu.memory_space<vmem>>, %arg5: memref<1x128xf32, #tpu.memory_space<vmem>>, %arg6: memref<8x128xf32, #tpu.memory_space<vmem>>, %arg7: memref<8x128xf32, #tpu.memory_space<vmem>>) attributes {dimension_semantics = [#tpu.dimension_semantics<parallel>, #tpu.dimension_semantics<parallel>, #tpu.dimension_semantics<arbitrary>], iteration_bounds = array<i64: 1, 1, 1>, scalar_prefetch = 0 : i64, scratch_operands = 1 : i64, tpu.core_type = #tpu.core_type<tc>, window_params = [{transform_indices = @transform_0, window_bounds = array<i64: 8, 128>}, {transform_indices = @transform_1, window_bounds = array<i64: 128, 128>}, {transform_indices = @transform_2, window_bounds = array<i64: 1, 128>}, {transform_indices = @transform_3, window_bounds = array<i64: 8, 128>}]} {
    %c0_i32 = arith.constant 0 : i32
    %0 = arith.cmpi eq, %arg2, %c0_i32 : i32
    %1 = arith.extui %0 : i1 to i32
    %c0_i32_0 = arith.constant 0 : i32
    %2 = arith.cmpi ne, %1, %c0_i32_0 : i32
    scf.if %2 {
      %cst_10 = arith.constant 0.000000e+00 : f32
      %12 = vector.broadcast %cst_10 : f32 to vector<8x128xf32>
      %c0_11 = arith.constant 0 : index
      %c0_12 = arith.constant 0 : index
      %13 = vector.load %arg7[%c0_11, %c0_12] : memref<8x128xf32, #tpu.memory_space<vmem>>, vector<8x128xf32>
      tpu.vector_store %arg7[%c0_11, %c0_12], %12 {strides = array<i32>} : memref<8x128xf32, #tpu.memory_space<vmem>>, vector<8x128xf32>,
    } else {
    }
    %c0 = arith.constant 0 : index
    %c0_1 = arith.constant 0 : index
    %3 = vector.load %arg7[%c0, %c0_1] : memref<8x128xf32, #tpu.memory_space<vmem>>, vector<8x128xf32>
    %c0_2 = arith.constant 0 : index
    %c0_3 = arith.constant 0 : index
    %4 = vector.load %arg3[%c0_2, %c0_3] : memref<8x128xbf16, #tpu.memory_space<vmem>>, vector<8x128xbf16>
    %c0_4 = arith.constant 0 : index
    %c0_5 = arith.constant 0 : index
    %5 = vector.load %arg4[%c0_4, %c0_5] : memref<128x128xbf16, #tpu.memory_space<vmem>>, vector<128x128xbf16>
    %cst = arith.constant dense<0.000000e+00> : vector<8x128xf32>
    %6 = tpu.matmul %4, %5, %cst {dimension_numbers = #tpu.dot_dimension_numbers<[1], [0], [0], [1], [0, 0, 1, 1], [], []>} : vector<8x128xbf16>, vector<128x128xbf16>, vector<8x128xf32> -> vector<8x128xf32>
    %7 = arith.addf %3, %6 : vector<8x128xf32>
    %c0_6 = arith.constant 0 : index
    %c0_7 = arith.constant 0 : index
    %8 = vector.load %arg7[%c0_6, %c0_7] : memref<8x128xf32, #tpu.memory_space<vmem>>, vector<8x128xf32>
    tpu.vector_store %arg7[%c0_6, %c0_7], %7 {strides = array<i32>} : memref<8x128xf32, #tpu.memory_space<vmem>>, vector<8x128xf32>,
    %c0_i32_8 = arith.constant 0 : i32
    %9 = arith.cmpi eq, %arg2, %c0_i32_8 : i32
    %10 = arith.extui %9 : i1 to i32
    %c0_i32_9 = arith.constant 0 : i32
    %11 = arith.cmpi ne, %10, %c0_i32_9 : i32
    scf.if %11 {
      %c0_10 = arith.constant 0 : index
      %c0_11 = arith.constant 0 : index
      %12 = vector.load %arg7[%c0_10, %c0_11] : memref<8x128xf32, #tpu.memory_space<vmem>>, vector<8x128xf32>
      %c0_12 = arith.constant 0 : index
      %c0_13 = arith.constant 0 : index
      %13 = vector.load %arg5[%c0_12, %c0_13] : memref<1x128xf32, #tpu.memory_space<vmem>>, vector<1x128xf32>
      %14 = vector.broadcast %13 : vector<1x128xf32> to vector<8x128xf32>
      %15 = arith.addf %12, %14 : vector<8x128xf32>
      %cst_14 = arith.constant 0.000000e+00 : f32
      %16 = vector.broadcast %cst_14 : f32 to vector<8x128xf32>
      %17 = arith.maximumf %15, %16 : vector<8x128xf32>
      %c0_15 = arith.constant 0 : index
      %c0_16 = arith.constant 0 : index
      %18 = vector.load %arg6[%c0_15, %c0_16] : memref<8x128xf32, #tpu.memory_space<vmem>>, vector<8x128xf32>
      tpu.vector_store %arg6[%c0_15, %c0_16], %17 {strides = array<i32>} : memref<8x128xf32, #tpu.memory_space<vmem>>, vector<8x128xf32>,
    } else {
    }
    return
  }
  func.func @transform_0(%arg0: i32, %arg1: i32, %arg2: i32) -> (i32, i32) {
    %c0_i32 = arith.constant 0 : i32
    return %arg0, %arg2 : i32, i32
  }
  func.func @transform_1(%arg0: i32, %arg1: i32, %arg2: i32) -> (i32, i32) {
    %c0_i32 = arith.constant 0 : i32
    return %arg2, %arg1 : i32, i32
  }
  func.func @transform_2(%arg0: i32, %arg1: i32, %arg2: i32) -> (i32, i32) {
    %c0_i32 = arith.constant 0 : i32
    %c0_i32_0 = arith.constant 0 : i32
    return %c0_i32, %arg1 : i32, i32
  }
  func.func @transform_3(%arg0: i32, %arg1: i32, %arg2: i32) -> (i32, i32) {
    %c0_i32 = arith.constant 0 : i32
    return %arg0, %arg1 : i32, i32
  }
}

module attributes {stable_mosaic.version = 11 : i64} {
  func.func @_matmul_kernel(%arg0: i32, %arg1: i32, %arg2: i32, %arg3: memref<72x128xbf16, #tpu.memory_space<vmem>>, %arg4: memref<128x512xbf16, #tpu.memory_space<vmem>>, %arg5: memref<1x512xf32, #tpu.memory_space<vmem>>, %arg6: memref<72x512xf32, #tpu.memory_space<vmem>>, %arg7: memref<72x512xf32, #tpu.memory_space<vmem>>) attributes {dimension_semantics = [#tpu.dimension_semantics<parallel>, #tpu.dimension_semantics<parallel>, #tpu.dimension_semantics<arbitrary>], iteration_bounds = array<i64: 1, 1, 1>, scalar_prefetch = 0 : i64, scratch_operands = 1 : i64, tpu.core_type = #tpu.core_type<tc>, window_params = [{transform_indices = @transform_0, window_bounds = array<i64: 72, 128>}, {transform_indices = @transform_1, window_bounds = array<i64: 128, 512>}, {transform_indices = @transform_2, window_bounds = array<i64: 1, 512>}, {transform_indices = @transform_3, window_bounds = array<i64: 72, 512>}]} {
    %c0_i32 = arith.constant 0 : i32
    %0 = arith.cmpi eq, %arg2, %c0_i32 : i32
    %1 = arith.extui %0 : i1 to i32
    %c0_i32_0 = arith.constant 0 : i32
    %2 = arith.cmpi ne, %1, %c0_i32_0 : i32
    scf.if %2 {
      %cst_10 = arith.constant 0.000000e+00 : f32
      %12 = vector.broadcast %cst_10 : f32 to vector<72x512xf32>
      %c0_11 = arith.constant 0 : index
      %c0_12 = arith.constant 0 : index
      %13 = vector.load %arg7[%c0_11, %c0_12] : memref<72x512xf32, #tpu.memory_space<vmem>>, vector<72x512xf32>
      tpu.vector_store %arg7[%c0_11, %c0_12], %12 {strides = array<i32>} : memref<72x512xf32, #tpu.memory_space<vmem>>, vector<72x512xf32>,
    } else {
    }
    %c0 = arith.constant 0 : index
    %c0_1 = arith.constant 0 : index
    %3 = vector.load %arg7[%c0, %c0_1] : memref<72x512xf32, #tpu.memory_space<vmem>>, vector<72x512xf32>
    %c0_2 = arith.constant 0 : index
    %c0_3 = arith.constant 0 : index
    %4 = vector.load %arg3[%c0_2, %c0_3] : memref<72x128xbf16, #tpu.memory_space<vmem>>, vector<72x128xbf16>
    %c0_4 = arith.constant 0 : index
    %c0_5 = arith.constant 0 : index
    %5 = vector.load %arg4[%c0_4, %c0_5] : memref<128x512xbf16, #tpu.memory_space<vmem>>, vector<128x512xbf16>
    %cst = arith.constant dense<0.000000e+00> : vector<72x512xf32>
    %6 = tpu.matmul %4, %5, %cst {dimension_numbers = #tpu.dot_dimension_numbers<[1], [0], [0], [1], [0, 0, 1, 1], [], []>} : vector<72x128xbf16>, vector<128x512xbf16>, vector<72x512xf32> -> vector<72x512xf32>
    %7 = arith.addf %3, %6 : vector<72x512xf32>
    %c0_6 = arith.constant 0 : index
    %c0_7 = arith.constant 0 : index
    %8 = vector.load %arg7[%c0_6, %c0_7] : memref<72x512xf32, #tpu.memory_space<vmem>>, vector<72x512xf32>
    tpu.vector_store %arg7[%c0_6, %c0_7], %7 {strides = array<i32>} : memref<72x512xf32, #tpu.memory_space<vmem>>, vector<72x512xf32>,
    %c0_i32_8 = arith.constant 0 : i32
    %9 = arith.cmpi eq, %arg2, %c0_i32_8 : i32
    %10 = arith.extui %9 : i1 to i32
    %c0_i32_9 = arith.constant 0 : i32
    %11 = arith.cmpi ne, %10, %c0_i32_9 : i32
    scf.if %11 {
      %c0_10 = arith.constant 0 : index
      %c0_11 = arith.constant 0 : index
      %12 = vector.load %arg7[%c0_10, %c0_11] : memref<72x512xf32, #tpu.memory_space<vmem>>, vector<72x512xf32>
      %c0_12 = arith.constant 0 : index
      %c0_13 = arith.constant 0 : index
      %13 = vector.load %arg5[%c0_12, %c0_13] : memref<1x512xf32, #tpu.memory_space<vmem>>, vector<1x512xf32>
      %14 = vector.broadcast %13 : vector<1x512xf32> to vector<72x512xf32>
      %15 = arith.addf %12, %14 : vector<72x512xf32>
      %c0_14 = arith.constant 0 : index
      %c0_15 = arith.constant 0 : index
      %16 = vector.load %arg6[%c0_14, %c0_15] : memref<72x512xf32, #tpu.memory_space<vmem>>, vector<72x512xf32>
      tpu.vector_store %arg6[%c0_14, %c0_15], %15 {strides = array<i32>} : memref<72x512xf32, #tpu.memory_space<vmem>>, vector<72x512xf32>,
    } else {
    }
    return
  }
  func.func @transform_0(%arg0: i32, %arg1: i32, %arg2: i32) -> (i32, i32) {
    %c0_i32 = arith.constant 0 : i32
    return %arg0, %arg2 : i32, i32
  }
  func.func @transform_1(%arg0: i32, %arg1: i32, %arg2: i32) -> (i32, i32) {
    %c0_i32 = arith.constant 0 : i32
    return %arg2, %arg1 : i32, i32
  }
  func.func @transform_2(%arg0: i32, %arg1: i32, %arg2: i32) -> (i32, i32) {
    %c0_i32 = arith.constant 0 : i32
    %c0_i32_0 = arith.constant 0 : i32
    return %c0_i32, %arg1 : i32, i32
  }
  func.func @transform_3(%arg0: i32, %arg1: i32, %arg2: i32) -> (i32, i32) {
    %c0_i32 = arith.constant 0 : i32
    return %arg0, %arg1 : i32, i32
  }
}

module attributes {stable_mosaic.version = 11 : i64} {
  func.func @_matmul_kernel(%arg0: i32, %arg1: i32, %arg2: i32, %arg3: memref<72x128xbf16, #tpu.memory_space<vmem>>, %arg4: memref<128x128xbf16, #tpu.memory_space<vmem>>, %arg5: memref<1x128xf32, #tpu.memory_space<vmem>>, %arg6: memref<72x128xf32, #tpu.memory_space<vmem>>, %arg7: memref<72x128xf32, #tpu.memory_space<vmem>>) attributes {dimension_semantics = [#tpu.dimension_semantics<parallel>, #tpu.dimension_semantics<parallel>, #tpu.dimension_semantics<arbitrary>], iteration_bounds = array<i64: 1, 1, 1>, scalar_prefetch = 0 : i64, scratch_operands = 1 : i64, tpu.core_type = #tpu.core_type<tc>, window_params = [{transform_indices = @transform_0, window_bounds = array<i64: 72, 128>}, {transform_indices = @transform_1, window_bounds = array<i64: 128, 128>}, {transform_indices = @transform_2, window_bounds = array<i64: 1, 128>}, {transform_indices = @transform_3, window_bounds = array<i64: 72, 128>}]} {
    %c0_i32 = arith.constant 0 : i32
    %0 = arith.cmpi eq, %arg2, %c0_i32 : i32
    %1 = arith.extui %0 : i1 to i32
    %c0_i32_0 = arith.constant 0 : i32
    %2 = arith.cmpi ne, %1, %c0_i32_0 : i32
    scf.if %2 {
      %cst_10 = arith.constant 0.000000e+00 : f32
      %12 = vector.broadcast %cst_10 : f32 to vector<72x128xf32>
      %c0_11 = arith.constant 0 : index
      %c0_12 = arith.constant 0 : index
      %13 = vector.load %arg7[%c0_11, %c0_12] : memref<72x128xf32, #tpu.memory_space<vmem>>, vector<72x128xf32>
      tpu.vector_store %arg7[%c0_11, %c0_12], %12 {strides = array<i32>} : memref<72x128xf32, #tpu.memory_space<vmem>>, vector<72x128xf32>,
    } else {
    }
    %c0 = arith.constant 0 : index
    %c0_1 = arith.constant 0 : index
    %3 = vector.load %arg7[%c0, %c0_1] : memref<72x128xf32, #tpu.memory_space<vmem>>, vector<72x128xf32>
    %c0_2 = arith.constant 0 : index
    %c0_3 = arith.constant 0 : index
    %4 = vector.load %arg3[%c0_2, %c0_3] : memref<72x128xbf16, #tpu.memory_space<vmem>>, vector<72x128xbf16>
    %c0_4 = arith.constant 0 : index
    %c0_5 = arith.constant 0 : index
    %5 = vector.load %arg4[%c0_4, %c0_5] : memref<128x128xbf16, #tpu.memory_space<vmem>>, vector<128x128xbf16>
    %cst = arith.constant dense<0.000000e+00> : vector<72x128xf32>
    %6 = tpu.matmul %4, %5, %cst {dimension_numbers = #tpu.dot_dimension_numbers<[1], [0], [0], [1], [0, 0, 1, 1], [], []>} : vector<72x128xbf16>, vector<128x128xbf16>, vector<72x128xf32> -> vector<72x128xf32>
    %7 = arith.addf %3, %6 : vector<72x128xf32>
    %c0_6 = arith.constant 0 : index
    %c0_7 = arith.constant 0 : index
    %8 = vector.load %arg7[%c0_6, %c0_7] : memref<72x128xf32, #tpu.memory_space<vmem>>, vector<72x128xf32>
    tpu.vector_store %arg7[%c0_6, %c0_7], %7 {strides = array<i32>} : memref<72x128xf32, #tpu.memory_space<vmem>>, vector<72x128xf32>,
    %c0_i32_8 = arith.constant 0 : i32
    %9 = arith.cmpi eq, %arg2, %c0_i32_8 : i32
    %10 = arith.extui %9 : i1 to i32
    %c0_i32_9 = arith.constant 0 : i32
    %11 = arith.cmpi ne, %10, %c0_i32_9 : i32
    scf.if %11 {
      %c0_10 = arith.constant 0 : index
      %c0_11 = arith.constant 0 : index
      %12 = vector.load %arg7[%c0_10, %c0_11] : memref<72x128xf32, #tpu.memory_space<vmem>>, vector<72x128xf32>
      %c0_12 = arith.constant 0 : index
      %c0_13 = arith.constant 0 : index
      %13 = vector.load %arg5[%c0_12, %c0_13] : memref<1x128xf32, #tpu.memory_space<vmem>>, vector<1x128xf32>
      %14 = vector.broadcast %13 : vector<1x128xf32> to vector<72x128xf32>
      %15 = arith.addf %12, %14 : vector<72x128xf32>
      %c0_14 = arith.constant 0 : index
      %c0_15 = arith.constant 0 : index
      %16 = vector.load %arg6[%c0_14, %c0_15] : memref<72x128xf32, #tpu.memory_space<vmem>>, vector<72x128xf32>
      tpu.vector_store %arg6[%c0_14, %c0_15], %15 {strides = array<i32>} : memref<72x128xf32, #tpu.memory_space<vmem>>, vector<72x128xf32>,
    } else {
    }
    return
  }
  func.func @transform_0(%arg0: i32, %arg1: i32, %arg2: i32) -> (i32, i32) {
    %c0_i32 = arith.constant 0 : i32
    return %arg0, %arg2 : i32, i32
  }
  func.func @transform_1(%arg0: i32, %arg1: i32, %arg2: i32) -> (i32, i32) {
    %c0_i32 = arith.constant 0 : i32
    return %arg2, %arg1 : i32, i32
  }
  func.func @transform_2(%arg0: i32, %arg1: i32, %arg2: i32) -> (i32, i32) {
    %c0_i32 = arith.constant 0 : i32
    %c0_i32_0 = arith.constant 0 : i32
    return %c0_i32, %arg1 : i32, i32
  }
  func.func @transform_3(%arg0: i32, %arg1: i32, %arg2: i32) -> (i32, i32) {
    %c0_i32 = arith.constant 0 : i32
    return %arg0, %arg1 : i32, i32
  }
}

module attributes {stable_mosaic.version = 11 : i64} {
  func.func @_fused_lstm_kernel(%arg0: i32, %arg1: memref<9x8x512xf32, #tpu.memory_space<vmem>>, %arg2: memref<2x128x512xbf16, #tpu.memory_space<vmem>>, %arg3: memref<1x128x512xbf16, #tpu.memory_space<vmem>>, %arg4: memref<1x1x512xf32, #tpu.memory_space<vmem>>, %arg5: memref<9x8x128xf32, #tpu.memory_space<vmem>>, %arg6: memref<8x128xf32, #tpu.memory_space<vmem>>, %arg7: memref<8x128xf32, #tpu.memory_space<vmem>>) attributes {dimension_semantics = [#tpu.dimension_semantics<parallel>], iteration_bounds = array<i64: 1>, scalar_prefetch = 0 : i64, scratch_operands = 2 : i64, tpu.core_type = #tpu.core_type<tc>, window_params = [{transform_indices = @transform_0, window_bounds = array<i64: 9, 8, 512>}, {pipeline_mode = #tpu.pipeline_mode<synchronous>, transform_indices = @transform_1, window_bounds = array<i64: 2, 128, 512>}, {pipeline_mode = #tpu.pipeline_mode<synchronous>, transform_indices = @transform_2, window_bounds = array<i64: 1, 128, 512>}, {pipeline_mode = #tpu.pipeline_mode<synchronous>, transform_indices = @transform_3, window_bounds = array<i64: 1, 1, 512>}, {transform_indices = @transform_4, window_bounds = array<i64: 9, 8, 128>}]} {
    %cst = arith.constant 0.000000e+00 : f32
    %0 = vector.broadcast %cst : f32 to vector<8x128xf32>
    %c0 = arith.constant 0 : index
    %c0_0 = arith.constant 0 : index
    %1 = vector.load %arg6[%c0, %c0_0] : memref<8x128xf32, #tpu.memory_space<vmem>>, vector<8x128xf32>
    tpu.vector_store %arg6[%c0, %c0_0], %0 {strides = array<i32>} : memref<8x128xf32, #tpu.memory_space<vmem>>, vector<8x128xf32>,
    %cst_1 = arith.constant 0.000000e+00 : f32
    %2 = vector.broadcast %cst_1 : f32 to vector<8x128xf32>
    %c0_2 = arith.constant 0 : index
    %c0_3 = arith.constant 0 : index
    %3 = vector.load %arg7[%c0_2, %c0_3] : memref<8x128xf32, #tpu.memory_space<vmem>>, vector<8x128xf32>
    tpu.vector_store %arg7[%c0_2, %c0_3], %2 {strides = array<i32>} : memref<8x128xf32, #tpu.memory_space<vmem>>, vector<8x128xf32>,
    %c0_i32 = arith.constant 0 : i32
    %4 = arith.index_cast %c0_i32 : i32 to index
    %c0_4 = arith.constant 0 : index
    %c0_5 = arith.constant 0 : index
    %5 = vector.load %arg1[%4, %c0_4, %c0_5] : memref<9x8x512xf32, #tpu.memory_space<vmem>>, vector<1x8x512xf32>
    %6 = vector.shape_cast %5 : vector<1x8x512xf32> to vector<8x512xf32>
    %c0_6 = arith.constant 0 : index
    %c0_7 = arith.constant 0 : index
    %7 = vector.load %arg6[%c0_6, %c0_7] : memref<8x128xf32, #tpu.memory_space<vmem>>, vector<8x128xf32>
    %8 = arith.truncf %7 : vector<8x128xf32> to vector<8x128xbf16>
    %c0_8 = arith.constant 0 : index
    %c0_9 = arith.constant 0 : index
    %c0_10 = arith.constant 0 : index
    %9 = vector.load %arg2[%c0_8, %c0_9, %c0_10] : memref<2x128x512xbf16, #tpu.memory_space<vmem>>, vector<1x128x512xbf16>
    %10 = vector.shape_cast %9 : vector<1x128x512xbf16> to vector<128x512xbf16>
    %cst_11 = arith.constant dense<0.000000e+00> : vector<8x512xf32>
    %11 = tpu.matmul %8, %10, %cst_11 {dimension_numbers = #tpu.dot_dimension_numbers<[1], [0], [0], [1], [0, 0, 1, 1], [], []>} : vector<8x128xbf16>, vector<128x512xbf16>, vector<8x512xf32> -> vector<8x512xf32>
    %12 = arith.addf %6, %11 : vector<8x512xf32>
    %13 = vector.extract_strided_slice %12 {offsets = [0, 0], sizes = [8, 128], strides = [1, 1]} : vector<8x512xf32> to vector<8x128xf32>
    %14 = arith.negf %13 : vector<8x128xf32>
    %15 = math.exp %14 : vector<8x128xf32>
    %cst_12 = arith.constant 1.000000e+00 : f32
    %16 = vector.broadcast %cst_12 : f32 to vector<8x128xf32>
    %17 = arith.addf %16, %15 : vector<8x128xf32>
    %18 = arith.divf %16, %17 : vector<8x128xf32>
    %19 = vector.extract_strided_slice %12 {offsets = [0, 128], sizes = [8, 128], strides = [1, 1]} : vector<8x512xf32> to vector<8x128xf32>
    %20 = arith.negf %19 : vector<8x128xf32>
    %21 = math.exp %20 : vector<8x128xf32>
    %cst_13 = arith.constant 1.000000e+00 : f32
    %22 = vector.broadcast %cst_13 : f32 to vector<8x128xf32>
    %23 = arith.addf %22, %21 : vector<8x128xf32>
    %24 = arith.divf %22, %23 : vector<8x128xf32>
    %25 = vector.extract_strided_slice %12 {offsets = [0, 256], sizes = [8, 128], strides = [1, 1]} : vector<8x512xf32> to vector<8x128xf32>
    %26 = math.tanh %25 : vector<8x128xf32>
    %27 = vector.extract_strided_slice %12 {offsets = [0, 384], sizes = [8, 128], strides = [1, 1]} : vector<8x512xf32> to vector<8x128xf32>
    %28 = arith.negf %27 : vector<8x128xf32>
    %29 = math.exp %28 : vector<8x128xf32>
    %cst_14 = arith.constant 1.000000e+00 : f32
    %30 = vector.broadcast %cst_14 : f32 to vector<8x128xf32>
    %31 = arith.addf %30, %29 : vector<8x128xf32>
    %32 = arith.divf %30, %31 : vector<8x128xf32>
    %c0_15 = arith.constant 0 : index
    %c0_16 = arith.constant 0 : index
    %33 = vector.load %arg7[%c0_15, %c0_16] : memref<8x128xf32, #tpu.memory_space<vmem>>, vector<8x128xf32>
    %34 = arith.mulf %24, %33 : vector<8x128xf32>
    %35 = arith.mulf %18, %26 : vector<8x128xf32>
    %36 = arith.addf %34, %35 : vector<8x128xf32>
    %37 = math.tanh %36 : vector<8x128xf32>
    %38 = arith.mulf %32, %37 : vector<8x128xf32>
    %c0_17 = arith.constant 0 : index
    %c0_18 = arith.constant 0 : index
    %39 = vector.load %arg7[%c0_17, %c0_18] : memref<8x128xf32, #tpu.memory_space<vmem>>, vector<8x128xf32>
    tpu.vector_store %arg7[%c0_17, %c0_18], %36 {strides = array<i32>} : memref<8x128xf32, #tpu.memory_space<vmem>>, vector<8x128xf32>,
    %c0_19 = arith.constant 0 : index
    %c0_20 = arith.constant 0 : index
    %40 = vector.load %arg6[%c0_19, %c0_20] : memref<8x128xf32, #tpu.memory_space<vmem>>, vector<8x128xf32>
    tpu.vector_store %arg6[%c0_19, %c0_20], %38 {strides = array<i32>} : memref<8x128xf32, #tpu.memory_space<vmem>>, vector<8x128xf32>,
    %41 = arith.index_cast %c0_i32 : i32 to index
    %c0_21 = arith.constant 0 : index
    %c0_22 = arith.constant 0 : index
    %42 = vector.load %arg5[%41, %c0_21, %c0_22] : memref<9x8x128xf32, #tpu.memory_space<vmem>>, vector<1x8x128xf32>
    %43 = vector.shape_cast %42 : vector<1x8x128xf32> to vector<8x128xf32>
    %44 = vector.shape_cast %38 : vector<8x128xf32> to vector<1x8x128xf32>
    tpu.vector_store %arg5[%41, %c0_21, %c0_22], %44 {strides = array<i32>} : memref<9x8x128xf32, #tpu.memory_space<vmem>>, vector<1x8x128xf32>,
    %c1_i32 = arith.constant 1 : i32
    %45 = arith.index_cast %c1_i32 : i32 to index
    %c0_23 = arith.constant 0 : index
    %c0_24 = arith.constant 0 : index
    %46 = vector.load %arg1[%45, %c0_23, %c0_24] : memref<9x8x512xf32, #tpu.memory_space<vmem>>, vector<1x8x512xf32>
    %47 = vector.shape_cast %46 : vector<1x8x512xf32> to vector<8x512xf32>
    %c0_25 = arith.constant 0 : index
    %c0_26 = arith.constant 0 : index
    %48 = vector.load %arg6[%c0_25, %c0_26] : memref<8x128xf32, #tpu.memory_space<vmem>>, vector<8x128xf32>
    %49 = arith.truncf %48 : vector<8x128xf32> to vector<8x128xbf16>
    %c0_27 = arith.constant 0 : index
    %c0_28 = arith.constant 0 : index
    %c0_29 = arith.constant 0 : index
    %50 = vector.load %arg2[%c0_27, %c0_28, %c0_29] : memref<2x128x512xbf16, #tpu.memory_space<vmem>>, vector<1x128x512xbf16>
    %51 = vector.shape_cast %50 : vector<1x128x512xbf16> to vector<128x512xbf16>
    %cst_30 = arith.constant dense<0.000000e+00> : vector<8x512xf32>
    %52 = tpu.matmul %49, %51, %cst_30 {dimension_numbers = #tpu.dot_dimension_numbers<[1], [0], [0], [1], [0, 0, 1, 1], [], []>} : vector<8x128xbf16>, vector<128x512xbf16>, vector<8x512xf32> -> vector<8x512xf32>
    %53 = arith.addf %47, %52 : vector<8x512xf32>
    %54 = vector.extract_strided_slice %53 {offsets = [0, 0], sizes = [8, 128], strides = [1, 1]} : vector<8x512xf32> to vector<8x128xf32>
    %55 = arith.negf %54 : vector<8x128xf32>
    %56 = math.exp %55 : vector<8x128xf32>
    %cst_31 = arith.constant 1.000000e+00 : f32
    %57 = vector.broadcast %cst_31 : f32 to vector<8x128xf32>
    %58 = arith.addf %57, %56 : vector<8x128xf32>
    %59 = arith.divf %57, %58 : vector<8x128xf32>
    %60 = vector.extract_strided_slice %53 {offsets = [0, 128], sizes = [8, 128], strides = [1, 1]} : vector<8x512xf32> to vector<8x128xf32>
    %61 = arith.negf %60 : vector<8x128xf32>
    %62 = math.exp %61 : vector<8x128xf32>
    %cst_32 = arith.constant 1.000000e+00 : f32
    %63 = vector.broadcast %cst_32 : f32 to vector<8x128xf32>
    %64 = arith.addf %63, %62 : vector<8x128xf32>
    %65 = arith.divf %63, %64 : vector<8x128xf32>
    %66 = vector.extract_strided_slice %53 {offsets = [0, 256], sizes = [8, 128], strides = [1, 1]} : vector<8x512xf32> to vector<8x128xf32>
    %67 = math.tanh %66 : vector<8x128xf32>
    %68 = vector.extract_strided_slice %53 {offsets = [0, 384], sizes = [8, 128], strides = [1, 1]} : vector<8x512xf32> to vector<8x128xf32>
    %69 = arith.negf %68 : vector<8x128xf32>
    %70 = math.exp %69 : vector<8x128xf32>
    %cst_33 = arith.constant 1.000000e+00 : f32
    %71 = vector.broadcast %cst_33 : f32 to vector<8x128xf32>
    %72 = arith.addf %71, %70 : vector<8x128xf32>
    %73 = arith.divf %71, %72 : vector<8x128xf32>
    %c0_34 = arith.constant 0 : index
    %c0_35 = arith.constant 0 : index
    %74 = vector.load %arg7[%c0_34, %c0_35] : memref<8x128xf32, #tpu.memory_space<vmem>>, vector<8x128xf32>
    %75 = arith.mulf %65, %74 : vector<8x128xf32>
    %76 = arith.mulf %59, %67 : vector<8x128xf32>
    %77 = arith.addf %75, %76 : vector<8x128xf32>
    %78 = math.tanh %77 : vector<8x128xf32>
    %79 = arith.mulf %73, %78 : vector<8x128xf32>
    %c0_36 = arith.constant 0 : index
    %c0_37 = arith.constant 0 : index
    %80 = vector.load %arg7[%c0_36, %c0_37] : memref<8x128xf32, #tpu.memory_space<vmem>>, vector<8x128xf32>
    tpu.vector_store %arg7[%c0_36, %c0_37], %77 {strides = array<i32>} : memref<8x128xf32, #tpu.memory_space<vmem>>, vector<8x128xf32>,
    %c0_38 = arith.constant 0 : index
    %c0_39 = arith.constant 0 : index
    %81 = vector.load %arg6[%c0_38, %c0_39] : memref<8x128xf32, #tpu.memory_space<vmem>>, vector<8x128xf32>
    tpu.vector_store %arg6[%c0_38, %c0_39], %79 {strides = array<i32>} : memref<8x128xf32, #tpu.memory_space<vmem>>, vector<8x128xf32>,
    %82 = arith.index_cast %c1_i32 : i32 to index
    %c0_40 = arith.constant 0 : index
    %c0_41 = arith.constant 0 : index
    %83 = vector.load %arg5[%82, %c0_40, %c0_41] : memref<9x8x128xf32, #tpu.memory_space<vmem>>, vector<1x8x128xf32>
    %84 = vector.shape_cast %83 : vector<1x8x128xf32> to vector<8x128xf32>
    %85 = vector.shape_cast %79 : vector<8x128xf32> to vector<1x8x128xf32>
    tpu.vector_store %arg5[%82, %c0_40, %c0_41], %85 {strides = array<i32>} : memref<9x8x128xf32, #tpu.memory_space<vmem>>, vector<1x8x128xf32>,
    %c2_i32 = arith.constant 2 : i32
    %86 = arith.index_cast %c2_i32 : i32 to index
    %c0_42 = arith.constant 0 : index
    %c0_43 = arith.constant 0 : index
    %87 = vector.load %arg1[%86, %c0_42, %c0_43] : memref<9x8x512xf32, #tpu.memory_space<vmem>>, vector<1x8x512xf32>
    %88 = vector.shape_cast %87 : vector<1x8x512xf32> to vector<8x512xf32>
    %c0_44 = arith.constant 0 : index
    %c0_45 = arith.constant 0 : index
    %89 = vector.load %arg6[%c0_44, %c0_45] : memref<8x128xf32, #tpu.memory_space<vmem>>, vector<8x128xf32>
    %90 = arith.truncf %89 : vector<8x128xf32> to vector<8x128xbf16>
    %c0_46 = arith.constant 0 : index
    %c0_47 = arith.constant 0 : index
    %c0_48 = arith.constant 0 : index
    %91 = vector.load %arg2[%c0_46, %c0_47, %c0_48] : memref<2x128x512xbf16, #tpu.memory_space<vmem>>, vector<1x128x512xbf16>
    %92 = vector.shape_cast %91 : vector<1x128x512xbf16> to vector<128x512xbf16>
    %cst_49 = arith.constant dense<0.000000e+00> : vector<8x512xf32>
    %93 = tpu.matmul %90, %92, %cst_49 {dimension_numbers = #tpu.dot_dimension_numbers<[1], [0], [0], [1], [0, 0, 1, 1], [], []>} : vector<8x128xbf16>, vector<128x512xbf16>, vector<8x512xf32> -> vector<8x512xf32>
    %94 = arith.addf %88, %93 : vector<8x512xf32>
    %95 = vector.extract_strided_slice %94 {offsets = [0, 0], sizes = [8, 128], strides = [1, 1]} : vector<8x512xf32> to vector<8x128xf32>
    %96 = arith.negf %95 : vector<8x128xf32>
    %97 = math.exp %96 : vector<8x128xf32>
    %cst_50 = arith.constant 1.000000e+00 : f32
    %98 = vector.broadcast %cst_50 : f32 to vector<8x128xf32>
    %99 = arith.addf %98, %97 : vector<8x128xf32>
    %100 = arith.divf %98, %99 : vector<8x128xf32>
    %101 = vector.extract_strided_slice %94 {offsets = [0, 128], sizes = [8, 128], strides = [1, 1]} : vector<8x512xf32> to vector<8x128xf32>
    %102 = arith.negf %101 : vector<8x128xf32>
    %103 = math.exp %102 : vector<8x128xf32>
    %cst_51 = arith.constant 1.000000e+00 : f32
    %104 = vector.broadcast %cst_51 : f32 to vector<8x128xf32>
    %105 = arith.addf %104, %103 : vector<8x128xf32>
    %106 = arith.divf %104, %105 : vector<8x128xf32>
    %107 = vector.extract_strided_slice %94 {offsets = [0, 256], sizes = [8, 128], strides = [1, 1]} : vector<8x512xf32> to vector<8x128xf32>
    %108 = math.tanh %107 : vector<8x128xf32>
    %109 = vector.extract_strided_slice %94 {offsets = [0, 384], sizes = [8, 128], strides = [1, 1]} : vector<8x512xf32> to vector<8x128xf32>
    %110 = arith.negf %109 : vector<8x128xf32>
    %111 = math.exp %110 : vector<8x128xf32>
    %cst_52 = arith.constant 1.000000e+00 : f32
    %112 = vector.broadcast %cst_52 : f32 to vector<8x128xf32>
    %113 = arith.addf %112, %111 : vector<8x128xf32>
    %114 = arith.divf %112, %113 : vector<8x128xf32>
    %c0_53 = arith.constant 0 : index
    %c0_54 = arith.constant 0 : index
    %115 = vector.load %arg7[%c0_53, %c0_54] : memref<8x128xf32, #tpu.memory_space<vmem>>, vector<8x128xf32>
    %116 = arith.mulf %106, %115 : vector<8x128xf32>
    %117 = arith.mulf %100, %108 : vector<8x128xf32>
    %118 = arith.addf %116, %117 : vector<8x128xf32>
    %119 = math.tanh %118 : vector<8x128xf32>
    %120 = arith.mulf %114, %119 : vector<8x128xf32>
    %c0_55 = arith.constant 0 : index
    %c0_56 = arith.constant 0 : index
    %121 = vector.load %arg7[%c0_55, %c0_56] : memref<8x128xf32, #tpu.memory_space<vmem>>, vector<8x128xf32>
    tpu.vector_store %arg7[%c0_55, %c0_56], %118 {strides = array<i32>} : memref<8x128xf32, #tpu.memory_space<vmem>>, vector<8x128xf32>,
    %c0_57 = arith.constant 0 : index
    %c0_58 = arith.constant 0 : index
    %122 = vector.load %arg6[%c0_57, %c0_58] : memref<8x128xf32, #tpu.memory_space<vmem>>, vector<8x128xf32>
    tpu.vector_store %arg6[%c0_57, %c0_58], %120 {strides = array<i32>} : memref<8x128xf32, #tpu.memory_space<vmem>>, vector<8x128xf32>,
    %123 = arith.index_cast %c2_i32 : i32 to index
    %c0_59 = arith.constant 0 : index
    %c0_60 = arith.constant 0 : index
    %124 = vector.load %arg5[%123, %c0_59, %c0_60] : memref<9x8x128xf32, #tpu.memory_space<vmem>>, vector<1x8x128xf32>
    %125 = vector.shape_cast %124 : vector<1x8x128xf32> to vector<8x128xf32>
    %126 = vector.shape_cast %120 : vector<8x128xf32> to vector<1x8x128xf32>
    tpu.vector_store %arg5[%123, %c0_59, %c0_60], %126 {strides = array<i32>} : memref<9x8x128xf32, #tpu.memory_space<vmem>>, vector<1x8x128xf32>,
    %c3_i32 = arith.constant 3 : i32
    %127 = arith.index_cast %c3_i32 : i32 to index
    %c0_61 = arith.constant 0 : index
    %c0_62 = arith.constant 0 : index
    %128 = vector.load %arg1[%127, %c0_61, %c0_62] : memref<9x8x512xf32, #tpu.memory_space<vmem>>, vector<1x8x512xf32>
    %129 = vector.shape_cast %128 : vector<1x8x512xf32> to vector<8x512xf32>
    %c0_63 = arith.constant 0 : index
    %c0_64 = arith.constant 0 : index
    %130 = vector.load %arg6[%c0_63, %c0_64] : memref<8x128xf32, #tpu.memory_space<vmem>>, vector<8x128xf32>
    %131 = arith.truncf %130 : vector<8x128xf32> to vector<8x128xbf16>
    %c0_65 = arith.constant 0 : index
    %c0_66 = arith.constant 0 : index
    %c0_67 = arith.constant 0 : index
    %132 = vector.load %arg2[%c0_65, %c0_66, %c0_67] : memref<2x128x512xbf16, #tpu.memory_space<vmem>>, vector<1x128x512xbf16>
    %133 = vector.shape_cast %132 : vector<1x128x512xbf16> to vector<128x512xbf16>
    %cst_68 = arith.constant dense<0.000000e+00> : vector<8x512xf32>
    %134 = tpu.matmul %131, %133, %cst_68 {dimension_numbers = #tpu.dot_dimension_numbers<[1], [0], [0], [1], [0, 0, 1, 1], [], []>} : vector<8x128xbf16>, vector<128x512xbf16>, vector<8x512xf32> -> vector<8x512xf32>
    %135 = arith.addf %129, %134 : vector<8x512xf32>
    %136 = vector.extract_strided_slice %135 {offsets = [0, 0], sizes = [8, 128], strides = [1, 1]} : vector<8x512xf32> to vector<8x128xf32>
    %137 = arith.negf %136 : vector<8x128xf32>
    %138 = math.exp %137 : vector<8x128xf32>
    %cst_69 = arith.constant 1.000000e+00 : f32
    %139 = vector.broadcast %cst_69 : f32 to vector<8x128xf32>
    %140 = arith.addf %139, %138 : vector<8x128xf32>
    %141 = arith.divf %139, %140 : vector<8x128xf32>
    %142 = vector.extract_strided_slice %135 {offsets = [0, 128], sizes = [8, 128], strides = [1, 1]} : vector<8x512xf32> to vector<8x128xf32>
    %143 = arith.negf %142 : vector<8x128xf32>
    %144 = math.exp %143 : vector<8x128xf32>
    %cst_70 = arith.constant 1.000000e+00 : f32
    %145 = vector.broadcast %cst_70 : f32 to vector<8x128xf32>
    %146 = arith.addf %145, %144 : vector<8x128xf32>
    %147 = arith.divf %145, %146 : vector<8x128xf32>
    %148 = vector.extract_strided_slice %135 {offsets = [0, 256], sizes = [8, 128], strides = [1, 1]} : vector<8x512xf32> to vector<8x128xf32>
    %149 = math.tanh %148 : vector<8x128xf32>
    %150 = vector.extract_strided_slice %135 {offsets = [0, 384], sizes = [8, 128], strides = [1, 1]} : vector<8x512xf32> to vector<8x128xf32>
    %151 = arith.negf %150 : vector<8x128xf32>
    %152 = math.exp %151 : vector<8x128xf32>
    %cst_71 = arith.constant 1.000000e+00 : f32
    %153 = vector.broadcast %cst_71 : f32 to vector<8x128xf32>
    %154 = arith.addf %153, %152 : vector<8x128xf32>
    %155 = arith.divf %153, %154 : vector<8x128xf32>
    %c0_72 = arith.constant 0 : index
    %c0_73 = arith.constant 0 : index
    %156 = vector.load %arg7[%c0_72, %c0_73] : memref<8x128xf32, #tpu.memory_space<vmem>>, vector<8x128xf32>
    %157 = arith.mulf %147, %156 : vector<8x128xf32>
    %158 = arith.mulf %141, %149 : vector<8x128xf32>
    %159 = arith.addf %157, %158 : vector<8x128xf32>
    %160 = math.tanh %159 : vector<8x128xf32>
    %161 = arith.mulf %155, %160 : vector<8x128xf32>
    %c0_74 = arith.constant 0 : index
    %c0_75 = arith.constant 0 : index
    %162 = vector.load %arg7[%c0_74, %c0_75] : memref<8x128xf32, #tpu.memory_space<vmem>>, vector<8x128xf32>
    tpu.vector_store %arg7[%c0_74, %c0_75], %159 {strides = array<i32>} : memref<8x128xf32, #tpu.memory_space<vmem>>, vector<8x128xf32>,
    %c0_76 = arith.constant 0 : index
    %c0_77 = arith.constant 0 : index
    %163 = vector.load %arg6[%c0_76, %c0_77] : memref<8x128xf32, #tpu.memory_space<vmem>>, vector<8x128xf32>
    tpu.vector_store %arg6[%c0_76, %c0_77], %161 {strides = array<i32>} : memref<8x128xf32, #tpu.memory_space<vmem>>, vector<8x128xf32>,
    %164 = arith.index_cast %c3_i32 : i32 to index
    %c0_78 = arith.constant 0 : index
    %c0_79 = arith.constant 0 : index
    %165 = vector.load %arg5[%164, %c0_78, %c0_79] : memref<9x8x128xf32, #tpu.memory_space<vmem>>, vector<1x8x128xf32>
    %166 = vector.shape_cast %165 : vector<1x8x128xf32> to vector<8x128xf32>
    %167 = vector.shape_cast %161 : vector<8x128xf32> to vector<1x8x128xf32>
    tpu.vector_store %arg5[%164, %c0_78, %c0_79], %167 {strides = array<i32>} : memref<9x8x128xf32, #tpu.memory_space<vmem>>, vector<1x8x128xf32>,
    %c4_i32 = arith.constant 4 : i32
    %168 = arith.index_cast %c4_i32 : i32 to index
    %c0_80 = arith.constant 0 : index
    %c0_81 = arith.constant 0 : index
    %169 = vector.load %arg1[%168, %c0_80, %c0_81] : memref<9x8x512xf32, #tpu.memory_space<vmem>>, vector<1x8x512xf32>
    %170 = vector.shape_cast %169 : vector<1x8x512xf32> to vector<8x512xf32>
    %c0_82 = arith.constant 0 : index
    %c0_83 = arith.constant 0 : index
    %171 = vector.load %arg6[%c0_82, %c0_83] : memref<8x128xf32, #tpu.memory_space<vmem>>, vector<8x128xf32>
    %172 = arith.truncf %171 : vector<8x128xf32> to vector<8x128xbf16>
    %c0_84 = arith.constant 0 : index
    %c0_85 = arith.constant 0 : index
    %c0_86 = arith.constant 0 : index
    %173 = vector.load %arg2[%c0_84, %c0_85, %c0_86] : memref<2x128x512xbf16, #tpu.memory_space<vmem>>, vector<1x128x512xbf16>
    %174 = vector.shape_cast %173 : vector<1x128x512xbf16> to vector<128x512xbf16>
    %cst_87 = arith.constant dense<0.000000e+00> : vector<8x512xf32>
    %175 = tpu.matmul %172, %174, %cst_87 {dimension_numbers = #tpu.dot_dimension_numbers<[1], [0], [0], [1], [0, 0, 1, 1], [], []>} : vector<8x128xbf16>, vector<128x512xbf16>, vector<8x512xf32> -> vector<8x512xf32>
    %176 = arith.addf %170, %175 : vector<8x512xf32>
    %177 = vector.extract_strided_slice %176 {offsets = [0, 0], sizes = [8, 128], strides = [1, 1]} : vector<8x512xf32> to vector<8x128xf32>
    %178 = arith.negf %177 : vector<8x128xf32>
    %179 = math.exp %178 : vector<8x128xf32>
    %cst_88 = arith.constant 1.000000e+00 : f32
    %180 = vector.broadcast %cst_88 : f32 to vector<8x128xf32>
    %181 = arith.addf %180, %179 : vector<8x128xf32>
    %182 = arith.divf %180, %181 : vector<8x128xf32>
    %183 = vector.extract_strided_slice %176 {offsets = [0, 128], sizes = [8, 128], strides = [1, 1]} : vector<8x512xf32> to vector<8x128xf32>
    %184 = arith.negf %183 : vector<8x128xf32>
    %185 = math.exp %184 : vector<8x128xf32>
    %cst_89 = arith.constant 1.000000e+00 : f32
    %186 = vector.broadcast %cst_89 : f32 to vector<8x128xf32>
    %187 = arith.addf %186, %185 : vector<8x128xf32>
    %188 = arith.divf %186, %187 : vector<8x128xf32>
    %189 = vector.extract_strided_slice %176 {offsets = [0, 256], sizes = [8, 128], strides = [1, 1]} : vector<8x512xf32> to vector<8x128xf32>
    %190 = math.tanh %189 : vector<8x128xf32>
    %191 = vector.extract_strided_slice %176 {offsets = [0, 384], sizes = [8, 128], strides = [1, 1]} : vector<8x512xf32> to vector<8x128xf32>
    %192 = arith.negf %191 : vector<8x128xf32>
    %193 = math.exp %192 : vector<8x128xf32>
    %cst_90 = arith.constant 1.000000e+00 : f32
    %194 = vector.broadcast %cst_90 : f32 to vector<8x128xf32>
    %195 = arith.addf %194, %193 : vector<8x128xf32>
    %196 = arith.divf %194, %195 : vector<8x128xf32>
    %c0_91 = arith.constant 0 : index
    %c0_92 = arith.constant 0 : index
    %197 = vector.load %arg7[%c0_91, %c0_92] : memref<8x128xf32, #tpu.memory_space<vmem>>, vector<8x128xf32>
    %198 = arith.mulf %188, %197 : vector<8x128xf32>
    %199 = arith.mulf %182, %190 : vector<8x128xf32>
    %200 = arith.addf %198, %199 : vector<8x128xf32>
    %201 = math.tanh %200 : vector<8x128xf32>
    %202 = arith.mulf %196, %201 : vector<8x128xf32>
    %c0_93 = arith.constant 0 : index
    %c0_94 = arith.constant 0 : index
    %203 = vector.load %arg7[%c0_93, %c0_94] : memref<8x128xf32, #tpu.memory_space<vmem>>, vector<8x128xf32>
    tpu.vector_store %arg7[%c0_93, %c0_94], %200 {strides = array<i32>} : memref<8x128xf32, #tpu.memory_space<vmem>>, vector<8x128xf32>,
    %c0_95 = arith.constant 0 : index
    %c0_96 = arith.constant 0 : index
    %204 = vector.load %arg6[%c0_95, %c0_96] : memref<8x128xf32, #tpu.memory_space<vmem>>, vector<8x128xf32>
    tpu.vector_store %arg6[%c0_95, %c0_96], %202 {strides = array<i32>} : memref<8x128xf32, #tpu.memory_space<vmem>>, vector<8x128xf32>,
    %205 = arith.index_cast %c4_i32 : i32 to index
    %c0_97 = arith.constant 0 : index
    %c0_98 = arith.constant 0 : index
    %206 = vector.load %arg5[%205, %c0_97, %c0_98] : memref<9x8x128xf32, #tpu.memory_space<vmem>>, vector<1x8x128xf32>
    %207 = vector.shape_cast %206 : vector<1x8x128xf32> to vector<8x128xf32>
    %208 = vector.shape_cast %202 : vector<8x128xf32> to vector<1x8x128xf32>
    tpu.vector_store %arg5[%205, %c0_97, %c0_98], %208 {strides = array<i32>} : memref<9x8x128xf32, #tpu.memory_space<vmem>>, vector<1x8x128xf32>,
    %c5_i32 = arith.constant 5 : i32
    %209 = arith.index_cast %c5_i32 : i32 to index
    %c0_99 = arith.constant 0 : index
    %c0_100 = arith.constant 0 : index
    %210 = vector.load %arg1[%209, %c0_99, %c0_100] : memref<9x8x512xf32, #tpu.memory_space<vmem>>, vector<1x8x512xf32>
    %211 = vector.shape_cast %210 : vector<1x8x512xf32> to vector<8x512xf32>
    %c0_101 = arith.constant 0 : index
    %c0_102 = arith.constant 0 : index
    %212 = vector.load %arg6[%c0_101, %c0_102] : memref<8x128xf32, #tpu.memory_space<vmem>>, vector<8x128xf32>
    %213 = arith.truncf %212 : vector<8x128xf32> to vector<8x128xbf16>
    %c0_103 = arith.constant 0 : index
    %c0_104 = arith.constant 0 : index
    %c0_105 = arith.constant 0 : index
    %214 = vector.load %arg2[%c0_103, %c0_104, %c0_105] : memref<2x128x512xbf16, #tpu.memory_space<vmem>>, vector<1x128x512xbf16>
    %215 = vector.shape_cast %214 : vector<1x128x512xbf16> to vector<128x512xbf16>
    %cst_106 = arith.constant dense<0.000000e+00> : vector<8x512xf32>
    %216 = tpu.matmul %213, %215, %cst_106 {dimension_numbers = #tpu.dot_dimension_numbers<[1], [0], [0], [1], [0, 0, 1, 1], [], []>} : vector<8x128xbf16>, vector<128x512xbf16>, vector<8x512xf32> -> vector<8x512xf32>
    %217 = arith.addf %211, %216 : vector<8x512xf32>
    %218 = vector.extract_strided_slice %217 {offsets = [0, 0], sizes = [8, 128], strides = [1, 1]} : vector<8x512xf32> to vector<8x128xf32>
    %219 = arith.negf %218 : vector<8x128xf32>
    %220 = math.exp %219 : vector<8x128xf32>
    %cst_107 = arith.constant 1.000000e+00 : f32
    %221 = vector.broadcast %cst_107 : f32 to vector<8x128xf32>
    %222 = arith.addf %221, %220 : vector<8x128xf32>
    %223 = arith.divf %221, %222 : vector<8x128xf32>
    %224 = vector.extract_strided_slice %217 {offsets = [0, 128], sizes = [8, 128], strides = [1, 1]} : vector<8x512xf32> to vector<8x128xf32>
    %225 = arith.negf %224 : vector<8x128xf32>
    %226 = math.exp %225 : vector<8x128xf32>
    %cst_108 = arith.constant 1.000000e+00 : f32
    %227 = vector.broadcast %cst_108 : f32 to vector<8x128xf32>
    %228 = arith.addf %227, %226 : vector<8x128xf32>
    %229 = arith.divf %227, %228 : vector<8x128xf32>
    %230 = vector.extract_strided_slice %217 {offsets = [0, 256], sizes = [8, 128], strides = [1, 1]} : vector<8x512xf32> to vector<8x128xf32>
    %231 = math.tanh %230 : vector<8x128xf32>
    %232 = vector.extract_strided_slice %217 {offsets = [0, 384], sizes = [8, 128], strides = [1, 1]} : vector<8x512xf32> to vector<8x128xf32>
    %233 = arith.negf %232 : vector<8x128xf32>
    %234 = math.exp %233 : vector<8x128xf32>
    %cst_109 = arith.constant 1.000000e+00 : f32
    %235 = vector.broadcast %cst_109 : f32 to vector<8x128xf32>
    %236 = arith.addf %235, %234 : vector<8x128xf32>
    %237 = arith.divf %235, %236 : vector<8x128xf32>
    %c0_110 = arith.constant 0 : index
    %c0_111 = arith.constant 0 : index
    %238 = vector.load %arg7[%c0_110, %c0_111] : memref<8x128xf32, #tpu.memory_space<vmem>>, vector<8x128xf32>
    %239 = arith.mulf %229, %238 : vector<8x128xf32>
    %240 = arith.mulf %223, %231 : vector<8x128xf32>
    %241 = arith.addf %239, %240 : vector<8x128xf32>
    %242 = math.tanh %241 : vector<8x128xf32>
    %243 = arith.mulf %237, %242 : vector<8x128xf32>
    %c0_112 = arith.constant 0 : index
    %c0_113 = arith.constant 0 : index
    %244 = vector.load %arg7[%c0_112, %c0_113] : memref<8x128xf32, #tpu.memory_space<vmem>>, vector<8x128xf32>
    tpu.vector_store %arg7[%c0_112, %c0_113], %241 {strides = array<i32>} : memref<8x128xf32, #tpu.memory_space<vmem>>, vector<8x128xf32>,
    %c0_114 = arith.constant 0 : index
    %c0_115 = arith.constant 0 : index
    %245 = vector.load %arg6[%c0_114, %c0_115] : memref<8x128xf32, #tpu.memory_space<vmem>>, vector<8x128xf32>
    tpu.vector_store %arg6[%c0_114, %c0_115], %243 {strides = array<i32>} : memref<8x128xf32, #tpu.memory_space<vmem>>, vector<8x128xf32>,
    %246 = arith.index_cast %c5_i32 : i32 to index
    %c0_116 = arith.constant 0 : index
    %c0_117 = arith.constant 0 : index
    %247 = vector.load %arg5[%246, %c0_116, %c0_117] : memref<9x8x128xf32, #tpu.memory_space<vmem>>, vector<1x8x128xf32>
    %248 = vector.shape_cast %247 : vector<1x8x128xf32> to vector<8x128xf32>
    %249 = vector.shape_cast %243 : vector<8x128xf32> to vector<1x8x128xf32>
    tpu.vector_store %arg5[%246, %c0_116, %c0_117], %249 {strides = array<i32>} : memref<9x8x128xf32, #tpu.memory_space<vmem>>, vector<1x8x128xf32>,
    %c6_i32 = arith.constant 6 : i32
    %250 = arith.index_cast %c6_i32 : i32 to index
    %c0_118 = arith.constant 0 : index
    %c0_119 = arith.constant 0 : index
    %251 = vector.load %arg1[%250, %c0_118, %c0_119] : memref<9x8x512xf32, #tpu.memory_space<vmem>>, vector<1x8x512xf32>
    %252 = vector.shape_cast %251 : vector<1x8x512xf32> to vector<8x512xf32>
    %c0_120 = arith.constant 0 : index
    %c0_121 = arith.constant 0 : index
    %253 = vector.load %arg6[%c0_120, %c0_121] : memref<8x128xf32, #tpu.memory_space<vmem>>, vector<8x128xf32>
    %254 = arith.truncf %253 : vector<8x128xf32> to vector<8x128xbf16>
    %c0_122 = arith.constant 0 : index
    %c0_123 = arith.constant 0 : index
    %c0_124 = arith.constant 0 : index
    %255 = vector.load %arg2[%c0_122, %c0_123, %c0_124] : memref<2x128x512xbf16, #tpu.memory_space<vmem>>, vector<1x128x512xbf16>
    %256 = vector.shape_cast %255 : vector<1x128x512xbf16> to vector<128x512xbf16>
    %cst_125 = arith.constant dense<0.000000e+00> : vector<8x512xf32>
    %257 = tpu.matmul %254, %256, %cst_125 {dimension_numbers = #tpu.dot_dimension_numbers<[1], [0], [0], [1], [0, 0, 1, 1], [], []>} : vector<8x128xbf16>, vector<128x512xbf16>, vector<8x512xf32> -> vector<8x512xf32>
    %258 = arith.addf %252, %257 : vector<8x512xf32>
    %259 = vector.extract_strided_slice %258 {offsets = [0, 0], sizes = [8, 128], strides = [1, 1]} : vector<8x512xf32> to vector<8x128xf32>
    %260 = arith.negf %259 : vector<8x128xf32>
    %261 = math.exp %260 : vector<8x128xf32>
    %cst_126 = arith.constant 1.000000e+00 : f32
    %262 = vector.broadcast %cst_126 : f32 to vector<8x128xf32>
    %263 = arith.addf %262, %261 : vector<8x128xf32>
    %264 = arith.divf %262, %263 : vector<8x128xf32>
    %265 = vector.extract_strided_slice %258 {offsets = [0, 128], sizes = [8, 128], strides = [1, 1]} : vector<8x512xf32> to vector<8x128xf32>
    %266 = arith.negf %265 : vector<8x128xf32>
    %267 = math.exp %266 : vector<8x128xf32>
    %cst_127 = arith.constant 1.000000e+00 : f32
    %268 = vector.broadcast %cst_127 : f32 to vector<8x128xf32>
    %269 = arith.addf %268, %267 : vector<8x128xf32>
    %270 = arith.divf %268, %269 : vector<8x128xf32>
    %271 = vector.extract_strided_slice %258 {offsets = [0, 256], sizes = [8, 128], strides = [1, 1]} : vector<8x512xf32> to vector<8x128xf32>
    %272 = math.tanh %271 : vector<8x128xf32>
    %273 = vector.extract_strided_slice %258 {offsets = [0, 384], sizes = [8, 128], strides = [1, 1]} : vector<8x512xf32> to vector<8x128xf32>
    %274 = arith.negf %273 : vector<8x128xf32>
    %275 = math.exp %274 : vector<8x128xf32>
    %cst_128 = arith.constant 1.000000e+00 : f32
    %276 = vector.broadcast %cst_128 : f32 to vector<8x128xf32>
    %277 = arith.addf %276, %275 : vector<8x128xf32>
    %278 = arith.divf %276, %277 : vector<8x128xf32>
    %c0_129 = arith.constant 0 : index
    %c0_130 = arith.constant 0 : index
    %279 = vector.load %arg7[%c0_129, %c0_130] : memref<8x128xf32, #tpu.memory_space<vmem>>, vector<8x128xf32>
    %280 = arith.mulf %270, %279 : vector<8x128xf32>
    %281 = arith.mulf %264, %272 : vector<8x128xf32>
    %282 = arith.addf %280, %281 : vector<8x128xf32>
    %283 = math.tanh %282 : vector<8x128xf32>
    %284 = arith.mulf %278, %283 : vector<8x128xf32>
    %c0_131 = arith.constant 0 : index
    %c0_132 = arith.constant 0 : index
    %285 = vector.load %arg7[%c0_131, %c0_132] : memref<8x128xf32, #tpu.memory_space<vmem>>, vector<8x128xf32>
    tpu.vector_store %arg7[%c0_131, %c0_132], %282 {strides = array<i32>} : memref<8x128xf32, #tpu.memory_space<vmem>>, vector<8x128xf32>,
    %c0_133 = arith.constant 0 : index
    %c0_134 = arith.constant 0 : index
    %286 = vector.load %arg6[%c0_133, %c0_134] : memref<8x128xf32, #tpu.memory_space<vmem>>, vector<8x128xf32>
    tpu.vector_store %arg6[%c0_133, %c0_134], %284 {strides = array<i32>} : memref<8x128xf32, #tpu.memory_space<vmem>>, vector<8x128xf32>,
    %287 = arith.index_cast %c6_i32 : i32 to index
    %c0_135 = arith.constant 0 : index
    %c0_136 = arith.constant 0 : index
    %288 = vector.load %arg5[%287, %c0_135, %c0_136] : memref<9x8x128xf32, #tpu.memory_space<vmem>>, vector<1x8x128xf32>
    %289 = vector.shape_cast %288 : vector<1x8x128xf32> to vector<8x128xf32>
    %290 = vector.shape_cast %284 : vector<8x128xf32> to vector<1x8x128xf32>
    tpu.vector_store %arg5[%287, %c0_135, %c0_136], %290 {strides = array<i32>} : memref<9x8x128xf32, #tpu.memory_space<vmem>>, vector<1x8x128xf32>,
    %c7_i32 = arith.constant 7 : i32
    %291 = arith.index_cast %c7_i32 : i32 to index
    %c0_137 = arith.constant 0 : index
    %c0_138 = arith.constant 0 : index
    %292 = vector.load %arg1[%291, %c0_137, %c0_138] : memref<9x8x512xf32, #tpu.memory_space<vmem>>, vector<1x8x512xf32>
    %293 = vector.shape_cast %292 : vector<1x8x512xf32> to vector<8x512xf32>
    %c0_139 = arith.constant 0 : index
    %c0_140 = arith.constant 0 : index
    %294 = vector.load %arg6[%c0_139, %c0_140] : memref<8x128xf32, #tpu.memory_space<vmem>>, vector<8x128xf32>
    %295 = arith.truncf %294 : vector<8x128xf32> to vector<8x128xbf16>
    %c0_141 = arith.constant 0 : index
    %c0_142 = arith.constant 0 : index
    %c0_143 = arith.constant 0 : index
    %296 = vector.load %arg2[%c0_141, %c0_142, %c0_143] : memref<2x128x512xbf16, #tpu.memory_space<vmem>>, vector<1x128x512xbf16>
    %297 = vector.shape_cast %296 : vector<1x128x512xbf16> to vector<128x512xbf16>
    %cst_144 = arith.constant dense<0.000000e+00> : vector<8x512xf32>
    %298 = tpu.matmul %295, %297, %cst_144 {dimension_numbers = #tpu.dot_dimension_numbers<[1], [0], [0], [1], [0, 0, 1, 1], [], []>} : vector<8x128xbf16>, vector<128x512xbf16>, vector<8x512xf32> -> vector<8x512xf32>
    %299 = arith.addf %293, %298 : vector<8x512xf32>
    %300 = vector.extract_strided_slice %299 {offsets = [0, 0], sizes = [8, 128], strides = [1, 1]} : vector<8x512xf32> to vector<8x128xf32>
    %301 = arith.negf %300 : vector<8x128xf32>
    %302 = math.exp %301 : vector<8x128xf32>
    %cst_145 = arith.constant 1.000000e+00 : f32
    %303 = vector.broadcast %cst_145 : f32 to vector<8x128xf32>
    %304 = arith.addf %303, %302 : vector<8x128xf32>
    %305 = arith.divf %303, %304 : vector<8x128xf32>
    %306 = vector.extract_strided_slice %299 {offsets = [0, 128], sizes = [8, 128], strides = [1, 1]} : vector<8x512xf32> to vector<8x128xf32>
    %307 = arith.negf %306 : vector<8x128xf32>
    %308 = math.exp %307 : vector<8x128xf32>
    %cst_146 = arith.constant 1.000000e+00 : f32
    %309 = vector.broadcast %cst_146 : f32 to vector<8x128xf32>
    %310 = arith.addf %309, %308 : vector<8x128xf32>
    %311 = arith.divf %309, %310 : vector<8x128xf32>
    %312 = vector.extract_strided_slice %299 {offsets = [0, 256], sizes = [8, 128], strides = [1, 1]} : vector<8x512xf32> to vector<8x128xf32>
    %313 = math.tanh %312 : vector<8x128xf32>
    %314 = vector.extract_strided_slice %299 {offsets = [0, 384], sizes = [8, 128], strides = [1, 1]} : vector<8x512xf32> to vector<8x128xf32>
    %315 = arith.negf %314 : vector<8x128xf32>
    %316 = math.exp %315 : vector<8x128xf32>
    %cst_147 = arith.constant 1.000000e+00 : f32
    %317 = vector.broadcast %cst_147 : f32 to vector<8x128xf32>
    %318 = arith.addf %317, %316 : vector<8x128xf32>
    %319 = arith.divf %317, %318 : vector<8x128xf32>
    %c0_148 = arith.constant 0 : index
    %c0_149 = arith.constant 0 : index
    %320 = vector.load %arg7[%c0_148, %c0_149] : memref<8x128xf32, #tpu.memory_space<vmem>>, vector<8x128xf32>
    %321 = arith.mulf %311, %320 : vector<8x128xf32>
    %322 = arith.mulf %305, %313 : vector<8x128xf32>
    %323 = arith.addf %321, %322 : vector<8x128xf32>
    %324 = math.tanh %323 : vector<8x128xf32>
    %325 = arith.mulf %319, %324 : vector<8x128xf32>
    %c0_150 = arith.constant 0 : index
    %c0_151 = arith.constant 0 : index
    %326 = vector.load %arg7[%c0_150, %c0_151] : memref<8x128xf32, #tpu.memory_space<vmem>>, vector<8x128xf32>
    tpu.vector_store %arg7[%c0_150, %c0_151], %323 {strides = array<i32>} : memref<8x128xf32, #tpu.memory_space<vmem>>, vector<8x128xf32>,
    %c0_152 = arith.constant 0 : index
    %c0_153 = arith.constant 0 : index
    %327 = vector.load %arg6[%c0_152, %c0_153] : memref<8x128xf32, #tpu.memory_space<vmem>>, vector<8x128xf32>
    tpu.vector_store %arg6[%c0_152, %c0_153], %325 {strides = array<i32>} : memref<8x128xf32, #tpu.memory_space<vmem>>, vector<8x128xf32>,
    %328 = arith.index_cast %c7_i32 : i32 to index
    %c0_154 = arith.constant 0 : index
    %c0_155 = arith.constant 0 : index
    %329 = vector.load %arg5[%328, %c0_154, %c0_155] : memref<9x8x128xf32, #tpu.memory_space<vmem>>, vector<1x8x128xf32>
    %330 = vector.shape_cast %329 : vector<1x8x128xf32> to vector<8x128xf32>
    %331 = vector.shape_cast %325 : vector<8x128xf32> to vector<1x8x128xf32>
    tpu.vector_store %arg5[%328, %c0_154, %c0_155], %331 {strides = array<i32>} : memref<9x8x128xf32, #tpu.memory_space<vmem>>, vector<1x8x128xf32>,
    %c8_i32 = arith.constant 8 : i32
    %332 = arith.index_cast %c8_i32 : i32 to index
    %c0_156 = arith.constant 0 : index
    %c0_157 = arith.constant 0 : index
    %333 = vector.load %arg1[%332, %c0_156, %c0_157] : memref<9x8x512xf32, #tpu.memory_space<vmem>>, vector<1x8x512xf32>
    %334 = vector.shape_cast %333 : vector<1x8x512xf32> to vector<8x512xf32>
    %c0_158 = arith.constant 0 : index
    %c0_159 = arith.constant 0 : index
    %335 = vector.load %arg6[%c0_158, %c0_159] : memref<8x128xf32, #tpu.memory_space<vmem>>, vector<8x128xf32>
    %336 = arith.truncf %335 : vector<8x128xf32> to vector<8x128xbf16>
    %c0_160 = arith.constant 0 : index
    %c0_161 = arith.constant 0 : index
    %c0_162 = arith.constant 0 : index
    %337 = vector.load %arg2[%c0_160, %c0_161, %c0_162] : memref<2x128x512xbf16, #tpu.memory_space<vmem>>, vector<1x128x512xbf16>
    %338 = vector.shape_cast %337 : vector<1x128x512xbf16> to vector<128x512xbf16>
    %cst_163 = arith.constant dense<0.000000e+00> : vector<8x512xf32>
    %339 = tpu.matmul %336, %338, %cst_163 {dimension_numbers = #tpu.dot_dimension_numbers<[1], [0], [0], [1], [0, 0, 1, 1], [], []>} : vector<8x128xbf16>, vector<128x512xbf16>, vector<8x512xf32> -> vector<8x512xf32>
    %340 = arith.addf %334, %339 : vector<8x512xf32>
    %341 = vector.extract_strided_slice %340 {offsets = [0, 0], sizes = [8, 128], strides = [1, 1]} : vector<8x512xf32> to vector<8x128xf32>
    %342 = arith.negf %341 : vector<8x128xf32>
    %343 = math.exp %342 : vector<8x128xf32>
    %cst_164 = arith.constant 1.000000e+00 : f32
    %344 = vector.broadcast %cst_164 : f32 to vector<8x128xf32>
    %345 = arith.addf %344, %343 : vector<8x128xf32>
    %346 = arith.divf %344, %345 : vector<8x128xf32>
    %347 = vector.extract_strided_slice %340 {offsets = [0, 128], sizes = [8, 128], strides = [1, 1]} : vector<8x512xf32> to vector<8x128xf32>
    %348 = arith.negf %347 : vector<8x128xf32>
    %349 = math.exp %348 : vector<8x128xf32>
    %cst_165 = arith.constant 1.000000e+00 : f32
    %350 = vector.broadcast %cst_165 : f32 to vector<8x128xf32>
    %351 = arith.addf %350, %349 : vector<8x128xf32>
    %352 = arith.divf %350, %351 : vector<8x128xf32>
    %353 = vector.extract_strided_slice %340 {offsets = [0, 256], sizes = [8, 128], strides = [1, 1]} : vector<8x512xf32> to vector<8x128xf32>
    %354 = math.tanh %353 : vector<8x128xf32>
    %355 = vector.extract_strided_slice %340 {offsets = [0, 384], sizes = [8, 128], strides = [1, 1]} : vector<8x512xf32> to vector<8x128xf32>
    %356 = arith.negf %355 : vector<8x128xf32>
    %357 = math.exp %356 : vector<8x128xf32>
    %cst_166 = arith.constant 1.000000e+00 : f32
    %358 = vector.broadcast %cst_166 : f32 to vector<8x128xf32>
    %359 = arith.addf %358, %357 : vector<8x128xf32>
    %360 = arith.divf %358, %359 : vector<8x128xf32>
    %c0_167 = arith.constant 0 : index
    %c0_168 = arith.constant 0 : index
    %361 = vector.load %arg7[%c0_167, %c0_168] : memref<8x128xf32, #tpu.memory_space<vmem>>, vector<8x128xf32>
    %362 = arith.mulf %352, %361 : vector<8x128xf32>
    %363 = arith.mulf %346, %354 : vector<8x128xf32>
    %364 = arith.addf %362, %363 : vector<8x128xf32>
    %365 = math.tanh %364 : vector<8x128xf32>
    %366 = arith.mulf %360, %365 : vector<8x128xf32>
    %c0_169 = arith.constant 0 : index
    %c0_170 = arith.constant 0 : index
    %367 = vector.load %arg7[%c0_169, %c0_170] : memref<8x128xf32, #tpu.memory_space<vmem>>, vector<8x128xf32>
    tpu.vector_store %arg7[%c0_169, %c0_170], %364 {strides = array<i32>} : memref<8x128xf32, #tpu.memory_space<vmem>>, vector<8x128xf32>,
    %c0_171 = arith.constant 0 : index
    %c0_172 = arith.constant 0 : index
    %368 = vector.load %arg6[%c0_171, %c0_172] : memref<8x128xf32, #tpu.memory_space<vmem>>, vector<8x128xf32>
    tpu.vector_store %arg6[%c0_171, %c0_172], %366 {strides = array<i32>} : memref<8x128xf32, #tpu.memory_space<vmem>>, vector<8x128xf32>,
    %369 = arith.index_cast %c8_i32 : i32 to index
    %c0_173 = arith.constant 0 : index
    %c0_174 = arith.constant 0 : index
    %370 = vector.load %arg5[%369, %c0_173, %c0_174] : memref<9x8x128xf32, #tpu.memory_space<vmem>>, vector<1x8x128xf32>
    %371 = vector.shape_cast %370 : vector<1x8x128xf32> to vector<8x128xf32>
    %372 = vector.shape_cast %366 : vector<8x128xf32> to vector<1x8x128xf32>
    tpu.vector_store %arg5[%369, %c0_173, %c0_174], %372 {strides = array<i32>} : memref<9x8x128xf32, #tpu.memory_space<vmem>>, vector<1x8x128xf32>,
    %c9_i32 = arith.constant 9 : i32
    %cst_175 = arith.constant 0.000000e+00 : f32
    %373 = vector.broadcast %cst_175 : f32 to vector<8x128xf32>
    %c0_176 = arith.constant 0 : index
    %c0_177 = arith.constant 0 : index
    %374 = vector.load %arg6[%c0_176, %c0_177] : memref<8x128xf32, #tpu.memory_space<vmem>>, vector<8x128xf32>
    tpu.vector_store %arg6[%c0_176, %c0_177], %373 {strides = array<i32>} : memref<8x128xf32, #tpu.memory_space<vmem>>, vector<8x128xf32>,
    %cst_178 = arith.constant 0.000000e+00 : f32
    %375 = vector.broadcast %cst_178 : f32 to vector<8x128xf32>
    %c0_179 = arith.constant 0 : index
    %c0_180 = arith.constant 0 : index
    %376 = vector.load %arg7[%c0_179, %c0_180] : memref<8x128xf32, #tpu.memory_space<vmem>>, vector<8x128xf32>
    tpu.vector_store %arg7[%c0_179, %c0_180], %375 {strides = array<i32>} : memref<8x128xf32, #tpu.memory_space<vmem>>, vector<8x128xf32>,
    %c0_i32_181 = arith.constant 0 : i32
    %377 = arith.index_cast %c0_i32_181 : i32 to index
    %c0_182 = arith.constant 0 : index
    %c0_183 = arith.constant 0 : index
    %378 = vector.load %arg5[%377, %c0_182, %c0_183] : memref<9x8x128xf32, #tpu.memory_space<vmem>>, vector<1x8x128xf32>
    %379 = vector.shape_cast %378 : vector<1x8x128xf32> to vector<8x128xf32>
    %380 = arith.truncf %379 : vector<8x128xf32> to vector<8x128xbf16>
    %c0_184 = arith.constant 0 : index
    %c0_185 = arith.constant 0 : index
    %c0_186 = arith.constant 0 : index
    %381 = vector.load %arg3[%c0_184, %c0_185, %c0_186] : memref<1x128x512xbf16, #tpu.memory_space<vmem>>, vector<1x128x512xbf16>
    %382 = vector.shape_cast %381 : vector<1x128x512xbf16> to vector<128x512xbf16>
    %cst_187 = arith.constant dense<0.000000e+00> : vector<8x512xf32>
    %383 = tpu.matmul %380, %382, %cst_187 {dimension_numbers = #tpu.dot_dimension_numbers<[1], [0], [0], [1], [0, 0, 1, 1], [], []>} : vector<8x128xbf16>, vector<128x512xbf16>, vector<8x512xf32> -> vector<8x512xf32>
    %c0_188 = arith.constant 0 : index
    %c0_189 = arith.constant 0 : index
    %c0_190 = arith.constant 0 : index
    %384 = vector.load %arg4[%c0_188, %c0_189, %c0_190] : memref<1x1x512xf32, #tpu.memory_space<vmem>>, vector<1x1x512xf32>
    %385 = vector.shape_cast %384 : vector<1x1x512xf32> to vector<1x512xf32>
    %386 = vector.broadcast %385 : vector<1x512xf32> to vector<8x512xf32>
    %387 = arith.addf %383, %386 : vector<8x512xf32>
    %c0_191 = arith.constant 0 : index
    %c0_192 = arith.constant 0 : index
    %388 = vector.load %arg6[%c0_191, %c0_192] : memref<8x128xf32, #tpu.memory_space<vmem>>, vector<8x128xf32>
    %389 = arith.truncf %388 : vector<8x128xf32> to vector<8x128xbf16>
    %c1 = arith.constant 1 : index
    %c0_193 = arith.constant 0 : index
    %c0_194 = arith.constant 0 : index
    %390 = vector.load %arg2[%c1, %c0_193, %c0_194] : memref<2x128x512xbf16, #tpu.memory_space<vmem>>, vector<1x128x512xbf16>
    %391 = vector.shape_cast %390 : vector<1x128x512xbf16> to vector<128x512xbf16>
    %cst_195 = arith.constant dense<0.000000e+00> : vector<8x512xf32>
    %392 = tpu.matmul %389, %391, %cst_195 {dimension_numbers = #tpu.dot_dimension_numbers<[1], [0], [0], [1], [0, 0, 1, 1], [], []>} : vector<8x128xbf16>, vector<128x512xbf16>, vector<8x512xf32> -> vector<8x512xf32>
    %393 = arith.addf %387, %392 : vector<8x512xf32>
    %394 = vector.extract_strided_slice %393 {offsets = [0, 0], sizes = [8, 128], strides = [1, 1]} : vector<8x512xf32> to vector<8x128xf32>
    %395 = arith.negf %394 : vector<8x128xf32>
    %396 = math.exp %395 : vector<8x128xf32>
    %cst_196 = arith.constant 1.000000e+00 : f32
    %397 = vector.broadcast %cst_196 : f32 to vector<8x128xf32>
    %398 = arith.addf %397, %396 : vector<8x128xf32>
    %399 = arith.divf %397, %398 : vector<8x128xf32>
    %400 = vector.extract_strided_slice %393 {offsets = [0, 128], sizes = [8, 128], strides = [1, 1]} : vector<8x512xf32> to vector<8x128xf32>
    %401 = arith.negf %400 : vector<8x128xf32>
    %402 = math.exp %401 : vector<8x128xf32>
    %cst_197 = arith.constant 1.000000e+00 : f32
    %403 = vector.broadcast %cst_197 : f32 to vector<8x128xf32>
    %404 = arith.addf %403, %402 : vector<8x128xf32>
    %405 = arith.divf %403, %404 : vector<8x128xf32>
    %406 = vector.extract_strided_slice %393 {offsets = [0, 256], sizes = [8, 128], strides = [1, 1]} : vector<8x512xf32> to vector<8x128xf32>
    %407 = math.tanh %406 : vector<8x128xf32>
    %408 = vector.extract_strided_slice %393 {offsets = [0, 384], sizes = [8, 128], strides = [1, 1]} : vector<8x512xf32> to vector<8x128xf32>
    %409 = arith.negf %408 : vector<8x128xf32>
    %410 = math.exp %409 : vector<8x128xf32>
    %cst_198 = arith.constant 1.000000e+00 : f32
    %411 = vector.broadcast %cst_198 : f32 to vector<8x128xf32>
    %412 = arith.addf %411, %410 : vector<8x128xf32>
    %413 = arith.divf %411, %412 : vector<8x128xf32>
    %c0_199 = arith.constant 0 : index
    %c0_200 = arith.constant 0 : index
    %414 = vector.load %arg7[%c0_199, %c0_200] : memref<8x128xf32, #tpu.memory_space<vmem>>, vector<8x128xf32>
    %415 = arith.mulf %405, %414 : vector<8x128xf32>
    %416 = arith.mulf %399, %407 : vector<8x128xf32>
    %417 = arith.addf %415, %416 : vector<8x128xf32>
    %418 = math.tanh %417 : vector<8x128xf32>
    %419 = arith.mulf %413, %418 : vector<8x128xf32>
    %c0_201 = arith.constant 0 : index
    %c0_202 = arith.constant 0 : index
    %420 = vector.load %arg7[%c0_201, %c0_202] : memref<8x128xf32, #tpu.memory_space<vmem>>, vector<8x128xf32>
    tpu.vector_store %arg7[%c0_201, %c0_202], %417 {strides = array<i32>} : memref<8x128xf32, #tpu.memory_space<vmem>>, vector<8x128xf32>,
    %c0_203 = arith.constant 0 : index
    %c0_204 = arith.constant 0 : index
    %421 = vector.load %arg6[%c0_203, %c0_204] : memref<8x128xf32, #tpu.memory_space<vmem>>, vector<8x128xf32>
    tpu.vector_store %arg6[%c0_203, %c0_204], %419 {strides = array<i32>} : memref<8x128xf32, #tpu.memory_space<vmem>>, vector<8x128xf32>,
    %422 = arith.index_cast %c0_i32_181 : i32 to index
    %c0_205 = arith.constant 0 : index
    %c0_206 = arith.constant 0 : index
    %423 = vector.load %arg5[%422, %c0_205, %c0_206] : memref<9x8x128xf32, #tpu.memory_space<vmem>>, vector<1x8x128xf32>
    %424 = vector.shape_cast %423 : vector<1x8x128xf32> to vector<8x128xf32>
    %425 = vector.shape_cast %419 : vector<8x128xf32> to vector<1x8x128xf32>
    tpu.vector_store %arg5[%422, %c0_205, %c0_206], %425 {strides = array<i32>} : memref<9x8x128xf32, #tpu.memory_space<vmem>>, vector<1x8x128xf32>,
    %c1_i32_207 = arith.constant 1 : i32
    %426 = arith.index_cast %c1_i32_207 : i32 to index
    %c0_208 = arith.constant 0 : index
    %c0_209 = arith.constant 0 : index
    %427 = vector.load %arg5[%426, %c0_208, %c0_209] : memref<9x8x128xf32, #tpu.memory_space<vmem>>, vector<1x8x128xf32>
    %428 = vector.shape_cast %427 : vector<1x8x128xf32> to vector<8x128xf32>
    %429 = arith.truncf %428 : vector<8x128xf32> to vector<8x128xbf16>
    %c0_210 = arith.constant 0 : index
    %c0_211 = arith.constant 0 : index
    %c0_212 = arith.constant 0 : index
    %430 = vector.load %arg3[%c0_210, %c0_211, %c0_212] : memref<1x128x512xbf16, #tpu.memory_space<vmem>>, vector<1x128x512xbf16>
    %431 = vector.shape_cast %430 : vector<1x128x512xbf16> to vector<128x512xbf16>
    %cst_213 = arith.constant dense<0.000000e+00> : vector<8x512xf32>
    %432 = tpu.matmul %429, %431, %cst_213 {dimension_numbers = #tpu.dot_dimension_numbers<[1], [0], [0], [1], [0, 0, 1, 1], [], []>} : vector<8x128xbf16>, vector<128x512xbf16>, vector<8x512xf32> -> vector<8x512xf32>
    %c0_214 = arith.constant 0 : index
    %c0_215 = arith.constant 0 : index
    %c0_216 = arith.constant 0 : index
    %433 = vector.load %arg4[%c0_214, %c0_215, %c0_216] : memref<1x1x512xf32, #tpu.memory_space<vmem>>, vector<1x1x512xf32>
    %434 = vector.shape_cast %433 : vector<1x1x512xf32> to vector<1x512xf32>
    %435 = vector.broadcast %434 : vector<1x512xf32> to vector<8x512xf32>
    %436 = arith.addf %432, %435 : vector<8x512xf32>
    %c0_217 = arith.constant 0 : index
    %c0_218 = arith.constant 0 : index
    %437 = vector.load %arg6[%c0_217, %c0_218] : memref<8x128xf32, #tpu.memory_space<vmem>>, vector<8x128xf32>
    %438 = arith.truncf %437 : vector<8x128xf32> to vector<8x128xbf16>
    %c1_219 = arith.constant 1 : index
    %c0_220 = arith.constant 0 : index
    %c0_221 = arith.constant 0 : index
    %439 = vector.load %arg2[%c1_219, %c0_220, %c0_221] : memref<2x128x512xbf16, #tpu.memory_space<vmem>>, vector<1x128x512xbf16>
    %440 = vector.shape_cast %439 : vector<1x128x512xbf16> to vector<128x512xbf16>
    %cst_222 = arith.constant dense<0.000000e+00> : vector<8x512xf32>
    %441 = tpu.matmul %438, %440, %cst_222 {dimension_numbers = #tpu.dot_dimension_numbers<[1], [0], [0], [1], [0, 0, 1, 1], [], []>} : vector<8x128xbf16>, vector<128x512xbf16>, vector<8x512xf32> -> vector<8x512xf32>
    %442 = arith.addf %436, %441 : vector<8x512xf32>
    %443 = vector.extract_strided_slice %442 {offsets = [0, 0], sizes = [8, 128], strides = [1, 1]} : vector<8x512xf32> to vector<8x128xf32>
    %444 = arith.negf %443 : vector<8x128xf32>
    %445 = math.exp %444 : vector<8x128xf32>
    %cst_223 = arith.constant 1.000000e+00 : f32
    %446 = vector.broadcast %cst_223 : f32 to vector<8x128xf32>
    %447 = arith.addf %446, %445 : vector<8x128xf32>
    %448 = arith.divf %446, %447 : vector<8x128xf32>
    %449 = vector.extract_strided_slice %442 {offsets = [0, 128], sizes = [8, 128], strides = [1, 1]} : vector<8x512xf32> to vector<8x128xf32>
    %450 = arith.negf %449 : vector<8x128xf32>
    %451 = math.exp %450 : vector<8x128xf32>
    %cst_224 = arith.constant 1.000000e+00 : f32
    %452 = vector.broadcast %cst_224 : f32 to vector<8x128xf32>
    %453 = arith.addf %452, %451 : vector<8x128xf32>
    %454 = arith.divf %452, %453 : vector<8x128xf32>
    %455 = vector.extract_strided_slice %442 {offsets = [0, 256], sizes = [8, 128], strides = [1, 1]} : vector<8x512xf32> to vector<8x128xf32>
    %456 = math.tanh %455 : vector<8x128xf32>
    %457 = vector.extract_strided_slice %442 {offsets = [0, 384], sizes = [8, 128], strides = [1, 1]} : vector<8x512xf32> to vector<8x128xf32>
    %458 = arith.negf %457 : vector<8x128xf32>
    %459 = math.exp %458 : vector<8x128xf32>
    %cst_225 = arith.constant 1.000000e+00 : f32
    %460 = vector.broadcast %cst_225 : f32 to vector<8x128xf32>
    %461 = arith.addf %460, %459 : vector<8x128xf32>
    %462 = arith.divf %460, %461 : vector<8x128xf32>
    %c0_226 = arith.constant 0 : index
    %c0_227 = arith.constant 0 : index
    %463 = vector.load %arg7[%c0_226, %c0_227] : memref<8x128xf32, #tpu.memory_space<vmem>>, vector<8x128xf32>
    %464 = arith.mulf %454, %463 : vector<8x128xf32>
    %465 = arith.mulf %448, %456 : vector<8x128xf32>
    %466 = arith.addf %464, %465 : vector<8x128xf32>
    %467 = math.tanh %466 : vector<8x128xf32>
    %468 = arith.mulf %462, %467 : vector<8x128xf32>
    %c0_228 = arith.constant 0 : index
    %c0_229 = arith.constant 0 : index
    %469 = vector.load %arg7[%c0_228, %c0_229] : memref<8x128xf32, #tpu.memory_space<vmem>>, vector<8x128xf32>
    tpu.vector_store %arg7[%c0_228, %c0_229], %466 {strides = array<i32>} : memref<8x128xf32, #tpu.memory_space<vmem>>, vector<8x128xf32>,
    %c0_230 = arith.constant 0 : index
    %c0_231 = arith.constant 0 : index
    %470 = vector.load %arg6[%c0_230, %c0_231] : memref<8x128xf32, #tpu.memory_space<vmem>>, vector<8x128xf32>
    tpu.vector_store %arg6[%c0_230, %c0_231], %468 {strides = array<i32>} : memref<8x128xf32, #tpu.memory_space<vmem>>, vector<8x128xf32>,
    %471 = arith.index_cast %c1_i32_207 : i32 to index
    %c0_232 = arith.constant 0 : index
    %c0_233 = arith.constant 0 : index
    %472 = vector.load %arg5[%471, %c0_232, %c0_233] : memref<9x8x128xf32, #tpu.memory_space<vmem>>, vector<1x8x128xf32>
    %473 = vector.shape_cast %472 : vector<1x8x128xf32> to vector<8x128xf32>
    %474 = vector.shape_cast %468 : vector<8x128xf32> to vector<1x8x128xf32>
    tpu.vector_store %arg5[%471, %c0_232, %c0_233], %474 {strides = array<i32>} : memref<9x8x128xf32, #tpu.memory_space<vmem>>, vector<1x8x128xf32>,
    %c2_i32_234 = arith.constant 2 : i32
    %475 = arith.index_cast %c2_i32_234 : i32 to index
    %c0_235 = arith.constant 0 : index
    %c0_236 = arith.constant 0 : index
    %476 = vector.load %arg5[%475, %c0_235, %c0_236] : memref<9x8x128xf32, #tpu.memory_space<vmem>>, vector<1x8x128xf32>
    %477 = vector.shape_cast %476 : vector<1x8x128xf32> to vector<8x128xf32>
    %478 = arith.truncf %477 : vector<8x128xf32> to vector<8x128xbf16>
    %c0_237 = arith.constant 0 : index
    %c0_238 = arith.constant 0 : index
    %c0_239 = arith.constant 0 : index
    %479 = vector.load %arg3[%c0_237, %c0_238, %c0_239] : memref<1x128x512xbf16, #tpu.memory_space<vmem>>, vector<1x128x512xbf16>
    %480 = vector.shape_cast %479 : vector<1x128x512xbf16> to vector<128x512xbf16>
    %cst_240 = arith.constant dense<0.000000e+00> : vector<8x512xf32>
    %481 = tpu.matmul %478, %480, %cst_240 {dimension_numbers = #tpu.dot_dimension_numbers<[1], [0], [0], [1], [0, 0, 1, 1], [], []>} : vector<8x128xbf16>, vector<128x512xbf16>, vector<8x512xf32> -> vector<8x512xf32>
    %c0_241 = arith.constant 0 : index
    %c0_242 = arith.constant 0 : index
    %c0_243 = arith.constant 0 : index
    %482 = vector.load %arg4[%c0_241, %c0_242, %c0_243] : memref<1x1x512xf32, #tpu.memory_space<vmem>>, vector<1x1x512xf32>
    %483 = vector.shape_cast %482 : vector<1x1x512xf32> to vector<1x512xf32>
    %484 = vector.broadcast %483 : vector<1x512xf32> to vector<8x512xf32>
    %485 = arith.addf %481, %484 : vector<8x512xf32>
    %c0_244 = arith.constant 0 : index
    %c0_245 = arith.constant 0 : index
    %486 = vector.load %arg6[%c0_244, %c0_245] : memref<8x128xf32, #tpu.memory_space<vmem>>, vector<8x128xf32>
    %487 = arith.truncf %486 : vector<8x128xf32> to vector<8x128xbf16>
    %c1_246 = arith.constant 1 : index
    %c0_247 = arith.constant 0 : index
    %c0_248 = arith.constant 0 : index
    %488 = vector.load %arg2[%c1_246, %c0_247, %c0_248] : memref<2x128x512xbf16, #tpu.memory_space<vmem>>, vector<1x128x512xbf16>
    %489 = vector.shape_cast %488 : vector<1x128x512xbf16> to vector<128x512xbf16>
    %cst_249 = arith.constant dense<0.000000e+00> : vector<8x512xf32>
    %490 = tpu.matmul %487, %489, %cst_249 {dimension_numbers = #tpu.dot_dimension_numbers<[1], [0], [0], [1], [0, 0, 1, 1], [], []>} : vector<8x128xbf16>, vector<128x512xbf16>, vector<8x512xf32> -> vector<8x512xf32>
    %491 = arith.addf %485, %490 : vector<8x512xf32>
    %492 = vector.extract_strided_slice %491 {offsets = [0, 0], sizes = [8, 128], strides = [1, 1]} : vector<8x512xf32> to vector<8x128xf32>
    %493 = arith.negf %492 : vector<8x128xf32>
    %494 = math.exp %493 : vector<8x128xf32>
    %cst_250 = arith.constant 1.000000e+00 : f32
    %495 = vector.broadcast %cst_250 : f32 to vector<8x128xf32>
    %496 = arith.addf %495, %494 : vector<8x128xf32>
    %497 = arith.divf %495, %496 : vector<8x128xf32>
    %498 = vector.extract_strided_slice %491 {offsets = [0, 128], sizes = [8, 128], strides = [1, 1]} : vector<8x512xf32> to vector<8x128xf32>
    %499 = arith.negf %498 : vector<8x128xf32>
    %500 = math.exp %499 : vector<8x128xf32>
    %cst_251 = arith.constant 1.000000e+00 : f32
    %501 = vector.broadcast %cst_251 : f32 to vector<8x128xf32>
    %502 = arith.addf %501, %500 : vector<8x128xf32>
    %503 = arith.divf %501, %502 : vector<8x128xf32>
    %504 = vector.extract_strided_slice %491 {offsets = [0, 256], sizes = [8, 128], strides = [1, 1]} : vector<8x512xf32> to vector<8x128xf32>
    %505 = math.tanh %504 : vector<8x128xf32>
    %506 = vector.extract_strided_slice %491 {offsets = [0, 384], sizes = [8, 128], strides = [1, 1]} : vector<8x512xf32> to vector<8x128xf32>
    %507 = arith.negf %506 : vector<8x128xf32>
    %508 = math.exp %507 : vector<8x128xf32>
    %cst_252 = arith.constant 1.000000e+00 : f32
    %509 = vector.broadcast %cst_252 : f32 to vector<8x128xf32>
    %510 = arith.addf %509, %508 : vector<8x128xf32>
    %511 = arith.divf %509, %510 : vector<8x128xf32>
    %c0_253 = arith.constant 0 : index
    %c0_254 = arith.constant 0 : index
    %512 = vector.load %arg7[%c0_253, %c0_254] : memref<8x128xf32, #tpu.memory_space<vmem>>, vector<8x128xf32>
    %513 = arith.mulf %503, %512 : vector<8x128xf32>
    %514 = arith.mulf %497, %505 : vector<8x128xf32>
    %515 = arith.addf %513, %514 : vector<8x128xf32>
    %516 = math.tanh %515 : vector<8x128xf32>
    %517 = arith.mulf %511, %516 : vector<8x128xf32>
    %c0_255 = arith.constant 0 : index
    %c0_256 = arith.constant 0 : index
    %518 = vector.load %arg7[%c0_255, %c0_256] : memref<8x128xf32, #tpu.memory_space<vmem>>, vector<8x128xf32>
    tpu.vector_store %arg7[%c0_255, %c0_256], %515 {strides = array<i32>} : memref<8x128xf32, #tpu.memory_space<vmem>>, vector<8x128xf32>,
    %c0_257 = arith.constant 0 : index
    %c0_258 = arith.constant 0 : index
    %519 = vector.load %arg6[%c0_257, %c0_258] : memref<8x128xf32, #tpu.memory_space<vmem>>, vector<8x128xf32>
    tpu.vector_store %arg6[%c0_257, %c0_258], %517 {strides = array<i32>} : memref<8x128xf32, #tpu.memory_space<vmem>>, vector<8x128xf32>,
    %520 = arith.index_cast %c2_i32_234 : i32 to index
    %c0_259 = arith.constant 0 : index
    %c0_260 = arith.constant 0 : index
    %521 = vector.load %arg5[%520, %c0_259, %c0_260] : memref<9x8x128xf32, #tpu.memory_space<vmem>>, vector<1x8x128xf32>
    %522 = vector.shape_cast %521 : vector<1x8x128xf32> to vector<8x128xf32>
    %523 = vector.shape_cast %517 : vector<8x128xf32> to vector<1x8x128xf32>
    tpu.vector_store %arg5[%520, %c0_259, %c0_260], %523 {strides = array<i32>} : memref<9x8x128xf32, #tpu.memory_space<vmem>>, vector<1x8x128xf32>,
    %c3_i32_261 = arith.constant 3 : i32
    %524 = arith.index_cast %c3_i32_261 : i32 to index
    %c0_262 = arith.constant 0 : index
    %c0_263 = arith.constant 0 : index
    %525 = vector.load %arg5[%524, %c0_262, %c0_263] : memref<9x8x128xf32, #tpu.memory_space<vmem>>, vector<1x8x128xf32>
    %526 = vector.shape_cast %525 : vector<1x8x128xf32> to vector<8x128xf32>
    %527 = arith.truncf %526 : vector<8x128xf32> to vector<8x128xbf16>
    %c0_264 = arith.constant 0 : index
    %c0_265 = arith.constant 0 : index
    %c0_266 = arith.constant 0 : index
    %528 = vector.load %arg3[%c0_264, %c0_265, %c0_266] : memref<1x128x512xbf16, #tpu.memory_space<vmem>>, vector<1x128x512xbf16>
    %529 = vector.shape_cast %528 : vector<1x128x512xbf16> to vector<128x512xbf16>
    %cst_267 = arith.constant dense<0.000000e+00> : vector<8x512xf32>
    %530 = tpu.matmul %527, %529, %cst_267 {dimension_numbers = #tpu.dot_dimension_numbers<[1], [0], [0], [1], [0, 0, 1, 1], [], []>} : vector<8x128xbf16>, vector<128x512xbf16>, vector<8x512xf32> -> vector<8x512xf32>
    %c0_268 = arith.constant 0 : index
    %c0_269 = arith.constant 0 : index
    %c0_270 = arith.constant 0 : index
    %531 = vector.load %arg4[%c0_268, %c0_269, %c0_270] : memref<1x1x512xf32, #tpu.memory_space<vmem>>, vector<1x1x512xf32>
    %532 = vector.shape_cast %531 : vector<1x1x512xf32> to vector<1x512xf32>
    %533 = vector.broadcast %532 : vector<1x512xf32> to vector<8x512xf32>
    %534 = arith.addf %530, %533 : vector<8x512xf32>
    %c0_271 = arith.constant 0 : index
    %c0_272 = arith.constant 0 : index
    %535 = vector.load %arg6[%c0_271, %c0_272] : memref<8x128xf32, #tpu.memory_space<vmem>>, vector<8x128xf32>
    %536 = arith.truncf %535 : vector<8x128xf32> to vector<8x128xbf16>
    %c1_273 = arith.constant 1 : index
    %c0_274 = arith.constant 0 : index
    %c0_275 = arith.constant 0 : index
    %537 = vector.load %arg2[%c1_273, %c0_274, %c0_275] : memref<2x128x512xbf16, #tpu.memory_space<vmem>>, vector<1x128x512xbf16>
    %538 = vector.shape_cast %537 : vector<1x128x512xbf16> to vector<128x512xbf16>
    %cst_276 = arith.constant dense<0.000000e+00> : vector<8x512xf32>
    %539 = tpu.matmul %536, %538, %cst_276 {dimension_numbers = #tpu.dot_dimension_numbers<[1], [0], [0], [1], [0, 0, 1, 1], [], []>} : vector<8x128xbf16>, vector<128x512xbf16>, vector<8x512xf32> -> vector<8x512xf32>
    %540 = arith.addf %534, %539 : vector<8x512xf32>
    %541 = vector.extract_strided_slice %540 {offsets = [0, 0], sizes = [8, 128], strides = [1, 1]} : vector<8x512xf32> to vector<8x128xf32>
    %542 = arith.negf %541 : vector<8x128xf32>
    %543 = math.exp %542 : vector<8x128xf32>
    %cst_277 = arith.constant 1.000000e+00 : f32
    %544 = vector.broadcast %cst_277 : f32 to vector<8x128xf32>
    %545 = arith.addf %544, %543 : vector<8x128xf32>
    %546 = arith.divf %544, %545 : vector<8x128xf32>
    %547 = vector.extract_strided_slice %540 {offsets = [0, 128], sizes = [8, 128], strides = [1, 1]} : vector<8x512xf32> to vector<8x128xf32>
    %548 = arith.negf %547 : vector<8x128xf32>
    %549 = math.exp %548 : vector<8x128xf32>
    %cst_278 = arith.constant 1.000000e+00 : f32
    %550 = vector.broadcast %cst_278 : f32 to vector<8x128xf32>
    %551 = arith.addf %550, %549 : vector<8x128xf32>
    %552 = arith.divf %550, %551 : vector<8x128xf32>
    %553 = vector.extract_strided_slice %540 {offsets = [0, 256], sizes = [8, 128], strides = [1, 1]} : vector<8x512xf32> to vector<8x128xf32>
    %554 = math.tanh %553 : vector<8x128xf32>
    %555 = vector.extract_strided_slice %540 {offsets = [0, 384], sizes = [8, 128], strides = [1, 1]} : vector<8x512xf32> to vector<8x128xf32>
    %556 = arith.negf %555 : vector<8x128xf32>
    %557 = math.exp %556 : vector<8x128xf32>
    %cst_279 = arith.constant 1.000000e+00 : f32
    %558 = vector.broadcast %cst_279 : f32 to vector<8x128xf32>
    %559 = arith.addf %558, %557 : vector<8x128xf32>
    %560 = arith.divf %558, %559 : vector<8x128xf32>
    %c0_280 = arith.constant 0 : index
    %c0_281 = arith.constant 0 : index
    %561 = vector.load %arg7[%c0_280, %c0_281] : memref<8x128xf32, #tpu.memory_space<vmem>>, vector<8x128xf32>
    %562 = arith.mulf %552, %561 : vector<8x128xf32>
    %563 = arith.mulf %546, %554 : vector<8x128xf32>
    %564 = arith.addf %562, %563 : vector<8x128xf32>
    %565 = math.tanh %564 : vector<8x128xf32>
    %566 = arith.mulf %560, %565 : vector<8x128xf32>
    %c0_282 = arith.constant 0 : index
    %c0_283 = arith.constant 0 : index
    %567 = vector.load %arg7[%c0_282, %c0_283] : memref<8x128xf32, #tpu.memory_space<vmem>>, vector<8x128xf32>
    tpu.vector_store %arg7[%c0_282, %c0_283], %564 {strides = array<i32>} : memref<8x128xf32, #tpu.memory_space<vmem>>, vector<8x128xf32>,
    %c0_284 = arith.constant 0 : index
    %c0_285 = arith.constant 0 : index
    %568 = vector.load %arg6[%c0_284, %c0_285] : memref<8x128xf32, #tpu.memory_space<vmem>>, vector<8x128xf32>
    tpu.vector_store %arg6[%c0_284, %c0_285], %566 {strides = array<i32>} : memref<8x128xf32, #tpu.memory_space<vmem>>, vector<8x128xf32>,
    %569 = arith.index_cast %c3_i32_261 : i32 to index
    %c0_286 = arith.constant 0 : index
    %c0_287 = arith.constant 0 : index
    %570 = vector.load %arg5[%569, %c0_286, %c0_287] : memref<9x8x128xf32, #tpu.memory_space<vmem>>, vector<1x8x128xf32>
    %571 = vector.shape_cast %570 : vector<1x8x128xf32> to vector<8x128xf32>
    %572 = vector.shape_cast %566 : vector<8x128xf32> to vector<1x8x128xf32>
    tpu.vector_store %arg5[%569, %c0_286, %c0_287], %572 {strides = array<i32>} : memref<9x8x128xf32, #tpu.memory_space<vmem>>, vector<1x8x128xf32>,
    %c4_i32_288 = arith.constant 4 : i32
    %573 = arith.index_cast %c4_i32_288 : i32 to index
    %c0_289 = arith.constant 0 : index
    %c0_290 = arith.constant 0 : index
    %574 = vector.load %arg5[%573, %c0_289, %c0_290] : memref<9x8x128xf32, #tpu.memory_space<vmem>>, vector<1x8x128xf32>
    %575 = vector.shape_cast %574 : vector<1x8x128xf32> to vector<8x128xf32>
    %576 = arith.truncf %575 : vector<8x128xf32> to vector<8x128xbf16>
    %c0_291 = arith.constant 0 : index
    %c0_292 = arith.constant 0 : index
    %c0_293 = arith.constant 0 : index
    %577 = vector.load %arg3[%c0_291, %c0_292, %c0_293] : memref<1x128x512xbf16, #tpu.memory_space<vmem>>, vector<1x128x512xbf16>
    %578 = vector.shape_cast %577 : vector<1x128x512xbf16> to vector<128x512xbf16>
    %cst_294 = arith.constant dense<0.000000e+00> : vector<8x512xf32>
    %579 = tpu.matmul %576, %578, %cst_294 {dimension_numbers = #tpu.dot_dimension_numbers<[1], [0], [0], [1], [0, 0, 1, 1], [], []>} : vector<8x128xbf16>, vector<128x512xbf16>, vector<8x512xf32> -> vector<8x512xf32>
    %c0_295 = arith.constant 0 : index
    %c0_296 = arith.constant 0 : index
    %c0_297 = arith.constant 0 : index
    %580 = vector.load %arg4[%c0_295, %c0_296, %c0_297] : memref<1x1x512xf32, #tpu.memory_space<vmem>>, vector<1x1x512xf32>
    %581 = vector.shape_cast %580 : vector<1x1x512xf32> to vector<1x512xf32>
    %582 = vector.broadcast %581 : vector<1x512xf32> to vector<8x512xf32>
    %583 = arith.addf %579, %582 : vector<8x512xf32>
    %c0_298 = arith.constant 0 : index
    %c0_299 = arith.constant 0 : index
    %584 = vector.load %arg6[%c0_298, %c0_299] : memref<8x128xf32, #tpu.memory_space<vmem>>, vector<8x128xf32>
    %585 = arith.truncf %584 : vector<8x128xf32> to vector<8x128xbf16>
    %c1_300 = arith.constant 1 : index
    %c0_301 = arith.constant 0 : index
    %c0_302 = arith.constant 0 : index
    %586 = vector.load %arg2[%c1_300, %c0_301, %c0_302] : memref<2x128x512xbf16, #tpu.memory_space<vmem>>, vector<1x128x512xbf16>
    %587 = vector.shape_cast %586 : vector<1x128x512xbf16> to vector<128x512xbf16>
    %cst_303 = arith.constant dense<0.000000e+00> : vector<8x512xf32>
    %588 = tpu.matmul %585, %587, %cst_303 {dimension_numbers = #tpu.dot_dimension_numbers<[1], [0], [0], [1], [0, 0, 1, 1], [], []>} : vector<8x128xbf16>, vector<128x512xbf16>, vector<8x512xf32> -> vector<8x512xf32>
    %589 = arith.addf %583, %588 : vector<8x512xf32>
    %590 = vector.extract_strided_slice %589 {offsets = [0, 0], sizes = [8, 128], strides = [1, 1]} : vector<8x512xf32> to vector<8x128xf32>
    %591 = arith.negf %590 : vector<8x128xf32>
    %592 = math.exp %591 : vector<8x128xf32>
    %cst_304 = arith.constant 1.000000e+00 : f32
    %593 = vector.broadcast %cst_304 : f32 to vector<8x128xf32>
    %594 = arith.addf %593, %592 : vector<8x128xf32>
    %595 = arith.divf %593, %594 : vector<8x128xf32>
    %596 = vector.extract_strided_slice %589 {offsets = [0, 128], sizes = [8, 128], strides = [1, 1]} : vector<8x512xf32> to vector<8x128xf32>
    %597 = arith.negf %596 : vector<8x128xf32>
    %598 = math.exp %597 : vector<8x128xf32>
    %cst_305 = arith.constant 1.000000e+00 : f32
    %599 = vector.broadcast %cst_305 : f32 to vector<8x128xf32>
    %600 = arith.addf %599, %598 : vector<8x128xf32>
    %601 = arith.divf %599, %600 : vector<8x128xf32>
    %602 = vector.extract_strided_slice %589 {offsets = [0, 256], sizes = [8, 128], strides = [1, 1]} : vector<8x512xf32> to vector<8x128xf32>
    %603 = math.tanh %602 : vector<8x128xf32>
    %604 = vector.extract_strided_slice %589 {offsets = [0, 384], sizes = [8, 128], strides = [1, 1]} : vector<8x512xf32> to vector<8x128xf32>
    %605 = arith.negf %604 : vector<8x128xf32>
    %606 = math.exp %605 : vector<8x128xf32>
    %cst_306 = arith.constant 1.000000e+00 : f32
    %607 = vector.broadcast %cst_306 : f32 to vector<8x128xf32>
    %608 = arith.addf %607, %606 : vector<8x128xf32>
    %609 = arith.divf %607, %608 : vector<8x128xf32>
    %c0_307 = arith.constant 0 : index
    %c0_308 = arith.constant 0 : index
    %610 = vector.load %arg7[%c0_307, %c0_308] : memref<8x128xf32, #tpu.memory_space<vmem>>, vector<8x128xf32>
    %611 = arith.mulf %601, %610 : vector<8x128xf32>
    %612 = arith.mulf %595, %603 : vector<8x128xf32>
    %613 = arith.addf %611, %612 : vector<8x128xf32>
    %614 = math.tanh %613 : vector<8x128xf32>
    %615 = arith.mulf %609, %614 : vector<8x128xf32>
    %c0_309 = arith.constant 0 : index
    %c0_310 = arith.constant 0 : index
    %616 = vector.load %arg7[%c0_309, %c0_310] : memref<8x128xf32, #tpu.memory_space<vmem>>, vector<8x128xf32>
    tpu.vector_store %arg7[%c0_309, %c0_310], %613 {strides = array<i32>} : memref<8x128xf32, #tpu.memory_space<vmem>>, vector<8x128xf32>,
    %c0_311 = arith.constant 0 : index
    %c0_312 = arith.constant 0 : index
    %617 = vector.load %arg6[%c0_311, %c0_312] : memref<8x128xf32, #tpu.memory_space<vmem>>, vector<8x128xf32>
    tpu.vector_store %arg6[%c0_311, %c0_312], %615 {strides = array<i32>} : memref<8x128xf32, #tpu.memory_space<vmem>>, vector<8x128xf32>,
    %618 = arith.index_cast %c4_i32_288 : i32 to index
    %c0_313 = arith.constant 0 : index
    %c0_314 = arith.constant 0 : index
    %619 = vector.load %arg5[%618, %c0_313, %c0_314] : memref<9x8x128xf32, #tpu.memory_space<vmem>>, vector<1x8x128xf32>
    %620 = vector.shape_cast %619 : vector<1x8x128xf32> to vector<8x128xf32>
    %621 = vector.shape_cast %615 : vector<8x128xf32> to vector<1x8x128xf32>
    tpu.vector_store %arg5[%618, %c0_313, %c0_314], %621 {strides = array<i32>} : memref<9x8x128xf32, #tpu.memory_space<vmem>>, vector<1x8x128xf32>,
    %c5_i32_315 = arith.constant 5 : i32
    %622 = arith.index_cast %c5_i32_315 : i32 to index
    %c0_316 = arith.constant 0 : index
    %c0_317 = arith.constant 0 : index
    %623 = vector.load %arg5[%622, %c0_316, %c0_317] : memref<9x8x128xf32, #tpu.memory_space<vmem>>, vector<1x8x128xf32>
    %624 = vector.shape_cast %623 : vector<1x8x128xf32> to vector<8x128xf32>
    %625 = arith.truncf %624 : vector<8x128xf32> to vector<8x128xbf16>
    %c0_318 = arith.constant 0 : index
    %c0_319 = arith.constant 0 : index
    %c0_320 = arith.constant 0 : index
    %626 = vector.load %arg3[%c0_318, %c0_319, %c0_320] : memref<1x128x512xbf16, #tpu.memory_space<vmem>>, vector<1x128x512xbf16>
    %627 = vector.shape_cast %626 : vector<1x128x512xbf16> to vector<128x512xbf16>
    %cst_321 = arith.constant dense<0.000000e+00> : vector<8x512xf32>
    %628 = tpu.matmul %625, %627, %cst_321 {dimension_numbers = #tpu.dot_dimension_numbers<[1], [0], [0], [1], [0, 0, 1, 1], [], []>} : vector<8x128xbf16>, vector<128x512xbf16>, vector<8x512xf32> -> vector<8x512xf32>
    %c0_322 = arith.constant 0 : index
    %c0_323 = arith.constant 0 : index
    %c0_324 = arith.constant 0 : index
    %629 = vector.load %arg4[%c0_322, %c0_323, %c0_324] : memref<1x1x512xf32, #tpu.memory_space<vmem>>, vector<1x1x512xf32>
    %630 = vector.shape_cast %629 : vector<1x1x512xf32> to vector<1x512xf32>
    %631 = vector.broadcast %630 : vector<1x512xf32> to vector<8x512xf32>
    %632 = arith.addf %628, %631 : vector<8x512xf32>
    %c0_325 = arith.constant 0 : index
    %c0_326 = arith.constant 0 : index
    %633 = vector.load %arg6[%c0_325, %c0_326] : memref<8x128xf32, #tpu.memory_space<vmem>>, vector<8x128xf32>
    %634 = arith.truncf %633 : vector<8x128xf32> to vector<8x128xbf16>
    %c1_327 = arith.constant 1 : index
    %c0_328 = arith.constant 0 : index
    %c0_329 = arith.constant 0 : index
    %635 = vector.load %arg2[%c1_327, %c0_328, %c0_329] : memref<2x128x512xbf16, #tpu.memory_space<vmem>>, vector<1x128x512xbf16>
    %636 = vector.shape_cast %635 : vector<1x128x512xbf16> to vector<128x512xbf16>
    %cst_330 = arith.constant dense<0.000000e+00> : vector<8x512xf32>
    %637 = tpu.matmul %634, %636, %cst_330 {dimension_numbers = #tpu.dot_dimension_numbers<[1], [0], [0], [1], [0, 0, 1, 1], [], []>} : vector<8x128xbf16>, vector<128x512xbf16>, vector<8x512xf32> -> vector<8x512xf32>
    %638 = arith.addf %632, %637 : vector<8x512xf32>
    %639 = vector.extract_strided_slice %638 {offsets = [0, 0], sizes = [8, 128], strides = [1, 1]} : vector<8x512xf32> to vector<8x128xf32>
    %640 = arith.negf %639 : vector<8x128xf32>
    %641 = math.exp %640 : vector<8x128xf32>
    %cst_331 = arith.constant 1.000000e+00 : f32
    %642 = vector.broadcast %cst_331 : f32 to vector<8x128xf32>
    %643 = arith.addf %642, %641 : vector<8x128xf32>
    %644 = arith.divf %642, %643 : vector<8x128xf32>
    %645 = vector.extract_strided_slice %638 {offsets = [0, 128], sizes = [8, 128], strides = [1, 1]} : vector<8x512xf32> to vector<8x128xf32>
    %646 = arith.negf %645 : vector<8x128xf32>
    %647 = math.exp %646 : vector<8x128xf32>
    %cst_332 = arith.constant 1.000000e+00 : f32
    %648 = vector.broadcast %cst_332 : f32 to vector<8x128xf32>
    %649 = arith.addf %648, %647 : vector<8x128xf32>
    %650 = arith.divf %648, %649 : vector<8x128xf32>
    %651 = vector.extract_strided_slice %638 {offsets = [0, 256], sizes = [8, 128], strides = [1, 1]} : vector<8x512xf32> to vector<8x128xf32>
    %652 = math.tanh %651 : vector<8x128xf32>
    %653 = vector.extract_strided_slice %638 {offsets = [0, 384], sizes = [8, 128], strides = [1, 1]} : vector<8x512xf32> to vector<8x128xf32>
    %654 = arith.negf %653 : vector<8x128xf32>
    %655 = math.exp %654 : vector<8x128xf32>
    %cst_333 = arith.constant 1.000000e+00 : f32
    %656 = vector.broadcast %cst_333 : f32 to vector<8x128xf32>
    %657 = arith.addf %656, %655 : vector<8x128xf32>
    %658 = arith.divf %656, %657 : vector<8x128xf32>
    %c0_334 = arith.constant 0 : index
    %c0_335 = arith.constant 0 : index
    %659 = vector.load %arg7[%c0_334, %c0_335] : memref<8x128xf32, #tpu.memory_space<vmem>>, vector<8x128xf32>
    %660 = arith.mulf %650, %659 : vector<8x128xf32>
    %661 = arith.mulf %644, %652 : vector<8x128xf32>
    %662 = arith.addf %660, %661 : vector<8x128xf32>
    %663 = math.tanh %662 : vector<8x128xf32>
    %664 = arith.mulf %658, %663 : vector<8x128xf32>
    %c0_336 = arith.constant 0 : index
    %c0_337 = arith.constant 0 : index
    %665 = vector.load %arg7[%c0_336, %c0_337] : memref<8x128xf32, #tpu.memory_space<vmem>>, vector<8x128xf32>
    tpu.vector_store %arg7[%c0_336, %c0_337], %662 {strides = array<i32>} : memref<8x128xf32, #tpu.memory_space<vmem>>, vector<8x128xf32>,
    %c0_338 = arith.constant 0 : index
    %c0_339 = arith.constant 0 : index
    %666 = vector.load %arg6[%c0_338, %c0_339] : memref<8x128xf32, #tpu.memory_space<vmem>>, vector<8x128xf32>
    tpu.vector_store %arg6[%c0_338, %c0_339], %664 {strides = array<i32>} : memref<8x128xf32, #tpu.memory_space<vmem>>, vector<8x128xf32>,
    %667 = arith.index_cast %c5_i32_315 : i32 to index
    %c0_340 = arith.constant 0 : index
    %c0_341 = arith.constant 0 : index
    %668 = vector.load %arg5[%667, %c0_340, %c0_341] : memref<9x8x128xf32, #tpu.memory_space<vmem>>, vector<1x8x128xf32>
    %669 = vector.shape_cast %668 : vector<1x8x128xf32> to vector<8x128xf32>
    %670 = vector.shape_cast %664 : vector<8x128xf32> to vector<1x8x128xf32>
    tpu.vector_store %arg5[%667, %c0_340, %c0_341], %670 {strides = array<i32>} : memref<9x8x128xf32, #tpu.memory_space<vmem>>, vector<1x8x128xf32>,
    %c6_i32_342 = arith.constant 6 : i32
    %671 = arith.index_cast %c6_i32_342 : i32 to index
    %c0_343 = arith.constant 0 : index
    %c0_344 = arith.constant 0 : index
    %672 = vector.load %arg5[%671, %c0_343, %c0_344] : memref<9x8x128xf32, #tpu.memory_space<vmem>>, vector<1x8x128xf32>
    %673 = vector.shape_cast %672 : vector<1x8x128xf32> to vector<8x128xf32>
    %674 = arith.truncf %673 : vector<8x128xf32> to vector<8x128xbf16>
    %c0_345 = arith.constant 0 : index
    %c0_346 = arith.constant 0 : index
    %c0_347 = arith.constant 0 : index
    %675 = vector.load %arg3[%c0_345, %c0_346, %c0_347] : memref<1x128x512xbf16, #tpu.memory_space<vmem>>, vector<1x128x512xbf16>
    %676 = vector.shape_cast %675 : vector<1x128x512xbf16> to vector<128x512xbf16>
    %cst_348 = arith.constant dense<0.000000e+00> : vector<8x512xf32>
    %677 = tpu.matmul %674, %676, %cst_348 {dimension_numbers = #tpu.dot_dimension_numbers<[1], [0], [0], [1], [0, 0, 1, 1], [], []>} : vector<8x128xbf16>, vector<128x512xbf16>, vector<8x512xf32> -> vector<8x512xf32>
    %c0_349 = arith.constant 0 : index
    %c0_350 = arith.constant 0 : index
    %c0_351 = arith.constant 0 : index
    %678 = vector.load %arg4[%c0_349, %c0_350, %c0_351] : memref<1x1x512xf32, #tpu.memory_space<vmem>>, vector<1x1x512xf32>
    %679 = vector.shape_cast %678 : vector<1x1x512xf32> to vector<1x512xf32>
    %680 = vector.broadcast %679 : vector<1x512xf32> to vector<8x512xf32>
    %681 = arith.addf %677, %680 : vector<8x512xf32>
    %c0_352 = arith.constant 0 : index
    %c0_353 = arith.constant 0 : index
    %682 = vector.load %arg6[%c0_352, %c0_353] : memref<8x128xf32, #tpu.memory_space<vmem>>, vector<8x128xf32>
    %683 = arith.truncf %682 : vector<8x128xf32> to vector<8x128xbf16>
    %c1_354 = arith.constant 1 : index
    %c0_355 = arith.constant 0 : index
    %c0_356 = arith.constant 0 : index
    %684 = vector.load %arg2[%c1_354, %c0_355, %c0_356] : memref<2x128x512xbf16, #tpu.memory_space<vmem>>, vector<1x128x512xbf16>
    %685 = vector.shape_cast %684 : vector<1x128x512xbf16> to vector<128x512xbf16>
    %cst_357 = arith.constant dense<0.000000e+00> : vector<8x512xf32>
    %686 = tpu.matmul %683, %685, %cst_357 {dimension_numbers = #tpu.dot_dimension_numbers<[1], [0], [0], [1], [0, 0, 1, 1], [], []>} : vector<8x128xbf16>, vector<128x512xbf16>, vector<8x512xf32> -> vector<8x512xf32>
    %687 = arith.addf %681, %686 : vector<8x512xf32>
    %688 = vector.extract_strided_slice %687 {offsets = [0, 0], sizes = [8, 128], strides = [1, 1]} : vector<8x512xf32> to vector<8x128xf32>
    %689 = arith.negf %688 : vector<8x128xf32>
    %690 = math.exp %689 : vector<8x128xf32>
    %cst_358 = arith.constant 1.000000e+00 : f32
    %691 = vector.broadcast %cst_358 : f32 to vector<8x128xf32>
    %692 = arith.addf %691, %690 : vector<8x128xf32>
    %693 = arith.divf %691, %692 : vector<8x128xf32>
    %694 = vector.extract_strided_slice %687 {offsets = [0, 128], sizes = [8, 128], strides = [1, 1]} : vector<8x512xf32> to vector<8x128xf32>
    %695 = arith.negf %694 : vector<8x128xf32>
    %696 = math.exp %695 : vector<8x128xf32>
    %cst_359 = arith.constant 1.000000e+00 : f32
    %697 = vector.broadcast %cst_359 : f32 to vector<8x128xf32>
    %698 = arith.addf %697, %696 : vector<8x128xf32>
    %699 = arith.divf %697, %698 : vector<8x128xf32>
    %700 = vector.extract_strided_slice %687 {offsets = [0, 256], sizes = [8, 128], strides = [1, 1]} : vector<8x512xf32> to vector<8x128xf32>
    %701 = math.tanh %700 : vector<8x128xf32>
    %702 = vector.extract_strided_slice %687 {offsets = [0, 384], sizes = [8, 128], strides = [1, 1]} : vector<8x512xf32> to vector<8x128xf32>
    %703 = arith.negf %702 : vector<8x128xf32>
    %704 = math.exp %703 : vector<8x128xf32>
    %cst_360 = arith.constant 1.000000e+00 : f32
    %705 = vector.broadcast %cst_360 : f32 to vector<8x128xf32>
    %706 = arith.addf %705, %704 : vector<8x128xf32>
    %707 = arith.divf %705, %706 : vector<8x128xf32>
    %c0_361 = arith.constant 0 : index
    %c0_362 = arith.constant 0 : index
    %708 = vector.load %arg7[%c0_361, %c0_362] : memref<8x128xf32, #tpu.memory_space<vmem>>, vector<8x128xf32>
    %709 = arith.mulf %699, %708 : vector<8x128xf32>
    %710 = arith.mulf %693, %701 : vector<8x128xf32>
    %711 = arith.addf %709, %710 : vector<8x128xf32>
    %712 = math.tanh %711 : vector<8x128xf32>
    %713 = arith.mulf %707, %712 : vector<8x128xf32>
    %c0_363 = arith.constant 0 : index
    %c0_364 = arith.constant 0 : index
    %714 = vector.load %arg7[%c0_363, %c0_364] : memref<8x128xf32, #tpu.memory_space<vmem>>, vector<8x128xf32>
    tpu.vector_store %arg7[%c0_363, %c0_364], %711 {strides = array<i32>} : memref<8x128xf32, #tpu.memory_space<vmem>>, vector<8x128xf32>,
    %c0_365 = arith.constant 0 : index
    %c0_366 = arith.constant 0 : index
    %715 = vector.load %arg6[%c0_365, %c0_366] : memref<8x128xf32, #tpu.memory_space<vmem>>, vector<8x128xf32>
    tpu.vector_store %arg6[%c0_365, %c0_366], %713 {strides = array<i32>} : memref<8x128xf32, #tpu.memory_space<vmem>>, vector<8x128xf32>,
    %716 = arith.index_cast %c6_i32_342 : i32 to index
    %c0_367 = arith.constant 0 : index
    %c0_368 = arith.constant 0 : index
    %717 = vector.load %arg5[%716, %c0_367, %c0_368] : memref<9x8x128xf32, #tpu.memory_space<vmem>>, vector<1x8x128xf32>
    %718 = vector.shape_cast %717 : vector<1x8x128xf32> to vector<8x128xf32>
    %719 = vector.shape_cast %713 : vector<8x128xf32> to vector<1x8x128xf32>
    tpu.vector_store %arg5[%716, %c0_367, %c0_368], %719 {strides = array<i32>} : memref<9x8x128xf32, #tpu.memory_space<vmem>>, vector<1x8x128xf32>,
    %c7_i32_369 = arith.constant 7 : i32
    %720 = arith.index_cast %c7_i32_369 : i32 to index
    %c0_370 = arith.constant 0 : index
    %c0_371 = arith.constant 0 : index
    %721 = vector.load %arg5[%720, %c0_370, %c0_371] : memref<9x8x128xf32, #tpu.memory_space<vmem>>, vector<1x8x128xf32>
    %722 = vector.shape_cast %721 : vector<1x8x128xf32> to vector<8x128xf32>
    %723 = arith.truncf %722 : vector<8x128xf32> to vector<8x128xbf16>
    %c0_372 = arith.constant 0 : index
    %c0_373 = arith.constant 0 : index
    %c0_374 = arith.constant 0 : index
    %724 = vector.load %arg3[%c0_372, %c0_373, %c0_374] : memref<1x128x512xbf16, #tpu.memory_space<vmem>>, vector<1x128x512xbf16>
    %725 = vector.shape_cast %724 : vector<1x128x512xbf16> to vector<128x512xbf16>
    %cst_375 = arith.constant dense<0.000000e+00> : vector<8x512xf32>
    %726 = tpu.matmul %723, %725, %cst_375 {dimension_numbers = #tpu.dot_dimension_numbers<[1], [0], [0], [1], [0, 0, 1, 1], [], []>} : vector<8x128xbf16>, vector<128x512xbf16>, vector<8x512xf32> -> vector<8x512xf32>
    %c0_376 = arith.constant 0 : index
    %c0_377 = arith.constant 0 : index
    %c0_378 = arith.constant 0 : index
    %727 = vector.load %arg4[%c0_376, %c0_377, %c0_378] : memref<1x1x512xf32, #tpu.memory_space<vmem>>, vector<1x1x512xf32>
    %728 = vector.shape_cast %727 : vector<1x1x512xf32> to vector<1x512xf32>
    %729 = vector.broadcast %728 : vector<1x512xf32> to vector<8x512xf32>
    %730 = arith.addf %726, %729 : vector<8x512xf32>
    %c0_379 = arith.constant 0 : index
    %c0_380 = arith.constant 0 : index
    %731 = vector.load %arg6[%c0_379, %c0_380] : memref<8x128xf32, #tpu.memory_space<vmem>>, vector<8x128xf32>
    %732 = arith.truncf %731 : vector<8x128xf32> to vector<8x128xbf16>
    %c1_381 = arith.constant 1 : index
    %c0_382 = arith.constant 0 : index
    %c0_383 = arith.constant 0 : index
    %733 = vector.load %arg2[%c1_381, %c0_382, %c0_383] : memref<2x128x512xbf16, #tpu.memory_space<vmem>>, vector<1x128x512xbf16>
    %734 = vector.shape_cast %733 : vector<1x128x512xbf16> to vector<128x512xbf16>
    %cst_384 = arith.constant dense<0.000000e+00> : vector<8x512xf32>
    %735 = tpu.matmul %732, %734, %cst_384 {dimension_numbers = #tpu.dot_dimension_numbers<[1], [0], [0], [1], [0, 0, 1, 1], [], []>} : vector<8x128xbf16>, vector<128x512xbf16>, vector<8x512xf32> -> vector<8x512xf32>
    %736 = arith.addf %730, %735 : vector<8x512xf32>
    %737 = vector.extract_strided_slice %736 {offsets = [0, 0], sizes = [8, 128], strides = [1, 1]} : vector<8x512xf32> to vector<8x128xf32>
    %738 = arith.negf %737 : vector<8x128xf32>
    %739 = math.exp %738 : vector<8x128xf32>
    %cst_385 = arith.constant 1.000000e+00 : f32
    %740 = vector.broadcast %cst_385 : f32 to vector<8x128xf32>
    %741 = arith.addf %740, %739 : vector<8x128xf32>
    %742 = arith.divf %740, %741 : vector<8x128xf32>
    %743 = vector.extract_strided_slice %736 {offsets = [0, 128], sizes = [8, 128], strides = [1, 1]} : vector<8x512xf32> to vector<8x128xf32>
    %744 = arith.negf %743 : vector<8x128xf32>
    %745 = math.exp %744 : vector<8x128xf32>
    %cst_386 = arith.constant 1.000000e+00 : f32
    %746 = vector.broadcast %cst_386 : f32 to vector<8x128xf32>
    %747 = arith.addf %746, %745 : vector<8x128xf32>
    %748 = arith.divf %746, %747 : vector<8x128xf32>
    %749 = vector.extract_strided_slice %736 {offsets = [0, 256], sizes = [8, 128], strides = [1, 1]} : vector<8x512xf32> to vector<8x128xf32>
    %750 = math.tanh %749 : vector<8x128xf32>
    %751 = vector.extract_strided_slice %736 {offsets = [0, 384], sizes = [8, 128], strides = [1, 1]} : vector<8x512xf32> to vector<8x128xf32>
    %752 = arith.negf %751 : vector<8x128xf32>
    %753 = math.exp %752 : vector<8x128xf32>
    %cst_387 = arith.constant 1.000000e+00 : f32
    %754 = vector.broadcast %cst_387 : f32 to vector<8x128xf32>
    %755 = arith.addf %754, %753 : vector<8x128xf32>
    %756 = arith.divf %754, %755 : vector<8x128xf32>
    %c0_388 = arith.constant 0 : index
    %c0_389 = arith.constant 0 : index
    %757 = vector.load %arg7[%c0_388, %c0_389] : memref<8x128xf32, #tpu.memory_space<vmem>>, vector<8x128xf32>
    %758 = arith.mulf %748, %757 : vector<8x128xf32>
    %759 = arith.mulf %742, %750 : vector<8x128xf32>
    %760 = arith.addf %758, %759 : vector<8x128xf32>
    %761 = math.tanh %760 : vector<8x128xf32>
    %762 = arith.mulf %756, %761 : vector<8x128xf32>
    %c0_390 = arith.constant 0 : index
    %c0_391 = arith.constant 0 : index
    %763 = vector.load %arg7[%c0_390, %c0_391] : memref<8x128xf32, #tpu.memory_space<vmem>>, vector<8x128xf32>
    tpu.vector_store %arg7[%c0_390, %c0_391], %760 {strides = array<i32>} : memref<8x128xf32, #tpu.memory_space<vmem>>, vector<8x128xf32>,
    %c0_392 = arith.constant 0 : index
    %c0_393 = arith.constant 0 : index
    %764 = vector.load %arg6[%c0_392, %c0_393] : memref<8x128xf32, #tpu.memory_space<vmem>>, vector<8x128xf32>
    tpu.vector_store %arg6[%c0_392, %c0_393], %762 {strides = array<i32>} : memref<8x128xf32, #tpu.memory_space<vmem>>, vector<8x128xf32>,
    %765 = arith.index_cast %c7_i32_369 : i32 to index
    %c0_394 = arith.constant 0 : index
    %c0_395 = arith.constant 0 : index
    %766 = vector.load %arg5[%765, %c0_394, %c0_395] : memref<9x8x128xf32, #tpu.memory_space<vmem>>, vector<1x8x128xf32>
    %767 = vector.shape_cast %766 : vector<1x8x128xf32> to vector<8x128xf32>
    %768 = vector.shape_cast %762 : vector<8x128xf32> to vector<1x8x128xf32>
    tpu.vector_store %arg5[%765, %c0_394, %c0_395], %768 {strides = array<i32>} : memref<9x8x128xf32, #tpu.memory_space<vmem>>, vector<1x8x128xf32>,
    %c8_i32_396 = arith.constant 8 : i32
    %769 = arith.index_cast %c8_i32_396 : i32 to index
    %c0_397 = arith.constant 0 : index
    %c0_398 = arith.constant 0 : index
    %770 = vector.load %arg5[%769, %c0_397, %c0_398] : memref<9x8x128xf32, #tpu.memory_space<vmem>>, vector<1x8x128xf32>
    %771 = vector.shape_cast %770 : vector<1x8x128xf32> to vector<8x128xf32>
    %772 = arith.truncf %771 : vector<8x128xf32> to vector<8x128xbf16>
    %c0_399 = arith.constant 0 : index
    %c0_400 = arith.constant 0 : index
    %c0_401 = arith.constant 0 : index
    %773 = vector.load %arg3[%c0_399, %c0_400, %c0_401] : memref<1x128x512xbf16, #tpu.memory_space<vmem>>, vector<1x128x512xbf16>
    %774 = vector.shape_cast %773 : vector<1x128x512xbf16> to vector<128x512xbf16>
    %cst_402 = arith.constant dense<0.000000e+00> : vector<8x512xf32>
    %775 = tpu.matmul %772, %774, %cst_402 {dimension_numbers = #tpu.dot_dimension_numbers<[1], [0], [0], [1], [0, 0, 1, 1], [], []>} : vector<8x128xbf16>, vector<128x512xbf16>, vector<8x512xf32> -> vector<8x512xf32>
    %c0_403 = arith.constant 0 : index
    %c0_404 = arith.constant 0 : index
    %c0_405 = arith.constant 0 : index
    %776 = vector.load %arg4[%c0_403, %c0_404, %c0_405] : memref<1x1x512xf32, #tpu.memory_space<vmem>>, vector<1x1x512xf32>
    %777 = vector.shape_cast %776 : vector<1x1x512xf32> to vector<1x512xf32>
    %778 = vector.broadcast %777 : vector<1x512xf32> to vector<8x512xf32>
    %779 = arith.addf %775, %778 : vector<8x512xf32>
    %c0_406 = arith.constant 0 : index
    %c0_407 = arith.constant 0 : index
    %780 = vector.load %arg6[%c0_406, %c0_407] : memref<8x128xf32, #tpu.memory_space<vmem>>, vector<8x128xf32>
    %781 = arith.truncf %780 : vector<8x128xf32> to vector<8x128xbf16>
    %c1_408 = arith.constant 1 : index
    %c0_409 = arith.constant 0 : index
    %c0_410 = arith.constant 0 : index
    %782 = vector.load %arg2[%c1_408, %c0_409, %c0_410] : memref<2x128x512xbf16, #tpu.memory_space<vmem>>, vector<1x128x512xbf16>
    %783 = vector.shape_cast %782 : vector<1x128x512xbf16> to vector<128x512xbf16>
    %cst_411 = arith.constant dense<0.000000e+00> : vector<8x512xf32>
    %784 = tpu.matmul %781, %783, %cst_411 {dimension_numbers = #tpu.dot_dimension_numbers<[1], [0], [0], [1], [0, 0, 1, 1], [], []>} : vector<8x128xbf16>, vector<128x512xbf16>, vector<8x512xf32> -> vector<8x512xf32>
    %785 = arith.addf %779, %784 : vector<8x512xf32>
    %786 = vector.extract_strided_slice %785 {offsets = [0, 0], sizes = [8, 128], strides = [1, 1]} : vector<8x512xf32> to vector<8x128xf32>
    %787 = arith.negf %786 : vector<8x128xf32>
    %788 = math.exp %787 : vector<8x128xf32>
    %cst_412 = arith.constant 1.000000e+00 : f32
    %789 = vector.broadcast %cst_412 : f32 to vector<8x128xf32>
    %790 = arith.addf %789, %788 : vector<8x128xf32>
    %791 = arith.divf %789, %790 : vector<8x128xf32>
    %792 = vector.extract_strided_slice %785 {offsets = [0, 128], sizes = [8, 128], strides = [1, 1]} : vector<8x512xf32> to vector<8x128xf32>
    %793 = arith.negf %792 : vector<8x128xf32>
    %794 = math.exp %793 : vector<8x128xf32>
    %cst_413 = arith.constant 1.000000e+00 : f32
    %795 = vector.broadcast %cst_413 : f32 to vector<8x128xf32>
    %796 = arith.addf %795, %794 : vector<8x128xf32>
    %797 = arith.divf %795, %796 : vector<8x128xf32>
    %798 = vector.extract_strided_slice %785 {offsets = [0, 256], sizes = [8, 128], strides = [1, 1]} : vector<8x512xf32> to vector<8x128xf32>
    %799 = math.tanh %798 : vector<8x128xf32>
    %800 = vector.extract_strided_slice %785 {offsets = [0, 384], sizes = [8, 128], strides = [1, 1]} : vector<8x512xf32> to vector<8x128xf32>
    %801 = arith.negf %800 : vector<8x128xf32>
    %802 = math.exp %801 : vector<8x128xf32>
    %cst_414 = arith.constant 1.000000e+00 : f32
    %803 = vector.broadcast %cst_414 : f32 to vector<8x128xf32>
    %804 = arith.addf %803, %802 : vector<8x128xf32>
    %805 = arith.divf %803, %804 : vector<8x128xf32>
    %c0_415 = arith.constant 0 : index
    %c0_416 = arith.constant 0 : index
    %806 = vector.load %arg7[%c0_415, %c0_416] : memref<8x128xf32, #tpu.memory_space<vmem>>, vector<8x128xf32>
    %807 = arith.mulf %797, %806 : vector<8x128xf32>
    %808 = arith.mulf %791, %799 : vector<8x128xf32>
    %809 = arith.addf %807, %808 : vector<8x128xf32>
    %810 = math.tanh %809 : vector<8x128xf32>
    %811 = arith.mulf %805, %810 : vector<8x128xf32>
    %c0_417 = arith.constant 0 : index
    %c0_418 = arith.constant 0 : index
    %812 = vector.load %arg7[%c0_417, %c0_418] : memref<8x128xf32, #tpu.memory_space<vmem>>, vector<8x128xf32>
    tpu.vector_store %arg7[%c0_417, %c0_418], %809 {strides = array<i32>} : memref<8x128xf32, #tpu.memory_space<vmem>>, vector<8x128xf32>,
    %c0_419 = arith.constant 0 : index
    %c0_420 = arith.constant 0 : index
    %813 = vector.load %arg6[%c0_419, %c0_420] : memref<8x128xf32, #tpu.memory_space<vmem>>, vector<8x128xf32>
    tpu.vector_store %arg6[%c0_419, %c0_420], %811 {strides = array<i32>} : memref<8x128xf32, #tpu.memory_space<vmem>>, vector<8x128xf32>,
    %814 = arith.index_cast %c8_i32_396 : i32 to index
    %c0_421 = arith.constant 0 : index
    %c0_422 = arith.constant 0 : index
    %815 = vector.load %arg5[%814, %c0_421, %c0_422] : memref<9x8x128xf32, #tpu.memory_space<vmem>>, vector<1x8x128xf32>
    %816 = vector.shape_cast %815 : vector<1x8x128xf32> to vector<8x128xf32>
    %817 = vector.shape_cast %811 : vector<8x128xf32> to vector<1x8x128xf32>
    tpu.vector_store %arg5[%814, %c0_421, %c0_422], %817 {strides = array<i32>} : memref<9x8x128xf32, #tpu.memory_space<vmem>>, vector<1x8x128xf32>,
    %c9_i32_423 = arith.constant 9 : i32
    return
  }
  func.func @transform_0(%arg0: i32) -> (i32, i32, i32) {
    %c0_i32 = arith.constant 0 : i32
    %c0_i32_0 = arith.constant 0 : i32
    %c0_i32_1 = arith.constant 0 : i32
    return %c0_i32, %arg0, %c0_i32_0 : i32, i32, i32
  }
  func.func @transform_1(%arg0: i32) -> (i32, i32, i32) {
    %c0_i32 = arith.constant 0 : i32
    %c0_i32_0 = arith.constant 0 : i32
    %c0_i32_1 = arith.constant 0 : i32
    %c0_i32_2 = arith.constant 0 : i32
    return %c0_i32, %c0_i32_0, %c0_i32_1 : i32, i32, i32
  }
  func.func @transform_2(%arg0: i32) -> (i32, i32, i32) {
    %c0_i32 = arith.constant 0 : i32
    %c0_i32_0 = arith.constant 0 : i32
    %c0_i32_1 = arith.constant 0 : i32
    %c0_i32_2 = arith.constant 0 : i32
    return %c0_i32, %c0_i32_0, %c0_i32_1 : i32, i32, i32
  }
  func.func @transform_3(%arg0: i32) -> (i32, i32, i32) {
    %c0_i32 = arith.constant 0 : i32
    %c0_i32_0 = arith.constant 0 : i32
    %c0_i32_1 = arith.constant 0 : i32
    %c0_i32_2 = arith.constant 0 : i32
    return %c0_i32, %c0_i32_0, %c0_i32_1 : i32, i32, i32
  }
  func.func @transform_4(%arg0: i32) -> (i32, i32, i32) {
    %c0_i32 = arith.constant 0 : i32
    %c0_i32_0 = arith.constant 0 : i32
    %c0_i32_1 = arith.constant 0 : i32
    return %c0_i32, %arg0, %c0_i32_0 : i32, i32, i32
  }
}

</mosaic_0001>

<llo_original>
// kernel: cnn_to_rnn_forward.6
$region0: #{cnn_to_rnn_forward.6}
  #allocation0 [shape = 'u32[]', space=smem, size = 0x4, offset = 0x4, fixed_abs, tag = 'smem constant byte address 0x4 - core index']
  #allocation1 [shape = 'u32[72,128]{1,0:T(1,128)}', space=vmem, size = 0x9000, scoped, tag = 'internal scratch']
  #allocation2 [shape = 'f32[8,128]{1,0:T(8,128)}', space=vmem, size = 0x1000, scoped, tag = 'scratch operand']
  %s0 = inlined_call_operand.vmem [shape: bf16[8,128], index: 0, kind: input, shape index: {}]
  %s1 = inlined_call_operand.vmem [shape: bf16[128,128], index: 1, kind: input, shape index: {}]
  %s2 = inlined_call_operand.vmem [shape: f32[1,128], index: 2, kind: input, shape index: {}]
  %s3 = inlined_call_operand.vmem [shape: f32[8,128], index: 3, kind: output, shape index: {}]
  %s4 = sld [smem:[#allocation0]]
  $region30: #{cnn_to_rnn_forward.6} parent=0
    _
  %s6 = ssub.s32 1, %s4
  %s7 = scalar_select 0, %s6, %s4
  // Predicated region
  $region2: #{cnn_to_rnn_forward.6} parent=0 // pred_check
    _
  $region3: #{cnn_to_rnn_forward.6} parent=0 // pred_check_branch
    %9 = sbr.rel (0) target = $region5
  $region4: #{cnn_to_rnn_forward.6} parent=0 // pred_region
    _
  $region5: #{cnn_to_rnn_forward.6} parent=0 // pred_fallthru
    _
  // Predicated region
  $region6: #{cnn_to_rnn_forward.6} parent=0 // pred_check
    _
  $region7: #{cnn_to_rnn_forward.6} parent=0 // pred_check_branch
    %11 = sbr.rel (0) target = $region9
  $region8: #{cnn_to_rnn_forward.6} parent=0 // pred_region
    _
  $region9: #{cnn_to_rnn_forward.6} parent=0 // pred_fallthru
    _
  // Predicated region
  $region10: #{cnn_to_rnn_forward.6} parent=0 // pred_check
    _
  $region11: #{cnn_to_rnn_forward.6} parent=0 // pred_check_branch
    %13 = sbr.rel (0) target = $region13
  $region12: #{cnn_to_rnn_forward.6} parent=0 // pred_region
    _
  $region13: #{cnn_to_rnn_forward.6} parent=0 // pred_fallthru
    _
  %p14 = scmp.eq.s32.totalorder 0, 0
  // Predicated region
  $region14: #{cnn_to_rnn_forward.6} parent=0 // pred_check
    %p15 = pneg %p14
  $region15: #{cnn_to_rnn_forward.6} parent=0 // pred_check_branch
    %17 = sbr.rel (%p15) target = $region17
  $region16: #{cnn_to_rnn_forward.6} parent=0 // pred_region
    %18 = vst [vmem:[#allocation2] sm:$0xff] 0.0
  $region17: #{cnn_to_rnn_forward.6} parent=0 // pred_fallthru
    _
  %v19 = vld [vmem:[#allocation2] sm:$0xff]
  %v20 = vld [vmem:[%s0] sm:$0xf]
  %v21 = vld [vmem:[%s1] sm:$0xf]
  %v22 = vld [vmem:[%s1 + $0x4] sm:$0xf]
  %v23 = vld [vmem:[%s1 + $0x8] sm:$0xf]
  %v24 = vld [vmem:[%s1 + $0xc] sm:$0xf]
  %v25 = vld [vmem:[%s1 + $0x10] sm:$0xf]
  %v26 = vld [vmem:[%s1 + $0x14] sm:$0xf]
  %v27 = vld [vmem:[%s1 + $0x18] sm:$0xf]
  %v28 = vld [vmem:[%s1 + $0x1c] sm:$0xf]
  %v29 = vld [vmem:[%s1 + $0x20] sm:$0xf]
  %v30 = vld [vmem:[%s1 + $0x24] sm:$0xf]
  %v31 = vld [vmem:[%s1 + $0x28] sm:$0xf]
  %v32 = vld [vmem:[%s1 + $0x2c] sm:$0xf]
  %v33 = vld [vmem:[%s1 + $0x30] sm:$0xf]
  %v34 = vld [vmem:[%s1 + $0x34] sm:$0xf]
  %v35 = vld [vmem:[%s1 + $0x38] sm:$0xf]
  %v36 = vld [vmem:[%s1 + $0x3c] sm:$0xf]
  %v53 = vunpack.c.l.b16 %v21
  %v54 = vunpack.c.l.b16 %v22
  %v55 = vunpack.c.l.b16 %v23
  %v56 = vunpack.c.l.b16 %v24
  %v57 = vunpack.c.l.b16 %v25
  %v58 = vunpack.c.l.b16 %v26
  %v59 = vunpack.c.l.b16 %v27
  %v60 = vunpack.c.l.b16 %v28
  %v61 = vunpack.c.l.b16 %v29
  %v62 = vunpack.c.l.b16 %v30
  %v63 = vunpack.c.l.b16 %v31
  %v64 = vunpack.c.l.b16 %v32
  %v65 = vunpack.c.l.b16 %v33
  %v66 = vunpack.c.l.b16 %v34
  %v67 = vunpack.c.l.b16 %v35
  %v68 = vunpack.c.l.b16 %v36
  %v69 = vpack.c.b16 %v54, %v53
  %v70 = vpack.c.b16 %v56, %v55
  %v71 = vpack.c.b16 %v58, %v57
  %v72 = vpack.c.b16 %v60, %v59
  %v73 = vpack.c.b16 %v62, %v61
  %v74 = vpack.c.b16 %v64, %v63
  %v75 = vpack.c.b16 %v66, %v65
  %v76 = vpack.c.b16 %v68, %v67
  %85 = vmatpush.bf16.msra.mxu0 %v76
  %86 = vmatpush.bf16.msra.mxu0 %v75
  %87 = vmatpush.bf16.msra.mxu0 %v74
  %88 = vmatpush.bf16.msra.mxu0 %v73
  %89 = vmatpush.bf16.msra.mxu0 %v72
  %90 = vmatpush.bf16.msra.mxu0 %v71
  %91 = vmatpush.bf16.msra.mxu0 %v70
  %92 = vmatpush.bf16.msra.mxu0 %v69
  %93 = vmatmul.bf16.gmra.mxu0 %v20
  %v94 = vpop.f32.mrf.mxu0
  %v95 = vadd.f32 0.0, %v94
  %v96 = vpop.f32.mrf.mxu0
  %97 = vdwg.mxu0
  %v98 = vadd.f32 %v19, %v95
  %99 = vst [vmem:[#allocation2] sm:$0xff] %v98
  // Predicated region
  $region18: #{cnn_to_rnn_forward.6} parent=0 // pred_check
    %p100 = pneg %p14
  $region19: #{cnn_to_rnn_forward.6} parent=0 // pred_check_branch
    %102 = sbr.rel (%p100) target = $region21
  $region20: #{cnn_to_rnn_forward.6} parent=0 // pred_region
    %v103 = vld [vmem:[#allocation2] sm:$0xff]
    %v104 = vld [vmem:[%s2] sm:$0x1]
    %v106 = vperm.slane %v104, 0
    %v108 = vadd.f32 %v103, %v106
    %v109 = vmax.f32 %v108, 0.0
    %110 = vst [vmem:[%s3] sm:$0xff] %v109
  $region21: #{cnn_to_rnn_forward.6} parent=0 // pred_fallthru
    _
  // Predicated region
  $region22: #{cnn_to_rnn_forward.6} parent=0 // pred_check
    _
  $region23: #{cnn_to_rnn_forward.6} parent=0 // pred_check_branch
    %112 = sbr.rel (0) target = $region25
  $region24: #{cnn_to_rnn_forward.6} parent=0 // pred_region
    _
  $region25: #{cnn_to_rnn_forward.6} parent=0 // pred_fallthru
    _
  // Predicated region
  $region26: #{cnn_to_rnn_forward.6} parent=0 // pred_check
    _
  $region27: #{cnn_to_rnn_forward.6} parent=0 // pred_check_branch
    %114 = sbr.rel (0) target = $region29
  $region28: #{cnn_to_rnn_forward.6} parent=0 // pred_region
    _
  $region29: #{cnn_to_rnn_forward.6} parent=0 // pred_fallthru
    _

// kernel: cnn_to_rnn_forward.5
$region0: #{cnn_to_rnn_forward.5}
  #allocation0 [shape = 'u32[]', space=smem, size = 0x4, offset = 0x4, fixed_abs, tag = 'smem constant byte address 0x4 - core index']
  #allocation1 [shape = 'u32[72,128]{1,0:T(1,128)}', space=vmem, size = 0x9000, scoped, tag = 'internal scratch']
  #allocation2 [shape = 'f32[8,128]{1,0:T(8,128)}', space=vmem, size = 0x1000, scoped, tag = 'scratch operand']
  %s0 = inlined_call_operand.vmem [shape: f32[2,256,27], index: 0, kind: input, shape index: {}]
  %s1 = inlined_call_operand.vmem [shape: f32[27,128], index: 1, kind: input, shape index: {}]
  %s2 = inlined_call_operand.vmem [shape: f32[1,128], index: 2, kind: input, shape index: {}]
  %s3 = inlined_call_operand.vmem [shape: f32[2,1,128], index: 3, kind: output, shape index: {}]
  %s4 = sld [smem:[#allocation0]]
  $region53: #{cnn_to_rnn_forward.5} parent=0
    _
  %s6 = ssub.s32 1, %s4
  %s7 = scalar_select 0, %s6, %s4
  loop: start=0, step=1, limit=6
  $region2: #{cnn_to_rnn_forward.5} parent=0 // loop_pre_header
    _
  $region3: #{cnn_to_rnn_forward.5} parent=0 // loop_header
    %s9 = sphi 0, %s13
    %p10 = scmp.ge.s32.totalorder %s9, 6
    %s16 = sphi 0, %s28
    %s17 = sphi 0, %s24
    %s18 = sphi 0, %s16
    %s19 = sphi 0, %s17
    %s20 = sphi 0, %s18
    %s21 = sphi 0, %s19
    %s33 = sphi 0, %s35
    %s36 = sphi 0, %s33
    %s37 = sphi 0, %s36
    %s53 = sphi 0, %s37
    %s57 = sphi 0, %s57
    %s59 = sphi 0, %s57
    %s60 = sphi 0, %s59
    %s74 = sphi 0, %s60
    %s78 = sphi 0, %s78
    %s80 = sphi 0, %s78
    %s81 = sphi 0, %s80
    %s95 = sphi 0, %s81
    %s101 = sphi 0, %s103
    %s104 = sphi 0, %s101
    %s105 = sphi 0, %s104
    %s121 = sphi 0, %s105
  $region4: #{cnn_to_rnn_forward.5} parent=0 // loop_header_branch
    %12 = sbr.rel (%p10) target = $region8
  $region5: #{cnn_to_rnn_forward.5} parent=0 // loop_body
    %s14 = ssub.s32 %s9, 1
    %s15 = ssub.s32 %s9, 2
    %s22 = sadd.s32 1, %s17
    %p23 = scmp.ge.s32.totalorder %s22, 2
    %s24 = scalar_select %p23, 0, %s22
    %s25 = sadd.s32 1, %s16
    %s26 = scalar_select %p23, %s25, %s16
    %p27 = scmp.ge.s32.totalorder %s26, 2
    %s28 = scalar_select %p27, 0, %s26
    %s29 = ssub.s32 %s16, %s28
    %s30 = ssub.s32 %s17, %s24
    %s31 = sor.u32 %s29, %s30
    %p32 = scmp.eq.s32.totalorder %s31, 0
    %s34 = sadd.s32 %s33, 1
    %s35 = scalar_select %p32, %s33, %s34
    %p38 = pneg %p32
    %p39 = scmp.eq.s32.totalorder %s9, 3
    %p40 = por %p38, %p39
    %p41 = scmp.ne.s32.totalorder %s33, %s36
    %p42 = scmp.eq.s32.totalorder %s9, 0
    %p43 = por %p41, %p42
    %p44 = scmp.ne.s32.totalorder %s33, %s36
    %p45 = scmp.eq.s32.totalorder %s14, 3
    %p46 = por %p44, %p45
    %p47 = scmp.ne.s32.totalorder %s36, %s37
    %p48 = scmp.eq.s32.totalorder %s14, 0
    %p49 = por %p47, %p48
    %p50 = scmp.ne.s32.totalorder %s36, %s37
    %p51 = scmp.eq.s32.totalorder %s15, 3
    %p52 = por %p50, %p51
    %p54 = scmp.ne.s32.totalorder %s37, %s53
    %p55 = scmp.eq.s32.totalorder %s15, 0
    %p56 = por %p54, %p55
    %s58 = sadd.s32 %s57, 1
    %p61 = scmp.eq.s32.totalorder %s9, 3
    %p62 = scmp.ne.s32.totalorder %s57, %s59
    %p63 = scmp.eq.s32.totalorder %s9, 0
    %p64 = por %p62, %p63
    %p65 = scmp.ne.s32.totalorder %s57, %s59
    %p66 = scmp.eq.s32.totalorder %s14, 3
    %p67 = por %p65, %p66
    %p68 = scmp.ne.s32.totalorder %s59, %s60
    %p69 = scmp.eq.s32.totalorder %s14, 0
    %p70 = por %p68, %p69
    %p71 = scmp.ne.s32.totalorder %s59, %s60
    %p72 = scmp.eq.s32.totalorder %s15, 3
    %p73 = por %p71, %p72
    %p75 = scmp.ne.s32.totalorder %s60, %s74
    %p76 = scmp.eq.s32.totalorder %s15, 0
    %p77 = por %p75, %p76
    %s79 = sadd.s32 %s78, 1
    %p82 = scmp.eq.s32.totalorder %s9, 3
    %p83 = scmp.ne.s32.totalorder %s78, %s80
    %p84 = scmp.eq.s32.totalorder %s9, 0
    %p85 = por %p83, %p84
    %p86 = scmp.ne.s32.totalorder %s78, %s80
    %p87 = scmp.eq.s32.totalorder %s14, 3
    %p88 = por %p86, %p87
    %p89 = scmp.ne.s32.totalorder %s80, %s81
    %p90 = scmp.eq.s32.totalorder %s14, 0
    %p91 = por %p89, %p90
    %p92 = scmp.ne.s32.totalorder %s80, %s81
    %p93 = scmp.eq.s32.totalorder %s15, 3
    %p94 = por %p92, %p93
    %p96 = scmp.ne.s32.totalorder %s81, %s95
    %p97 = scmp.eq.s32.totalorder %s15, 0
    %p98 = por %p96, %p97
    %s99 = ssub.s32 %s16, %s28
    %p100 = scmp.eq.s32.totalorder %s99, 0
    %s102 = sadd.s32 %s101, 1
    %s103 = scalar_select %p100, %s101, %s102
    %p106 = pneg %p100
    %p107 = scmp.eq.s32.totalorder %s9, 3
    %p108 = por %p106, %p107
    %p109 = scmp.ne.s32.totalorder %s101, %s104
    %p110 = scmp.eq.s32.totalorder %s9, 0
    %p111 = por %p109, %p110
    %p112 = scmp.ne.s32.totalorder %s101, %s104
    %p113 = scmp.eq.s32.totalorder %s14, 3
    %p114 = por %p112, %p113
    %p115 = scmp.ne.s32.totalorder %s104, %s105
    %p116 = scmp.eq.s32.totalorder %s14, 0
    %p117 = por %p115, %p116
    %p118 = scmp.ne.s32.totalorder %s104, %s105
    %p119 = scmp.eq.s32.totalorder %s15, 3
    %p120 = por %p118, %p119
    %p122 = scmp.ne.s32.totalorder %s105, %s121
    %p123 = scmp.eq.s32.totalorder %s15, 0
    %p124 = por %p122, %p123
    %p125 = scmp.le.s32.totalorder 1, %s9
    %p126 = scmp.lt.s32.totalorder %s9, 5
    %p127 = pnand %p125, %p126
    %p128 = pneg %p127
    // Predicated region
    $region9: #{cnn_to_rnn_forward.5} parent=5 // pred_check
      _
    $region10: #{cnn_to_rnn_forward.5} parent=5 // pred_check_branch
      %130 = sbr.rel (%p127) target = $region12
    $region11: #{cnn_to_rnn_forward.5} parent=5 // pred_region
      %s131 = ssub.s32 %s9, 1
      // Predicated region
      $region13: #{cnn_to_rnn_forward.5} parent=11 // pred_check
        %p132 = pneg %p70
      $region14: #{cnn_to_rnn_forward.5} parent=11 // pred_check_branch
        %134 = sbr.rel (%p132) target = $region16
      $region15: #{cnn_to_rnn_forward.5} parent=11 // pred_region
        _
      $region16: #{cnn_to_rnn_forward.5} parent=11 // pred_fallthru
        _
      // Predicated region
      $region17: #{cnn_to_rnn_forward.5} parent=11 // pred_check
        %p135 = pneg %p91
      $region18: #{cnn_to_rnn_forward.5} parent=11 // pred_check_branch
        %137 = sbr.rel (%p135) target = $region20
      $region19: #{cnn_to_rnn_forward.5} parent=11 // pred_region
        _
      $region20: #{cnn_to_rnn_forward.5} parent=11 // pred_fallthru
        _
    $region12: #{cnn_to_rnn_forward.5} parent=5 // pred_fallthru
      _
    %p138 = scmp.lt.s32.totalorder %s9, 4
    // Predicated region
    $region21: #{cnn_to_rnn_forward.5} parent=5 // pred_check
      %p139 = pneg %p138
    $region22: #{cnn_to_rnn_forward.5} parent=5 // pred_check_branch
      %141 = sbr.rel (%p139) target = $region24
    $region23: #{cnn_to_rnn_forward.5} parent=5 // pred_region
      // Predicated region
      $region25: #{cnn_to_rnn_forward.5} parent=23 // pred_check
        %p142 = pneg %p43
      $region26: #{cnn_to_rnn_forward.5} parent=23 // pred_check_branch
        %144 = sbr.rel (%p142) target = $region28
      $region27: #{cnn_to_rnn_forward.5} parent=23 // pred_region
        %s145 = smul.u32 16, %s17
        %p146 = scmp.lt.s32.totalorder %s16, 1
        %s147 = scalar_select %p146, %s16, 1
        %p148 = scmp.lt.s32.totalorder %s145, 31
        %s149 = scalar_select %p148, %s145, 31
        %s150 = smul.addr %s147, 32
        %s151 = sadd.s32 %s149, %s150
        %s152 = smul.addr %s151, 8
        %s153 = scalar_lea.vmem %s0, %s152
        %s154 = smul.u32 16, %s17
      $region28: #{cnn_to_rnn_forward.5} parent=23 // pred_fallthru
        _
    $region24: #{cnn_to_rnn_forward.5} parent=5 // pred_fallthru
      _
    %p155 = scmp.le.s32.totalorder 1, %s9
    %p156 = scmp.lt.s32.totalorder %s9, 5
    %p157 = pnand %p155, %p156
    %p158 = pneg %p157
    // Predicated region
    $region29: #{cnn_to_rnn_forward.5} parent=5 // pred_check
      _
    $region30: #{cnn_to_rnn_forward.5} parent=5 // pred_check_branch
      %160 = sbr.rel (%p157) target = $region32
    $region31: #{cnn_to_rnn_forward.5} parent=5 // pred_region
      %s161 = ssub.s32 %s9, 1
      %s162 = smul.u32 16, %s19
      %p163 = scmp.lt.s32.totalorder %s18, 1
      %s164 = scalar_select %p163, %s18, 1
      %p165 = scmp.lt.s32.totalorder %s162, 31
      %s166 = scalar_select %p165, %s162, 31
      %s167 = smul.addr %s164, 32
      %s168 = sadd.s32 %s166, %s167
      %s169 = smul.addr %s168, 8
      %s170 = scalar_lea.vmem %s0, %s169
      %p171 = pneg %p49
      %p172 = pneg %p46
      %p173 = pneg %p70
      %p174 = pneg %p67
      %p175 = pneg %p91
      %p176 = pneg %p88
      %p177 = pneg %p117
      %p178 = pneg %p114
      %p179 = scmp.lt.s32.totalorder %s18, 1
      %s180 = scalar_select %p179, %s18, 1
      %s181 = scalar_lea.vmem %s3, %s180
      %s182 = smul.u32 16, %s19
      %p183 = scmp.lt.s32.totalorder %s18, 1
      %s184 = scalar_select %p183, %s18, 1
      %p185 = scmp.lt.s32.totalorder %s182, 31
      %s186 = scalar_select %p185, %s182, 31
      %s187 = smul.addr %s184, 32
      %s188 = sadd.s32 %s186, %s187
      %s189 = smul.addr %s188, 8
      %s190 = scalar_lea.vmem %s0, %s189
      %s191 = smul.u32 16, %s19
      %p192 = scmp.lt.s32.totalorder %s18, 1
      %s193 = scalar_select %p192, %s18, 1
      %s194 = scalar_lea.vmem %s3, %s193
      %p195 = scmp.eq.s32.totalorder %s19, 0
      // Predicated region
      $region33: #{cnn_to_rnn_forward.5} parent=31 // pred_check
        %p196 = pneg %p195
      $region34: #{cnn_to_rnn_forward.5} parent=31 // pred_check_branch
        %198 = sbr.rel (%p196) target = $region36
      $region35: #{cnn_to_rnn_forward.5} parent=31 // pred_region
        %199 = vst [vmem:[#allocation2] sm:$0xff] 0.0
      $region36: #{cnn_to_rnn_forward.5} parent=31 // pred_fallthru
        _
      %v200 = vld [vmem:[%s190] sm:$0xff]
      %v201 = vld [vmem:[%s190 + $0x8] sm:$0xff]
      %v202 = vld [vmem:[%s190 + $0x10] sm:$0xff]
      %v203 = vld [vmem:[%s190 + $0x18] sm:$0xff]
      %v204 = vld [vmem:[%s190 + $0x20] sm:$0xff]
      %v205 = vld [vmem:[%s190 + $0x28] sm:$0xff]
      %v206 = vld [vmem:[%s190 + $0x30] sm:$0xff]
      %v207 = vld [vmem:[%s190 + $0x38] sm:$0xff]
      %v208 = vld [vmem:[%s190 + $0x40] sm:$0xff]
      %v209 = vld [vmem:[%s190 + $0x48] sm:$0xff]
      %v210 = vld [vmem:[%s190 + $0x50] sm:$0xff]
      %v211 = vld [vmem:[%s190 + $0x58] sm:$0xff]
      %v212 = vld [vmem:[%s190 + $0x60] sm:$0xff]
      %v213 = vld [vmem:[%s190 + $0x68] sm:$0xff]
      %v214 = vld [vmem:[%s190 + $0x70] sm:$0xff]
      %v215 = vld [vmem:[%s190 + $0x78] sm:$0xff]
      %v216 = vld [vmem:[%s1] sm:$0xff]
      %v217 = vld [vmem:[%s1 + $0x8] sm:$0xff]
      %v218 = vld [vmem:[%s1 + $0x10] sm:$0xff]
      %v219 = vld [vmem:[%s1 + $0x18] sm:$0x7]
      %v220 = vld [vmem:[%s2] sm:$0x1]
      %v222 = vperm.slane %v220, 0
      %vm224 = vcmask 220160
      %v226 = vsel %vm224, %v200, 0
      %v229 = vsel %vm224, %v201, 0
      %v232 = vsel %vm224, %v202, 0
      %v235 = vsel %vm224, %v203, 0
      %v238 = vsel %vm224, %v204, 0
      %v241 = vsel %vm224, %v205, 0
      %v244 = vsel %vm224, %v206, 0
      %v247 = vsel %vm224, %v207, 0
      %v250 = vsel %vm224, %v208, 0
      %v253 = vsel %vm224, %v209, 0
      %v256 = vsel %vm224, %v210, 0
      %v259 = vsel %vm224, %v211, 0
      %v262 = vsel %vm224, %v212, 0
      %v265 = vsel %vm224, %v213, 0
      %v268 = vsel %vm224, %v214, 0
      %v271 = vsel %vm224, %v215, 0
      %vm273 = vcmask 1042432
      %v275 = vsel %vm273, %v219, 0
      %277 = vmatpush.msra.mxu0 0.0
      %278 = vmatpush.msra.mxu0 0.0
      %279 = vmatpush.msra.mxu0 0.0
      %280 = vmatpush.msra.mxu0 0.0
      %281 = vmatpush.msra.mxu0 0.0
      %282 = vmatpush.msra.mxu0 0.0
      %283 = vmatpush.msra.mxu0 0.0
      %284 = vmatpush.msra.mxu0 0.0
      %285 = vmatpush.msra.mxu0 0.0
      %286 = vmatpush.msra.mxu0 0.0
      %287 = vmatpush.msra.mxu0 0.0
      %288 = vmatpush.msra.mxu0 0.0
      %289 = vmatpush.msra.mxu0 %v275
      %290 = vmatpush.msra.mxu0 %v218
      %291 = vmatpush.msra.mxu0 %v217
      %292 = vmatpush.msra.mxu0 %v216
      %293 = vmatmul.f32.gmra.mxu0 %v226
      %v294 = vpop.f32.mrf.mxu0
      %v295 = vadd.f32 %v222, %v294
      %296 = vmatmul.f32.gmra.mxu0 %v229
      %v297 = vpop.f32.mrf.mxu0
      %v298 = vadd.f32 %v222, %v297
      %299 = vmatmul.f32.gmra.mxu0 %v232
      %v300 = vpop.f32.mrf.mxu0
      %v301 = vadd.f32 %v222, %v300
      %302 = vmatmul.f32.gmra.mxu0 %v235
      %v303 = vpop.f32.mrf.mxu0
      %v304 = vadd.f32 %v222, %v303
      %305 = vmatmul.f32.gmra.mxu0 %v238
      %v306 = vpop.f32.mrf.mxu0
      %v307 = vadd.f32 %v222, %v306
      %308 = vmatmul.f32.gmra.mxu0 %v241
      %v309 = vpop.f32.mrf.mxu0
      %v310 = vadd.f32 %v222, %v309
      %311 = vmatmul.f32.gmra.mxu0 %v244
      %v312 = vpop.f32.mrf.mxu0
      %v313 = vadd.f32 %v222, %v312
      %314 = vmatmul.f32.gmra.mxu0 %v247
      %v315 = vpop.f32.mrf.mxu0
      %v316 = vadd.f32 %v222, %v315
      %317 = vmatmul.f32.gmra.mxu0 %v250
      %v318 = vpop.f32.mrf.mxu0
      %v319 = vadd.f32 %v222, %v318
      %320 = vmatmul.f32.gmra.mxu0 %v253
      %v321 = vpop.f32.mrf.mxu0
      %v322 = vadd.f32 %v222, %v321
      %323 = vmatmul.f32.gmra.mxu0 %v256
      %v324 = vpop.f32.mrf.mxu0
      %v325 = vadd.f32 %v222, %v324
      %326 = vmatmul.f32.gmra.mxu0 %v259
      %v327 = vpop.f32.mrf.mxu0
      %v328 = vadd.f32 %v222, %v327
      %329 = vmatmul.f32.gmra.mxu0 %v262
      %v330 = vpop.f32.mrf.mxu0
      %v331 = vadd.f32 %v222, %v330
      %332 = vmatmul.f32.gmra.mxu0 %v265
      %v333 = vpop.f32.mrf.mxu0
      %v334 = vadd.f32 %v222, %v333
      %335 = vmatmul.f32.gmra.mxu0 %v268
      %v336 = vpop.f32.mrf.mxu0
      %v337 = vadd.f32 %v222, %v336
      %338 = vmatmul.f32.gmra.mxu0 %v271
      %v339 = vpop.f32.mrf.mxu0
      %v340 = vadd.f32 %v222, %v339
      %341 = vdwg.mxu0
      %v342 = vmax.f32 %v295, 0.0
      %v343 = vmax.f32 %v298, 0.0
      %v344 = vmax.f32 %v301, 0.0
      %v345 = vmax.f32 %v304, 0.0
      %v346 = vmax.f32 %v307, 0.0
      %v347 = vmax.f32 %v310, 0.0
      %v348 = vmax.f32 %v313, 0.0
      %v349 = vmax.f32 %v316, 0.0
      %v350 = vmax.f32 %v319, 0.0
      %v351 = vmax.f32 %v322, 0.0
      %v352 = vmax.f32 %v325, 0.0
      %v353 = vmax.f32 %v328, 0.0
      %v354 = vmax.f32 %v331, 0.0
      %v355 = vmax.f32 %v334, 0.0
      %v356 = vmax.f32 %v337, 0.0
      %v357 = vmax.f32 %v340, 0.0
      %v358 = vld [vmem:[#allocation2] sm:$0xff]
      %v359 = vadd.f32 %v342, %v343
      %v360 = vadd.f32 %v359, %v344
      %v361 = vadd.f32 %v360, %v345
      %v362 = vadd.f32 %v361, %v346
      %v363 = vadd.f32 %v362, %v347
      %v364 = vadd.f32 %v363, %v348
      %v365 = vadd.f32 %v364, %v349
      %v366 = vadd.f32 %v365, %v350
      %v367 = vadd.f32 %v366, %v351
      %v368 = vadd.f32 %v367, %v352
      %v369 = vadd.f32 %v368, %v353
      %v370 = vadd.f32 %v369, %v354
      %v371 = vadd.f32 %v370, %v355
      %v372 = vadd.f32 %v371, %v356
      %v373 = vadd.f32 %v372, %v357
      %v374 = vadd.f32 %v358, %v373
      %375 = vst [vmem:[#allocation2] sm:$0xff] %v374
      %p376 = scmp.eq.s32.totalorder %s19, 1
      // Predicated region
      $region37: #{cnn_to_rnn_forward.5} parent=31 // pred_check
        %p377 = pneg %p376
      $region38: #{cnn_to_rnn_forward.5} parent=31 // pred_check_branch
        %379 = sbr.rel (%p377) target = $region40
      $region39: #{cnn_to_rnn_forward.5} parent=31 // pred_region
        %v380 = vld [vmem:[#allocation2] sm:$0xff]
        %v381 = vrot.slane %v380, 4
        %v382 = vadd.f32 %v380, %v381
        %v383 = vrot.slane %v382, 2
        %v384 = vadd.f32 %v382, %v383
        %v385 = vrot.slane %v384, 1
        %v386 = vadd.f32 %v384, %v385
        %v387 = vmul.f32 %v386, 0.00390625
        %388 = vst [vmem:[%s194] sm:$0x1] %v387
      $region40: #{cnn_to_rnn_forward.5} parent=31 // pred_fallthru
        _
      %p389 = scmp.lt.s32.totalorder %s18, 1
      %s390 = scalar_select %p389, %s18, 1
      %s391 = scalar_lea.vmem %s3, %s390
      // Predicated region
      $region41: #{cnn_to_rnn_forward.5} parent=31 // pred_check
        %p392 = pneg %p114
      $region42: #{cnn_to_rnn_forward.5} parent=31 // pred_check_branch
        %394 = sbr.rel (%p392) target = $region44
      $region43: #{cnn_to_rnn_forward.5} parent=31 // pred_region
        _
      $region44: #{cnn_to_rnn_forward.5} parent=31 // pred_fallthru
        _
    $region32: #{cnn_to_rnn_forward.5} parent=5 // pred_fallthru
      _
    %p395 = scmp.le.s32.totalorder 2, %s9
    // Predicated region
    $region45: #{cnn_to_rnn_forward.5} parent=5 // pred_check
      %p396 = pneg %p395
    $region46: #{cnn_to_rnn_forward.5} parent=5 // pred_check_branch
      %398 = sbr.rel (%p396) target = $region48
    $region47: #{cnn_to_rnn_forward.5} parent=5 // pred_region
      %s399 = ssub.s32 %s9, 2
      // Predicated region
      $region49: #{cnn_to_rnn_forward.5} parent=47 // pred_check
        %p400 = pneg %p120
      $region50: #{cnn_to_rnn_forward.5} parent=47 // pred_check_branch
        %402 = sbr.rel (%p400) target = $region52
      $region51: #{cnn_to_rnn_forward.5} parent=47 // pred_region
        %p403 = scmp.lt.s32.totalorder %s20, 1
        %s404 = scalar_select %p403, %s20, 1
        %s405 = scalar_lea.vmem %s3, %s404
      $region52: #{cnn_to_rnn_forward.5} parent=47 // pred_fallthru
        _
    $region48: #{cnn_to_rnn_forward.5} parent=5 // pred_fallthru
      _
  $region6: #{cnn_to_rnn_forward.5} parent=0 // loop_footer
    %s13 = sadd.s32 1, %s9
  $region7: #{cnn_to_rnn_forward.5} parent=0 // loop_footer_branch
    %8 = sbr.rel target = $region3
  $region8: #{cnn_to_rnn_forward.5} parent=0 // loop_exit
    _

// kernel: cnn_to_rnn_forward.9
$region0: #{cnn_to_rnn_forward.9}
  #allocation0 [shape = 'u32[]', space=smem, size = 0x4, offset = 0x4, fixed_abs, tag = 'smem constant byte address 0x4 - core index']
  #allocation1 [shape = 'u32[72,128]{1,0:T(1,128)}', space=vmem, size = 0x9000, scoped, tag = 'internal scratch']
  #allocation2 [shape = 'f32[72,128]{1,0:T(8,128)}', space=vmem, size = 0x9000, scoped, tag = 'scratch operand']
  %s0 = inlined_call_operand.vmem [shape: bf16[72,128], index: 0, kind: input, shape index: {}]
  %s1 = inlined_call_operand.vmem [shape: bf16[128,128], index: 1, kind: input, shape index: {}]
  %s2 = inlined_call_operand.vmem [shape: f32[1,128], index: 2, kind: input, shape index: {}]
  %s3 = inlined_call_operand.vmem [shape: f32[72,128], index: 3, kind: output, shape index: {}]
  %s4 = sld [smem:[#allocation0]]
  $region30: #{cnn_to_rnn_forward.9} parent=0
    _
  %s6 = ssub.s32 1, %s4
  %s7 = scalar_select 0, %s6, %s4
  // Predicated region
  $region2: #{cnn_to_rnn_forward.9} parent=0 // pred_check
    _
  $region3: #{cnn_to_rnn_forward.9} parent=0 // pred_check_branch
    %9 = sbr.rel (0) target = $region5
  $region4: #{cnn_to_rnn_forward.9} parent=0 // pred_region
    _
  $region5: #{cnn_to_rnn_forward.9} parent=0 // pred_fallthru
    _
  // Predicated region
  $region6: #{cnn_to_rnn_forward.9} parent=0 // pred_check
    _
  $region7: #{cnn_to_rnn_forward.9} parent=0 // pred_check_branch
    %11 = sbr.rel (0) target = $region9
  $region8: #{cnn_to_rnn_forward.9} parent=0 // pred_region
    _
  $region9: #{cnn_to_rnn_forward.9} parent=0 // pred_fallthru
    _
  // Predicated region
  $region10: #{cnn_to_rnn_forward.9} parent=0 // pred_check
    _
  $region11: #{cnn_to_rnn_forward.9} parent=0 // pred_check_branch
    %13 = sbr.rel (0) target = $region13
  $region12: #{cnn_to_rnn_forward.9} parent=0 // pred_region
    _
  $region13: #{cnn_to_rnn_forward.9} parent=0 // pred_fallthru
    _
  %p14 = scmp.eq.s32.totalorder 0, 0
  // Predicated region
  $region14: #{cnn_to_rnn_forward.9} parent=0 // pred_check
    %p15 = pneg %p14
  $region15: #{cnn_to_rnn_forward.9} parent=0 // pred_check_branch
    %17 = sbr.rel (%p15) target = $region17
  $region16: #{cnn_to_rnn_forward.9} parent=0 // pred_region
    %18 = vst [vmem:[#allocation2] sm:$0xff] 0.0
    %19 = vst [vmem:[#allocation2 + $0x8] sm:$0xff] 0.0
    %20 = vst [vmem:[#allocation2 + $0x10] sm:$0xff] 0.0
    %21 = vst [vmem:[#allocation2 + $0x18] sm:$0xff] 0.0
    %22 = vst [vmem:[#allocation2 + $0x20] sm:$0xff] 0.0
    %23 = vst [vmem:[#allocation2 + $0x28] sm:$0xff] 0.0
    %24 = vst [vmem:[#allocation2 + $0x30] sm:$0xff] 0.0
    %25 = vst [vmem:[#allocation2 + $0x38] sm:$0xff] 0.0
    %26 = vst [vmem:[#allocation2 + $0x40] sm:$0xff] 0.0
  $region17: #{cnn_to_rnn_forward.9} parent=0 // pred_fallthru
    _
  %v27 = vld [vmem:[#allocation2] sm:$0xff]
  %v28 = vld [vmem:[#allocation2 + $0x8] sm:$0xff]
  %v29 = vld [vmem:[#allocation2 + $0x10] sm:$0xff]
  %v30 = vld [vmem:[#allocation2 + $0x18] sm:$0xff]
  %v31 = vld [vmem:[#allocation2 + $0x20] sm:$0xff]
  %v32 = vld [vmem:[#allocation2 + $0x28] sm:$0xff]
  %v33 = vld [vmem:[#allocation2 + $0x30] sm:$0xff]
  %v34 = vld [vmem:[#allocation2 + $0x38] sm:$0xff]
  %v35 = vld [vmem:[#allocation2 + $0x40] sm:$0xff]
  %v36 = vld [vmem:[%s0] sm:$0xf]
  %v37 = vld [vmem:[%s0 + $0x4] sm:$0xf]
  %v38 = vld [vmem:[%s0 + $0x8] sm:$0xf]
  %v39 = vld [vmem:[%s0 + $0xc] sm:$0xf]
  %v40 = vld [vmem:[%s0 + $0x10] sm:$0xf]
  %v41 = vld [vmem:[%s0 + $0x14] sm:$0xf]
  %v42 = vld [vmem:[%s0 + $0x18] sm:$0xf]
  %v43 = vld [vmem:[%s0 + $0x1c] sm:$0xf]
  %v44 = vld [vmem:[%s0 + $0x20] sm:$0xf]
  %v45 = vld [vmem:[%s1] sm:$0xf]
  %v46 = vld [vmem:[%s1 + $0x4] sm:$0xf]
  %v47 = vld [vmem:[%s1 + $0x8] sm:$0xf]
  %v48 = vld [vmem:[%s1 + $0xc] sm:$0xf]
  %v49 = vld [vmem:[%s1 + $0x10] sm:$0xf]
  %v50 = vld [vmem:[%s1 + $0x14] sm:$0xf]
  %v51 = vld [vmem:[%s1 + $0x18] sm:$0xf]
  %v52 = vld [vmem:[%s1 + $0x1c] sm:$0xf]
  %v53 = vld [vmem:[%s1 + $0x20] sm:$0xf]
  %v54 = vld [vmem:[%s1 + $0x24] sm:$0xf]
  %v55 = vld [vmem:[%s1 + $0x28] sm:$0xf]
  %v56 = vld [vmem:[%s1 + $0x2c] sm:$0xf]
  %v57 = vld [vmem:[%s1 + $0x30] sm:$0xf]
  %v58 = vld [vmem:[%s1 + $0x34] sm:$0xf]
  %v59 = vld [vmem:[%s1 + $0x38] sm:$0xf]
  %v60 = vld [vmem:[%s1 + $0x3c] sm:$0xf]
  %v70 = vunpack.c.l.b16 %v36
  %v71 = vunpack.c.l.b16 %v37
  %v72 = vunpack.c.l.b16 %v38
  %v73 = vunpack.c.l.b16 %v39
  %v74 = vunpack.c.l.b16 %v40
  %v75 = vunpack.c.l.b16 %v41
  %v76 = vunpack.c.l.b16 %v42
  %v77 = vunpack.c.l.b16 %v43
  %v78 = vunpack.c.l.b16 %v44
  %v79 = vpack.c.b16 %v71, %v70
  %v80 = vpack.c.b16 %v73, %v72
  %v81 = vpack.c.b16 %v75, %v74
  %v82 = vpack.c.b16 %v77, %v76
  %v83 = vpack.c.b16 %v78, %v78
  %v105 = vunpack.c.l.b16 %v45
  %v106 = vunpack.c.l.b16 %v46
  %v107 = vunpack.c.l.b16 %v47
  %v108 = vunpack.c.l.b16 %v48
  %v109 = vunpack.c.l.b16 %v49
  %v110 = vunpack.c.l.b16 %v50
  %v111 = vunpack.c.l.b16 %v51
  %v112 = vunpack.c.l.b16 %v52
  %v113 = vunpack.c.l.b16 %v53
  %v114 = vunpack.c.l.b16 %v54
  %v115 = vunpack.c.l.b16 %v55
  %v116 = vunpack.c.l.b16 %v56
  %v117 = vunpack.c.l.b16 %v57
  %v118 = vunpack.c.l.b16 %v58
  %v119 = vunpack.c.l.b16 %v59
  %v120 = vunpack.c.l.b16 %v60
  %v121 = vpack.c.b16 %v106, %v105
  %v122 = vpack.c.b16 %v108, %v107
  %v123 = vpack.c.b16 %v110, %v109
  %v124 = vpack.c.b16 %v112, %v111
  %v125 = vpack.c.b16 %v114, %v113
  %v126 = vpack.c.b16 %v116, %v115
  %v127 = vpack.c.b16 %v118, %v117
  %v128 = vpack.c.b16 %v120, %v119
  %137 = vmatpush.bf16.msra.mxu0 %v128
  %138 = vmatpush.bf16.msra.mxu0 %v127
  %139 = vmatpush.bf16.msra.mxu0 %v126
  %140 = vmatpush.bf16.msra.mxu0 %v125
  %141 = vmatpush.bf16.msra.mxu0 %v124
  %142 = vmatpush.bf16.msra.mxu0 %v123
  %143 = vmatpush.bf16.msra.mxu0 %v122
  %144 = vmatpush.bf16.msra.mxu0 %v121
  %145 = vmatmul.bf16.gmra.mxu0 %v79
  %v146 = vpop.f32.mrf.mxu0
  %v147 = vadd.f32 0.0, %v146
  %v148 = vpop.f32.mrf.mxu0
  %v149 = vadd.f32 0.0, %v148
  %150 = vmatmul.bf16.gmra.mxu0 %v80
  %v151 = vpop.f32.mrf.mxu0
  %v152 = vadd.f32 0.0, %v151
  %v153 = vpop.f32.mrf.mxu0
  %v154 = vadd.f32 0.0, %v153
  %155 = vmatmul.bf16.gmra.mxu0 %v81
  %v156 = vpop.f32.mrf.mxu0
  %v157 = vadd.f32 0.0, %v156
  %v158 = vpop.f32.mrf.mxu0
  %v159 = vadd.f32 0.0, %v158
  %160 = vmatmul.bf16.gmra.mxu0 %v82
  %v161 = vpop.f32.mrf.mxu0
  %v162 = vadd.f32 0.0, %v161
  %v163 = vpop.f32.mrf.mxu0
  %v164 = vadd.f32 0.0, %v163
  %165 = vmatmul.bf16.gmra.mxu0 %v83
  %v166 = vpop.f32.mrf.mxu0
  %v167 = vadd.f32 0.0, %v166
  %v168 = vpop.f32.mrf.mxu0
  %169 = vdwg.mxu0
  %v170 = vadd.f32 %v27, %v147
  %v171 = vadd.f32 %v28, %v149
  %v172 = vadd.f32 %v29, %v152
  %v173 = vadd.f32 %v30, %v154
  %v174 = vadd.f32 %v31, %v157
  %v175 = vadd.f32 %v32, %v159
  %v176 = vadd.f32 %v33, %v162
  %v177 = vadd.f32 %v34, %v164
  %v178 = vadd.f32 %v35, %v167
  %179 = vst [vmem:[#allocation2] sm:$0xff] %v170
  %180 = vst [vmem:[#allocation2 + $0x8] sm:$0xff] %v171
  %181 = vst [vmem:[#allocation2 + $0x10] sm:$0xff] %v172
  %182 = vst [vmem:[#allocation2 + $0x18] sm:$0xff] %v173
  %183 = vst [vmem:[#allocation2 + $0x20] sm:$0xff] %v174
  %184 = vst [vmem:[#allocation2 + $0x28] sm:$0xff] %v175
  %185 = vst [vmem:[#allocation2 + $0x30] sm:$0xff] %v176
  %186 = vst [vmem:[#allocation2 + $0x38] sm:$0xff] %v177
  %187 = vst [vmem:[#allocation2 + $0x40] sm:$0xff] %v178
  // Predicated region
  $region18: #{cnn_to_rnn_forward.9} parent=0 // pred_check
    %p188 = pneg %p14
  $region19: #{cnn_to_rnn_forward.9} parent=0 // pred_check_branch
    %190 = sbr.rel (%p188) target = $region21
  $region20: #{cnn_to_rnn_forward.9} parent=0 // pred_region
    %v191 = vld [vmem:[#allocation2] sm:$0xff]
    %v192 = vld [vmem:[#allocation2 + $0x8] sm:$0xff]
    %v193 = vld [vmem:[#allocation2 + $0x10] sm:$0xff]
    %v194 = vld [vmem:[#allocation2 + $0x18] sm:$0xff]
    %v195 = vld [vmem:[#allocation2 + $0x20] sm:$0xff]
    %v196 = vld [vmem:[#allocation2 + $0x28] sm:$0xff]
    %v197 = vld [vmem:[#allocation2 + $0x30] sm:$0xff]
    %v198 = vld [vmem:[#allocation2 + $0x38] sm:$0xff]
    %v199 = vld [vmem:[#allocation2 + $0x40] sm:$0xff]
    %v200 = vld [vmem:[%s2] sm:$0x1]
    %v202 = vperm.slane %v200, 0
    %v204 = vadd.f32 %v191, %v202
    %v205 = vadd.f32 %v192, %v202
    %v206 = vadd.f32 %v193, %v202
    %v207 = vadd.f32 %v194, %v202
    %v208 = vadd.f32 %v195, %v202
    %v209 = vadd.f32 %v196, %v202
    %v210 = vadd.f32 %v197, %v202
    %v211 = vadd.f32 %v198, %v202
    %v212 = vadd.f32 %v199, %v202
    %213 = vst [vmem:[%s3] sm:$0xff] %v204
    %214 = vst [vmem:[%s3 + $0x8] sm:$0xff] %v205
    %215 = vst [vmem:[%s3 + $0x10] sm:$0xff] %v206
    %216 = vst [vmem:[%s3 + $0x18] sm:$0xff] %v207
    %217 = vst [vmem:[%s3 + $0x20] sm:$0xff] %v208
    %218 = vst [vmem:[%s3 + $0x28] sm:$0xff] %v209
    %219 = vst [vmem:[%s3 + $0x30] sm:$0xff] %v210
    %220 = vst [vmem:[%s3 + $0x38] sm:$0xff] %v211
    %221 = vst [vmem:[%s3 + $0x40] sm:$0xff] %v212
  $region21: #{cnn_to_rnn_forward.9} parent=0 // pred_fallthru
    _
  // Predicated region
  $region22: #{cnn_to_rnn_forward.9} parent=0 // pred_check
    _
  $region23: #{cnn_to_rnn_forward.9} parent=0 // pred_check_branch
    %223 = sbr.rel (0) target = $region25
  $region24: #{cnn_to_rnn_forward.9} parent=0 // pred_region
    _
  $region25: #{cnn_to_rnn_forward.9} parent=0 // pred_fallthru
    _
  // Predicated region
  $region26: #{cnn_to_rnn_forward.9} parent=0 // pred_check
    _
  $region27: #{cnn_to_rnn_forward.9} parent=0 // pred_check_branch
    %225 = sbr.rel (0) target = $region29
  $region28: #{cnn_to_rnn_forward.9} parent=0 // pred_region
    _
  $region29: #{cnn_to_rnn_forward.9} parent=0 // pred_fallthru
    _

// kernel: cnn_to_rnn_forward.7
$region0: #{cnn_to_rnn_forward.7}
  #allocation0 [shape = 'u32[]', space=smem, size = 0x4, offset = 0x4, fixed_abs, tag = 'smem constant byte address 0x4 - core index']
  #allocation1 [shape = 'u32[72,128]{1,0:T(1,128)}', space=vmem, size = 0x9000, scoped, tag = 'internal scratch']
  #allocation2 [shape = 'f32[72,512]{1,0:T(8,128)}', space=vmem, size = 0x24000, scoped, tag = 'scratch operand']
  %s0 = inlined_call_operand.vmem [shape: bf16[72,128], index: 0, kind: input, shape index: {}]
  %s1 = inlined_call_operand.vmem [shape: bf16[128,512], index: 1, kind: input, shape index: {}]
  %s2 = inlined_call_operand.vmem [shape: f32[1,512], index: 2, kind: input, shape index: {}]
  %s3 = inlined_call_operand.vmem [shape: f32[72,512], index: 3, kind: output, shape index: {}]
  %s4 = sld [smem:[#allocation0]]
  $region30: #{cnn_to_rnn_forward.7} parent=0
    _
  %s6 = ssub.s32 1, %s4
  %s7 = scalar_select 0, %s6, %s4
  // Predicated region
  $region2: #{cnn_to_rnn_forward.7} parent=0 // pred_check
    _
  $region3: #{cnn_to_rnn_forward.7} parent=0 // pred_check_branch
    %9 = sbr.rel (0) target = $region5
  $region4: #{cnn_to_rnn_forward.7} parent=0 // pred_region
    _
  $region5: #{cnn_to_rnn_forward.7} parent=0 // pred_fallthru
    _
  // Predicated region
  $region6: #{cnn_to_rnn_forward.7} parent=0 // pred_check
    _
  $region7: #{cnn_to_rnn_forward.7} parent=0 // pred_check_branch
    %11 = sbr.rel (0) target = $region9
  $region8: #{cnn_to_rnn_forward.7} parent=0 // pred_region
    _
  $region9: #{cnn_to_rnn_forward.7} parent=0 // pred_fallthru
    _
  // Predicated region
  $region10: #{cnn_to_rnn_forward.7} parent=0 // pred_check
    _
  $region11: #{cnn_to_rnn_forward.7} parent=0 // pred_check_branch
    %13 = sbr.rel (0) target = $region13
  $region12: #{cnn_to_rnn_forward.7} parent=0 // pred_region
    _
  $region13: #{cnn_to_rnn_forward.7} parent=0 // pred_fallthru
    _
  %p14 = scmp.eq.s32.totalorder 0, 0
  // Predicated region
  $region14: #{cnn_to_rnn_forward.7} parent=0 // pred_check
    %p15 = pneg %p14
  $region15: #{cnn_to_rnn_forward.7} parent=0 // pred_check_branch
    %17 = sbr.rel (%p15) target = $region17
  $region16: #{cnn_to_rnn_forward.7} parent=0 // pred_region
    %18 = vst [vmem:[#allocation2] sm:$0xff] 0.0
    %19 = vst [vmem:[#allocation2 + $0x8] sm:$0xff] 0.0
    %20 = vst [vmem:[#allocation2 + $0x10] sm:$0xff] 0.0
    %21 = vst [vmem:[#allocation2 + $0x18] sm:$0xff] 0.0
    %22 = vst [vmem:[#allocation2 + $0x20] sm:$0xff] 0.0
    %23 = vst [vmem:[#allocation2 + $0x28] sm:$0xff] 0.0
    %24 = vst [vmem:[#allocation2 + $0x30] sm:$0xff] 0.0
    %25 = vst [vmem:[#allocation2 + $0x38] sm:$0xff] 0.0
    %26 = vst [vmem:[#allocation2 + $0x40] sm:$0xff] 0.0
    %27 = vst [vmem:[#allocation2 + $0x48] sm:$0xff] 0.0
    %28 = vst [vmem:[#allocation2 + $0x50] sm:$0xff] 0.0
    %29 = vst [vmem:[#allocation2 + $0x58] sm:$0xff] 0.0
    %30 = vst [vmem:[#allocation2 + $0x60] sm:$0xff] 0.0
    %31 = vst [vmem:[#allocation2 + $0x68] sm:$0xff] 0.0
    %32 = vst [vmem:[#allocation2 + $0x70] sm:$0xff] 0.0
    %33 = vst [vmem:[#allocation2 + $0x78] sm:$0xff] 0.0
    %34 = vst [vmem:[#allocation2 + $0x80] sm:$0xff] 0.0
    %35 = vst [vmem:[#allocation2 + $0x88] sm:$0xff] 0.0
    %36 = vst [vmem:[#allocation2 + $0x90] sm:$0xff] 0.0
    %37 = vst [vmem:[#allocation2 + $0x98] sm:$0xff] 0.0
    %38 = vst [vmem:[#allocation2 + $0xa0] sm:$0xff] 0.0
    %39 = vst [vmem:[#allocation2 + $0xa8] sm:$0xff] 0.0
    %40 = vst [vmem:[#allocation2 + $0xb0] sm:$0xff] 0.0
    %41 = vst [vmem:[#allocation2 + $0xb8] sm:$0xff] 0.0
    %42 = vst [vmem:[#allocation2 + $0xc0] sm:$0xff] 0.0
    %43 = vst [vmem:[#allocation2 + $0xc8] sm:$0xff] 0.0
    %44 = vst [vmem:[#allocation2 + $0xd0] sm:$0xff] 0.0
    %45 = vst [vmem:[#allocation2 + $0xd8] sm:$0xff] 0.0
    %46 = vst [vmem:[#allocation2 + $0xe0] sm:$0xff] 0.0
    %47 = vst [vmem:[#allocation2 + $0xe8] sm:$0xff] 0.0
    %48 = vst [vmem:[#allocation2 + $0xf0] sm:$0xff] 0.0
    %49 = vst [vmem:[#allocation2 + $0xf8] sm:$0xff] 0.0
    %50 = vst [vmem:[#allocation2 + $0x100] sm:$0xff] 0.0
    %51 = vst [vmem:[#allocation2 + $0x108] sm:$0xff] 0.0
    %52 = vst [vmem:[#allocation2 + $0x110] sm:$0xff] 0.0
    %53 = vst [vmem:[#allocation2 + $0x118] sm:$0xff] 0.0
  $region17: #{cnn_to_rnn_forward.7} parent=0 // pred_fallthru
    _
  %v54 = vld [vmem:[#allocation2] sm:$0xff]
  %v55 = vld [vmem:[#allocation2 + $0x8] sm:$0xff]
  %v56 = vld [vmem:[#allocation2 + $0x10] sm:$0xff]
  %v57 = vld [vmem:[#allocation2 + $0x18] sm:$0xff]
  %v58 = vld [vmem:[#allocation2 + $0x20] sm:$0xff]
  %v59 = vld [vmem:[#allocation2 + $0x28] sm:$0xff]
  %v60 = vld [vmem:[#allocation2 + $0x30] sm:$0xff]
  %v61 = vld [vmem:[#allocation2 + $0x38] sm:$0xff]
  %v62 = vld [vmem:[#allocation2 + $0x40] sm:$0xff]
  %v63 = vld [vmem:[#allocation2 + $0x48] sm:$0xff]
  %v64 = vld [vmem:[#allocation2 + $0x50] sm:$0xff]
  %v65 = vld [vmem:[#allocation2 + $0x58] sm:$0xff]
  %v66 = vld [vmem:[#allocation2 + $0x60] sm:$0xff]
  %v67 = vld [vmem:[#allocation2 + $0x68] sm:$0xff]
  %v68 = vld [vmem:[#allocation2 + $0x70] sm:$0xff]
  %v69 = vld [vmem:[#allocation2 + $0x78] sm:$0xff]
  %v70 = vld [vmem:[#allocation2 + $0x80] sm:$0xff]
  %v71 = vld [vmem:[#allocation2 + $0x88] sm:$0xff]
  %v72 = vld [vmem:[#allocation2 + $0x90] sm:$0xff]
  %v73 = vld [vmem:[#allocation2 + $0x98] sm:$0xff]
  %v74 = vld [vmem:[#allocation2 + $0xa0] sm:$0xff]
  %v75 = vld [vmem:[#allocation2 + $0xa8] sm:$0xff]
  %v76 = vld [vmem:[#allocation2 + $0xb0] sm:$0xff]
  %v77 = vld [vmem:[#allocation2 + $0xb8] sm:$0xff]
  %v78 = vld [vmem:[#allocation2 + $0xc0] sm:$0xff]
  %v79 = vld [vmem:[#allocation2 + $0xc8] sm:$0xff]
  %v80 = vld [vmem:[#allocation2 + $0xd0] sm:$0xff]
  %v81 = vld [vmem:[#allocation2 + $0xd8] sm:$0xff]
  %v82 = vld [vmem:[#allocation2 + $0xe0] sm:$0xff]
  %v83 = vld [vmem:[#allocation2 + $0xe8] sm:$0xff]
  %v84 = vld [vmem:[#allocation2 + $0xf0] sm:$0xff]
  %v85 = vld [vmem:[#allocation2 + $0xf8] sm:$0xff]
  %v86 = vld [vmem:[#allocation2 + $0x100] sm:$0xff]
  %v87 = vld [vmem:[#allocation2 + $0x108] sm:$0xff]
  %v88 = vld [vmem:[#allocation2 + $0x110] sm:$0xff]
  %v89 = vld [vmem:[#allocation2 + $0x118] sm:$0xff]
  %v90 = vld [vmem:[%s0] sm:$0xf]
  %v91 = vld [vmem:[%s0 + $0x4] sm:$0xf]
  %v92 = vld [vmem:[%s0 + $0x8] sm:$0xf]
  %v93 = vld [vmem:[%s0 + $0xc] sm:$0xf]
  %v94 = vld [vmem:[%s0 + $0x10] sm:$0xf]
  %v95 = vld [vmem:[%s0 + $0x14] sm:$0xf]
  %v96 = vld [vmem:[%s0 + $0x18] sm:$0xf]
  %v97 = vld [vmem:[%s0 + $0x1c] sm:$0xf]
  %v98 = vld [vmem:[%s0 + $0x20] sm:$0xf]
  %v99 = vld [vmem:[%s1] sm:$0xff]
  %v100 = vld [vmem:[%s1 + $0x8] sm:$0xff]
  %v101 = vld [vmem:[%s1 + $0x10] sm:$0xff]
  %v102 = vld [vmem:[%s1 + $0x18] sm:$0xff]
  %v103 = vld [vmem:[%s1 + $0x20] sm:$0xff]
  %v104 = vld [vmem:[%s1 + $0x28] sm:$0xff]
  %v105 = vld [vmem:[%s1 + $0x30] sm:$0xff]
  %v106 = vld [vmem:[%s1 + $0x38] sm:$0xff]
  %v107 = vld [vmem:[%s1 + $0x40] sm:$0xff]
  %v108 = vld [vmem:[%s1 + $0x48] sm:$0xff]
  %v109 = vld [vmem:[%s1 + $0x50] sm:$0xff]
  %v110 = vld [vmem:[%s1 + $0x58] sm:$0xff]
  %v111 = vld [vmem:[%s1 + $0x60] sm:$0xff]
  %v112 = vld [vmem:[%s1 + $0x68] sm:$0xff]
  %v113 = vld [vmem:[%s1 + $0x70] sm:$0xff]
  %v114 = vld [vmem:[%s1 + $0x78] sm:$0xff]
  %v115 = vld [vmem:[%s1 + $0x80] sm:$0xff]
  %v116 = vld [vmem:[%s1 + $0x88] sm:$0xff]
  %v117 = vld [vmem:[%s1 + $0x90] sm:$0xff]
  %v118 = vld [vmem:[%s1 + $0x98] sm:$0xff]
  %v119 = vld [vmem:[%s1 + $0xa0] sm:$0xff]
  %v120 = vld [vmem:[%s1 + $0xa8] sm:$0xff]
  %v121 = vld [vmem:[%s1 + $0xb0] sm:$0xff]
  %v122 = vld [vmem:[%s1 + $0xb8] sm:$0xff]
  %v123 = vld [vmem:[%s1 + $0xc0] sm:$0xff]
  %v124 = vld [vmem:[%s1 + $0xc8] sm:$0xff]
  %v125 = vld [vmem:[%s1 + $0xd0] sm:$0xff]
  %v126 = vld [vmem:[%s1 + $0xd8] sm:$0xff]
  %v127 = vld [vmem:[%s1 + $0xe0] sm:$0xff]
  %v128 = vld [vmem:[%s1 + $0xe8] sm:$0xff]
  %v129 = vld [vmem:[%s1 + $0xf0] sm:$0xff]
  %v130 = vld [vmem:[%s1 + $0xf8] sm:$0xff]
  %v140 = vunpack.c.l.b16 %v90
  %v141 = vunpack.c.l.b16 %v91
  %v142 = vunpack.c.l.b16 %v92
  %v143 = vunpack.c.l.b16 %v93
  %v144 = vunpack.c.l.b16 %v94
  %v145 = vunpack.c.l.b16 %v95
  %v146 = vunpack.c.l.b16 %v96
  %v147 = vunpack.c.l.b16 %v97
  %v148 = vunpack.c.l.b16 %v98
  %v149 = vpack.c.b16 %v141, %v140
  %v150 = vpack.c.b16 %v143, %v142
  %v151 = vpack.c.b16 %v145, %v144
  %v152 = vpack.c.b16 %v147, %v146
  %v153 = vpack.c.b16 %v148, %v148
  %v191 = vunpack.c.l.b16 %v99
  %v192 = vunpack.c.h.b16 %v99
  %v193 = vunpack.c.l.b16 %v100
  %v194 = vunpack.c.h.b16 %v100
  %v195 = vunpack.c.l.b16 %v101
  %v196 = vunpack.c.h.b16 %v101
  %v197 = vunpack.c.l.b16 %v102
  %v198 = vunpack.c.h.b16 %v102
  %v199 = vunpack.c.l.b16 %v103
  %v200 = vunpack.c.h.b16 %v103
  %v201 = vunpack.c.l.b16 %v104
  %v202 = vunpack.c.h.b16 %v104
  %v203 = vunpack.c.l.b16 %v105
  %v204 = vunpack.c.h.b16 %v105
  %v205 = vunpack.c.l.b16 %v106
  %v206 = vunpack.c.h.b16 %v106
  %v207 = vunpack.c.l.b16 %v107
  %v208 = vunpack.c.h.b16 %v107
  %v209 = vunpack.c.l.b16 %v108
  %v210 = vunpack.c.h.b16 %v108
  %v211 = vunpack.c.l.b16 %v109
  %v212 = vunpack.c.h.b16 %v109
  %v213 = vunpack.c.l.b16 %v110
  %v214 = vunpack.c.h.b16 %v110
  %v215 = vunpack.c.l.b16 %v111
  %v216 = vunpack.c.h.b16 %v111
  %v217 = vunpack.c.l.b16 %v112
  %v218 = vunpack.c.h.b16 %v112
  %v219 = vunpack.c.l.b16 %v113
  %v220 = vunpack.c.h.b16 %v113
  %v221 = vunpack.c.l.b16 %v114
  %v222 = vunpack.c.h.b16 %v114
  %v223 = vunpack.c.l.b16 %v115
  %v224 = vunpack.c.h.b16 %v115
  %v225 = vunpack.c.l.b16 %v116
  %v226 = vunpack.c.h.b16 %v116
  %v227 = vunpack.c.l.b16 %v117
  %v228 = vunpack.c.h.b16 %v117
  %v229 = vunpack.c.l.b16 %v118
  %v230 = vunpack.c.h.b16 %v118
  %v231 = vunpack.c.l.b16 %v119
  %v232 = vunpack.c.h.b16 %v119
  %v233 = vunpack.c.l.b16 %v120
  %v234 = vunpack.c.h.b16 %v120
  %v235 = vunpack.c.l.b16 %v121
  %v236 = vunpack.c.h.b16 %v121
  %v237 = vunpack.c.l.b16 %v122
  %v238 = vunpack.c.h.b16 %v122
  %v239 = vunpack.c.l.b16 %v123
  %v240 = vunpack.c.h.b16 %v123
  %v241 = vunpack.c.l.b16 %v124
  %v242 = vunpack.c.h.b16 %v124
  %v243 = vunpack.c.l.b16 %v125
  %v244 = vunpack.c.h.b16 %v125
  %v245 = vunpack.c.l.b16 %v126
  %v246 = vunpack.c.h.b16 %v126
  %v247 = vunpack.c.l.b16 %v127
  %v248 = vunpack.c.h.b16 %v127
  %v249 = vunpack.c.l.b16 %v128
  %v250 = vunpack.c.h.b16 %v128
  %v251 = vunpack.c.l.b16 %v129
  %v252 = vunpack.c.h.b16 %v129
  %v253 = vunpack.c.l.b16 %v130
  %v254 = vunpack.c.h.b16 %v130
  %v255 = vpack.c.b16 %v195, %v191
  %v256 = vpack.c.b16 %v196, %v192
  %v257 = vpack.c.b16 %v197, %v193
  %v258 = vpack.c.b16 %v198, %v194
  %v259 = vpack.c.b16 %v203, %v199
  %v260 = vpack.c.b16 %v204, %v200
  %v261 = vpack.c.b16 %v205, %v201
  %v262 = vpack.c.b16 %v206, %v202
  %v263 = vpack.c.b16 %v211, %v207
  %v264 = vpack.c.b16 %v212, %v208
  %v265 = vpack.c.b16 %v213, %v209
  %v266 = vpack.c.b16 %v214, %v210
  %v267 = vpack.c.b16 %v219, %v215
  %v268 = vpack.c.b16 %v220, %v216
  %v269 = vpack.c.b16 %v221, %v217
  %v270 = vpack.c.b16 %v222, %v218
  %v271 = vpack.c.b16 %v227, %v223
  %v272 = vpack.c.b16 %v228, %v224
  %v273 = vpack.c.b16 %v229, %v225
  %v274 = vpack.c.b16 %v230, %v226
  %v275 = vpack.c.b16 %v235, %v231
  %v276 = vpack.c.b16 %v236, %v232
  %v277 = vpack.c.b16 %v237, %v233
  %v278 = vpack.c.b16 %v238, %v234
  %v279 = vpack.c.b16 %v243, %v239
  %v280 = vpack.c.b16 %v244, %v240
  %v281 = vpack.c.b16 %v245, %v241
  %v282 = vpack.c.b16 %v246, %v242
  %v283 = vpack.c.b16 %v251, %v247
  %v284 = vpack.c.b16 %v252, %v248
  %v285 = vpack.c.b16 %v253, %v249
  %v286 = vpack.c.b16 %v254, %v250
  %319 = vmatpush.bf16.msra.mxu0 %v283
  %320 = vmatpush.bf16.msra.mxu0 %v279
  %321 = vmatpush.bf16.msra.mxu0 %v275
  %322 = vmatpush.bf16.msra.mxu0 %v271
  %323 = vmatpush.bf16.msra.mxu0 %v267
  %324 = vmatpush.bf16.msra.mxu0 %v263
  %325 = vmatpush.bf16.msra.mxu0 %v259
  %326 = vmatpush.bf16.msra.mxu0 %v255
  %327 = vmatmul.bf16.gmra.mxu0 %v149
  %v328 = vpop.f32.mrf.mxu0
  %v329 = vadd.f32 0.0, %v328
  %v330 = vpop.f32.mrf.mxu0
  %v331 = vadd.f32 0.0, %v330
  %332 = vmatmul.bf16.gmra.mxu0 %v150
  %v333 = vpop.f32.mrf.mxu0
  %v334 = vadd.f32 0.0, %v333
  %v335 = vpop.f32.mrf.mxu0
  %v336 = vadd.f32 0.0, %v335
  %337 = vmatmul.bf16.gmra.mxu0 %v151
  %v338 = vpop.f32.mrf.mxu0
  %v339 = vadd.f32 0.0, %v338
  %v340 = vpop.f32.mrf.mxu0
  %v341 = vadd.f32 0.0, %v340
  %342 = vmatmul.bf16.gmra.mxu0 %v152
  %v343 = vpop.f32.mrf.mxu0
  %v344 = vadd.f32 0.0, %v343
  %v345 = vpop.f32.mrf.mxu0
  %v346 = vadd.f32 0.0, %v345
  %347 = vmatmul.bf16.gmra.mxu0 %v153
  %v348 = vpop.f32.mrf.mxu0
  %v349 = vadd.f32 0.0, %v348
  %v350 = vpop.f32.mrf.mxu0
  %351 = vdwg.mxu0
  %352 = vmatpush.bf16.msra.mxu0 %v284
  %353 = vmatpush.bf16.msra.mxu0 %v280
  %354 = vmatpush.bf16.msra.mxu0 %v276
  %355 = vmatpush.bf16.msra.mxu0 %v272
  %356 = vmatpush.bf16.msra.mxu0 %v268
  %357 = vmatpush.bf16.msra.mxu0 %v264
  %358 = vmatpush.bf16.msra.mxu0 %v260
  %359 = vmatpush.bf16.msra.mxu0 %v256
  %360 = vmatmul.bf16.gmra.mxu0 %v149
  %v361 = vpop.f32.mrf.mxu0
  %v362 = vadd.f32 0.0, %v361
  %v363 = vpop.f32.mrf.mxu0
  %v364 = vadd.f32 0.0, %v363
  %365 = vmatmul.bf16.gmra.mxu0 %v150
  %v366 = vpop.f32.mrf.mxu0
  %v367 = vadd.f32 0.0, %v366
  %v368 = vpop.f32.mrf.mxu0
  %v369 = vadd.f32 0.0, %v368
  %370 = vmatmul.bf16.gmra.mxu0 %v151
  %v371 = vpop.f32.mrf.mxu0
  %v372 = vadd.f32 0.0, %v371
  %v373 = vpop.f32.mrf.mxu0
  %v374 = vadd.f32 0.0, %v373
  %375 = vmatmul.bf16.gmra.mxu0 %v152
  %v376 = vpop.f32.mrf.mxu0
  %v377 = vadd.f32 0.0, %v376
  %v378 = vpop.f32.mrf.mxu0
  %v379 = vadd.f32 0.0, %v378
  %380 = vmatmul.bf16.gmra.mxu0 %v153
  %v381 = vpop.f32.mrf.mxu0
  %v382 = vadd.f32 0.0, %v381
  %v383 = vpop.f32.mrf.mxu0
  %384 = vdwg.mxu0
  %385 = vmatpush.bf16.msra.mxu0 %v285
  %386 = vmatpush.bf16.msra.mxu0 %v281
  %387 = vmatpush.bf16.msra.mxu0 %v277
  %388 = vmatpush.bf16.msra.mxu0 %v273
  %389 = vmatpush.bf16.msra.mxu0 %v269
  %390 = vmatpush.bf16.msra.mxu0 %v265
  %391 = vmatpush.bf16.msra.mxu0 %v261
  %392 = vmatpush.bf16.msra.mxu0 %v257
  %393 = vmatmul.bf16.gmra.mxu0 %v149
  %v394 = vpop.f32.mrf.mxu0
  %v395 = vadd.f32 0.0, %v394
  %v396 = vpop.f32.mrf.mxu0
  %v397 = vadd.f32 0.0, %v396
  %398 = vmatmul.bf16.gmra.mxu0 %v150
  %v399 = vpop.f32.mrf.mxu0
  %v400 = vadd.f32 0.0, %v399
  %v401 = vpop.f32.mrf.mxu0
  %v402 = vadd.f32 0.0, %v401
  %403 = vmatmul.bf16.gmra.mxu0 %v151
  %v404 = vpop.f32.mrf.mxu0
  %v405 = vadd.f32 0.0, %v404
  %v406 = vpop.f32.mrf.mxu0
  %v407 = vadd.f32 0.0, %v406
  %408 = vmatmul.bf16.gmra.mxu0 %v152
  %v409 = vpop.f32.mrf.mxu0
  %v410 = vadd.f32 0.0, %v409
  %v411 = vpop.f32.mrf.mxu0
  %v412 = vadd.f32 0.0, %v411
  %413 = vmatmul.bf16.gmra.mxu0 %v153
  %v414 = vpop.f32.mrf.mxu0
  %v415 = vadd.f32 0.0, %v414
  %v416 = vpop.f32.mrf.mxu0
  %417 = vdwg.mxu0
  %418 = vmatpush.bf16.msra.mxu0 %v286
  %419 = vmatpush.bf16.msra.mxu0 %v282
  %420 = vmatpush.bf16.msra.mxu0 %v278
  %421 = vmatpush.bf16.msra.mxu0 %v274
  %422 = vmatpush.bf16.msra.mxu0 %v270
  %423 = vmatpush.bf16.msra.mxu0 %v266
  %424 = vmatpush.bf16.msra.mxu0 %v262
  %425 = vmatpush.bf16.msra.mxu0 %v258
  %426 = vmatmul.bf16.gmra.mxu0 %v149
  %v427 = vpop.f32.mrf.mxu0
  %v428 = vadd.f32 0.0, %v427
  %v429 = vpop.f32.mrf.mxu0
  %v430 = vadd.f32 0.0, %v429
  %431 = vmatmul.bf16.gmra.mxu0 %v150
  %v432 = vpop.f32.mrf.mxu0
  %v433 = vadd.f32 0.0, %v432
  %v434 = vpop.f32.mrf.mxu0
  %v435 = vadd.f32 0.0, %v434
  %436 = vmatmul.bf16.gmra.mxu0 %v151
  %v437 = vpop.f32.mrf.mxu0
  %v438 = vadd.f32 0.0, %v437
  %v439 = vpop.f32.mrf.mxu0
  %v440 = vadd.f32 0.0, %v439
  %441 = vmatmul.bf16.gmra.mxu0 %v152
  %v442 = vpop.f32.mrf.mxu0
  %v443 = vadd.f32 0.0, %v442
  %v444 = vpop.f32.mrf.mxu0
  %v445 = vadd.f32 0.0, %v444
  %446 = vmatmul.bf16.gmra.mxu0 %v153
  %v447 = vpop.f32.mrf.mxu0
  %v448 = vadd.f32 0.0, %v447
  %v449 = vpop.f32.mrf.mxu0
  %450 = vdwg.mxu0
  %v451 = vadd.f32 %v54, %v329
  %v452 = vadd.f32 %v55, %v362
  %v453 = vadd.f32 %v56, %v395
  %v454 = vadd.f32 %v57, %v428
  %v455 = vadd.f32 %v58, %v331
  %v456 = vadd.f32 %v59, %v364
  %v457 = vadd.f32 %v60, %v397
  %v458 = vadd.f32 %v61, %v430
  %v459 = vadd.f32 %v62, %v334
  %v460 = vadd.f32 %v63, %v367
  %v461 = vadd.f32 %v64, %v400
  %v462 = vadd.f32 %v65, %v433
  %v463 = vadd.f32 %v66, %v336
  %v464 = vadd.f32 %v67, %v369
  %v465 = vadd.f32 %v68, %v402
  %v466 = vadd.f32 %v69, %v435
  %v467 = vadd.f32 %v70, %v339
  %v468 = vadd.f32 %v71, %v372
  %v469 = vadd.f32 %v72, %v405
  %v470 = vadd.f32 %v73, %v438
  %v471 = vadd.f32 %v74, %v341
  %v472 = vadd.f32 %v75, %v374
  %v473 = vadd.f32 %v76, %v407
  %v474 = vadd.f32 %v77, %v440
  %v475 = vadd.f32 %v78, %v344
  %v476 = vadd.f32 %v79, %v377
  %v477 = vadd.f32 %v80, %v410
  %v478 = vadd.f32 %v81, %v443
  %v479 = vadd.f32 %v82, %v346
  %v480 = vadd.f32 %v83, %v379
  %v481 = vadd.f32 %v84, %v412
  %v482 = vadd.f32 %v85, %v445
  %v483 = vadd.f32 %v86, %v349
  %v484 = vadd.f32 %v87, %v382
  %v485 = vadd.f32 %v88, %v415
  %v486 = vadd.f32 %v89, %v448
  %487 = vst [vmem:[#allocation2] sm:$0xff] %v451
  %488 = vst [vmem:[#allocation2 + $0x8] sm:$0xff] %v452
  %489 = vst [vmem:[#allocation2 + $0x10] sm:$0xff] %v453
  %490 = vst [vmem:[#allocation2 + $0x18] sm:$0xff] %v454
  %491 = vst [vmem:[#allocation2 + $0x20] sm:$0xff] %v455
  %492 = vst [vmem:[#allocation2 + $0x28] sm:$0xff] %v456
  %493 = vst [vmem:[#allocation2 + $0x30] sm:$0xff] %v457
  %494 = vst [vmem:[#allocation2 + $0x38] sm:$0xff] %v458
  %495 = vst [vmem:[#allocation2 + $0x40] sm:$0xff] %v459
  %496 = vst [vmem:[#allocation2 + $0x48] sm:$0xff] %v460
  %497 = vst [vmem:[#allocation2 + $0x50] sm:$0xff] %v461
  %498 = vst [vmem:[#allocation2 + $0x58] sm:$0xff] %v462
  %499 = vst [vmem:[#allocation2 + $0x60] sm:$0xff] %v463
  %500 = vst [vmem:[#allocation2 + $0x68] sm:$0xff] %v464
  %501 = vst [vmem:[#allocation2 + $0x70] sm:$0xff] %v465
  %502 = vst [vmem:[#allocation2 + $0x78] sm:$0xff] %v466
  %503 = vst [vmem:[#allocation2 + $0x80] sm:$0xff] %v467
  %504 = vst [vmem:[#allocation2 + $0x88] sm:$0xff] %v468
  %505 = vst [vmem:[#allocation2 + $0x90] sm:$0xff] %v469
  %506 = vst [vmem:[#allocation2 + $0x98] sm:$0xff] %v470
  %507 = vst [vmem:[#allocation2 + $0xa0] sm:$0xff] %v471
  %508 = vst [vmem:[#allocation2 + $0xa8] sm:$0xff] %v472
  %509 = vst [vmem:[#allocation2 + $0xb0] sm:$0xff] %v473
  %510 = vst [vmem:[#allocation2 + $0xb8] sm:$0xff] %v474
  %511 = vst [vmem:[#allocation2 + $0xc0] sm:$0xff] %v475
  %512 = vst [vmem:[#allocation2 + $0xc8] sm:$0xff] %v476
  %513 = vst [vmem:[#allocation2 + $0xd0] sm:$0xff] %v477
  %514 = vst [vmem:[#allocation2 + $0xd8] sm:$0xff] %v478
  %515 = vst [vmem:[#allocation2 + $0xe0] sm:$0xff] %v479
  %516 = vst [vmem:[#allocation2 + $0xe8] sm:$0xff] %v480
  %517 = vst [vmem:[#allocation2 + $0xf0] sm:$0xff] %v481
  %518 = vst [vmem:[#allocation2 + $0xf8] sm:$0xff] %v482
  %519 = vst [vmem:[#allocation2 + $0x100] sm:$0xff] %v483
  %520 = vst [vmem:[#allocation2 + $0x108] sm:$0xff] %v484
  %521 = vst [vmem:[#allocation2 + $0x110] sm:$0xff] %v485
  %522 = vst [vmem:[#allocation2 + $0x118] sm:$0xff] %v486
  // Predicated region
  $region18: #{cnn_to_rnn_forward.7} parent=0 // pred_check
    %p523 = pneg %p14
  $region19: #{cnn_to_rnn_forward.7} parent=0 // pred_check_branch
    %525 = sbr.rel (%p523) target = $region21
  $region20: #{cnn_to_rnn_forward.7} parent=0 // pred_region
    %v526 = vld [vmem:[#allocation2] sm:$0xff]
    %v527 = vld [vmem:[#allocation2 + $0x8] sm:$0xff]
    %v528 = vld [vmem:[#allocation2 + $0x10] sm:$0xff]
    %v529 = vld [vmem:[#allocation2 + $0x18] sm:$0xff]
    %v530 = vld [vmem:[#allocation2 + $0x20] sm:$0xff]
    %v531 = vld [vmem:[#allocation2 + $0x28] sm:$0xff]
    %v532 = vld [vmem:[#allocation2 + $0x30] sm:$0xff]
    %v533 = vld [vmem:[#allocation2 + $0x38] sm:$0xff]
    %v534 = vld [vmem:[#allocation2 + $0x40] sm:$0xff]
    %v535 = vld [vmem:[#allocation2 + $0x48] sm:$0xff]
    %v536 = vld [vmem:[#allocation2 + $0x50] sm:$0xff]
    %v537 = vld [vmem:[#allocation2 + $0x58] sm:$0xff]
    %v538 = vld [vmem:[#allocation2 + $0x60] sm:$0xff]
    %v539 = vld [vmem:[#allocation2 + $0x68] sm:$0xff]
    %v540 = vld [vmem:[#allocation2 + $0x70] sm:$0xff]
    %v541 = vld [vmem:[#allocation2 + $0x78] sm:$0xff]
    %v542 = vld [vmem:[#allocation2 + $0x80] sm:$0xff]
    %v543 = vld [vmem:[#allocation2 + $0x88] sm:$0xff]
    %v544 = vld [vmem:[#allocation2 + $0x90] sm:$0xff]
    %v545 = vld [vmem:[#allocation2 + $0x98] sm:$0xff]
    %v546 = vld [vmem:[#allocation2 + $0xa0] sm:$0xff]
    %v547 = vld [vmem:[#allocation2 + $0xa8] sm:$0xff]
    %v548 = vld [vmem:[#allocation2 + $0xb0] sm:$0xff]
    %v549 = vld [vmem:[#allocation2 + $0xb8] sm:$0xff]
    %v550 = vld [vmem:[#allocation2 + $0xc0] sm:$0xff]
    %v551 = vld [vmem:[#allocation2 + $0xc8] sm:$0xff]
    %v552 = vld [vmem:[#allocation2 + $0xd0] sm:$0xff]
    %v553 = vld [vmem:[#allocation2 + $0xd8] sm:$0xff]
    %v554 = vld [vmem:[#allocation2 + $0xe0] sm:$0xff]
    %v555 = vld [vmem:[#allocation2 + $0xe8] sm:$0xff]
    %v556 = vld [vmem:[#allocation2 + $0xf0] sm:$0xff]
    %v557 = vld [vmem:[#allocation2 + $0xf8] sm:$0xff]
    %v558 = vld [vmem:[#allocation2 + $0x100] sm:$0xff]
    %v559 = vld [vmem:[#allocation2 + $0x108] sm:$0xff]
    %v560 = vld [vmem:[#allocation2 + $0x110] sm:$0xff]
    %v561 = vld [vmem:[#allocation2 + $0x118] sm:$0xff]
    %v562 = vld [vmem:[%s2] sm:$0xf]
    %v564 = vperm.slane %v562, 0
    %v565 = vperm.slane %v562, 1
    %v566 = vperm.slane %v562, 2
    %v567 = vperm.slane %v562, 3
    %v572 = vadd.f32 %v526, %v564
    %v573 = vadd.f32 %v527, %v565
    %v574 = vadd.f32 %v528, %v566
    %v575 = vadd.f32 %v529, %v567
    %v576 = vadd.f32 %v530, %v564
    %v577 = vadd.f32 %v531, %v565
    %v578 = vadd.f32 %v532, %v566
    %v579 = vadd.f32 %v533, %v567
    %v580 = vadd.f32 %v534, %v564
    %v581 = vadd.f32 %v535, %v565
    %v582 = vadd.f32 %v536, %v566
    %v583 = vadd.f32 %v537, %v567
    %v584 = vadd.f32 %v538, %v564
    %v585 = vadd.f32 %v539, %v565
    %v586 = vadd.f32 %v540, %v566
    %v587 = vadd.f32 %v541, %v567
    %v588 = vadd.f32 %v542, %v564
    %v589 = vadd.f32 %v543, %v565
    %v590 = vadd.f32 %v544, %v566
    %v591 = vadd.f32 %v545, %v567
    %v592 = vadd.f32 %v546, %v564
    %v593 = vadd.f32 %v547, %v565
    %v594 = vadd.f32 %v548, %v566
    %v595 = vadd.f32 %v549, %v567
    %v596 = vadd.f32 %v550, %v564
    %v597 = vadd.f32 %v551, %v565
    %v598 = vadd.f32 %v552, %v566
    %v599 = vadd.f32 %v553, %v567
    %v600 = vadd.f32 %v554, %v564
    %v601 = vadd.f32 %v555, %v565
    %v602 = vadd.f32 %v556, %v566
    %v603 = vadd.f32 %v557, %v567
    %v604 = vadd.f32 %v558, %v564
    %v605 = vadd.f32 %v559, %v565
    %v606 = vadd.f32 %v560, %v566
    %v607 = vadd.f32 %v561, %v567
    %608 = vst [vmem:[%s3] sm:$0xff] %v572
    %609 = vst [vmem:[%s3 + $0x8] sm:$0xff] %v573
    %610 = vst [vmem:[%s3 + $0x10] sm:$0xff] %v574
    %611 = vst [vmem:[%s3 + $0x18] sm:$0xff] %v575
    %612 = vst [vmem:[%s3 + $0x20] sm:$0xff] %v576
    %613 = vst [vmem:[%s3 + $0x28] sm:$0xff] %v577
    %614 = vst [vmem:[%s3 + $0x30] sm:$0xff] %v578
    %615 = vst [vmem:[%s3 + $0x38] sm:$0xff] %v579
    %616 = vst [vmem:[%s3 + $0x40] sm:$0xff] %v580
    %617 = vst [vmem:[%s3 + $0x48] sm:$0xff] %v581
    %618 = vst [vmem:[%s3 + $0x50] sm:$0xff] %v582
    %619 = vst [vmem:[%s3 + $0x58] sm:$0xff] %v583
    %620 = vst [vmem:[%s3 + $0x60] sm:$0xff] %v584
    %621 = vst [vmem:[%s3 + $0x68] sm:$0xff] %v585
    %622 = vst [vmem:[%s3 + $0x70] sm:$0xff] %v586
    %623 = vst [vmem:[%s3 + $0x78] sm:$0xff] %v587
    %624 = vst [vmem:[%s3 + $0x80] sm:$0xff] %v588
    %625 = vst [vmem:[%s3 + $0x88] sm:$0xff] %v589
    %626 = vst [vmem:[%s3 + $0x90] sm:$0xff] %v590
    %627 = vst [vmem:[%s3 + $0x98] sm:$0xff] %v591
    %628 = vst [vmem:[%s3 + $0xa0] sm:$0xff] %v592
    %629 = vst [vmem:[%s3 + $0xa8] sm:$0xff] %v593
    %630 = vst [vmem:[%s3 + $0xb0] sm:$0xff] %v594
    %631 = vst [vmem:[%s3 + $0xb8] sm:$0xff] %v595
    %632 = vst [vmem:[%s3 + $0xc0] sm:$0xff] %v596
    %633 = vst [vmem:[%s3 + $0xc8] sm:$0xff] %v597
    %634 = vst [vmem:[%s3 + $0xd0] sm:$0xff] %v598
    %635 = vst [vmem:[%s3 + $0xd8] sm:$0xff] %v599
    %636 = vst [vmem:[%s3 + $0xe0] sm:$0xff] %v600
    %637 = vst [vmem:[%s3 + $0xe8] sm:$0xff] %v601
    %638 = vst [vmem:[%s3 + $0xf0] sm:$0xff] %v602
    %639 = vst [vmem:[%s3 + $0xf8] sm:$0xff] %v603
    %640 = vst [vmem:[%s3 + $0x100] sm:$0xff] %v604
    %641 = vst [vmem:[%s3 + $0x108] sm:$0xff] %v605
    %642 = vst [vmem:[%s3 + $0x110] sm:$0xff] %v606
    %643 = vst [vmem:[%s3 + $0x118] sm:$0xff] %v607
  $region21: #{cnn_to_rnn_forward.7} parent=0 // pred_fallthru
    _
  // Predicated region
  $region22: #{cnn_to_rnn_forward.7} parent=0 // pred_check
    _
  $region23: #{cnn_to_rnn_forward.7} parent=0 // pred_check_branch
    %645 = sbr.rel (0) target = $region25
  $region24: #{cnn_to_rnn_forward.7} parent=0 // pred_region
    _
  $region25: #{cnn_to_rnn_forward.7} parent=0 // pred_fallthru
    _
  // Predicated region
  $region26: #{cnn_to_rnn_forward.7} parent=0 // pred_check
    _
  $region27: #{cnn_to_rnn_forward.7} parent=0 // pred_check_branch
    %647 = sbr.rel (0) target = $region29
  $region28: #{cnn_to_rnn_forward.7} parent=0 // pred_region
    _
  $region29: #{cnn_to_rnn_forward.7} parent=0 // pred_fallthru
    _

// kernel: cnn_to_rnn_forward.8
$region0: #{cnn_to_rnn_forward.8}
  #allocation0 [shape = 'u32[]', space=smem, size = 0x4, offset = 0x4, fixed_abs, tag = 'smem constant byte address 0x4 - core index']
  #allocation1 [shape = 'u32[72,128]{1,0:T(1,128)}', space=vmem, size = 0x9000, scoped, tag = 'internal scratch']
  #allocation2 [shape = 'f32[8,128]{1,0:T(8,128)}', space=vmem, size = 0x1000, scoped, tag = 'scratch operand']
  #allocation3 [shape = 'f32[8,128]{1,0:T(8,128)}', space=vmem, size = 0x1000, scoped, tag = 'scratch operand']
  %s0 = inlined_call_operand.vmem [shape: f32[9,8,512], index: 0, kind: input, shape index: {}]
  %s1 = inlined_call_operand.vmem [shape: bf16[2,128,512], index: 1, kind: input, shape index: {}]
  %s2 = inlined_call_operand.vmem [shape: bf16[1,128,512], index: 2, kind: input, shape index: {}]
  %s3 = inlined_call_operand.vmem [shape: f32[1,1,512], index: 3, kind: input, shape index: {}]
  %s4 = inlined_call_operand.vmem [shape: f32[9,8,128], index: 4, kind: output, shape index: {}]
  %s5 = sld [smem:[#allocation0]]
  $region26: #{cnn_to_rnn_forward.8} parent=0
    _
  %s7 = ssub.s32 1, %s5
  %s8 = scalar_select 0, %s7, %s5
  // Predicated region
  $region2: #{cnn_to_rnn_forward.8} parent=0 // pred_check
    _
  $region3: #{cnn_to_rnn_forward.8} parent=0 // pred_check_branch
    %10 = sbr.rel (0) target = $region5
  $region4: #{cnn_to_rnn_forward.8} parent=0 // pred_region
    _
  $region5: #{cnn_to_rnn_forward.8} parent=0 // pred_fallthru
    _
  // Predicated region
  $region6: #{cnn_to_rnn_forward.8} parent=0 // pred_check
    _
  $region7: #{cnn_to_rnn_forward.8} parent=0 // pred_check_branch
    %12 = sbr.rel (0) target = $region9
  $region8: #{cnn_to_rnn_forward.8} parent=0 // pred_region
    _
  $region9: #{cnn_to_rnn_forward.8} parent=0 // pred_fallthru
    _
  // Predicated region
  $region10: #{cnn_to_rnn_forward.8} parent=0 // pred_check
    _
  $region11: #{cnn_to_rnn_forward.8} parent=0 // pred_check_branch
    %14 = sbr.rel (0) target = $region13
  $region12: #{cnn_to_rnn_forward.8} parent=0 // pred_region
    _
  $region13: #{cnn_to_rnn_forward.8} parent=0 // pred_fallthru
    _
  // Predicated region
  $region14: #{cnn_to_rnn_forward.8} parent=0 // pred_check
    _
  $region15: #{cnn_to_rnn_forward.8} parent=0 // pred_check_branch
    %16 = sbr.rel (0) target = $region17
  $region16: #{cnn_to_rnn_forward.8} parent=0 // pred_region
    _
  $region17: #{cnn_to_rnn_forward.8} parent=0 // pred_fallthru
    _
  %17 = vst [vmem:[#allocation2] sm:$0xff] 0.0
  %18 = vst [vmem:[#allocation3] sm:$0xff] 0.0
  %v19 = vld [vmem:[%s0] sm:$0xff]
  %v20 = vld [vmem:[%s0 + $0x8] sm:$0xff]
  %v21 = vld [vmem:[%s0 + $0x10] sm:$0xff]
  %v22 = vld [vmem:[%s0 + $0x18] sm:$0xff]
  %v23 = vld [vmem:[#allocation2] sm:$0xff]
  %v24 = vpack.c.bf16 %v23, %v23
  %v25 = vld [vmem:[%s1] sm:$0xff]
  %v26 = vld [vmem:[%s1 + $0x8] sm:$0xff]
  %v27 = vld [vmem:[%s1 + $0x10] sm:$0xff]
  %v28 = vld [vmem:[%s1 + $0x18] sm:$0xff]
  %v29 = vld [vmem:[%s1 + $0x20] sm:$0xff]
  %v30 = vld [vmem:[%s1 + $0x28] sm:$0xff]
  %v31 = vld [vmem:[%s1 + $0x30] sm:$0xff]
  %v32 = vld [vmem:[%s1 + $0x38] sm:$0xff]
  %v33 = vld [vmem:[%s1 + $0x40] sm:$0xff]
  %v34 = vld [vmem:[%s1 + $0x48] sm:$0xff]
  %v35 = vld [vmem:[%s1 + $0x50] sm:$0xff]
  %v36 = vld [vmem:[%s1 + $0x58] sm:$0xff]
  %v37 = vld [vmem:[%s1 + $0x60] sm:$0xff]
  %v38 = vld [vmem:[%s1 + $0x68] sm:$0xff]
  %v39 = vld [vmem:[%s1 + $0x70] sm:$0xff]
  %v40 = vld [vmem:[%s1 + $0x78] sm:$0xff]
  %v41 = vld [vmem:[%s1 + $0x80] sm:$0xff]
  %v42 = vld [vmem:[%s1 + $0x88] sm:$0xff]
  %v43 = vld [vmem:[%s1 + $0x90] sm:$0xff]
  %v44 = vld [vmem:[%s1 + $0x98] sm:$0xff]
  %v45 = vld [vmem:[%s1 + $0xa0] sm:$0xff]
  %v46 = vld [vmem:[%s1 + $0xa8] sm:$0xff]
  %v47 = vld [vmem:[%s1 + $0xb0] sm:$0xff]
  %v48 = vld [vmem:[%s1 + $0xb8] sm:$0xff]
  %v49 = vld [vmem:[%s1 + $0xc0] sm:$0xff]
  %v50 = vld [vmem:[%s1 + $0xc8] sm:$0xff]
  %v51 = vld [vmem:[%s1 + $0xd0] sm:$0xff]
  %v52 = vld [vmem:[%s1 + $0xd8] sm:$0xff]
  %v53 = vld [vmem:[%s1 + $0xe0] sm:$0xff]
  %v54 = vld [vmem:[%s1 + $0xe8] sm:$0xff]
  %v55 = vld [vmem:[%s1 + $0xf0] sm:$0xff]
  %v56 = vld [vmem:[%s1 + $0xf8] sm:$0xff]
  %v89 = vunpack.c.l.b16 %v25
  %v90 = vunpack.c.h.b16 %v25
  %v91 = vunpack.c.l.b16 %v26
  %v92 = vunpack.c.h.b16 %v26
  %v93 = vunpack.c.l.b16 %v27
  %v94 = vunpack.c.h.b16 %v27
  %v95 = vunpack.c.l.b16 %v28
  %v96 = vunpack.c.h.b16 %v28
  %v97 = vunpack.c.l.b16 %v29
  %v98 = vunpack.c.h.b16 %v29
  %v99 = vunpack.c.l.b16 %v30
  %v100 = vunpack.c.h.b16 %v30
  %v101 = vunpack.c.l.b16 %v31
  %v102 = vunpack.c.h.b16 %v31
  %v103 = vunpack.c.l.b16 %v32
  %v104 = vunpack.c.h.b16 %v32
  %v105 = vunpack.c.l.b16 %v33
  %v106 = vunpack.c.h.b16 %v33
  %v107 = vunpack.c.l.b16 %v34
  %v108 = vunpack.c.h.b16 %v34
  %v109 = vunpack.c.l.b16 %v35
  %v110 = vunpack.c.h.b16 %v35
  %v111 = vunpack.c.l.b16 %v36
  %v112 = vunpack.c.h.b16 %v36
  %v113 = vunpack.c.l.b16 %v37
  %v114 = vunpack.c.h.b16 %v37
  %v115 = vunpack.c.l.b16 %v38
  %v116 = vunpack.c.h.b16 %v38
  %v117 = vunpack.c.l.b16 %v39
  %v118 = vunpack.c.h.b16 %v39
  %v119 = vunpack.c.l.b16 %v40
  %v120 = vunpack.c.h.b16 %v40
  %v121 = vunpack.c.l.b16 %v41
  %v122 = vunpack.c.h.b16 %v41
  %v123 = vunpack.c.l.b16 %v42
  %v124 = vunpack.c.h.b16 %v42
  %v125 = vunpack.c.l.b16 %v43
  %v126 = vunpack.c.h.b16 %v43
  %v127 = vunpack.c.l.b16 %v44
  %v128 = vunpack.c.h.b16 %v44
  %v129 = vunpack.c.l.b16 %v45
  %v130 = vunpack.c.h.b16 %v45
  %v131 = vunpack.c.l.b16 %v46
  %v132 = vunpack.c.h.b16 %v46
  %v133 = vunpack.c.l.b16 %v47
  %v134 = vunpack.c.h.b16 %v47
  %v135 = vunpack.c.l.b16 %v48
  %v136 = vunpack.c.h.b16 %v48
  %v137 = vunpack.c.l.b16 %v49
  %v138 = vunpack.c.h.b16 %v49
  %v139 = vunpack.c.l.b16 %v50
  %v140 = vunpack.c.h.b16 %v50
  %v141 = vunpack.c.l.b16 %v51
  %v142 = vunpack.c.h.b16 %v51
  %v143 = vunpack.c.l.b16 %v52
  %v144 = vunpack.c.h.b16 %v52
  %v145 = vunpack.c.l.b16 %v53
  %v146 = vunpack.c.h.b16 %v53
  %v147 = vunpack.c.l.b16 %v54
  %v148 = vunpack.c.h.b16 %v54
  %v149 = vunpack.c.l.b16 %v55
  %v150 = vunpack.c.h.b16 %v55
  %v151 = vunpack.c.l.b16 %v56
  %v152 = vunpack.c.h.b16 %v56
  %v153 = vpack.c.b16 %v93, %v89
  %v154 = vpack.c.b16 %v94, %v90
  %v155 = vpack.c.b16 %v95, %v91
  %v156 = vpack.c.b16 %v96, %v92
  %v157 = vpack.c.b16 %v101, %v97
  %v158 = vpack.c.b16 %v102, %v98
  %v159 = vpack.c.b16 %v103, %v99
  %v160 = vpack.c.b16 %v104, %v100
  %v161 = vpack.c.b16 %v109, %v105
  %v162 = vpack.c.b16 %v110, %v106
  %v163 = vpack.c.b16 %v111, %v107
  %v164 = vpack.c.b16 %v112, %v108
  %v165 = vpack.c.b16 %v117, %v113
  %v166 = vpack.c.b16 %v118, %v114
  %v167 = vpack.c.b16 %v119, %v115
  %v168 = vpack.c.b16 %v120, %v116
  %v169 = vpack.c.b16 %v125, %v121
  %v170 = vpack.c.b16 %v126, %v122
  %v171 = vpack.c.b16 %v127, %v123
  %v172 = vpack.c.b16 %v128, %v124
  %v173 = vpack.c.b16 %v133, %v129
  %v174 = vpack.c.b16 %v134, %v130
  %v175 = vpack.c.b16 %v135, %v131
  %v176 = vpack.c.b16 %v136, %v132
  %v177 = vpack.c.b16 %v141, %v137
  %v178 = vpack.c.b16 %v142, %v138
  %v179 = vpack.c.b16 %v143, %v139
  %v180 = vpack.c.b16 %v144, %v140
  %v181 = vpack.c.b16 %v149, %v145
  %v182 = vpack.c.b16 %v150, %v146
  %v183 = vpack.c.b16 %v151, %v147
  %v184 = vpack.c.b16 %v152, %v148
  %217 = vmatpush.bf16.msra.mxu0 %v181
  %218 = vmatpush.bf16.msra.mxu0 %v177
  %219 = vmatpush.bf16.msra.mxu0 %v173
  %220 = vmatpush.bf16.msra.mxu0 %v169
  %221 = vmatpush.bf16.msra.mxu0 %v165
  %222 = vmatpush.bf16.msra.mxu0 %v161
  %223 = vmatpush.bf16.msra.mxu0 %v157
  %224 = vmatpush.bf16.msra.mxu0 %v153
  %225 = vmatmul.bf16.gmra.mxu0 %v24
  %v226 = vpop.f32.mrf.mxu0
  %v227 = vadd.f32 0.0, %v226
  %v228 = vpop.f32.mrf.mxu0
  %229 = vdwg.mxu0
  %230 = vmatpush.bf16.msra.mxu0 %v182
  %231 = vmatpush.bf16.msra.mxu0 %v178
  %232 = vmatpush.bf16.msra.mxu0 %v174
  %233 = vmatpush.bf16.msra.mxu0 %v170
  %234 = vmatpush.bf16.msra.mxu0 %v166
  %235 = vmatpush.bf16.msra.mxu0 %v162
  %236 = vmatpush.bf16.msra.mxu0 %v158
  %237 = vmatpush.bf16.msra.mxu0 %v154
  %238 = vmatmul.bf16.gmra.mxu0 %v24
  %v239 = vpop.f32.mrf.mxu0
  %v240 = vadd.f32 0.0, %v239
  %v241 = vpop.f32.mrf.mxu0
  %242 = vdwg.mxu0
  %243 = vmatpush.bf16.msra.mxu0 %v183
  %244 = vmatpush.bf16.msra.mxu0 %v179
  %245 = vmatpush.bf16.msra.mxu0 %v175
  %246 = vmatpush.bf16.msra.mxu0 %v171
  %247 = vmatpush.bf16.msra.mxu0 %v167
  %248 = vmatpush.bf16.msra.mxu0 %v163
  %249 = vmatpush.bf16.msra.mxu0 %v159
  %250 = vmatpush.bf16.msra.mxu0 %v155
  %251 = vmatmul.bf16.gmra.mxu0 %v24
  %v252 = vpop.f32.mrf.mxu0
  %v253 = vadd.f32 0.0, %v252
  %v254 = vpop.f32.mrf.mxu0
  %255 = vdwg.mxu0
  %256 = vmatpush.bf16.msra.mxu0 %v184
  %257 = vmatpush.bf16.msra.mxu0 %v180
  %258 = vmatpush.bf16.msra.mxu0 %v176
  %259 = vmatpush.bf16.msra.mxu0 %v172
  %260 = vmatpush.bf16.msra.mxu0 %v168
  %261 = vmatpush.bf16.msra.mxu0 %v164
  %262 = vmatpush.bf16.msra.mxu0 %v160
  %263 = vmatpush.bf16.msra.mxu0 %v156
  %264 = vmatmul.bf16.gmra.mxu0 %v24
  %v265 = vpop.f32.mrf.mxu0
  %v266 = vadd.f32 0.0, %v265
  %v267 = vpop.f32.mrf.mxu0
  %268 = vdwg.mxu0
  %v269 = vadd.f32 %v19, %v227
  %v270 = vadd.f32 %v20, %v240
  %v271 = vadd.f32 %v21, %v253
  %v272 = vadd.f32 %v22, %v266
  %v273 = vxor.u32 %v269, 2147483648
  %v274 = vmul.f32 %v273, 1.442695
  %v275 = vpow.pop %v274
  %v276 = vadd.f32 %v275, 1.0
  %v277 = vrcp.pop %v276
  %v278 = vmul.f32 %v276, %v277
  %v279 = vsub.f32 1.0, %v278
  %v280 = vmul.f32 %v277, %v279
  %v281 = vadd.f32 %v277, %v280
  %vm282 = vweird.f32 %v276
  %vm283 = vweird.f32 %v277
  %vm284 = vmor %vm282, %vm283
  %v285 = vsel %vm284, %v277, %v281
  %v286 = vand.u32 2147483647, %v276
  %vm287 = vcmp.eq.f32.partialorder %v286, 8.507059e+37
  %v288 = vand.u32 %v276, 2147483648
  %v289 = vor.u32 1.1754944e-38, %v288
  %v290 = vsel %vm287, %v289, %v285
  %v291 = vmul.f32 1.0, %v290
  %v292 = vxor.u32 %v270, 2147483648
  %v293 = vmul.f32 %v292, 1.442695
  %v294 = vpow.pop %v293
  %v295 = vadd.f32 %v294, 1.0
  %v296 = vrcp.pop %v295
  %v297 = vmul.f32 %v295, %v296
  %v298 = vsub.f32 1.0, %v297
  %v299 = vmul.f32 %v296, %v298
  %v300 = vadd.f32 %v296, %v299
  %vm301 = vweird.f32 %v295
  %vm302 = vweird.f32 %v296
  %vm303 = vmor %vm301, %vm302
  %v304 = vsel %vm303, %v296, %v300
  %v305 = vand.u32 2147483647, %v295
  %vm306 = vcmp.eq.f32.partialorder %v305, 8.507059e+37
  %v307 = vand.u32 %v295, 2147483648
  %v308 = vor.u32 1.1754944e-38, %v307
  %v309 = vsel %vm306, %v308, %v304
  %v310 = vmul.f32 1.0, %v309
  %v311 = vtanh.pop %v271
  %v312 = vxor.u32 %v272, 2147483648
  %v313 = vmul.f32 %v312, 1.442695
  %v314 = vpow.pop %v313
  %v315 = vadd.f32 %v314, 1.0
  %v316 = vrcp.pop %v315
  %v317 = vmul.f32 %v315, %v316
  %v318 = vsub.f32 1.0, %v317
  %v319 = vmul.f32 %v316, %v318
  %v320 = vadd.f32 %v316, %v319
  %vm321 = vweird.f32 %v315
  %vm322 = vweird.f32 %v316
  %vm323 = vmor %vm321, %vm322
  %v324 = vsel %vm323, %v316, %v320
  %v325 = vand.u32 2147483647, %v315
  %vm326 = vcmp.eq.f32.partialorder %v325, 8.507059e+37
  %v327 = vand.u32 %v315, 2147483648
  %v328 = vor.u32 1.1754944e-38, %v327
  %v329 = vsel %vm326, %v328, %v324
  %v330 = vmul.f32 1.0, %v329
  %v331 = vld [vmem:[#allocation3] sm:$0xff]
  %v332 = vmul.f32 %v310, %v331
  %v333 = vmul.f32 %v291, %v311
  %v334 = vadd.f32 %v332, %v333
  %v335 = vtanh.pop %v334
  %v336 = vmul.f32 %v330, %v335
  %337 = vst [vmem:[#allocation3] sm:$0xff] %v334
  %338 = vst [vmem:[#allocation2] sm:$0xff] %v336
  %339 = vst [vmem:[%s4] sm:$0xff] %v336
  %s340 = scalar_lea.vmem %s0, 32
  %v341 = vld [vmem:[%s340] sm:$0xff]
  %v342 = vld [vmem:[%s340 + $0x8] sm:$0xff]
  %v343 = vld [vmem:[%s340 + $0x10] sm:$0xff]
  %v344 = vld [vmem:[%s340 + $0x18] sm:$0xff]
  %v345 = vld [vmem:[#allocation2] sm:$0xff]
  %v346 = vpack.c.bf16 %v345, %v345
  %v347 = vld [vmem:[%s1] sm:$0xff]
  %v348 = vld [vmem:[%s1 + $0x8] sm:$0xff]
  %v349 = vld [vmem:[%s1 + $0x10] sm:$0xff]
  %v350 = vld [vmem:[%s1 + $0x18] sm:$0xff]
  %v351 = vld [vmem:[%s1 + $0x20] sm:$0xff]
  %v352 = vld [vmem:[%s1 + $0x28] sm:$0xff]
  %v353 = vld [vmem:[%s1 + $0x30] sm:$0xff]
  %v354 = vld [vmem:[%s1 + $0x38] sm:$0xff]
  %v355 = vld [vmem:[%s1 + $0x40] sm:$0xff]
  %v356 = vld [vmem:[%s1 + $0x48] sm:$0xff]
  %v357 = vld [vmem:[%s1 + $0x50] sm:$0xff]
  %v358 = vld [vmem:[%s1 + $0x58] sm:$0xff]
  %v359 = vld [vmem:[%s1 + $0x60] sm:$0xff]
  %v360 = vld [vmem:[%s1 + $0x68] sm:$0xff]
  %v361 = vld [vmem:[%s1 + $0x70] sm:$0xff]
  %v362 = vld [vmem:[%s1 + $0x78] sm:$0xff]
  %v363 = vld [vmem:[%s1 + $0x80] sm:$0xff]
  %v364 = vld [vmem:[%s1 + $0x88] sm:$0xff]
  %v365 = vld [vmem:[%s1 + $0x90] sm:$0xff]
  %v366 = vld [vmem:[%s1 + $0x98] sm:$0xff]
  %v367 = vld [vmem:[%s1 + $0xa0] sm:$0xff]
  %v368 = vld [vmem:[%s1 + $0xa8] sm:$0xff]
  %v369 = vld [vmem:[%s1 + $0xb0] sm:$0xff]
  %v370 = vld [vmem:[%s1 + $0xb8] sm:$0xff]
  %v371 = vld [vmem:[%s1 + $0xc0] sm:$0xff]
  %v372 = vld [vmem:[%s1 + $0xc8] sm:$0xff]
  %v373 = vld [vmem:[%s1 + $0xd0] sm:$0xff]
  %v374 = vld [vmem:[%s1 + $0xd8] sm:$0xff]
  %v375 = vld [vmem:[%s1 + $0xe0] sm:$0xff]
  %v376 = vld [vmem:[%s1 + $0xe8] sm:$0xff]
  %v377 = vld [vmem:[%s1 + $0xf0] sm:$0xff]
  %v378 = vld [vmem:[%s1 + $0xf8] sm:$0xff]
  %v411 = vunpack.c.l.b16 %v347
  %v412 = vunpack.c.h.b16 %v347
  %v413 = vunpack.c.l.b16 %v348
  %v414 = vunpack.c.h.b16 %v348
  %v415 = vunpack.c.l.b16 %v349
  %v416 = vunpack.c.h.b16 %v349
  %v417 = vunpack.c.l.b16 %v350
  %v418 = vunpack.c.h.b16 %v350
  %v419 = vunpack.c.l.b16 %v351
  %v420 = vunpack.c.h.b16 %v351
  %v421 = vunpack.c.l.b16 %v352
  %v422 = vunpack.c.h.b16 %v352
  %v423 = vunpack.c.l.b16 %v353
  %v424 = vunpack.c.h.b16 %v353
  %v425 = vunpack.c.l.b16 %v354
  %v426 = vunpack.c.h.b16 %v354
  %v427 = vunpack.c.l.b16 %v355
  %v428 = vunpack.c.h.b16 %v355
  %v429 = vunpack.c.l.b16 %v356
  %v430 = vunpack.c.h.b16 %v356
  %v431 = vunpack.c.l.b16 %v357
  %v432 = vunpack.c.h.b16 %v357
  %v433 = vunpack.c.l.b16 %v358
  %v434 = vunpack.c.h.b16 %v358
  %v435 = vunpack.c.l.b16 %v359
  %v436 = vunpack.c.h.b16 %v359
  %v437 = vunpack.c.l.b16 %v360
  %v438 = vunpack.c.h.b16 %v360
  %v439 = vunpack.c.l.b16 %v361
  %v440 = vunpack.c.h.b16 %v361
  %v441 = vunpack.c.l.b16 %v362
  %v442 = vunpack.c.h.b16 %v362
  %v443 = vunpack.c.l.b16 %v363
  %v444 = vunpack.c.h.b16 %v363
  %v445 = vunpack.c.l.b16 %v364
  %v446 = vunpack.c.h.b16 %v364
  %v447 = vunpack.c.l.b16 %v365
  %v448 = vunpack.c.h.b16 %v365
  %v449 = vunpack.c.l.b16 %v366
  %v450 = vunpack.c.h.b16 %v366
  %v451 = vunpack.c.l.b16 %v367
  %v452 = vunpack.c.h.b16 %v367
  %v453 = vunpack.c.l.b16 %v368
  %v454 = vunpack.c.h.b16 %v368
  %v455 = vunpack.c.l.b16 %v369
  %v456 = vunpack.c.h.b16 %v369
  %v457 = vunpack.c.l.b16 %v370
  %v458 = vunpack.c.h.b16 %v370
  %v459 = vunpack.c.l.b16 %v371
  %v460 = vunpack.c.h.b16 %v371
  %v461 = vunpack.c.l.b16 %v372
  %v462 = vunpack.c.h.b16 %v372
  %v463 = vunpack.c.l.b16 %v373
  %v464 = vunpack.c.h.b16 %v373
  %v465 = vunpack.c.l.b16 %v374
  %v466 = vunpack.c.h.b16 %v374
  %v467 = vunpack.c.l.b16 %v375
  %v468 = vunpack.c.h.b16 %v375
  %v469 = vunpack.c.l.b16 %v376
  %v470 = vunpack.c.h.b16 %v376
  %v471 = vunpack.c.l.b16 %v377
  %v472 = vunpack.c.h.b16 %v377
  %v473 = vunpack.c.l.b16 %v378
  %v474 = vunpack.c.h.b16 %v378
  %v475 = vpack.c.b16 %v415, %v411
  %v476 = vpack.c.b16 %v416, %v412
  %v477 = vpack.c.b16 %v417, %v413
  %v478 = vpack.c.b16 %v418, %v414
  %v479 = vpack.c.b16 %v423, %v419
  %v480 = vpack.c.b16 %v424, %v420
  %v481 = vpack.c.b16 %v425, %v421
  %v482 = vpack.c.b16 %v426, %v422
  %v483 = vpack.c.b16 %v431, %v427
  %v484 = vpack.c.b16 %v432, %v428
  %v485 = vpack.c.b16 %v433, %v429
  %v486 = vpack.c.b16 %v434, %v430
  %v487 = vpack.c.b16 %v439, %v435
  %v488 = vpack.c.b16 %v440, %v436
  %v489 = vpack.c.b16 %v441, %v437
  %v490 = vpack.c.b16 %v442, %v438
  %v491 = vpack.c.b16 %v447, %v443
  %v492 = vpack.c.b16 %v448, %v444
  %v493 = vpack.c.b16 %v449, %v445
  %v494 = vpack.c.b16 %v450, %v446
  %v495 = vpack.c.b16 %v455, %v451
  %v496 = vpack.c.b16 %v456, %v452
  %v497 = vpack.c.b16 %v457, %v453
  %v498 = vpack.c.b16 %v458, %v454
  %v499 = vpack.c.b16 %v463, %v459
  %v500 = vpack.c.b16 %v464, %v460
  %v501 = vpack.c.b16 %v465, %v461
  %v502 = vpack.c.b16 %v466, %v462
  %v503 = vpack.c.b16 %v471, %v467
  %v504 = vpack.c.b16 %v472, %v468
  %v505 = vpack.c.b16 %v473, %v469
  %v506 = vpack.c.b16 %v474, %v470
  %539 = vmatpush.bf16.msra.mxu0 %v503
  %540 = vmatpush.bf16.msra.mxu0 %v499
  %541 = vmatpush.bf16.msra.mxu0 %v495
  %542 = vmatpush.bf16.msra.mxu0 %v491
  %543 = vmatpush.bf16.msra.mxu0 %v487
  %544 = vmatpush.bf16.msra.mxu0 %v483
  %545 = vmatpush.bf16.msra.mxu0 %v479
  %546 = vmatpush.bf16.msra.mxu0 %v475
  %547 = vmatmul.bf16.gmra.mxu0 %v346
  %v548 = vpop.f32.mrf.mxu0
  %v549 = vadd.f32 0.0, %v548
  %v550 = vpop.f32.mrf.mxu0
  %551 = vdwg.mxu0
  %552 = vmatpush.bf16.msra.mxu0 %v504
  %553 = vmatpush.bf16.msra.mxu0 %v500
  %554 = vmatpush.bf16.msra.mxu0 %v496
  %555 = vmatpush.bf16.msra.mxu0 %v492
  %556 = vmatpush.bf16.msra.mxu0 %v488
  %557 = vmatpush.bf16.msra.mxu0 %v484
  %558 = vmatpush.bf16.msra.mxu0 %v480
  %559 = vmatpush.bf16.msra.mxu0 %v476
  %560 = vmatmul.bf16.gmra.mxu0 %v346
  %v561 = vpop.f32.mrf.mxu0
  %v562 = vadd.f32 0.0, %v561
  %v563 = vpop.f32.mrf.mxu0
  %564 = vdwg.mxu0
  %565 = vmatpush.bf16.msra.mxu0 %v505
  %566 = vmatpush.bf16.msra.mxu0 %v501
  %567 = vmatpush.bf16.msra.mxu0 %v497
  %568 = vmatpush.bf16.msra.mxu0 %v493
  %569 = vmatpush.bf16.msra.mxu0 %v489
  %570 = vmatpush.bf16.msra.mxu0 %v485
  %571 = vmatpush.bf16.msra.mxu0 %v481
  %572 = vmatpush.bf16.msra.mxu0 %v477
  %573 = vmatmul.bf16.gmra.mxu0 %v346
  %v574 = vpop.f32.mrf.mxu0
  %v575 = vadd.f32 0.0, %v574
  %v576 = vpop.f32.mrf.mxu0
  %577 = vdwg.mxu0
  %578 = vmatpush.bf16.msra.mxu0 %v506
  %579 = vmatpush.bf16.msra.mxu0 %v502
  %580 = vmatpush.bf16.msra.mxu0 %v498
  %581 = vmatpush.bf16.msra.mxu0 %v494
  %582 = vmatpush.bf16.msra.mxu0 %v490
  %583 = vmatpush.bf16.msra.mxu0 %v486
  %584 = vmatpush.bf16.msra.mxu0 %v482
  %585 = vmatpush.bf16.msra.mxu0 %v478
  %586 = vmatmul.bf16.gmra.mxu0 %v346
  %v587 = vpop.f32.mrf.mxu0
  %v588 = vadd.f32 0.0, %v587
  %v589 = vpop.f32.mrf.mxu0
  %590 = vdwg.mxu0
  %v591 = vadd.f32 %v341, %v549
  %v592 = vadd.f32 %v342, %v562
  %v593 = vadd.f32 %v343, %v575
  %v594 = vadd.f32 %v344, %v588
  %v595 = vxor.u32 %v591, 2147483648
  %v596 = vmul.f32 %v595, 1.442695
  %v597 = vpow.pop %v596
  %v598 = vadd.f32 %v597, 1.0
  %v599 = vrcp.pop %v598
  %v600 = vmul.f32 %v598, %v599
  %v601 = vsub.f32 1.0, %v600
  %v602 = vmul.f32 %v599, %v601
  %v603 = vadd.f32 %v599, %v602
  %vm604 = vweird.f32 %v598
  %vm605 = vweird.f32 %v599
  %vm606 = vmor %vm604, %vm605
  %v607 = vsel %vm606, %v599, %v603
  %v608 = vand.u32 2147483647, %v598
  %vm609 = vcmp.eq.f32.partialorder %v608, 8.507059e+37
  %v610 = vand.u32 %v598, 2147483648
  %v611 = vor.u32 1.1754944e-38, %v610
  %v612 = vsel %vm609, %v611, %v607
  %v613 = vmul.f32 1.0, %v612
  %v614 = vxor.u32 %v592, 2147483648
  %v615 = vmul.f32 %v614, 1.442695
  %v616 = vpow.pop %v615
  %v617 = vadd.f32 %v616, 1.0
  %v618 = vrcp.pop %v617
  %v619 = vmul.f32 %v617, %v618
  %v620 = vsub.f32 1.0, %v619
  %v621 = vmul.f32 %v618, %v620
  %v622 = vadd.f32 %v618, %v621
  %vm623 = vweird.f32 %v617
  %vm624 = vweird.f32 %v618
  %vm625 = vmor %vm623, %vm624
  %v626 = vsel %vm625, %v618, %v622
  %v627 = vand.u32 2147483647, %v617
  %vm628 = vcmp.eq.f32.partialorder %v627, 8.507059e+37
  %v629 = vand.u32 %v617, 2147483648
  %v630 = vor.u32 1.1754944e-38, %v629
  %v631 = vsel %vm628, %v630, %v626
  %v632 = vmul.f32 1.0, %v631
  %v633 = vtanh.pop %v593
  %v634 = vxor.u32 %v594, 2147483648
  %v635 = vmul.f32 %v634, 1.442695
  %v636 = vpow.pop %v635
  %v637 = vadd.f32 %v636, 1.0
  %v638 = vrcp.pop %v637
  %v639 = vmul.f32 %v637, %v638
  %v640 = vsub.f32 1.0, %v639
  %v641 = vmul.f32 %v638, %v640
  %v642 = vadd.f32 %v638, %v641
  %vm643 = vweird.f32 %v637
  %vm644 = vweird.f32 %v638
  %vm645 = vmor %vm643, %vm644
  %v646 = vsel %vm645, %v638, %v642
  %v647 = vand.u32 2147483647, %v637
  %vm648 = vcmp.eq.f32.partialorder %v647, 8.507059e+37
  %v649 = vand.u32 %v637, 2147483648
  %v650 = vor.u32 1.1754944e-38, %v649
  %v651 = vsel %vm648, %v650, %v646
  %v652 = vmul.f32 1.0, %v651
  %v653 = vld [vmem:[#allocation3] sm:$0xff]
  %v654 = vmul.f32 %v632, %v653
  %v655 = vmul.f32 %v613, %v633
  %v656 = vadd.f32 %v654, %v655
  %v657 = vtanh.pop %v656
  %v658 = vmul.f32 %v652, %v657
  %659 = vst [vmem:[#allocation3] sm:$0xff] %v656
  %660 = vst [vmem:[#allocation2] sm:$0xff] %v658
  %s661 = scalar_lea.vmem %s4, 8
  %662 = vst [vmem:[%s661] sm:$0xff] %v658
  %s663 = scalar_lea.vmem %s0, 64
  %v664 = vld [vmem:[%s663] sm:$0xff]
  %v665 = vld [vmem:[%s663 + $0x8] sm:$0xff]
  %v666 = vld [vmem:[%s663 + $0x10] sm:$0xff]
  %v667 = vld [vmem:[%s663 + $0x18] sm:$0xff]
  %v668 = vld [vmem:[#allocation2] sm:$0xff]
  %v669 = vpack.c.bf16 %v668, %v668
  %v670 = vld [vmem:[%s1] sm:$0xff]
  %v671 = vld [vmem:[%s1 + $0x8] sm:$0xff]
  %v672 = vld [vmem:[%s1 + $0x10] sm:$0xff]
  %v673 = vld [vmem:[%s1 + $0x18] sm:$0xff]
  %v674 = vld [vmem:[%s1 + $0x20] sm:$0xff]
  %v675 = vld [vmem:[%s1 + $0x28] sm:$0xff]
  %v676 = vld [vmem:[%s1 + $0x30] sm:$0xff]
  %v677 = vld [vmem:[%s1 + $0x38] sm:$0xff]
  %v678 = vld [vmem:[%s1 + $0x40] sm:$0xff]
  %v679 = vld [vmem:[%s1 + $0x48] sm:$0xff]
  %v680 = vld [vmem:[%s1 + $0x50] sm:$0xff]
  %v681 = vld [vmem:[%s1 + $0x58] sm:$0xff]
  %v682 = vld [vmem:[%s1 + $0x60] sm:$0xff]
  %v683 = vld [vmem:[%s1 + $0x68] sm:$0xff]
  %v684 = vld [vmem:[%s1 + $0x70] sm:$0xff]
  %v685 = vld [vmem:[%s1 + $0x78] sm:$0xff]
  %v686 = vld [vmem:[%s1 + $0x80] sm:$0xff]
  %v687 = vld [vmem:[%s1 + $0x88] sm:$0xff]
  %v688 = vld [vmem:[%s1 + $0x90] sm:$0xff]
  %v689 = vld [vmem:[%s1 + $0x98] sm:$0xff]
  %v690 = vld [vmem:[%s1 + $0xa0] sm:$0xff]
  %v691 = vld [vmem:[%s1 + $0xa8] sm:$0xff]
  %v692 = vld [vmem:[%s1 + $0xb0] sm:$0xff]
  %v693 = vld [vmem:[%s1 + $0xb8] sm:$0xff]
  %v694 = vld [vmem:[%s1 + $0xc0] sm:$0xff]
  %v695 = vld [vmem:[%s1 + $0xc8] sm:$0xff]
  %v696 = vld [vmem:[%s1 + $0xd0] sm:$0xff]
  %v697 = vld [vmem:[%s1 + $0xd8] sm:$0xff]
  %v698 = vld [vmem:[%s1 + $0xe0] sm:$0xff]
  %v699 = vld [vmem:[%s1 + $0xe8] sm:$0xff]
  %v700 = vld [vmem:[%s1 + $0xf0] sm:$0xff]
  %v701 = vld [vmem:[%s1 + $0xf8] sm:$0xff]
  %v734 = vunpack.c.l.b16 %v670
  %v735 = vunpack.c.h.b16 %v670
  %v736 = vunpack.c.l.b16 %v671
  %v737 = vunpack.c.h.b16 %v671
  %v738 = vunpack.c.l.b16 %v672
  %v739 = vunpack.c.h.b16 %v672
  %v740 = vunpack.c.l.b16 %v673
  %v741 = vunpack.c.h.b16 %v673
  %v742 = vunpack.c.l.b16 %v674
  %v743 = vunpack.c.h.b16 %v674
  %v744 = vunpack.c.l.b16 %v675
  %v745 = vunpack.c.h.b16 %v675
  %v746 = vunpack.c.l.b16 %v676
  %v747 = vunpack.c.h.b16 %v676
  %v748 = vunpack.c.l.b16 %v677
  %v749 = vunpack.c.h.b16 %v677
  %v750 = vunpack.c.l.b16 %v678
  %v751 = vunpack.c.h.b16 %v678
  %v752 = vunpack.c.l.b16 %v679
  %v753 = vunpack.c.h.b16 %v679
  %v754 = vunpack.c.l.b16 %v680
  %v755 = vunpack.c.h.b16 %v680
  %v756 = vunpack.c.l.b16 %v681
  %v757 = vunpack.c.h.b16 %v681
  %v758 = vunpack.c.l.b16 %v682
  %v759 = vunpack.c.h.b16 %v682
  %v760 = vunpack.c.l.b16 %v683
  %v761 = vunpack.c.h.b16 %v683
  %v762 = vunpack.c.l.b16 %v684
  %v763 = vunpack.c.h.b16 %v684
  %v764 = vunpack.c.l.b16 %v685
  %v765 = vunpack.c.h.b16 %v685
  %v766 = vunpack.c.l.b16 %v686
  %v767 = vunpack.c.h.b16 %v686
  %v768 = vunpack.c.l.b16 %v687
  %v769 = vunpack.c.h.b16 %v687
  %v770 = vunpack.c.l.b16 %v688
  %v771 = vunpack.c.h.b16 %v688
  %v772 = vunpack.c.l.b16 %v689
  %v773 = vunpack.c.h.b16 %v689
  %v774 = vunpack.c.l.b16 %v690
  %v775 = vunpack.c.h.b16 %v690
  %v776 = vunpack.c.l.b16 %v691
  %v777 = vunpack.c.h.b16 %v691
  %v778 = vunpack.c.l.b16 %v692
  %v779 = vunpack.c.h.b16 %v692
  %v780 = vunpack.c.l.b16 %v693
  %v781 = vunpack.c.h.b16 %v693
  %v782 = vunpack.c.l.b16 %v694
  %v783 = vunpack.c.h.b16 %v694
  %v784 = vunpack.c.l.b16 %v695
  %v785 = vunpack.c.h.b16 %v695
  %v786 = vunpack.c.l.b16 %v696
  %v787 = vunpack.c.h.b16 %v696
  %v788 = vunpack.c.l.b16 %v697
  %v789 = vunpack.c.h.b16 %v697
  %v790 = vunpack.c.l.b16 %v698
  %v791 = vunpack.c.h.b16 %v698
  %v792 = vunpack.c.l.b16 %v699
  %v793 = vunpack.c.h.b16 %v699
  %v794 = vunpack.c.l.b16 %v700
  %v795 = vunpack.c.h.b16 %v700
  %v796 = vunpack.c.l.b16 %v701
  %v797 = vunpack.c.h.b16 %v701
  %v798 = vpack.c.b16 %v738, %v734
  %v799 = vpack.c.b16 %v739, %v735
  %v800 = vpack.c.b16 %v740, %v736
  %v801 = vpack.c.b16 %v741, %v737
  %v802 = vpack.c.b16 %v746, %v742
  %v803 = vpack.c.b16 %v747, %v743
  %v804 = vpack.c.b16 %v748, %v744
  %v805 = vpack.c.b16 %v749, %v745
  %v806 = vpack.c.b16 %v754, %v750
  %v807 = vpack.c.b16 %v755, %v751
  %v808 = vpack.c.b16 %v756, %v752
  %v809 = vpack.c.b16 %v757, %v753
  %v810 = vpack.c.b16 %v762, %v758
  %v811 = vpack.c.b16 %v763, %v759
  %v812 = vpack.c.b16 %v764, %v760
  %v813 = vpack.c.b16 %v765, %v761
  %v814 = vpack.c.b16 %v770, %v766
  %v815 = vpack.c.b16 %v771, %v767
  %v816 = vpack.c.b16 %v772, %v768
  %v817 = vpack.c.b16 %v773, %v769
  %v818 = vpack.c.b16 %v778, %v774
  %v819 = vpack.c.b16 %v779, %v775
  %v820 = vpack.c.b16 %v780, %v776
  %v821 = vpack.c.b16 %v781, %v777
  %v822 = vpack.c.b16 %v786, %v782
  %v823 = vpack.c.b16 %v787, %v783
  %v824 = vpack.c.b16 %v788, %v784
  %v825 = vpack.c.b16 %v789, %v785
  %v826 = vpack.c.b16 %v794, %v790
  %v827 = vpack.c.b16 %v795, %v791
  %v828 = vpack.c.b16 %v796, %v792
  %v829 = vpack.c.b16 %v797, %v793
  %862 = vmatpush.bf16.msra.mxu0 %v826
  %863 = vmatpush.bf16.msra.mxu0 %v822
  %864 = vmatpush.bf16.msra.mxu0 %v818
  %865 = vmatpush.bf16.msra.mxu0 %v814
  %866 = vmatpush.bf16.msra.mxu0 %v810
  %867 = vmatpush.bf16.msra.mxu0 %v806
  %868 = vmatpush.bf16.msra.mxu0 %v802
  %869 = vmatpush.bf16.msra.mxu0 %v798
  %870 = vmatmul.bf16.gmra.mxu0 %v669
  %v871 = vpop.f32.mrf.mxu0
  %v872 = vadd.f32 0.0, %v871
  %v873 = vpop.f32.mrf.mxu0
  %874 = vdwg.mxu0
  %875 = vmatpush.bf16.msra.mxu0 %v827
  %876 = vmatpush.bf16.msra.mxu0 %v823
  %877 = vmatpush.bf16.msra.mxu0 %v819
  %878 = vmatpush.bf16.msra.mxu0 %v815
  %879 = vmatpush.bf16.msra.mxu0 %v811
  %880 = vmatpush.bf16.msra.mxu0 %v807
  %881 = vmatpush.bf16.msra.mxu0 %v803
  %882 = vmatpush.bf16.msra.mxu0 %v799
  %883 = vmatmul.bf16.gmra.mxu0 %v669
  %v884 = vpop.f32.mrf.mxu0
  %v885 = vadd.f32 0.0, %v884
  %v886 = vpop.f32.mrf.mxu0
  %887 = vdwg.mxu0
  %888 = vmatpush.bf16.msra.mxu0 %v828
  %889 = vmatpush.bf16.msra.mxu0 %v824
  %890 = vmatpush.bf16.msra.mxu0 %v820
  %891 = vmatpush.bf16.msra.mxu0 %v816
  %892 = vmatpush.bf16.msra.mxu0 %v812
  %893 = vmatpush.bf16.msra.mxu0 %v808
  %894 = vmatpush.bf16.msra.mxu0 %v804
  %895 = vmatpush.bf16.msra.mxu0 %v800
  %896 = vmatmul.bf16.gmra.mxu0 %v669
  %v897 = vpop.f32.mrf.mxu0
  %v898 = vadd.f32 0.0, %v897
  %v899 = vpop.f32.mrf.mxu0
  %900 = vdwg.mxu0
  %901 = vmatpush.bf16.msra.mxu0 %v829
  %902 = vmatpush.bf16.msra.mxu0 %v825
  %903 = vmatpush.bf16.msra.mxu0 %v821
  %904 = vmatpush.bf16.msra.mxu0 %v817
  %905 = vmatpush.bf16.msra.mxu0 %v813
  %906 = vmatpush.bf16.msra.mxu0 %v809
  %907 = vmatpush.bf16.msra.mxu0 %v805
  %908 = vmatpush.bf16.msra.mxu0 %v801
  %909 = vmatmul.bf16.gmra.mxu0 %v669
  %v910 = vpop.f32.mrf.mxu0
  %v911 = vadd.f32 0.0, %v910
  %v912 = vpop.f32.mrf.mxu0
  %913 = vdwg.mxu0
  %v914 = vadd.f32 %v664, %v872
  %v915 = vadd.f32 %v665, %v885
  %v916 = vadd.f32 %v666, %v898
  %v917 = vadd.f32 %v667, %v911
  %v918 = vxor.u32 %v914, 2147483648
  %v919 = vmul.f32 %v918, 1.442695
  %v920 = vpow.pop %v919
  %v921 = vadd.f32 %v920, 1.0
  %v922 = vrcp.pop %v921
  %v923 = vmul.f32 %v921, %v922
  %v924 = vsub.f32 1.0, %v923
  %v925 = vmul.f32 %v922, %v924
  %v926 = vadd.f32 %v922, %v925
  %vm927 = vweird.f32 %v921
  %vm928 = vweird.f32 %v922
  %vm929 = vmor %vm927, %vm928
  %v930 = vsel %vm929, %v922, %v926
  %v931 = vand.u32 2147483647, %v921
  %vm932 = vcmp.eq.f32.partialorder %v931, 8.507059e+37
  %v933 = vand.u32 %v921, 2147483648
  %v934 = vor.u32 1.1754944e-38, %v933
  %v935 = vsel %vm932, %v934, %v930
  %v936 = vmul.f32 1.0, %v935
  %v937 = vxor.u32 %v915, 2147483648
  %v938 = vmul.f32 %v937, 1.442695
  %v939 = vpow.pop %v938
  %v940 = vadd.f32 %v939, 1.0
  %v941 = vrcp.pop %v940
  %v942 = vmul.f32 %v940, %v941
  %v943 = vsub.f32 1.0, %v942
  %v944 = vmul.f32 %v941, %v943
  %v945 = vadd.f32 %v941, %v944
  %vm946 = vweird.f32 %v940
  %vm947 = vweird.f32 %v941
  %vm948 = vmor %vm946, %vm947
  %v949 = vsel %vm948, %v941, %v945
  %v950 = vand.u32 2147483647, %v940
  %vm951 = vcmp.eq.f32.partialorder %v950, 8.507059e+37
  %v952 = vand.u32 %v940, 2147483648
  %v953 = vor.u32 1.1754944e-38, %v952
  %v954 = vsel %vm951, %v953, %v949
  %v955 = vmul.f32 1.0, %v954
  %v956 = vtanh.pop %v916
  %v957 = vxor.u32 %v917, 2147483648
  %v958 = vmul.f32 %v957, 1.442695
  %v959 = vpow.pop %v958
  %v960 = vadd.f32 %v959, 1.0
  %v961 = vrcp.pop %v960
  %v962 = vmul.f32 %v960, %v961
  %v963 = vsub.f32 1.0, %v962
  %v964 = vmul.f32 %v961, %v963
  %v965 = vadd.f32 %v961, %v964
  %vm966 = vweird.f32 %v960
  %vm967 = vweird.f32 %v961
  %vm968 = vmor %vm966, %vm967
  %v969 = vsel %vm968, %v961, %v965
  %v970 = vand.u32 2147483647, %v960
  %vm971 = vcmp.eq.f32.partialorder %v970, 8.507059e+37
  %v972 = vand.u32 %v960, 2147483648
  %v973 = vor.u32 1.1754944e-38, %v972
  %v974 = vsel %vm971, %v973, %v969
  %v975 = vmul.f32 1.0, %v974
  %v976 = vld [vmem:[#allocation3] sm:$0xff]
  %v977 = vmul.f32 %v955, %v976
  %v978 = vmul.f32 %v936, %v956
  %v979 = vadd.f32 %v977, %v978
  %v980 = vtanh.pop %v979
  %v981 = vmul.f32 %v975, %v980
  %982 = vst [vmem:[#allocation3] sm:$0xff] %v979
  %983 = vst [vmem:[#allocation2] sm:$0xff] %v981
  %s984 = scalar_lea.vmem %s4, 16
  %985 = vst [vmem:[%s984] sm:$0xff] %v981
  %s986 = scalar_lea.vmem %s0, 96
  %v987 = vld [vmem:[%s986] sm:$0xff]
  %v988 = vld [vmem:[%s986 + $0x8] sm:$0xff]
  %v989 = vld [vmem:[%s986 + $0x10] sm:$0xff]
  %v990 = vld [vmem:[%s986 + $0x18] sm:$0xff]
  %v991 = vld [vmem:[#allocation2] sm:$0xff]
  %v992 = vpack.c.bf16 %v991, %v991
  %v993 = vld [vmem:[%s1] sm:$0xff]
  %v994 = vld [vmem:[%s1 + $0x8] sm:$0xff]
  %v995 = vld [vmem:[%s1 + $0x10] sm:$0xff]
  %v996 = vld [vmem:[%s1 + $0x18] sm:$0xff]
  %v997 = vld [vmem:[%s1 + $0x20] sm:$0xff]
  %v998 = vld [vmem:[%s1 + $0x28] sm:$0xff]
  %v999 = vld [vmem:[%s1 + $0x30] sm:$0xff]
  %v1000 = vld [vmem:[%s1 + $0x38] sm:$0xff]
  %v1001 = vld [vmem:[%s1 + $0x40] sm:$0xff]
  %v1002 = vld [vmem:[%s1 + $0x48] sm:$0xff]
  %v1003 = vld [vmem:[%s1 + $0x50] sm:$0xff]
  %v1004 = vld [vmem:[%s1 + $0x58] sm:$0xff]
  %v1005 = vld [vmem:[%s1 + $0x60] sm:$0xff]
  %v1006 = vld [vmem:[%s1 + $0x68] sm:$0xff]
  %v1007 = vld [vmem:[%s1 + $0x70] sm:$0xff]
  %v1008 = vld [vmem:[%s1 + $0x78] sm:$0xff]
  %v1009 = vld [vmem:[%s1 + $0x80] sm:$0xff]
  %v1010 = vld [vmem:[%s1 + $0x88] sm:$0xff]
  %v1011 = vld [vmem:[%s1 + $0x90] sm:$0xff]
  %v1012 = vld [vmem:[%s1 + $0x98] sm:$0xff]
  %v1013 = vld [vmem:[%s1 + $0xa0] sm:$0xff]
  %v1014 = vld [vmem:[%s1 + $0xa8] sm:$0xff]
  %v1015 = vld [vmem:[%s1 + $0xb0] sm:$0xff]
  %v1016 = vld [vmem:[%s1 + $0xb8] sm:$0xff]
  %v1017 = vld [vmem:[%s1 + $0xc0] sm:$0xff]
  %v1018 = vld [vmem:[%s1 + $0xc8] sm:$0xff]
  %v1019 = vld [vmem:[%s1 + $0xd0] sm:$0xff]
  %v1020 = vld [vmem:[%s1 + $0xd8] sm:$0xff]
  %v1021 = vld [vmem:[%s1 + $0xe0] sm:$0xff]
  %v1022 = vld [vmem:[%s1 + $0xe8] sm:$0xff]
  %v1023 = vld [vmem:[%s1 + $0xf0] sm:$0xff]
  %v1024 = vld [vmem:[%s1 + $0xf8] sm:$0xff]
  %v1057 = vunpack.c.l.b16 %v993
  %v1058 = vunpack.c.h.b16 %v993
  %v1059 = vunpack.c.l.b16 %v994
  %v1060 = vunpack.c.h.b16 %v994
  %v1061 = vunpack.c.l.b16 %v995
  %v1062 = vunpack.c.h.b16 %v995
  %v1063 = vunpack.c.l.b16 %v996
  %v1064 = vunpack.c.h.b16 %v996
  %v1065 = vunpack.c.l.b16 %v997
  %v1066 = vunpack.c.h.b16 %v997
  %v1067 = vunpack.c.l.b16 %v998
  %v1068 = vunpack.c.h.b16 %v998
  %v1069 = vunpack.c.l.b16 %v999
  %v1070 = vunpack.c.h.b16 %v999
  %v1071 = vunpack.c.l.b16 %v1000
  %v1072 = vunpack.c.h.b16 %v1000
  %v1073 = vunpack.c.l.b16 %v1001
  %v1074 = vunpack.c.h.b16 %v1001
  %v1075 = vunpack.c.l.b16 %v1002
  %v1076 = vunpack.c.h.b16 %v1002
  %v1077 = vunpack.c.l.b16 %v1003
  %v1078 = vunpack.c.h.b16 %v1003
  %v1079 = vunpack.c.l.b16 %v1004
  %v1080 = vunpack.c.h.b16 %v1004
  %v1081 = vunpack.c.l.b16 %v1005
  %v1082 = vunpack.c.h.b16 %v1005
  %v1083 = vunpack.c.l.b16 %v1006
  %v1084 = vunpack.c.h.b16 %v1006
  %v1085 = vunpack.c.l.b16 %v1007
  %v1086 = vunpack.c.h.b16 %v1007
  %v1087 = vunpack.c.l.b16 %v1008
  %v1088 = vunpack.c.h.b16 %v1008
  %v1089 = vunpack.c.l.b16 %v1009
  %v1090 = vunpack.c.h.b16 %v1009
  %v1091 = vunpack.c.l.b16 %v1010
  %v1092 = vunpack.c.h.b16 %v1010
  %v1093 = vunpack.c.l.b16 %v1011
  %v1094 = vunpack.c.h.b16 %v1011
  %v1095 = vunpack.c.l.b16 %v1012
  %v1096 = vunpack.c.h.b16 %v1012
  %v1097 = vunpack.c.l.b16 %v1013
  %v1098 = vunpack.c.h.b16 %v1013
  %v1099 = vunpack.c.l.b16 %v1014
  %v1100 = vunpack.c.h.b16 %v1014
  %v1101 = vunpack.c.l.b16 %v1015
  %v1102 = vunpack.c.h.b16 %v1015
  %v1103 = vunpack.c.l.b16 %v1016
  %v1104 = vunpack.c.h.b16 %v1016
  %v1105 = vunpack.c.l.b16 %v1017
  %v1106 = vunpack.c.h.b16 %v1017
  %v1107 = vunpack.c.l.b16 %v1018
  %v1108 = vunpack.c.h.b16 %v1018
  %v1109 = vunpack.c.l.b16 %v1019
  %v1110 = vunpack.c.h.b16 %v1019
  %v1111 = vunpack.c.l.b16 %v1020
  %v1112 = vunpack.c.h.b16 %v1020
  %v1113 = vunpack.c.l.b16 %v1021
  %v1114 = vunpack.c.h.b16 %v1021
  %v1115 = vunpack.c.l.b16 %v1022
  %v1116 = vunpack.c.h.b16 %v1022
  %v1117 = vunpack.c.l.b16 %v1023
  %v1118 = vunpack.c.h.b16 %v1023
  %v1119 = vunpack.c.l.b16 %v1024
  %v1120 = vunpack.c.h.b16 %v1024
  %v1121 = vpack.c.b16 %v1061, %v1057
  %v1122 = vpack.c.b16 %v1062, %v1058
  %v1123 = vpack.c.b16 %v1063, %v1059
  %v1124 = vpack.c.b16 %v1064, %v1060
  %v1125 = vpack.c.b16 %v1069, %v1065
  %v1126 = vpack.c.b16 %v1070, %v1066
  %v1127 = vpack.c.b16 %v1071, %v1067
  %v1128 = vpack.c.b16 %v1072, %v1068
  %v1129 = vpack.c.b16 %v1077, %v1073
  %v1130 = vpack.c.b16 %v1078, %v1074
  %v1131 = vpack.c.b16 %v1079, %v1075
  %v1132 = vpack.c.b16 %v1080, %v1076
  %v1133 = vpack.c.b16 %v1085, %v1081
  %v1134 = vpack.c.b16 %v1086, %v1082
  %v1135 = vpack.c.b16 %v1087, %v1083
  %v1136 = vpack.c.b16 %v1088, %v1084
  %v1137 = vpack.c.b16 %v1093, %v1089
  %v1138 = vpack.c.b16 %v1094, %v1090
  %v1139 = vpack.c.b16 %v1095, %v1091
  %v1140 = vpack.c.b16 %v1096, %v1092
  %v1141 = vpack.c.b16 %v1101, %v1097
  %v1142 = vpack.c.b16 %v1102, %v1098
  %v1143 = vpack.c.b16 %v1103, %v1099
  %v1144 = vpack.c.b16 %v1104, %v1100
  %v1145 = vpack.c.b16 %v1109, %v1105
  %v1146 = vpack.c.b16 %v1110, %v1106
  %v1147 = vpack.c.b16 %v1111, %v1107
  %v1148 = vpack.c.b16 %v1112, %v1108
  %v1149 = vpack.c.b16 %v1117, %v1113
  %v1150 = vpack.c.b16 %v1118, %v1114
  %v1151 = vpack.c.b16 %v1119, %v1115
  %v1152 = vpack.c.b16 %v1120, %v1116
  %1185 = vmatpush.bf16.msra.mxu0 %v1149
  %1186 = vmatpush.bf16.msra.mxu0 %v1145
  %1187 = vmatpush.bf16.msra.mxu0 %v1141
  %1188 = vmatpush.bf16.msra.mxu0 %v1137
  %1189 = vmatpush.bf16.msra.mxu0 %v1133
  %1190 = vmatpush.bf16.msra.mxu0 %v1129
  %1191 = vmatpush.bf16.msra.mxu0 %v1125
  %1192 = vmatpush.bf16.msra.mxu0 %v1121
  %1193 = vmatmul.bf16.gmra.mxu0 %v992
  %v1194 = vpop.f32.mrf.mxu0
  %v1195 = vadd.f32 0.0, %v1194
  %v1196 = vpop.f32.mrf.mxu0
  %1197 = vdwg.mxu0
  %1198 = vmatpush.bf16.msra.mxu0 %v1150
  %1199 = vmatpush.bf16.msra.mxu0 %v1146
  %1200 = vmatpush.bf16.msra.mxu0 %v1142
  %1201 = vmatpush.bf16.msra.mxu0 %v1138
  %1202 = vmatpush.bf16.msra.mxu0 %v1134
  %1203 = vmatpush.bf16.msra.mxu0 %v1130
  %1204 = vmatpush.bf16.msra.mxu0 %v1126
  %1205 = vmatpush.bf16.msra.mxu0 %v1122
  %1206 = vmatmul.bf16.gmra.mxu0 %v992
  %v1207 = vpop.f32.mrf.mxu0
  %v1208 = vadd.f32 0.0, %v1207
  %v1209 = vpop.f32.mrf.mxu0
  %1210 = vdwg.mxu0
  %1211 = vmatpush.bf16.msra.mxu0 %v1151
  %1212 = vmatpush.bf16.msra.mxu0 %v1147
  %1213 = vmatpush.bf16.msra.mxu0 %v1143
  %1214 = vmatpush.bf16.msra.mxu0 %v1139
  %1215 = vmatpush.bf16.msra.mxu0 %v1135
  %1216 = vmatpush.bf16.msra.mxu0 %v1131
  %1217 = vmatpush.bf16.msra.mxu0 %v1127
  %1218 = vmatpush.bf16.msra.mxu0 %v1123
  %1219 = vmatmul.bf16.gmra.mxu0 %v992
  %v1220 = vpop.f32.mrf.mxu0
  %v1221 = vadd.f32 0.0, %v1220
  %v1222 = vpop.f32.mrf.mxu0
  %1223 = vdwg.mxu0
  %1224 = vmatpush.bf16.msra.mxu0 %v1152
  %1225 = vmatpush.bf16.msra.mxu0 %v1148
  %1226 = vmatpush.bf16.msra.mxu0 %v1144
  %1227 = vmatpush.bf16.msra.mxu0 %v1140
  %1228 = vmatpush.bf16.msra.mxu0 %v1136
  %1229 = vmatpush.bf16.msra.mxu0 %v1132
  %1230 = vmatpush.bf16.msra.mxu0 %v1128
  %1231 = vmatpush.bf16.msra.mxu0 %v1124
  %1232 = vmatmul.bf16.gmra.mxu0 %v992
  %v1233 = vpop.f32.mrf.mxu0
  %v1234 = vadd.f32 0.0, %v1233
  %v1235 = vpop.f32.mrf.mxu0
  %1236 = vdwg.mxu0
  %v1237 = vadd.f32 %v987, %v1195
  %v1238 = vadd.f32 %v988, %v1208
  %v1239 = vadd.f32 %v989, %v1221
  %v1240 = vadd.f32 %v990, %v1234
  %v1241 = vxor.u32 %v1237, 2147483648
  %v1242 = vmul.f32 %v1241, 1.442695
  %v1243 = vpow.pop %v1242
  %v1244 = vadd.f32 %v1243, 1.0
  %v1245 = vrcp.pop %v1244
  %v1246 = vmul.f32 %v1244, %v1245
  %v1247 = vsub.f32 1.0, %v1246
  %v1248 = vmul.f32 %v1245, %v1247
  %v1249 = vadd.f32 %v1245, %v1248
  %vm1250 = vweird.f32 %v1244
  %vm1251 = vweird.f32 %v1245
  %vm1252 = vmor %vm1250, %vm1251
  %v1253 = vsel %vm1252, %v1245, %v1249
  %v1254 = vand.u32 2147483647, %v1244
  %vm1255 = vcmp.eq.f32.partialorder %v1254, 8.507059e+37
  %v1256 = vand.u32 %v1244, 2147483648
  %v1257 = vor.u32 1.1754944e-38, %v1256
  %v1258 = vsel %vm1255, %v1257, %v1253
  %v1259 = vmul.f32 1.0, %v1258
  %v1260 = vxor.u32 %v1238, 2147483648
  %v1261 = vmul.f32 %v1260, 1.442695
  %v1262 = vpow.pop %v1261
  %v1263 = vadd.f32 %v1262, 1.0
  %v1264 = vrcp.pop %v1263
  %v1265 = vmul.f32 %v1263, %v1264
  %v1266 = vsub.f32 1.0, %v1265
  %v1267 = vmul.f32 %v1264, %v1266
  %v1268 = vadd.f32 %v1264, %v1267
  %vm1269 = vweird.f32 %v1263
  %vm1270 = vweird.f32 %v1264
  %vm1271 = vmor %vm1269, %vm1270
  %v1272 = vsel %vm1271, %v1264, %v1268
  %v1273 = vand.u32 2147483647, %v1263
  %vm1274 = vcmp.eq.f32.partialorder %v1273, 8.507059e+37
  %v1275 = vand.u32 %v1263, 2147483648
  %v1276 = vor.u32 1.1754944e-38, %v1275
  %v1277 = vsel %vm1274, %v1276, %v1272
  %v1278 = vmul.f32 1.0, %v1277
  %v1279 = vtanh.pop %v1239
  %v1280 = vxor.u32 %v1240, 2147483648
  %v1281 = vmul.f32 %v1280, 1.442695
  %v1282 = vpow.pop %v1281
  %v1283 = vadd.f32 %v1282, 1.0
  %v1284 = vrcp.pop %v1283
  %v1285 = vmul.f32 %v1283, %v1284
  %v1286 = vsub.f32 1.0, %v1285
  %v1287 = vmul.f32 %v1284, %v1286
  %v1288 = vadd.f32 %v1284, %v1287
  %vm1289 = vweird.f32 %v1283
  %vm1290 = vweird.f32 %v1284
  %vm1291 = vmor %vm1289, %vm1290
  %v1292 = vsel %vm1291, %v1284, %v1288
  %v1293 = vand.u32 2147483647, %v1283
  %vm1294 = vcmp.eq.f32.partialorder %v1293, 8.507059e+37
  %v1295 = vand.u32 %v1283, 2147483648
  %v1296 = vor.u32 1.1754944e-38, %v1295
  %v1297 = vsel %vm1294, %v1296, %v1292
  %v1298 = vmul.f32 1.0, %v1297
  %v1299 = vld [vmem:[#allocation3] sm:$0xff]
  %v1300 = vmul.f32 %v1278, %v1299
  %v1301 = vmul.f32 %v1259, %v1279
  %v1302 = vadd.f32 %v1300, %v1301
  %v1303 = vtanh.pop %v1302
  %v1304 = vmul.f32 %v1298, %v1303
  %1305 = vst [vmem:[#allocation3] sm:$0xff] %v1302
  %1306 = vst [vmem:[#allocation2] sm:$0xff] %v1304
  %s1307 = scalar_lea.vmem %s4, 24
  %1308 = vst [vmem:[%s1307] sm:$0xff] %v1304
  %s1309 = scalar_lea.vmem %s0, 128
  %v1310 = vld [vmem:[%s1309] sm:$0xff]
  %v1311 = vld [vmem:[%s1309 + $0x8] sm:$0xff]
  %v1312 = vld [vmem:[%s1309 + $0x10] sm:$0xff]
  %v1313 = vld [vmem:[%s1309 + $0x18] sm:$0xff]
  %v1314 = vld [vmem:[#allocation2] sm:$0xff]
  %v1315 = vpack.c.bf16 %v1314, %v1314
  %v1316 = vld [vmem:[%s1] sm:$0xff]
  %v1317 = vld [vmem:[%s1 + $0x8] sm:$0xff]
  %v1318 = vld [vmem:[%s1 + $0x10] sm:$0xff]
  %v1319 = vld [vmem:[%s1 + $0x18] sm:$0xff]
  %v1320 = vld [vmem:[%s1 + $0x20] sm:$0xff]
  %v1321 = vld [vmem:[%s1 + $0x28] sm:$0xff]
  %v1322 = vld [vmem:[%s1 + $0x30] sm:$0xff]
  %v1323 = vld [vmem:[%s1 + $0x38] sm:$0xff]
  %v1324 = vld [vmem:[%s1 + $0x40] sm:$0xff]
  %v1325 = vld [vmem:[%s1 + $0x48] sm:$0xff]
  %v1326 = vld [vmem:[%s1 + $0x50] sm:$0xff]
  %v1327 = vld [vmem:[%s1 + $0x58] sm:$0xff]
  %v1328 = vld [vmem:[%s1 + $0x60] sm:$0xff]
  %v1329 = vld [vmem:[%s1 + $0x68] sm:$0xff]
  %v1330 = vld [vmem:[%s1 + $0x70] sm:$0xff]
  %v1331 = vld [vmem:[%s1 + $0x78] sm:$0xff]
  %v1332 = vld [vmem:[%s1 + $0x80] sm:$0xff]
  %v1333 = vld [vmem:[%s1 + $0x88] sm:$0xff]
  %v1334 = vld [vmem:[%s1 + $0x90] sm:$0xff]
  %v1335 = vld [vmem:[%s1 + $0x98] sm:$0xff]
  %v1336 = vld [vmem:[%s1 + $0xa0] sm:$0xff]
  %v1337 = vld [vmem:[%s1 + $0xa8] sm:$0xff]
  %v1338 = vld [vmem:[%s1 + $0xb0] sm:$0xff]
  %v1339 = vld [vmem:[%s1 + $0xb8] sm:$0xff]
  %v1340 = vld [vmem:[%s1 + $0xc0] sm:$0xff]
  %v1341 = vld [vmem:[%s1 + $0xc8] sm:$0xff]
  %v1342 = vld [vmem:[%s1 + $0xd0] sm:$0xff]
  %v1343 = vld [vmem:[%s1 + $0xd8] sm:$0xff]
  %v1344 = vld [vmem:[%s1 + $0xe0] sm:$0xff]
  %v1345 = vld [vmem:[%s1 + $0xe8] sm:$0xff]
  %v1346 = vld [vmem:[%s1 + $0xf0] sm:$0xff]
  %v1347 = vld [vmem:[%s1 + $0xf8] sm:$0xff]
  %v1380 = vunpack.c.l.b16 %v1316
  %v1381 = vunpack.c.h.b16 %v1316
  %v1382 = vunpack.c.l.b16 %v1317
  %v1383 = vunpack.c.h.b16 %v1317
  %v1384 = vunpack.c.l.b16 %v1318
  %v1385 = vunpack.c.h.b16 %v1318
  %v1386 = vunpack.c.l.b16 %v1319
  %v1387 = vunpack.c.h.b16 %v1319
  %v1388 = vunpack.c.l.b16 %v1320
  %v1389 = vunpack.c.h.b16 %v1320
  %v1390 = vunpack.c.l.b16 %v1321
  %v1391 = vunpack.c.h.b16 %v1321
  %v1392 = vunpack.c.l.b16 %v1322
  %v1393 = vunpack.c.h.b16 %v1322
  %v1394 = vunpack.c.l.b16 %v1323
  %v1395 = vunpack.c.h.b16 %v1323
  %v1396 = vunpack.c.l.b16 %v1324
  %v1397 = vunpack.c.h.b16 %v1324
  %v1398 = vunpack.c.l.b16 %v1325
  %v1399 = vunpack.c.h.b16 %v1325
  %v1400 = vunpack.c.l.b16 %v1326
  %v1401 = vunpack.c.h.b16 %v1326
  %v1402 = vunpack.c.l.b16 %v1327
  %v1403 = vunpack.c.h.b16 %v1327
  %v1404 = vunpack.c.l.b16 %v1328
  %v1405 = vunpack.c.h.b16 %v1328
  %v1406 = vunpack.c.l.b16 %v1329
  %v1407 = vunpack.c.h.b16 %v1329
  %v1408 = vunpack.c.l.b16 %v1330
  %v1409 = vunpack.c.h.b16 %v1330
  %v1410 = vunpack.c.l.b16 %v1331
  %v1411 = vunpack.c.h.b16 %v1331
  %v1412 = vunpack.c.l.b16 %v1332
  %v1413 = vunpack.c.h.b16 %v1332
  %v1414 = vunpack.c.l.b16 %v1333
  %v1415 = vunpack.c.h.b16 %v1333
  %v1416 = vunpack.c.l.b16 %v1334
  %v1417 = vunpack.c.h.b16 %v1334
  %v1418 = vunpack.c.l.b16 %v1335
  %v1419 = vunpack.c.h.b16 %v1335
  %v1420 = vunpack.c.l.b16 %v1336
  %v1421 = vunpack.c.h.b16 %v1336
  %v1422 = vunpack.c.l.b16 %v1337
  %v1423 = vunpack.c.h.b16 %v1337
  %v1424 = vunpack.c.l.b16 %v1338
  %v1425 = vunpack.c.h.b16 %v1338
  %v1426 = vunpack.c.l.b16 %v1339
  %v1427 = vunpack.c.h.b16 %v1339
  %v1428 = vunpack.c.l.b16 %v1340
  %v1429 = vunpack.c.h.b16 %v1340
  %v1430 = vunpack.c.l.b16 %v1341
  %v1431 = vunpack.c.h.b16 %v1341
  %v1432 = vunpack.c.l.b16 %v1342
  %v1433 = vunpack.c.h.b16 %v1342
  %v1434 = vunpack.c.l.b16 %v1343
  %v1435 = vunpack.c.h.b16 %v1343
  %v1436 = vunpack.c.l.b16 %v1344
  %v1437 = vunpack.c.h.b16 %v1344
  %v1438 = vunpack.c.l.b16 %v1345
  %v1439 = vunpack.c.h.b16 %v1345
  %v1440 = vunpack.c.l.b16 %v1346
  %v1441 = vunpack.c.h.b16 %v1346
  %v1442 = vunpack.c.l.b16 %v1347
  %v1443 = vunpack.c.h.b16 %v1347
  %v1444 = vpack.c.b16 %v1384, %v1380
  %v1445 = vpack.c.b16 %v1385, %v1381
  %v1446 = vpack.c.b16 %v1386, %v1382
  %v1447 = vpack.c.b16 %v1387, %v1383
  %v1448 = vpack.c.b16 %v1392, %v1388
  %v1449 = vpack.c.b16 %v1393, %v1389
  %v1450 = vpack.c.b16 %v1394, %v1390
  %v1451 = vpack.c.b16 %v1395, %v1391
  %v1452 = vpack.c.b16 %v1400, %v1396
  %v1453 = vpack.c.b16 %v1401, %v1397
  %v1454 = vpack.c.b16 %v1402, %v1398
  %v1455 = vpack.c.b16 %v1403, %v1399
  %v1456 = vpack.c.b16 %v1408, %v1404
  %v1457 = vpack.c.b16 %v1409, %v1405
  %v1458 = vpack.c.b16 %v1410, %v1406
  %v1459 = vpack.c.b16 %v1411, %v1407
  %v1460 = vpack.c.b16 %v1416, %v1412
  %v1461 = vpack.c.b16 %v1417, %v1413
  %v1462 = vpack.c.b16 %v1418, %v1414
  %v1463 = vpack.c.b16 %v1419, %v1415
  %v1464 = vpack.c.b16 %v1424, %v1420
  %v1465 = vpack.c.b16 %v1425, %v1421
  %v1466 = vpack.c.b16 %v1426, %v1422
  %v1467 = vpack.c.b16 %v1427, %v1423
  %v1468 = vpack.c.b16 %v1432, %v1428
  %v1469 = vpack.c.b16 %v1433, %v1429
  %v1470 = vpack.c.b16 %v1434, %v1430
  %v1471 = vpack.c.b16 %v1435, %v1431
  %v1472 = vpack.c.b16 %v1440, %v1436
  %v1473 = vpack.c.b16 %v1441, %v1437
  %v1474 = vpack.c.b16 %v1442, %v1438
  %v1475 = vpack.c.b16 %v1443, %v1439
  %1508 = vmatpush.bf16.msra.mxu0 %v1472
  %1509 = vmatpush.bf16.msra.mxu0 %v1468
  %1510 = vmatpush.bf16.msra.mxu0 %v1464
  %1511 = vmatpush.bf16.msra.mxu0 %v1460
  %1512 = vmatpush.bf16.msra.mxu0 %v1456
  %1513 = vmatpush.bf16.msra.mxu0 %v1452
  %1514 = vmatpush.bf16.msra.mxu0 %v1448
  %1515 = vmatpush.bf16.msra.mxu0 %v1444
  %1516 = vmatmul.bf16.gmra.mxu0 %v1315
  %v1517 = vpop.f32.mrf.mxu0
  %v1518 = vadd.f32 0.0, %v1517
  %v1519 = vpop.f32.mrf.mxu0
  %1520 = vdwg.mxu0
  %1521 = vmatpush.bf16.msra.mxu0 %v1473
  %1522 = vmatpush.bf16.msra.mxu0 %v1469
  %1523 = vmatpush.bf16.msra.mxu0 %v1465
  %1524 = vmatpush.bf16.msra.mxu0 %v1461
  %1525 = vmatpush.bf16.msra.mxu0 %v1457
  %1526 = vmatpush.bf16.msra.mxu0 %v1453
  %1527 = vmatpush.bf16.msra.mxu0 %v1449
  %1528 = vmatpush.bf16.msra.mxu0 %v1445
  %1529 = vmatmul.bf16.gmra.mxu0 %v1315
  %v1530 = vpop.f32.mrf.mxu0
  %v1531 = vadd.f32 0.0, %v1530
  %v1532 = vpop.f32.mrf.mxu0
  %1533 = vdwg.mxu0
  %1534 = vmatpush.bf16.msra.mxu0 %v1474
  %1535 = vmatpush.bf16.msra.mxu0 %v1470
  %1536 = vmatpush.bf16.msra.mxu0 %v1466
  %1537 = vmatpush.bf16.msra.mxu0 %v1462
  %1538 = vmatpush.bf16.msra.mxu0 %v1458
  %1539 = vmatpush.bf16.msra.mxu0 %v1454
  %1540 = vmatpush.bf16.msra.mxu0 %v1450
  %1541 = vmatpush.bf16.msra.mxu0 %v1446
  %1542 = vmatmul.bf16.gmra.mxu0 %v1315
  %v1543 = vpop.f32.mrf.mxu0
  %v1544 = vadd.f32 0.0, %v1543
  %v1545 = vpop.f32.mrf.mxu0
  %1546 = vdwg.mxu0
  %1547 = vmatpush.bf16.msra.mxu0 %v1475
  %1548 = vmatpush.bf16.msra.mxu0 %v1471
  %1549 = vmatpush.bf16.msra.mxu0 %v1467
  %1550 = vmatpush.bf16.msra.mxu0 %v1463
  %1551 = vmatpush.bf16.msra.mxu0 %v1459
  %1552 = vmatpush.bf16.msra.mxu0 %v1455
  %1553 = vmatpush.bf16.msra.mxu0 %v1451
  %1554 = vmatpush.bf16.msra.mxu0 %v1447
  %1555 = vmatmul.bf16.gmra.mxu0 %v1315
  %v1556 = vpop.f32.mrf.mxu0
  %v1557 = vadd.f32 0.0, %v1556
  %v1558 = vpop.f32.mrf.mxu0
  %1559 = vdwg.mxu0
  %v1560 = vadd.f32 %v1310, %v1518
  %v1561 = vadd.f32 %v1311, %v1531
  %v1562 = vadd.f32 %v1312, %v1544
  %v1563 = vadd.f32 %v1313, %v1557
  %v1564 = vxor.u32 %v1560, 2147483648
  %v1565 = vmul.f32 %v1564, 1.442695
  %v1566 = vpow.pop %v1565
  %v1567 = vadd.f32 %v1566, 1.0
  %v1568 = vrcp.pop %v1567
  %v1569 = vmul.f32 %v1567, %v1568
  %v1570 = vsub.f32 1.0, %v1569
  %v1571 = vmul.f32 %v1568, %v1570
  %v1572 = vadd.f32 %v1568, %v1571
  %vm1573 = vweird.f32 %v1567
  %vm1574 = vweird.f32 %v1568
  %vm1575 = vmor %vm1573, %vm1574
  %v1576 = vsel %vm1575, %v1568, %v1572
  %v1577 = vand.u32 2147483647, %v1567
  %vm1578 = vcmp.eq.f32.partialorder %v1577, 8.507059e+37
  %v1579 = vand.u32 %v1567, 2147483648
  %v1580 = vor.u32 1.1754944e-38, %v1579
  %v1581 = vsel %vm1578, %v1580, %v1576
  %v1582 = vmul.f32 1.0, %v1581
  %v1583 = vxor.u32 %v1561, 2147483648
  %v1584 = vmul.f32 %v1583, 1.442695
  %v1585 = vpow.pop %v1584
  %v1586 = vadd.f32 %v1585, 1.0
  %v1587 = vrcp.pop %v1586
  %v1588 = vmul.f32 %v1586, %v1587
  %v1589 = vsub.f32 1.0, %v1588
  %v1590 = vmul.f32 %v1587, %v1589
  %v1591 = vadd.f32 %v1587, %v1590
  %vm1592 = vweird.f32 %v1586
  %vm1593 = vweird.f32 %v1587
  %vm1594 = vmor %vm1592, %vm1593
  %v1595 = vsel %vm1594, %v1587, %v1591
  %v1596 = vand.u32 2147483647, %v1586
  %vm1597 = vcmp.eq.f32.partialorder %v1596, 8.507059e+37
  %v1598 = vand.u32 %v1586, 2147483648
  %v1599 = vor.u32 1.1754944e-38, %v1598
  %v1600 = vsel %vm1597, %v1599, %v1595
  %v1601 = vmul.f32 1.0, %v1600
  %v1602 = vtanh.pop %v1562
  %v1603 = vxor.u32 %v1563, 2147483648
  %v1604 = vmul.f32 %v1603, 1.442695
  %v1605 = vpow.pop %v1604
  %v1606 = vadd.f32 %v1605, 1.0
  %v1607 = vrcp.pop %v1606
  %v1608 = vmul.f32 %v1606, %v1607
  %v1609 = vsub.f32 1.0, %v1608
  %v1610 = vmul.f32 %v1607, %v1609
  %v1611 = vadd.f32 %v1607, %v1610
  %vm1612 = vweird.f32 %v1606
  %vm1613 = vweird.f32 %v1607
  %vm1614 = vmor %vm1612, %vm1613
  %v1615 = vsel %vm1614, %v1607, %v1611
  %v1616 = vand.u32 2147483647, %v1606
  %vm1617 = vcmp.eq.f32.partialorder %v1616, 8.507059e+37
  %v1618 = vand.u32 %v1606, 2147483648
  %v1619 = vor.u32 1.1754944e-38, %v1618
  %v1620 = vsel %vm1617, %v1619, %v1615
  %v1621 = vmul.f32 1.0, %v1620
  %v1622 = vld [vmem:[#allocation3] sm:$0xff]
  %v1623 = vmul.f32 %v1601, %v1622
  %v1624 = vmul.f32 %v1582, %v1602
  %v1625 = vadd.f32 %v1623, %v1624
  %v1626 = vtanh.pop %v1625
  %v1627 = vmul.f32 %v1621, %v1626
  %1628 = vst [vmem:[#allocation3] sm:$0xff] %v1625
  %1629 = vst [vmem:[#allocation2] sm:$0xff] %v1627
  %s1630 = scalar_lea.vmem %s4, 32
  %1631 = vst [vmem:[%s1630] sm:$0xff] %v1627
  %s1632 = scalar_lea.vmem %s0, 160
  %v1633 = vld [vmem:[%s1632] sm:$0xff]
  %v1634 = vld [vmem:[%s1632 + $0x8] sm:$0xff]
  %v1635 = vld [vmem:[%s1632 + $0x10] sm:$0xff]
  %v1636 = vld [vmem:[%s1632 + $0x18] sm:$0xff]
  %v1637 = vld [vmem:[#allocation2] sm:$0xff]
  %v1638 = vpack.c.bf16 %v1637, %v1637
  %v1639 = vld [vmem:[%s1] sm:$0xff]
  %v1640 = vld [vmem:[%s1 + $0x8] sm:$0xff]
  %v1641 = vld [vmem:[%s1 + $0x10] sm:$0xff]
  %v1642 = vld [vmem:[%s1 + $0x18] sm:$0xff]
  %v1643 = vld [vmem:[%s1 + $0x20] sm:$0xff]
  %v1644 = vld [vmem:[%s1 + $0x28] sm:$0xff]
  %v1645 = vld [vmem:[%s1 + $0x30] sm:$0xff]
  %v1646 = vld [vmem:[%s1 + $0x38] sm:$0xff]
  %v1647 = vld [vmem:[%s1 + $0x40] sm:$0xff]
  %v1648 = vld [vmem:[%s1 + $0x48] sm:$0xff]
  %v1649 = vld [vmem:[%s1 + $0x50] sm:$0xff]
  %v1650 = vld [vmem:[%s1 + $0x58] sm:$0xff]
  %v1651 = vld [vmem:[%s1 + $0x60] sm:$0xff]
  %v1652 = vld [vmem:[%s1 + $0x68] sm:$0xff]
  %v1653 = vld [vmem:[%s1 + $0x70] sm:$0xff]
  %v1654 = vld [vmem:[%s1 + $0x78] sm:$0xff]
  %v1655 = vld [vmem:[%s1 + $0x80] sm:$0xff]
  %v1656 = vld [vmem:[%s1 + $0x88] sm:$0xff]
  %v1657 = vld [vmem:[%s1 + $0x90] sm:$0xff]
  %v1658 = vld [vmem:[%s1 + $0x98] sm:$0xff]
  %v1659 = vld [vmem:[%s1 + $0xa0] sm:$0xff]
  %v1660 = vld [vmem:[%s1 + $0xa8] sm:$0xff]
  %v1661 = vld [vmem:[%s1 + $0xb0] sm:$0xff]
  %v1662 = vld [vmem:[%s1 + $0xb8] sm:$0xff]
  %v1663 = vld [vmem:[%s1 + $0xc0] sm:$0xff]
  %v1664 = vld [vmem:[%s1 + $0xc8] sm:$0xff]
  %v1665 = vld [vmem:[%s1 + $0xd0] sm:$0xff]
  %v1666 = vld [vmem:[%s1 + $0xd8] sm:$0xff]
  %v1667 = vld [vmem:[%s1 + $0xe0] sm:$0xff]
  %v1668 = vld [vmem:[%s1 + $0xe8] sm:$0xff]
  %v1669 = vld [vmem:[%s1 + $0xf0] sm:$0xff]
  %v1670 = vld [vmem:[%s1 + $0xf8] sm:$0xff]
  %v1703 = vunpack.c.l.b16 %v1639
  %v1704 = vunpack.c.h.b16 %v1639
  %v1705 = vunpack.c.l.b16 %v1640
  %v1706 = vunpack.c.h.b16 %v1640
  %v1707 = vunpack.c.l.b16 %v1641
  %v1708 = vunpack.c.h.b16 %v1641
  %v1709 = vunpack.c.l.b16 %v1642
  %v1710 = vunpack.c.h.b16 %v1642
  %v1711 = vunpack.c.l.b16 %v1643
  %v1712 = vunpack.c.h.b16 %v1643
  %v1713 = vunpack.c.l.b16 %v1644
  %v1714 = vunpack.c.h.b16 %v1644
  %v1715 = vunpack.c.l.b16 %v1645
  %v1716 = vunpack.c.h.b16 %v1645
  %v1717 = vunpack.c.l.b16 %v1646
  %v1718 = vunpack.c.h.b16 %v1646
  %v1719 = vunpack.c.l.b16 %v1647
  %v1720 = vunpack.c.h.b16 %v1647
  %v1721 = vunpack.c.l.b16 %v1648
  %v1722 = vunpack.c.h.b16 %v1648
  %v1723 = vunpack.c.l.b16 %v1649
  %v1724 = vunpack.c.h.b16 %v1649
  %v1725 = vunpack.c.l.b16 %v1650
  %v1726 = vunpack.c.h.b16 %v1650
  %v1727 = vunpack.c.l.b16 %v1651
  %v1728 = vunpack.c.h.b16 %v1651
  %v1729 = vunpack.c.l.b16 %v1652
  %v1730 = vunpack.c.h.b16 %v1652
  %v1731 = vunpack.c.l.b16 %v1653
  %v1732 = vunpack.c.h.b16 %v1653
  %v1733 = vunpack.c.l.b16 %v1654
  %v1734 = vunpack.c.h.b16 %v1654
  %v1735 = vunpack.c.l.b16 %v1655
  %v1736 = vunpack.c.h.b16 %v1655
  %v1737 = vunpack.c.l.b16 %v1656
  %v1738 = vunpack.c.h.b16 %v1656
  %v1739 = vunpack.c.l.b16 %v1657
  %v1740 = vunpack.c.h.b16 %v1657
  %v1741 = vunpack.c.l.b16 %v1658
  %v1742 = vunpack.c.h.b16 %v1658
  %v1743 = vunpack.c.l.b16 %v1659
  %v1744 = vunpack.c.h.b16 %v1659
  %v1745 = vunpack.c.l.b16 %v1660
  %v1746 = vunpack.c.h.b16 %v1660
  %v1747 = vunpack.c.l.b16 %v1661
  %v1748 = vunpack.c.h.b16 %v1661
  %v1749 = vunpack.c.l.b16 %v1662
  %v1750 = vunpack.c.h.b16 %v1662
  %v1751 = vunpack.c.l.b16 %v1663
  %v1752 = vunpack.c.h.b16 %v1663
  %v1753 = vunpack.c.l.b16 %v1664
  %v1754 = vunpack.c.h.b16 %v1664
  %v1755 = vunpack.c.l.b16 %v1665
  %v1756 = vunpack.c.h.b16 %v1665
  %v1757 = vunpack.c.l.b16 %v1666
  %v1758 = vunpack.c.h.b16 %v1666
  %v1759 = vunpack.c.l.b16 %v1667
  %v1760 = vunpack.c.h.b16 %v1667
  %v1761 = vunpack.c.l.b16 %v1668
  %v1762 = vunpack.c.h.b16 %v1668
  %v1763 = vunpack.c.l.b16 %v1669
  %v1764 = vunpack.c.h.b16 %v1669
  %v1765 = vunpack.c.l.b16 %v1670
  %v1766 = vunpack.c.h.b16 %v1670
  %v1767 = vpack.c.b16 %v1707, %v1703
  %v1768 = vpack.c.b16 %v1708, %v1704
  %v1769 = vpack.c.b16 %v1709, %v1705
  %v1770 = vpack.c.b16 %v1710, %v1706
  %v1771 = vpack.c.b16 %v1715, %v1711
  %v1772 = vpack.c.b16 %v1716, %v1712
  %v1773 = vpack.c.b16 %v1717, %v1713
  %v1774 = vpack.c.b16 %v1718, %v1714
  %v1775 = vpack.c.b16 %v1723, %v1719
  %v1776 = vpack.c.b16 %v1724, %v1720
  %v1777 = vpack.c.b16 %v1725, %v1721
  %v1778 = vpack.c.b16 %v1726, %v1722
  %v1779 = vpack.c.b16 %v1731, %v1727
  %v1780 = vpack.c.b16 %v1732, %v1728
  %v1781 = vpack.c.b16 %v1733, %v1729
  %v1782 = vpack.c.b16 %v1734, %v1730
  %v1783 = vpack.c.b16 %v1739, %v1735
  %v1784 = vpack.c.b16 %v1740, %v1736
  %v1785 = vpack.c.b16 %v1741, %v1737
  %v1786 = vpack.c.b16 %v1742, %v1738
  %v1787 = vpack.c.b16 %v1747, %v1743
  %v1788 = vpack.c.b16 %v1748, %v1744
  %v1789 = vpack.c.b16 %v1749, %v1745
  %v1790 = vpack.c.b16 %v1750, %v1746
  %v1791 = vpack.c.b16 %v1755, %v1751
  %v1792 = vpack.c.b16 %v1756, %v1752
  %v1793 = vpack.c.b16 %v1757, %v1753
  %v1794 = vpack.c.b16 %v1758, %v1754
  %v1795 = vpack.c.b16 %v1763, %v1759
  %v1796 = vpack.c.b16 %v1764, %v1760
  %v1797 = vpack.c.b16 %v1765, %v1761
  %v1798 = vpack.c.b16 %v1766, %v1762
  %1831 = vmatpush.bf16.msra.mxu0 %v1795
  %1832 = vmatpush.bf16.msra.mxu0 %v1791
  %1833 = vmatpush.bf16.msra.mxu0 %v1787
  %1834 = vmatpush.bf16.msra.mxu0 %v1783
  %1835 = vmatpush.bf16.msra.mxu0 %v1779
  %1836 = vmatpush.bf16.msra.mxu0 %v1775
  %1837 = vmatpush.bf16.msra.mxu0 %v1771
  %1838 = vmatpush.bf16.msra.mxu0 %v1767
  %1839 = vmatmul.bf16.gmra.mxu0 %v1638
  %v1840 = vpop.f32.mrf.mxu0
  %v1841 = vadd.f32 0.0, %v1840
  %v1842 = vpop.f32.mrf.mxu0
  %1843 = vdwg.mxu0
  %1844 = vmatpush.bf16.msra.mxu0 %v1796
  %1845 = vmatpush.bf16.msra.mxu0 %v1792
  %1846 = vmatpush.bf16.msra.mxu0 %v1788
  %1847 = vmatpush.bf16.msra.mxu0 %v1784
  %1848 = vmatpush.bf16.msra.mxu0 %v1780
  %1849 = vmatpush.bf16.msra.mxu0 %v1776
  %1850 = vmatpush.bf16.msra.mxu0 %v1772
  %1851 = vmatpush.bf16.msra.mxu0 %v1768
  %1852 = vmatmul.bf16.gmra.mxu0 %v1638
  %v1853 = vpop.f32.mrf.mxu0
  %v1854 = vadd.f32 0.0, %v1853
  %v1855 = vpop.f32.mrf.mxu0
  %1856 = vdwg.mxu0
  %1857 = vmatpush.bf16.msra.mxu0 %v1797
  %1858 = vmatpush.bf16.msra.mxu0 %v1793
  %1859 = vmatpush.bf16.msra.mxu0 %v1789
  %1860 = vmatpush.bf16.msra.mxu0 %v1785
  %1861 = vmatpush.bf16.msra.mxu0 %v1781
  %1862 = vmatpush.bf16.msra.mxu0 %v1777
  %1863 = vmatpush.bf16.msra.mxu0 %v1773
  %1864 = vmatpush.bf16.msra.mxu0 %v1769
  %1865 = vmatmul.bf16.gmra.mxu0 %v1638
  %v1866 = vpop.f32.mrf.mxu0
  %v1867 = vadd.f32 0.0, %v1866
  %v1868 = vpop.f32.mrf.mxu0
  %1869 = vdwg.mxu0
  %1870 = vmatpush.bf16.msra.mxu0 %v1798
  %1871 = vmatpush.bf16.msra.mxu0 %v1794
  %1872 = vmatpush.bf16.msra.mxu0 %v1790
  %1873 = vmatpush.bf16.msra.mxu0 %v1786
  %1874 = vmatpush.bf16.msra.mxu0 %v1782
  %1875 = vmatpush.bf16.msra.mxu0 %v1778
  %1876 = vmatpush.bf16.msra.mxu0 %v1774
  %1877 = vmatpush.bf16.msra.mxu0 %v1770
  %1878 = vmatmul.bf16.gmra.mxu0 %v1638
  %v1879 = vpop.f32.mrf.mxu0
  %v1880 = vadd.f32 0.0, %v1879
  %v1881 = vpop.f32.mrf.mxu0
  %1882 = vdwg.mxu0
  %v1883 = vadd.f32 %v1633, %v1841
  %v1884 = vadd.f32 %v1634, %v1854
  %v1885 = vadd.f32 %v1635, %v1867
  %v1886 = vadd.f32 %v1636, %v1880
  %v1887 = vxor.u32 %v1883, 2147483648
  %v1888 = vmul.f32 %v1887, 1.442695
  %v1889 = vpow.pop %v1888
  %v1890 = vadd.f32 %v1889, 1.0
  %v1891 = vrcp.pop %v1890
  %v1892 = vmul.f32 %v1890, %v1891
  %v1893 = vsub.f32 1.0, %v1892
  %v1894 = vmul.f32 %v1891, %v1893
  %v1895 = vadd.f32 %v1891, %v1894
  %vm1896 = vweird.f32 %v1890
  %vm1897 = vweird.f32 %v1891
  %vm1898 = vmor %vm1896, %vm1897
  %v1899 = vsel %vm1898, %v1891, %v1895
  %v1900 = vand.u32 2147483647, %v1890
  %vm1901 = vcmp.eq.f32.partialorder %v1900, 8.507059e+37
  %v1902 = vand.u32 %v1890, 2147483648
  %v1903 = vor.u32 1.1754944e-38, %v1902
  %v1904 = vsel %vm1901, %v1903, %v1899
  %v1905 = vmul.f32 1.0, %v1904
  %v1906 = vxor.u32 %v1884, 2147483648
  %v1907 = vmul.f32 %v1906, 1.442695
  %v1908 = vpow.pop %v1907
  %v1909 = vadd.f32 %v1908, 1.0
  %v1910 = vrcp.pop %v1909
  %v1911 = vmul.f32 %v1909, %v1910
  %v1912 = vsub.f32 1.0, %v1911
  %v1913 = vmul.f32 %v1910, %v1912
  %v1914 = vadd.f32 %v1910, %v1913
  %vm1915 = vweird.f32 %v1909
  %vm1916 = vweird.f32 %v1910
  %vm1917 = vmor %vm1915, %vm1916
  %v1918 = vsel %vm1917, %v1910, %v1914
  %v1919 = vand.u32 2147483647, %v1909
  %vm1920 = vcmp.eq.f32.partialorder %v1919, 8.507059e+37
  %v1921 = vand.u32 %v1909, 2147483648
  %v1922 = vor.u32 1.1754944e-38, %v1921
  %v1923 = vsel %vm1920, %v1922, %v1918
  %v1924 = vmul.f32 1.0, %v1923
  %v1925 = vtanh.pop %v1885
  %v1926 = vxor.u32 %v1886, 2147483648
  %v1927 = vmul.f32 %v1926, 1.442695
  %v1928 = vpow.pop %v1927
  %v1929 = vadd.f32 %v1928, 1.0
  %v1930 = vrcp.pop %v1929
  %v1931 = vmul.f32 %v1929, %v1930
  %v1932 = vsub.f32 1.0, %v1931
  %v1933 = vmul.f32 %v1930, %v1932
  %v1934 = vadd.f32 %v1930, %v1933
  %vm1935 = vweird.f32 %v1929
  %vm1936 = vweird.f32 %v1930
  %vm1937 = vmor %vm1935, %vm1936
  %v1938 = vsel %vm1937, %v1930, %v1934
  %v1939 = vand.u32 2147483647, %v1929
  %vm1940 = vcmp.eq.f32.partialorder %v1939, 8.507059e+37
  %v1941 = vand.u32 %v1929, 2147483648
  %v1942 = vor.u32 1.1754944e-38, %v1941
  %v1943 = vsel %vm1940, %v1942, %v1938
  %v1944 = vmul.f32 1.0, %v1943
  %v1945 = vld [vmem:[#allocation3] sm:$0xff]
  %v1946 = vmul.f32 %v1924, %v1945
  %v1947 = vmul.f32 %v1905, %v1925
  %v1948 = vadd.f32 %v1946, %v1947
  %v1949 = vtanh.pop %v1948
  %v1950 = vmul.f32 %v1944, %v1949
  %1951 = vst [vmem:[#allocation3] sm:$0xff] %v1948
  %1952 = vst [vmem:[#allocation2] sm:$0xff] %v1950
  %s1953 = scalar_lea.vmem %s4, 40
  %1954 = vst [vmem:[%s1953] sm:$0xff] %v1950
  %s1955 = scalar_lea.vmem %s0, 192
  %v1956 = vld [vmem:[%s1955] sm:$0xff]
  %v1957 = vld [vmem:[%s1955 + $0x8] sm:$0xff]
  %v1958 = vld [vmem:[%s1955 + $0x10] sm:$0xff]
  %v1959 = vld [vmem:[%s1955 + $0x18] sm:$0xff]
  %v1960 = vld [vmem:[#allocation2] sm:$0xff]
  %v1961 = vpack.c.bf16 %v1960, %v1960
  %v1962 = vld [vmem:[%s1] sm:$0xff]
  %v1963 = vld [vmem:[%s1 + $0x8] sm:$0xff]
  %v1964 = vld [vmem:[%s1 + $0x10] sm:$0xff]
  %v1965 = vld [vmem:[%s1 + $0x18] sm:$0xff]
  %v1966 = vld [vmem:[%s1 + $0x20] sm:$0xff]
  %v1967 = vld [vmem:[%s1 + $0x28] sm:$0xff]
  %v1968 = vld [vmem:[%s1 + $0x30] sm:$0xff]
  %v1969 = vld [vmem:[%s1 + $0x38] sm:$0xff]
  %v1970 = vld [vmem:[%s1 + $0x40] sm:$0xff]
  %v1971 = vld [vmem:[%s1 + $0x48] sm:$0xff]
  %v1972 = vld [vmem:[%s1 + $0x50] sm:$0xff]
  %v1973 = vld [vmem:[%s1 + $0x58] sm:$0xff]
  %v1974 = vld [vmem:[%s1 + $0x60] sm:$0xff]
  %v1975 = vld [vmem:[%s1 + $0x68] sm:$0xff]
  %v1976 = vld [vmem:[%s1 + $0x70] sm:$0xff]
  %v1977 = vld [vmem:[%s1 + $0x78] sm:$0xff]
  %v1978 = vld [vmem:[%s1 + $0x80] sm:$0xff]
  %v1979 = vld [vmem:[%s1 + $0x88] sm:$0xff]
  %v1980 = vld [vmem:[%s1 + $0x90] sm:$0xff]
  %v1981 = vld [vmem:[%s1 + $0x98] sm:$0xff]
  %v1982 = vld [vmem:[%s1 + $0xa0] sm:$0xff]
  %v1983 = vld [vmem:[%s1 + $0xa8] sm:$0xff]
  %v1984 = vld [vmem:[%s1 + $0xb0] sm:$0xff]
  %v1985 = vld [vmem:[%s1 + $0xb8] sm:$0xff]
  %v1986 = vld [vmem:[%s1 + $0xc0] sm:$0xff]
  %v1987 = vld [vmem:[%s1 + $0xc8] sm:$0xff]
  %v1988 = vld [vmem:[%s1 + $0xd0] sm:$0xff]
  %v1989 = vld [vmem:[%s1 + $0xd8] sm:$0xff]
  %v1990 = vld [vmem:[%s1 + $0xe0] sm:$0xff]
  %v1991 = vld [vmem:[%s1 + $0xe8] sm:$0xff]
  %v1992 = vld [vmem:[%s1 + $0xf0] sm:$0xff]
  %v1993 = vld [vmem:[%s1 + $0xf8] sm:$0xff]
  %v2026 = vunpack.c.l.b16 %v1962
  %v2027 = vunpack.c.h.b16 %v1962
  %v2028 = vunpack.c.l.b16 %v1963
  %v2029 = vunpack.c.h.b16 %v1963
  %v2030 = vunpack.c.l.b16 %v1964
  %v2031 = vunpack.c.h.b16 %v1964
  %v2032 = vunpack.c.l.b16 %v1965
  %v2033 = vunpack.c.h.b16 %v1965
  %v2034 = vunpack.c.l.b16 %v1966
  %v2035 = vunpack.c.h.b16 %v1966
  %v2036 = vunpack.c.l.b16 %v1967
  %v2037 = vunpack.c.h.b16 %v1967
  %v2038 = vunpack.c.l.b16 %v1968
  %v2039 = vunpack.c.h.b16 %v1968
  %v2040 = vunpack.c.l.b16 %v1969
  %v2041 = vunpack.c.h.b16 %v1969
  %v2042 = vunpack.c.l.b16 %v1970
  %v2043 = vunpack.c.h.b16 %v1970
  %v2044 = vunpack.c.l.b16 %v1971
  %v2045 = vunpack.c.h.b16 %v1971
  %v2046 = vunpack.c.l.b16 %v1972
  %v2047 = vunpack.c.h.b16 %v1972
  %v2048 = vunpack.c.l.b16 %v1973
  %v2049 = vunpack.c.h.b16 %v1973
  %v2050 = vunpack.c.l.b16 %v1974
  %v2051 = vunpack.c.h.b16 %v1974
  %v2052 = vunpack.c.l.b16 %v1975
  %v2053 = vunpack.c.h.b16 %v1975
  %v2054 = vunpack.c.l.b16 %v1976
  %v2055 = vunpack.c.h.b16 %v1976
  %v2056 = vunpack.c.l.b16 %v1977
  %v2057 = vunpack.c.h.b16 %v1977
  %v2058 = vunpack.c.l.b16 %v1978
  %v2059 = vunpack.c.h.b16 %v1978
  %v2060 = vunpack.c.l.b16 %v1979
  %v2061 = vunpack.c.h.b16 %v1979
  %v2062 = vunpack.c.l.b16 %v1980
  %v2063 = vunpack.c.h.b16 %v1980
  %v2064 = vunpack.c.l.b16 %v1981
  %v2065 = vunpack.c.h.b16 %v1981
  %v2066 = vunpack.c.l.b16 %v1982
  %v2067 = vunpack.c.h.b16 %v1982
  %v2068 = vunpack.c.l.b16 %v1983
  %v2069 = vunpack.c.h.b16 %v1983
  %v2070 = vunpack.c.l.b16 %v1984
  %v2071 = vunpack.c.h.b16 %v1984
  %v2072 = vunpack.c.l.b16 %v1985
  %v2073 = vunpack.c.h.b16 %v1985
  %v2074 = vunpack.c.l.b16 %v1986
  %v2075 = vunpack.c.h.b16 %v1986
  %v2076 = vunpack.c.l.b16 %v1987
  %v2077 = vunpack.c.h.b16 %v1987
  %v2078 = vunpack.c.l.b16 %v1988
  %v2079 = vunpack.c.h.b16 %v1988
  %v2080 = vunpack.c.l.b16 %v1989
  %v2081 = vunpack.c.h.b16 %v1989
  %v2082 = vunpack.c.l.b16 %v1990
  %v2083 = vunpack.c.h.b16 %v1990
  %v2084 = vunpack.c.l.b16 %v1991
  %v2085 = vunpack.c.h.b16 %v1991
  %v2086 = vunpack.c.l.b16 %v1992
  %v2087 = vunpack.c.h.b16 %v1992
  %v2088 = vunpack.c.l.b16 %v1993
  %v2089 = vunpack.c.h.b16 %v1993
  %v2090 = vpack.c.b16 %v2030, %v2026
  %v2091 = vpack.c.b16 %v2031, %v2027
  %v2092 = vpack.c.b16 %v2032, %v2028
  %v2093 = vpack.c.b16 %v2033, %v2029
  %v2094 = vpack.c.b16 %v2038, %v2034
  %v2095 = vpack.c.b16 %v2039, %v2035
  %v2096 = vpack.c.b16 %v2040, %v2036
  %v2097 = vpack.c.b16 %v2041, %v2037
  %v2098 = vpack.c.b16 %v2046, %v2042
  %v2099 = vpack.c.b16 %v2047, %v2043
  %v2100 = vpack.c.b16 %v2048, %v2044
  %v2101 = vpack.c.b16 %v2049, %v2045
  %v2102 = vpack.c.b16 %v2054, %v2050
  %v2103 = vpack.c.b16 %v2055, %v2051
  %v2104 = vpack.c.b16 %v2056, %v2052
  %v2105 = vpack.c.b16 %v2057, %v2053
  %v2106 = vpack.c.b16 %v2062, %v2058
  %v2107 = vpack.c.b16 %v2063, %v2059
  %v2108 = vpack.c.b16 %v2064, %v2060
  %v2109 = vpack.c.b16 %v2065, %v2061
  %v2110 = vpack.c.b16 %v2070, %v2066
  %v2111 = vpack.c.b16 %v2071, %v2067
  %v2112 = vpack.c.b16 %v2072, %v2068
  %v2113 = vpack.c.b16 %v2073, %v2069
  %v2114 = vpack.c.b16 %v2078, %v2074
  %v2115 = vpack.c.b16 %v2079, %v2075
  %v2116 = vpack.c.b16 %v2080, %v2076
  %v2117 = vpack.c.b16 %v2081, %v2077
  %v2118 = vpack.c.b16 %v2086, %v2082
  %v2119 = vpack.c.b16 %v2087, %v2083
  %v2120 = vpack.c.b16 %v2088, %v2084
  %v2121 = vpack.c.b16 %v2089, %v2085
  %2154 = vmatpush.bf16.msra.mxu0 %v2118
  %2155 = vmatpush.bf16.msra.mxu0 %v2114
  %2156 = vmatpush.bf16.msra.mxu0 %v2110
  %2157 = vmatpush.bf16.msra.mxu0 %v2106
  %2158 = vmatpush.bf16.msra.mxu0 %v2102
  %2159 = vmatpush.bf16.msra.mxu0 %v2098
  %2160 = vmatpush.bf16.msra.mxu0 %v2094
  %2161 = vmatpush.bf16.msra.mxu0 %v2090
  %2162 = vmatmul.bf16.gmra.mxu0 %v1961
  %v2163 = vpop.f32.mrf.mxu0
  %v2164 = vadd.f32 0.0, %v2163
  %v2165 = vpop.f32.mrf.mxu0
  %2166 = vdwg.mxu0
  %2167 = vmatpush.bf16.msra.mxu0 %v2119
  %2168 = vmatpush.bf16.msra.mxu0 %v2115
  %2169 = vmatpush.bf16.msra.mxu0 %v2111
  %2170 = vmatpush.bf16.msra.mxu0 %v2107
  %2171 = vmatpush.bf16.msra.mxu0 %v2103
  %2172 = vmatpush.bf16.msra.mxu0 %v2099
  %2173 = vmatpush.bf16.msra.mxu0 %v2095
  %2174 = vmatpush.bf16.msra.mxu0 %v2091
  %2175 = vmatmul.bf16.gmra.mxu0 %v1961
  %v2176 = vpop.f32.mrf.mxu0
  %v2177 = vadd.f32 0.0, %v2176
  %v2178 = vpop.f32.mrf.mxu0
  %2179 = vdwg.mxu0
  %2180 = vmatpush.bf16.msra.mxu0 %v2120
  %2181 = vmatpush.bf16.msra.mxu0 %v2116
  %2182 = vmatpush.bf16.msra.mxu0 %v2112
  %2183 = vmatpush.bf16.msra.mxu0 %v2108
  %2184 = vmatpush.bf16.msra.mxu0 %v2104
  %2185 = vmatpush.bf16.msra.mxu0 %v2100
  %2186 = vmatpush.bf16.msra.mxu0 %v2096
  %2187 = vmatpush.bf16.msra.mxu0 %v2092
  %2188 = vmatmul.bf16.gmra.mxu0 %v1961
  %v2189 = vpop.f32.mrf.mxu0
  %v2190 = vadd.f32 0.0, %v2189
  %v2191 = vpop.f32.mrf.mxu0
  %2192 = vdwg.mxu0
  %2193 = vmatpush.bf16.msra.mxu0 %v2121
  %2194 = vmatpush.bf16.msra.mxu0 %v2117
  %2195 = vmatpush.bf16.msra.mxu0 %v2113
  %2196 = vmatpush.bf16.msra.mxu0 %v2109
  %2197 = vmatpush.bf16.msra.mxu0 %v2105
  %2198 = vmatpush.bf16.msra.mxu0 %v2101
  %2199 = vmatpush.bf16.msra.mxu0 %v2097
  %2200 = vmatpush.bf16.msra.mxu0 %v2093
  %2201 = vmatmul.bf16.gmra.mxu0 %v1961
  %v2202 = vpop.f32.mrf.mxu0
  %v2203 = vadd.f32 0.0, %v2202
  %v2204 = vpop.f32.mrf.mxu0
  %2205 = vdwg.mxu0
  %v2206 = vadd.f32 %v1956, %v2164
  %v2207 = vadd.f32 %v1957, %v2177
  %v2208 = vadd.f32 %v1958, %v2190
  %v2209 = vadd.f32 %v1959, %v2203
  %v2210 = vxor.u32 %v2206, 2147483648
  %v2211 = vmul.f32 %v2210, 1.442695
  %v2212 = vpow.pop %v2211
  %v2213 = vadd.f32 %v2212, 1.0
  %v2214 = vrcp.pop %v2213
  %v2215 = vmul.f32 %v2213, %v2214
  %v2216 = vsub.f32 1.0, %v2215
  %v2217 = vmul.f32 %v2214, %v2216
  %v2218 = vadd.f32 %v2214, %v2217
  %vm2219 = vweird.f32 %v2213
  %vm2220 = vweird.f32 %v2214
  %vm2221 = vmor %vm2219, %vm2220
  %v2222 = vsel %vm2221, %v2214, %v2218
  %v2223 = vand.u32 2147483647, %v2213
  %vm2224 = vcmp.eq.f32.partialorder %v2223, 8.507059e+37
  %v2225 = vand.u32 %v2213, 2147483648
  %v2226 = vor.u32 1.1754944e-38, %v2225
  %v2227 = vsel %vm2224, %v2226, %v2222
  %v2228 = vmul.f32 1.0, %v2227
  %v2229 = vxor.u32 %v2207, 2147483648
  %v2230 = vmul.f32 %v2229, 1.442695
  %v2231 = vpow.pop %v2230
  %v2232 = vadd.f32 %v2231, 1.0
  %v2233 = vrcp.pop %v2232
  %v2234 = vmul.f32 %v2232, %v2233
  %v2235 = vsub.f32 1.0, %v2234
  %v2236 = vmul.f32 %v2233, %v2235
  %v2237 = vadd.f32 %v2233, %v2236
  %vm2238 = vweird.f32 %v2232
  %vm2239 = vweird.f32 %v2233
  %vm2240 = vmor %vm2238, %vm2239
  %v2241 = vsel %vm2240, %v2233, %v2237
  %v2242 = vand.u32 2147483647, %v2232
  %vm2243 = vcmp.eq.f32.partialorder %v2242, 8.507059e+37
  %v2244 = vand.u32 %v2232, 2147483648
  %v2245 = vor.u32 1.1754944e-38, %v2244
  %v2246 = vsel %vm2243, %v2245, %v2241
  %v2247 = vmul.f32 1.0, %v2246
  %v2248 = vtanh.pop %v2208
  %v2249 = vxor.u32 %v2209, 2147483648
  %v2250 = vmul.f32 %v2249, 1.442695
  %v2251 = vpow.pop %v2250
  %v2252 = vadd.f32 %v2251, 1.0
  %v2253 = vrcp.pop %v2252
  %v2254 = vmul.f32 %v2252, %v2253
  %v2255 = vsub.f32 1.0, %v2254
  %v2256 = vmul.f32 %v2253, %v2255
  %v2257 = vadd.f32 %v2253, %v2256
  %vm2258 = vweird.f32 %v2252
  %vm2259 = vweird.f32 %v2253
  %vm2260 = vmor %vm2258, %vm2259
  %v2261 = vsel %vm2260, %v2253, %v2257
  %v2262 = vand.u32 2147483647, %v2252
  %vm2263 = vcmp.eq.f32.partialorder %v2262, 8.507059e+37
  %v2264 = vand.u32 %v2252, 2147483648
  %v2265 = vor.u32 1.1754944e-38, %v2264
  %v2266 = vsel %vm2263, %v2265, %v2261
  %v2267 = vmul.f32 1.0, %v2266
  %v2268 = vld [vmem:[#allocation3] sm:$0xff]
  %v2269 = vmul.f32 %v2247, %v2268
  %v2270 = vmul.f32 %v2228, %v2248
  %v2271 = vadd.f32 %v2269, %v2270
  %v2272 = vtanh.pop %v2271
  %v2273 = vmul.f32 %v2267, %v2272
  %2274 = vst [vmem:[#allocation3] sm:$0xff] %v2271
  %2275 = vst [vmem:[#allocation2] sm:$0xff] %v2273
  %s2276 = scalar_lea.vmem %s4, 48
  %2277 = vst [vmem:[%s2276] sm:$0xff] %v2273
  %s2278 = scalar_lea.vmem %s0, 224
  %v2279 = vld [vmem:[%s2278] sm:$0xff]
  %v2280 = vld [vmem:[%s2278 + $0x8] sm:$0xff]
  %v2281 = vld [vmem:[%s2278 + $0x10] sm:$0xff]
  %v2282 = vld [vmem:[%s2278 + $0x18] sm:$0xff]
  %v2283 = vld [vmem:[#allocation2] sm:$0xff]
  %v2284 = vpack.c.bf16 %v2283, %v2283
  %v2285 = vld [vmem:[%s1] sm:$0xff]
  %v2286 = vld [vmem:[%s1 + $0x8] sm:$0xff]
  %v2287 = vld [vmem:[%s1 + $0x10] sm:$0xff]
  %v2288 = vld [vmem:[%s1 + $0x18] sm:$0xff]
  %v2289 = vld [vmem:[%s1 + $0x20] sm:$0xff]
  %v2290 = vld [vmem:[%s1 + $0x28] sm:$0xff]
  %v2291 = vld [vmem:[%s1 + $0x30] sm:$0xff]
  %v2292 = vld [vmem:[%s1 + $0x38] sm:$0xff]
  %v2293 = vld [vmem:[%s1 + $0x40] sm:$0xff]
  %v2294 = vld [vmem:[%s1 + $0x48] sm:$0xff]
  %v2295 = vld [vmem:[%s1 + $0x50] sm:$0xff]
  %v2296 = vld [vmem:[%s1 + $0x58] sm:$0xff]
  %v2297 = vld [vmem:[%s1 + $0x60] sm:$0xff]
  %v2298 = vld [vmem:[%s1 + $0x68] sm:$0xff]
  %v2299 = vld [vmem:[%s1 + $0x70] sm:$0xff]
  %v2300 = vld [vmem:[%s1 + $0x78] sm:$0xff]
  %v2301 = vld [vmem:[%s1 + $0x80] sm:$0xff]
  %v2302 = vld [vmem:[%s1 + $0x88] sm:$0xff]
  %v2303 = vld [vmem:[%s1 + $0x90] sm:$0xff]
  %v2304 = vld [vmem:[%s1 + $0x98] sm:$0xff]
  %v2305 = vld [vmem:[%s1 + $0xa0] sm:$0xff]
  %v2306 = vld [vmem:[%s1 + $0xa8] sm:$0xff]
  %v2307 = vld [vmem:[%s1 + $0xb0] sm:$0xff]
  %v2308 = vld [vmem:[%s1 + $0xb8] sm:$0xff]
  %v2309 = vld [vmem:[%s1 + $0xc0] sm:$0xff]
  %v2310 = vld [vmem:[%s1 + $0xc8] sm:$0xff]
  %v2311 = vld [vmem:[%s1 + $0xd0] sm:$0xff]
  %v2312 = vld [vmem:[%s1 + $0xd8] sm:$0xff]
  %v2313 = vld [vmem:[%s1 + $0xe0] sm:$0xff]
  %v2314 = vld [vmem:[%s1 + $0xe8] sm:$0xff]
  %v2315 = vld [vmem:[%s1 + $0xf0] sm:$0xff]
  %v2316 = vld [vmem:[%s1 + $0xf8] sm:$0xff]
  %v2349 = vunpack.c.l.b16 %v2285
  %v2350 = vunpack.c.h.b16 %v2285
  %v2351 = vunpack.c.l.b16 %v2286
  %v2352 = vunpack.c.h.b16 %v2286
  %v2353 = vunpack.c.l.b16 %v2287
  %v2354 = vunpack.c.h.b16 %v2287
  %v2355 = vunpack.c.l.b16 %v2288
  %v2356 = vunpack.c.h.b16 %v2288
  %v2357 = vunpack.c.l.b16 %v2289
  %v2358 = vunpack.c.h.b16 %v2289
  %v2359 = vunpack.c.l.b16 %v2290
  %v2360 = vunpack.c.h.b16 %v2290
  %v2361 = vunpack.c.l.b16 %v2291
  %v2362 = vunpack.c.h.b16 %v2291
  %v2363 = vunpack.c.l.b16 %v2292
  %v2364 = vunpack.c.h.b16 %v2292
  %v2365 = vunpack.c.l.b16 %v2293
  %v2366 = vunpack.c.h.b16 %v2293
  %v2367 = vunpack.c.l.b16 %v2294
  %v2368 = vunpack.c.h.b16 %v2294
  %v2369 = vunpack.c.l.b16 %v2295
  %v2370 = vunpack.c.h.b16 %v2295
  %v2371 = vunpack.c.l.b16 %v2296
  %v2372 = vunpack.c.h.b16 %v2296
  %v2373 = vunpack.c.l.b16 %v2297
  %v2374 = vunpack.c.h.b16 %v2297
  %v2375 = vunpack.c.l.b16 %v2298
  %v2376 = vunpack.c.h.b16 %v2298
  %v2377 = vunpack.c.l.b16 %v2299
  %v2378 = vunpack.c.h.b16 %v2299
  %v2379 = vunpack.c.l.b16 %v2300
  %v2380 = vunpack.c.h.b16 %v2300
  %v2381 = vunpack.c.l.b16 %v2301
  %v2382 = vunpack.c.h.b16 %v2301
  %v2383 = vunpack.c.l.b16 %v2302
  %v2384 = vunpack.c.h.b16 %v2302
  %v2385 = vunpack.c.l.b16 %v2303
  %v2386 = vunpack.c.h.b16 %v2303
  %v2387 = vunpack.c.l.b16 %v2304
  %v2388 = vunpack.c.h.b16 %v2304
  %v2389 = vunpack.c.l.b16 %v2305
  %v2390 = vunpack.c.h.b16 %v2305
  %v2391 = vunpack.c.l.b16 %v2306
  %v2392 = vunpack.c.h.b16 %v2306
  %v2393 = vunpack.c.l.b16 %v2307
  %v2394 = vunpack.c.h.b16 %v2307
  %v2395 = vunpack.c.l.b16 %v2308
  %v2396 = vunpack.c.h.b16 %v2308
  %v2397 = vunpack.c.l.b16 %v2309
  %v2398 = vunpack.c.h.b16 %v2309
  %v2399 = vunpack.c.l.b16 %v2310
  %v2400 = vunpack.c.h.b16 %v2310
  %v2401 = vunpack.c.l.b16 %v2311
  %v2402 = vunpack.c.h.b16 %v2311
  %v2403 = vunpack.c.l.b16 %v2312
  %v2404 = vunpack.c.h.b16 %v2312
  %v2405 = vunpack.c.l.b16 %v2313
  %v2406 = vunpack.c.h.b16 %v2313
  %v2407 = vunpack.c.l.b16 %v2314
  %v2408 = vunpack.c.h.b16 %v2314
  %v2409 = vunpack.c.l.b16 %v2315
  %v2410 = vunpack.c.h.b16 %v2315
  %v2411 = vunpack.c.l.b16 %v2316
  %v2412 = vunpack.c.h.b16 %v2316
  %v2413 = vpack.c.b16 %v2353, %v2349
  %v2414 = vpack.c.b16 %v2354, %v2350
  %v2415 = vpack.c.b16 %v2355, %v2351
  %v2416 = vpack.c.b16 %v2356, %v2352
  %v2417 = vpack.c.b16 %v2361, %v2357
  %v2418 = vpack.c.b16 %v2362, %v2358
  %v2419 = vpack.c.b16 %v2363, %v2359
  %v2420 = vpack.c.b16 %v2364, %v2360
  %v2421 = vpack.c.b16 %v2369, %v2365
  %v2422 = vpack.c.b16 %v2370, %v2366
  %v2423 = vpack.c.b16 %v2371, %v2367
  %v2424 = vpack.c.b16 %v2372, %v2368
  %v2425 = vpack.c.b16 %v2377, %v2373
  %v2426 = vpack.c.b16 %v2378, %v2374
  %v2427 = vpack.c.b16 %v2379, %v2375
  %v2428 = vpack.c.b16 %v2380, %v2376
  %v2429 = vpack.c.b16 %v2385, %v2381
  %v2430 = vpack.c.b16 %v2386, %v2382
  %v2431 = vpack.c.b16 %v2387, %v2383
  %v2432 = vpack.c.b16 %v2388, %v2384
  %v2433 = vpack.c.b16 %v2393, %v2389
  %v2434 = vpack.c.b16 %v2394, %v2390
  %v2435 = vpack.c.b16 %v2395, %v2391
  %v2436 = vpack.c.b16 %v2396, %v2392
  %v2437 = vpack.c.b16 %v2401, %v2397
  %v2438 = vpack.c.b16 %v2402, %v2398
  %v2439 = vpack.c.b16 %v2403, %v2399
  %v2440 = vpack.c.b16 %v2404, %v2400
  %v2441 = vpack.c.b16 %v2409, %v2405
  %v2442 = vpack.c.b16 %v2410, %v2406
  %v2443 = vpack.c.b16 %v2411, %v2407
  %v2444 = vpack.c.b16 %v2412, %v2408
  %2477 = vmatpush.bf16.msra.mxu0 %v2441
  %2478 = vmatpush.bf16.msra.mxu0 %v2437
  %2479 = vmatpush.bf16.msra.mxu0 %v2433
  %2480 = vmatpush.bf16.msra.mxu0 %v2429
  %2481 = vmatpush.bf16.msra.mxu0 %v2425
  %2482 = vmatpush.bf16.msra.mxu0 %v2421
  %2483 = vmatpush.bf16.msra.mxu0 %v2417
  %2484 = vmatpush.bf16.msra.mxu0 %v2413
  %2485 = vmatmul.bf16.gmra.mxu0 %v2284
  %v2486 = vpop.f32.mrf.mxu0
  %v2487 = vadd.f32 0.0, %v2486
  %v2488 = vpop.f32.mrf.mxu0
  %2489 = vdwg.mxu0
  %2490 = vmatpush.bf16.msra.mxu0 %v2442
  %2491 = vmatpush.bf16.msra.mxu0 %v2438
  %2492 = vmatpush.bf16.msra.mxu0 %v2434
  %2493 = vmatpush.bf16.msra.mxu0 %v2430
  %2494 = vmatpush.bf16.msra.mxu0 %v2426
  %2495 = vmatpush.bf16.msra.mxu0 %v2422
  %2496 = vmatpush.bf16.msra.mxu0 %v2418
  %2497 = vmatpush.bf16.msra.mxu0 %v2414
  %2498 = vmatmul.bf16.gmra.mxu0 %v2284
  %v2499 = vpop.f32.mrf.mxu0
  %v2500 = vadd.f32 0.0, %v2499
  %v2501 = vpop.f32.mrf.mxu0
  %2502 = vdwg.mxu0
  %2503 = vmatpush.bf16.msra.mxu0 %v2443
  %2504 = vmatpush.bf16.msra.mxu0 %v2439
  %2505 = vmatpush.bf16.msra.mxu0 %v2435
  %2506 = vmatpush.bf16.msra.mxu0 %v2431
  %2507 = vmatpush.bf16.msra.mxu0 %v2427
  %2508 = vmatpush.bf16.msra.mxu0 %v2423
  %2509 = vmatpush.bf16.msra.mxu0 %v2419
  %2510 = vmatpush.bf16.msra.mxu0 %v2415
  %2511 = vmatmul.bf16.gmra.mxu0 %v2284
  %v2512 = vpop.f32.mrf.mxu0
  %v2513 = vadd.f32 0.0, %v2512
  %v2514 = vpop.f32.mrf.mxu0
  %2515 = vdwg.mxu0
  %2516 = vmatpush.bf16.msra.mxu0 %v2444
  %2517 = vmatpush.bf16.msra.mxu0 %v2440
  %2518 = vmatpush.bf16.msra.mxu0 %v2436
  %2519 = vmatpush.bf16.msra.mxu0 %v2432
  %2520 = vmatpush.bf16.msra.mxu0 %v2428
  %2521 = vmatpush.bf16.msra.mxu0 %v2424
  %2522 = vmatpush.bf16.msra.mxu0 %v2420
  %2523 = vmatpush.bf16.msra.mxu0 %v2416
  %2524 = vmatmul.bf16.gmra.mxu0 %v2284
  %v2525 = vpop.f32.mrf.mxu0
  %v2526 = vadd.f32 0.0, %v2525
  %v2527 = vpop.f32.mrf.mxu0
  %2528 = vdwg.mxu0
  %v2529 = vadd.f32 %v2279, %v2487
  %v2530 = vadd.f32 %v2280, %v2500
  %v2531 = vadd.f32 %v2281, %v2513
  %v2532 = vadd.f32 %v2282, %v2526
  %v2533 = vxor.u32 %v2529, 2147483648
  %v2534 = vmul.f32 %v2533, 1.442695
  %v2535 = vpow.pop %v2534
  %v2536 = vadd.f32 %v2535, 1.0
  %v2537 = vrcp.pop %v2536
  %v2538 = vmul.f32 %v2536, %v2537
  %v2539 = vsub.f32 1.0, %v2538
  %v2540 = vmul.f32 %v2537, %v2539
  %v2541 = vadd.f32 %v2537, %v2540
  %vm2542 = vweird.f32 %v2536
  %vm2543 = vweird.f32 %v2537
  %vm2544 = vmor %vm2542, %vm2543
  %v2545 = vsel %vm2544, %v2537, %v2541
  %v2546 = vand.u32 2147483647, %v2536
  %vm2547 = vcmp.eq.f32.partialorder %v2546, 8.507059e+37
  %v2548 = vand.u32 %v2536, 2147483648
  %v2549 = vor.u32 1.1754944e-38, %v2548
  %v2550 = vsel %vm2547, %v2549, %v2545
  %v2551 = vmul.f32 1.0, %v2550
  %v2552 = vxor.u32 %v2530, 2147483648
  %v2553 = vmul.f32 %v2552, 1.442695
  %v2554 = vpow.pop %v2553
  %v2555 = vadd.f32 %v2554, 1.0
  %v2556 = vrcp.pop %v2555
  %v2557 = vmul.f32 %v2555, %v2556
  %v2558 = vsub.f32 1.0, %v2557
  %v2559 = vmul.f32 %v2556, %v2558
  %v2560 = vadd.f32 %v2556, %v2559
  %vm2561 = vweird.f32 %v2555
  %vm2562 = vweird.f32 %v2556
  %vm2563 = vmor %vm2561, %vm2562
  %v2564 = vsel %vm2563, %v2556, %v2560
  %v2565 = vand.u32 2147483647, %v2555
  %vm2566 = vcmp.eq.f32.partialorder %v2565, 8.507059e+37
  %v2567 = vand.u32 %v2555, 2147483648
  %v2568 = vor.u32 1.1754944e-38, %v2567
  %v2569 = vsel %vm2566, %v2568, %v2564
  %v2570 = vmul.f32 1.0, %v2569
  %v2571 = vtanh.pop %v2531
  %v2572 = vxor.u32 %v2532, 2147483648
  %v2573 = vmul.f32 %v2572, 1.442695
  %v2574 = vpow.pop %v2573
  %v2575 = vadd.f32 %v2574, 1.0
  %v2576 = vrcp.pop %v2575
  %v2577 = vmul.f32 %v2575, %v2576
  %v2578 = vsub.f32 1.0, %v2577
  %v2579 = vmul.f32 %v2576, %v2578
  %v2580 = vadd.f32 %v2576, %v2579
  %vm2581 = vweird.f32 %v2575
  %vm2582 = vweird.f32 %v2576
  %vm2583 = vmor %vm2581, %vm2582
  %v2584 = vsel %vm2583, %v2576, %v2580
  %v2585 = vand.u32 2147483647, %v2575
  %vm2586 = vcmp.eq.f32.partialorder %v2585, 8.507059e+37
  %v2587 = vand.u32 %v2575, 2147483648
  %v2588 = vor.u32 1.1754944e-38, %v2587
  %v2589 = vsel %vm2586, %v2588, %v2584
  %v2590 = vmul.f32 1.0, %v2589
  %v2591 = vld [vmem:[#allocation3] sm:$0xff]
  %v2592 = vmul.f32 %v2570, %v2591
  %v2593 = vmul.f32 %v2551, %v2571
  %v2594 = vadd.f32 %v2592, %v2593
  %v2595 = vtanh.pop %v2594
  %v2596 = vmul.f32 %v2590, %v2595
  %2597 = vst [vmem:[#allocation3] sm:$0xff] %v2594
  %2598 = vst [vmem:[#allocation2] sm:$0xff] %v2596
  %s2599 = scalar_lea.vmem %s4, 56
  %2600 = vst [vmem:[%s2599] sm:$0xff] %v2596
  %s2601 = scalar_lea.vmem %s0, 256
  %v2602 = vld [vmem:[%s2601] sm:$0xff]
  %v2603 = vld [vmem:[%s2601 + $0x8] sm:$0xff]
  %v2604 = vld [vmem:[%s2601 + $0x10] sm:$0xff]
  %v2605 = vld [vmem:[%s2601 + $0x18] sm:$0xff]
  %v2606 = vld [vmem:[#allocation2] sm:$0xff]
  %v2607 = vpack.c.bf16 %v2606, %v2606
  %v2608 = vld [vmem:[%s1] sm:$0xff]
  %v2609 = vld [vmem:[%s1 + $0x8] sm:$0xff]
  %v2610 = vld [vmem:[%s1 + $0x10] sm:$0xff]
  %v2611 = vld [vmem:[%s1 + $0x18] sm:$0xff]
  %v2612 = vld [vmem:[%s1 + $0x20] sm:$0xff]
  %v2613 = vld [vmem:[%s1 + $0x28] sm:$0xff]
  %v2614 = vld [vmem:[%s1 + $0x30] sm:$0xff]
  %v2615 = vld [vmem:[%s1 + $0x38] sm:$0xff]
  %v2616 = vld [vmem:[%s1 + $0x40] sm:$0xff]
  %v2617 = vld [vmem:[%s1 + $0x48] sm:$0xff]
  %v2618 = vld [vmem:[%s1 + $0x50] sm:$0xff]
  %v2619 = vld [vmem:[%s1 + $0x58] sm:$0xff]
  %v2620 = vld [vmem:[%s1 + $0x60] sm:$0xff]
  %v2621 = vld [vmem:[%s1 + $0x68] sm:$0xff]
  %v2622 = vld [vmem:[%s1 + $0x70] sm:$0xff]
  %v2623 = vld [vmem:[%s1 + $0x78] sm:$0xff]
  %v2624 = vld [vmem:[%s1 + $0x80] sm:$0xff]
  %v2625 = vld [vmem:[%s1 + $0x88] sm:$0xff]
  %v2626 = vld [vmem:[%s1 + $0x90] sm:$0xff]
  %v2627 = vld [vmem:[%s1 + $0x98] sm:$0xff]
  %v2628 = vld [vmem:[%s1 + $0xa0] sm:$0xff]
  %v2629 = vld [vmem:[%s1 + $0xa8] sm:$0xff]
  %v2630 = vld [vmem:[%s1 + $0xb0] sm:$0xff]
  %v2631 = vld [vmem:[%s1 + $0xb8] sm:$0xff]
  %v2632 = vld [vmem:[%s1 + $0xc0] sm:$0xff]
  %v2633 = vld [vmem:[%s1 + $0xc8] sm:$0xff]
  %v2634 = vld [vmem:[%s1 + $0xd0] sm:$0xff]
  %v2635 = vld [vmem:[%s1 + $0xd8] sm:$0xff]
  %v2636 = vld [vmem:[%s1 + $0xe0] sm:$0xff]
  %v2637 = vld [vmem:[%s1 + $0xe8] sm:$0xff]
  %v2638 = vld [vmem:[%s1 + $0xf0] sm:$0xff]
  %v2639 = vld [vmem:[%s1 + $0xf8] sm:$0xff]
  %v2672 = vunpack.c.l.b16 %v2608
  %v2673 = vunpack.c.h.b16 %v2608
  %v2674 = vunpack.c.l.b16 %v2609
  %v2675 = vunpack.c.h.b16 %v2609
  %v2676 = vunpack.c.l.b16 %v2610
  %v2677 = vunpack.c.h.b16 %v2610
  %v2678 = vunpack.c.l.b16 %v2611
  %v2679 = vunpack.c.h.b16 %v2611
  %v2680 = vunpack.c.l.b16 %v2612
  %v2681 = vunpack.c.h.b16 %v2612
  %v2682 = vunpack.c.l.b16 %v2613
  %v2683 = vunpack.c.h.b16 %v2613
  %v2684 = vunpack.c.l.b16 %v2614
  %v2685 = vunpack.c.h.b16 %v2614
  %v2686 = vunpack.c.l.b16 %v2615
  %v2687 = vunpack.c.h.b16 %v2615
  %v2688 = vunpack.c.l.b16 %v2616
  %v2689 = vunpack.c.h.b16 %v2616
  %v2690 = vunpack.c.l.b16 %v2617
  %v2691 = vunpack.c.h.b16 %v2617
  %v2692 = vunpack.c.l.b16 %v2618
  %v2693 = vunpack.c.h.b16 %v2618
  %v2694 = vunpack.c.l.b16 %v2619
  %v2695 = vunpack.c.h.b16 %v2619
  %v2696 = vunpack.c.l.b16 %v2620
  %v2697 = vunpack.c.h.b16 %v2620
  %v2698 = vunpack.c.l.b16 %v2621
  %v2699 = vunpack.c.h.b16 %v2621
  %v2700 = vunpack.c.l.b16 %v2622
  %v2701 = vunpack.c.h.b16 %v2622
  %v2702 = vunpack.c.l.b16 %v2623
  %v2703 = vunpack.c.h.b16 %v2623
  %v2704 = vunpack.c.l.b16 %v2624
  %v2705 = vunpack.c.h.b16 %v2624
  %v2706 = vunpack.c.l.b16 %v2625
  %v2707 = vunpack.c.h.b16 %v2625
  %v2708 = vunpack.c.l.b16 %v2626
  %v2709 = vunpack.c.h.b16 %v2626
  %v2710 = vunpack.c.l.b16 %v2627
  %v2711 = vunpack.c.h.b16 %v2627
  %v2712 = vunpack.c.l.b16 %v2628
  %v2713 = vunpack.c.h.b16 %v2628
  %v2714 = vunpack.c.l.b16 %v2629
  %v2715 = vunpack.c.h.b16 %v2629
  %v2716 = vunpack.c.l.b16 %v2630
  %v2717 = vunpack.c.h.b16 %v2630
  %v2718 = vunpack.c.l.b16 %v2631
  %v2719 = vunpack.c.h.b16 %v2631
  %v2720 = vunpack.c.l.b16 %v2632
  %v2721 = vunpack.c.h.b16 %v2632
  %v2722 = vunpack.c.l.b16 %v2633
  %v2723 = vunpack.c.h.b16 %v2633
  %v2724 = vunpack.c.l.b16 %v2634
  %v2725 = vunpack.c.h.b16 %v2634
  %v2726 = vunpack.c.l.b16 %v2635
  %v2727 = vunpack.c.h.b16 %v2635
  %v2728 = vunpack.c.l.b16 %v2636
  %v2729 = vunpack.c.h.b16 %v2636
  %v2730 = vunpack.c.l.b16 %v2637
  %v2731 = vunpack.c.h.b16 %v2637
  %v2732 = vunpack.c.l.b16 %v2638
  %v2733 = vunpack.c.h.b16 %v2638
  %v2734 = vunpack.c.l.b16 %v2639
  %v2735 = vunpack.c.h.b16 %v2639
  %v2736 = vpack.c.b16 %v2676, %v2672
  %v2737 = vpack.c.b16 %v2677, %v2673
  %v2738 = vpack.c.b16 %v2678, %v2674
  %v2739 = vpack.c.b16 %v2679, %v2675
  %v2740 = vpack.c.b16 %v2684, %v2680
  %v2741 = vpack.c.b16 %v2685, %v2681
  %v2742 = vpack.c.b16 %v2686, %v2682
  %v2743 = vpack.c.b16 %v2687, %v2683
  %v2744 = vpack.c.b16 %v2692, %v2688
  %v2745 = vpack.c.b16 %v2693, %v2689
  %v2746 = vpack.c.b16 %v2694, %v2690
  %v2747 = vpack.c.b16 %v2695, %v2691
  %v2748 = vpack.c.b16 %v2700, %v2696
  %v2749 = vpack.c.b16 %v2701, %v2697
  %v2750 = vpack.c.b16 %v2702, %v2698
  %v2751 = vpack.c.b16 %v2703, %v2699
  %v2752 = vpack.c.b16 %v2708, %v2704
  %v2753 = vpack.c.b16 %v2709, %v2705
  %v2754 = vpack.c.b16 %v2710, %v2706
  %v2755 = vpack.c.b16 %v2711, %v2707
  %v2756 = vpack.c.b16 %v2716, %v2712
  %v2757 = vpack.c.b16 %v2717, %v2713
  %v2758 = vpack.c.b16 %v2718, %v2714
  %v2759 = vpack.c.b16 %v2719, %v2715
  %v2760 = vpack.c.b16 %v2724, %v2720
  %v2761 = vpack.c.b16 %v2725, %v2721
  %v2762 = vpack.c.b16 %v2726, %v2722
  %v2763 = vpack.c.b16 %v2727, %v2723
  %v2764 = vpack.c.b16 %v2732, %v2728
  %v2765 = vpack.c.b16 %v2733, %v2729
  %v2766 = vpack.c.b16 %v2734, %v2730
  %v2767 = vpack.c.b16 %v2735, %v2731
  %2800 = vmatpush.bf16.msra.mxu0 %v2764
  %2801 = vmatpush.bf16.msra.mxu0 %v2760
  %2802 = vmatpush.bf16.msra.mxu0 %v2756
  %2803 = vmatpush.bf16.msra.mxu0 %v2752
  %2804 = vmatpush.bf16.msra.mxu0 %v2748
  %2805 = vmatpush.bf16.msra.mxu0 %v2744
  %2806 = vmatpush.bf16.msra.mxu0 %v2740
  %2807 = vmatpush.bf16.msra.mxu0 %v2736
  %2808 = vmatmul.bf16.gmra.mxu0 %v2607
  %v2809 = vpop.f32.mrf.mxu0
  %v2810 = vadd.f32 0.0, %v2809
  %v2811 = vpop.f32.mrf.mxu0
  %2812 = vdwg.mxu0
  %2813 = vmatpush.bf16.msra.mxu0 %v2765
  %2814 = vmatpush.bf16.msra.mxu0 %v2761
  %2815 = vmatpush.bf16.msra.mxu0 %v2757
  %2816 = vmatpush.bf16.msra.mxu0 %v2753
  %2817 = vmatpush.bf16.msra.mxu0 %v2749
  %2818 = vmatpush.bf16.msra.mxu0 %v2745
  %2819 = vmatpush.bf16.msra.mxu0 %v2741
  %2820 = vmatpush.bf16.msra.mxu0 %v2737
  %2821 = vmatmul.bf16.gmra.mxu0 %v2607
  %v2822 = vpop.f32.mrf.mxu0
  %v2823 = vadd.f32 0.0, %v2822
  %v2824 = vpop.f32.mrf.mxu0
  %2825 = vdwg.mxu0
  %2826 = vmatpush.bf16.msra.mxu0 %v2766
  %2827 = vmatpush.bf16.msra.mxu0 %v2762
  %2828 = vmatpush.bf16.msra.mxu0 %v2758
  %2829 = vmatpush.bf16.msra.mxu0 %v2754
  %2830 = vmatpush.bf16.msra.mxu0 %v2750
  %2831 = vmatpush.bf16.msra.mxu0 %v2746
  %2832 = vmatpush.bf16.msra.mxu0 %v2742
  %2833 = vmatpush.bf16.msra.mxu0 %v2738
  %2834 = vmatmul.bf16.gmra.mxu0 %v2607
  %v2835 = vpop.f32.mrf.mxu0
  %v2836 = vadd.f32 0.0, %v2835
  %v2837 = vpop.f32.mrf.mxu0
  %2838 = vdwg.mxu0
  %2839 = vmatpush.bf16.msra.mxu0 %v2767
  %2840 = vmatpush.bf16.msra.mxu0 %v2763
  %2841 = vmatpush.bf16.msra.mxu0 %v2759
  %2842 = vmatpush.bf16.msra.mxu0 %v2755
  %2843 = vmatpush.bf16.msra.mxu0 %v2751
  %2844 = vmatpush.bf16.msra.mxu0 %v2747
  %2845 = vmatpush.bf16.msra.mxu0 %v2743
  %2846 = vmatpush.bf16.msra.mxu0 %v2739
  %2847 = vmatmul.bf16.gmra.mxu0 %v2607
  %v2848 = vpop.f32.mrf.mxu0
  %v2849 = vadd.f32 0.0, %v2848
  %v2850 = vpop.f32.mrf.mxu0
  %2851 = vdwg.mxu0
  %v2852 = vadd.f32 %v2602, %v2810
  %v2853 = vadd.f32 %v2603, %v2823
  %v2854 = vadd.f32 %v2604, %v2836
  %v2855 = vadd.f32 %v2605, %v2849
  %v2856 = vxor.u32 %v2852, 2147483648
  %v2857 = vmul.f32 %v2856, 1.442695
  %v2858 = vpow.pop %v2857
  %v2859 = vadd.f32 %v2858, 1.0
  %v2860 = vrcp.pop %v2859
  %v2861 = vmul.f32 %v2859, %v2860
  %v2862 = vsub.f32 1.0, %v2861
  %v2863 = vmul.f32 %v2860, %v2862
  %v2864 = vadd.f32 %v2860, %v2863
  %vm2865 = vweird.f32 %v2859
  %vm2866 = vweird.f32 %v2860
  %vm2867 = vmor %vm2865, %vm2866
  %v2868 = vsel %vm2867, %v2860, %v2864
  %v2869 = vand.u32 2147483647, %v2859
  %vm2870 = vcmp.eq.f32.partialorder %v2869, 8.507059e+37
  %v2871 = vand.u32 %v2859, 2147483648
  %v2872 = vor.u32 1.1754944e-38, %v2871
  %v2873 = vsel %vm2870, %v2872, %v2868
  %v2874 = vmul.f32 1.0, %v2873
  %v2875 = vxor.u32 %v2853, 2147483648
  %v2876 = vmul.f32 %v2875, 1.442695
  %v2877 = vpow.pop %v2876
  %v2878 = vadd.f32 %v2877, 1.0
  %v2879 = vrcp.pop %v2878
  %v2880 = vmul.f32 %v2878, %v2879
  %v2881 = vsub.f32 1.0, %v2880
  %v2882 = vmul.f32 %v2879, %v2881
  %v2883 = vadd.f32 %v2879, %v2882
  %vm2884 = vweird.f32 %v2878
  %vm2885 = vweird.f32 %v2879
  %vm2886 = vmor %vm2884, %vm2885
  %v2887 = vsel %vm2886, %v2879, %v2883
  %v2888 = vand.u32 2147483647, %v2878
  %vm2889 = vcmp.eq.f32.partialorder %v2888, 8.507059e+37
  %v2890 = vand.u32 %v2878, 2147483648
  %v2891 = vor.u32 1.1754944e-38, %v2890
  %v2892 = vsel %vm2889, %v2891, %v2887
  %v2893 = vmul.f32 1.0, %v2892
  %v2894 = vtanh.pop %v2854
  %v2895 = vxor.u32 %v2855, 2147483648
  %v2896 = vmul.f32 %v2895, 1.442695
  %v2897 = vpow.pop %v2896
  %v2898 = vadd.f32 %v2897, 1.0
  %v2899 = vrcp.pop %v2898
  %v2900 = vmul.f32 %v2898, %v2899
  %v2901 = vsub.f32 1.0, %v2900
  %v2902 = vmul.f32 %v2899, %v2901
  %v2903 = vadd.f32 %v2899, %v2902
  %vm2904 = vweird.f32 %v2898
  %vm2905 = vweird.f32 %v2899
  %vm2906 = vmor %vm2904, %vm2905
  %v2907 = vsel %vm2906, %v2899, %v2903
  %v2908 = vand.u32 2147483647, %v2898
  %vm2909 = vcmp.eq.f32.partialorder %v2908, 8.507059e+37
  %v2910 = vand.u32 %v2898, 2147483648
  %v2911 = vor.u32 1.1754944e-38, %v2910
  %v2912 = vsel %vm2909, %v2911, %v2907
  %v2913 = vmul.f32 1.0, %v2912
  %v2914 = vld [vmem:[#allocation3] sm:$0xff]
  %v2915 = vmul.f32 %v2893, %v2914
  %v2916 = vmul.f32 %v2874, %v2894
  %v2917 = vadd.f32 %v2915, %v2916
  %v2918 = vtanh.pop %v2917
  %v2919 = vmul.f32 %v2913, %v2918
  %2920 = vst [vmem:[#allocation3] sm:$0xff] %v2917
  %2921 = vst [vmem:[#allocation2] sm:$0xff] %v2919
  %s2922 = scalar_lea.vmem %s4, 64
  %2923 = vst [vmem:[%s2922] sm:$0xff] %v2919
  %2924 = vst [vmem:[#allocation2] sm:$0xff] 0.0
  %2925 = vst [vmem:[#allocation3] sm:$0xff] 0.0
  %v2926 = vld [vmem:[%s4] sm:$0xff]
  %v2927 = vpack.c.bf16 %v2926, %v2926
  %v2928 = vld [vmem:[%s2] sm:$0xff]
  %v2929 = vld [vmem:[%s2 + $0x8] sm:$0xff]
  %v2930 = vld [vmem:[%s2 + $0x10] sm:$0xff]
  %v2931 = vld [vmem:[%s2 + $0x18] sm:$0xff]
  %v2932 = vld [vmem:[%s2 + $0x20] sm:$0xff]
  %v2933 = vld [vmem:[%s2 + $0x28] sm:$0xff]
  %v2934 = vld [vmem:[%s2 + $0x30] sm:$0xff]
  %v2935 = vld [vmem:[%s2 + $0x38] sm:$0xff]
  %v2936 = vld [vmem:[%s2 + $0x40] sm:$0xff]
  %v2937 = vld [vmem:[%s2 + $0x48] sm:$0xff]
  %v2938 = vld [vmem:[%s2 + $0x50] sm:$0xff]
  %v2939 = vld [vmem:[%s2 + $0x58] sm:$0xff]
  %v2940 = vld [vmem:[%s2 + $0x60] sm:$0xff]
  %v2941 = vld [vmem:[%s2 + $0x68] sm:$0xff]
  %v2942 = vld [vmem:[%s2 + $0x70] sm:$0xff]
  %v2943 = vld [vmem:[%s2 + $0x78] sm:$0xff]
  %v2944 = vld [vmem:[%s2 + $0x80] sm:$0xff]
  %v2945 = vld [vmem:[%s2 + $0x88] sm:$0xff]
  %v2946 = vld [vmem:[%s2 + $0x90] sm:$0xff]
  %v2947 = vld [vmem:[%s2 + $0x98] sm:$0xff]
  %v2948 = vld [vmem:[%s2 + $0xa0] sm:$0xff]
  %v2949 = vld [vmem:[%s2 + $0xa8] sm:$0xff]
  %v2950 = vld [vmem:[%s2 + $0xb0] sm:$0xff]
  %v2951 = vld [vmem:[%s2 + $0xb8] sm:$0xff]
  %v2952 = vld [vmem:[%s2 + $0xc0] sm:$0xff]
  %v2953 = vld [vmem:[%s2 + $0xc8] sm:$0xff]
  %v2954 = vld [vmem:[%s2 + $0xd0] sm:$0xff]
  %v2955 = vld [vmem:[%s2 + $0xd8] sm:$0xff]
  %v2956 = vld [vmem:[%s2 + $0xe0] sm:$0xff]
  %v2957 = vld [vmem:[%s2 + $0xe8] sm:$0xff]
  %v2958 = vld [vmem:[%s2 + $0xf0] sm:$0xff]
  %v2959 = vld [vmem:[%s2 + $0xf8] sm:$0xff]
  %v2960 = vld [vmem:[%s3] sm:$0xf]
  %v2962 = vperm.slane %v2960, 0
  %v2963 = vperm.slane %v2960, 1
  %v2964 = vperm.slane %v2960, 2
  %v2965 = vperm.slane %v2960, 3
  %v3002 = vunpack.c.l.b16 %v2928
  %v3003 = vunpack.c.h.b16 %v2928
  %v3004 = vunpack.c.l.b16 %v2929
  %v3005 = vunpack.c.h.b16 %v2929
  %v3006 = vunpack.c.l.b16 %v2930
  %v3007 = vunpack.c.h.b16 %v2930
  %v3008 = vunpack.c.l.b16 %v2931
  %v3009 = vunpack.c.h.b16 %v2931
  %v3010 = vunpack.c.l.b16 %v2932
  %v3011 = vunpack.c.h.b16 %v2932
  %v3012 = vunpack.c.l.b16 %v2933
  %v3013 = vunpack.c.h.b16 %v2933
  %v3014 = vunpack.c.l.b16 %v2934
  %v3015 = vunpack.c.h.b16 %v2934
  %v3016 = vunpack.c.l.b16 %v2935
  %v3017 = vunpack.c.h.b16 %v2935
  %v3018 = vunpack.c.l.b16 %v2936
  %v3019 = vunpack.c.h.b16 %v2936
  %v3020 = vunpack.c.l.b16 %v2937
  %v3021 = vunpack.c.h.b16 %v2937
  %v3022 = vunpack.c.l.b16 %v2938
  %v3023 = vunpack.c.h.b16 %v2938
  %v3024 = vunpack.c.l.b16 %v2939
  %v3025 = vunpack.c.h.b16 %v2939
  %v3026 = vunpack.c.l.b16 %v2940
  %v3027 = vunpack.c.h.b16 %v2940
  %v3028 = vunpack.c.l.b16 %v2941
  %v3029 = vunpack.c.h.b16 %v2941
  %v3030 = vunpack.c.l.b16 %v2942
  %v3031 = vunpack.c.h.b16 %v2942
  %v3032 = vunpack.c.l.b16 %v2943
  %v3033 = vunpack.c.h.b16 %v2943
  %v3034 = vunpack.c.l.b16 %v2944
  %v3035 = vunpack.c.h.b16 %v2944
  %v3036 = vunpack.c.l.b16 %v2945
  %v3037 = vunpack.c.h.b16 %v2945
  %v3038 = vunpack.c.l.b16 %v2946
  %v3039 = vunpack.c.h.b16 %v2946
  %v3040 = vunpack.c.l.b16 %v2947
  %v3041 = vunpack.c.h.b16 %v2947
  %v3042 = vunpack.c.l.b16 %v2948
  %v3043 = vunpack.c.h.b16 %v2948
  %v3044 = vunpack.c.l.b16 %v2949
  %v3045 = vunpack.c.h.b16 %v2949
  %v3046 = vunpack.c.l.b16 %v2950
  %v3047 = vunpack.c.h.b16 %v2950
  %v3048 = vunpack.c.l.b16 %v2951
  %v3049 = vunpack.c.h.b16 %v2951
  %v3050 = vunpack.c.l.b16 %v2952
  %v3051 = vunpack.c.h.b16 %v2952
  %v3052 = vunpack.c.l.b16 %v2953
  %v3053 = vunpack.c.h.b16 %v2953
  %v3054 = vunpack.c.l.b16 %v2954
  %v3055 = vunpack.c.h.b16 %v2954
  %v3056 = vunpack.c.l.b16 %v2955
  %v3057 = vunpack.c.h.b16 %v2955
  %v3058 = vunpack.c.l.b16 %v2956
  %v3059 = vunpack.c.h.b16 %v2956
  %v3060 = vunpack.c.l.b16 %v2957
  %v3061 = vunpack.c.h.b16 %v2957
  %v3062 = vunpack.c.l.b16 %v2958
  %v3063 = vunpack.c.h.b16 %v2958
  %v3064 = vunpack.c.l.b16 %v2959
  %v3065 = vunpack.c.h.b16 %v2959
  %v3066 = vpack.c.b16 %v3006, %v3002
  %v3067 = vpack.c.b16 %v3007, %v3003
  %v3068 = vpack.c.b16 %v3008, %v3004
  %v3069 = vpack.c.b16 %v3009, %v3005
  %v3070 = vpack.c.b16 %v3014, %v3010
  %v3071 = vpack.c.b16 %v3015, %v3011
  %v3072 = vpack.c.b16 %v3016, %v3012
  %v3073 = vpack.c.b16 %v3017, %v3013
  %v3074 = vpack.c.b16 %v3022, %v3018
  %v3075 = vpack.c.b16 %v3023, %v3019
  %v3076 = vpack.c.b16 %v3024, %v3020
  %v3077 = vpack.c.b16 %v3025, %v3021
  %v3078 = vpack.c.b16 %v3030, %v3026
  %v3079 = vpack.c.b16 %v3031, %v3027
  %v3080 = vpack.c.b16 %v3032, %v3028
  %v3081 = vpack.c.b16 %v3033, %v3029
  %v3082 = vpack.c.b16 %v3038, %v3034
  %v3083 = vpack.c.b16 %v3039, %v3035
  %v3084 = vpack.c.b16 %v3040, %v3036
  %v3085 = vpack.c.b16 %v3041, %v3037
  %v3086 = vpack.c.b16 %v3046, %v3042
  %v3087 = vpack.c.b16 %v3047, %v3043
  %v3088 = vpack.c.b16 %v3048, %v3044
  %v3089 = vpack.c.b16 %v3049, %v3045
  %v3090 = vpack.c.b16 %v3054, %v3050
  %v3091 = vpack.c.b16 %v3055, %v3051
  %v3092 = vpack.c.b16 %v3056, %v3052
  %v3093 = vpack.c.b16 %v3057, %v3053
  %v3094 = vpack.c.b16 %v3062, %v3058
  %v3095 = vpack.c.b16 %v3063, %v3059
  %v3096 = vpack.c.b16 %v3064, %v3060
  %v3097 = vpack.c.b16 %v3065, %v3061
  %3130 = vmatpush.bf16.msra.mxu0 %v3094
  %3131 = vmatpush.bf16.msra.mxu0 %v3090
  %3132 = vmatpush.bf16.msra.mxu0 %v3086
  %3133 = vmatpush.bf16.msra.mxu0 %v3082
  %3134 = vmatpush.bf16.msra.mxu0 %v3078
  %3135 = vmatpush.bf16.msra.mxu0 %v3074
  %3136 = vmatpush.bf16.msra.mxu0 %v3070
  %3137 = vmatpush.bf16.msra.mxu0 %v3066
  %3138 = vmatmul.bf16.gmra.mxu0 %v2927
  %v3139 = vpop.f32.mrf.mxu0
  %v3140 = vadd.f32 %v2962, %v3139
  %v3141 = vpop.f32.mrf.mxu0
  %3142 = vdwg.mxu0
  %3143 = vmatpush.bf16.msra.mxu0 %v3095
  %3144 = vmatpush.bf16.msra.mxu0 %v3091
  %3145 = vmatpush.bf16.msra.mxu0 %v3087
  %3146 = vmatpush.bf16.msra.mxu0 %v3083
  %3147 = vmatpush.bf16.msra.mxu0 %v3079
  %3148 = vmatpush.bf16.msra.mxu0 %v3075
  %3149 = vmatpush.bf16.msra.mxu0 %v3071
  %3150 = vmatpush.bf16.msra.mxu0 %v3067
  %3151 = vmatmul.bf16.gmra.mxu0 %v2927
  %v3152 = vpop.f32.mrf.mxu0
  %v3153 = vadd.f32 %v2963, %v3152
  %v3154 = vpop.f32.mrf.mxu0
  %3155 = vdwg.mxu0
  %3156 = vmatpush.bf16.msra.mxu0 %v3096
  %3157 = vmatpush.bf16.msra.mxu0 %v3092
  %3158 = vmatpush.bf16.msra.mxu0 %v3088
  %3159 = vmatpush.bf16.msra.mxu0 %v3084
  %3160 = vmatpush.bf16.msra.mxu0 %v3080
  %3161 = vmatpush.bf16.msra.mxu0 %v3076
  %3162 = vmatpush.bf16.msra.mxu0 %v3072
  %3163 = vmatpush.bf16.msra.mxu0 %v3068
  %3164 = vmatmul.bf16.gmra.mxu0 %v2927
  %v3165 = vpop.f32.mrf.mxu0
  %v3166 = vadd.f32 %v2964, %v3165
  %v3167 = vpop.f32.mrf.mxu0
  %3168 = vdwg.mxu0
  %3169 = vmatpush.bf16.msra.mxu0 %v3097
  %3170 = vmatpush.bf16.msra.mxu0 %v3093
  %3171 = vmatpush.bf16.msra.mxu0 %v3089
  %3172 = vmatpush.bf16.msra.mxu0 %v3085
  %3173 = vmatpush.bf16.msra.mxu0 %v3081
  %3174 = vmatpush.bf16.msra.mxu0 %v3077
  %3175 = vmatpush.bf16.msra.mxu0 %v3073
  %3176 = vmatpush.bf16.msra.mxu0 %v3069
  %3177 = vmatmul.bf16.gmra.mxu0 %v2927
  %v3178 = vpop.f32.mrf.mxu0
  %v3179 = vadd.f32 %v2965, %v3178
  %v3180 = vpop.f32.mrf.mxu0
  %3181 = vdwg.mxu0
  %v3182 = vld [vmem:[#allocation2] sm:$0xff]
  %v3183 = vpack.c.bf16 %v3182, %v3182
  %s3184 = scalar_lea.vmem %s1, 256
  %v3185 = vld [vmem:[%s3184] sm:$0xff]
  %v3186 = vld [vmem:[%s3184 + $0x8] sm:$0xff]
  %v3187 = vld [vmem:[%s3184 + $0x10] sm:$0xff]
  %v3188 = vld [vmem:[%s3184 + $0x18] sm:$0xff]
  %v3189 = vld [vmem:[%s3184 + $0x20] sm:$0xff]
  %v3190 = vld [vmem:[%s3184 + $0x28] sm:$0xff]
  %v3191 = vld [vmem:[%s3184 + $0x30] sm:$0xff]
  %v3192 = vld [vmem:[%s3184 + $0x38] sm:$0xff]
  %v3193 = vld [vmem:[%s3184 + $0x40] sm:$0xff]
  %v3194 = vld [vmem:[%s3184 + $0x48] sm:$0xff]
  %v3195 = vld [vmem:[%s3184 + $0x50] sm:$0xff]
  %v3196 = vld [vmem:[%s3184 + $0x58] sm:$0xff]
  %v3197 = vld [vmem:[%s3184 + $0x60] sm:$0xff]
  %v3198 = vld [vmem:[%s3184 + $0x68] sm:$0xff]
  %v3199 = vld [vmem:[%s3184 + $0x70] sm:$0xff]
  %v3200 = vld [vmem:[%s3184 + $0x78] sm:$0xff]
  %v3201 = vld [vmem:[%s3184 + $0x80] sm:$0xff]
  %v3202 = vld [vmem:[%s3184 + $0x88] sm:$0xff]
  %v3203 = vld [vmem:[%s3184 + $0x90] sm:$0xff]
  %v3204 = vld [vmem:[%s3184 + $0x98] sm:$0xff]
  %v3205 = vld [vmem:[%s3184 + $0xa0] sm:$0xff]
  %v3206 = vld [vmem:[%s3184 + $0xa8] sm:$0xff]
  %v3207 = vld [vmem:[%s3184 + $0xb0] sm:$0xff]
  %v3208 = vld [vmem:[%s3184 + $0xb8] sm:$0xff]
  %v3209 = vld [vmem:[%s3184 + $0xc0] sm:$0xff]
  %v3210 = vld [vmem:[%s3184 + $0xc8] sm:$0xff]
  %v3211 = vld [vmem:[%s3184 + $0xd0] sm:$0xff]
  %v3212 = vld [vmem:[%s3184 + $0xd8] sm:$0xff]
  %v3213 = vld [vmem:[%s3184 + $0xe0] sm:$0xff]
  %v3214 = vld [vmem:[%s3184 + $0xe8] sm:$0xff]
  %v3215 = vld [vmem:[%s3184 + $0xf0] sm:$0xff]
  %v3216 = vld [vmem:[%s3184 + $0xf8] sm:$0xff]
  %v3249 = vunpack.c.l.b16 %v3185
  %v3250 = vunpack.c.h.b16 %v3185
  %v3251 = vunpack.c.l.b16 %v3186
  %v3252 = vunpack.c.h.b16 %v3186
  %v3253 = vunpack.c.l.b16 %v3187
  %v3254 = vunpack.c.h.b16 %v3187
  %v3255 = vunpack.c.l.b16 %v3188
  %v3256 = vunpack.c.h.b16 %v3188
  %v3257 = vunpack.c.l.b16 %v3189
  %v3258 = vunpack.c.h.b16 %v3189
  %v3259 = vunpack.c.l.b16 %v3190
  %v3260 = vunpack.c.h.b16 %v3190
  %v3261 = vunpack.c.l.b16 %v3191
  %v3262 = vunpack.c.h.b16 %v3191
  %v3263 = vunpack.c.l.b16 %v3192
  %v3264 = vunpack.c.h.b16 %v3192
  %v3265 = vunpack.c.l.b16 %v3193
  %v3266 = vunpack.c.h.b16 %v3193
  %v3267 = vunpack.c.l.b16 %v3194
  %v3268 = vunpack.c.h.b16 %v3194
  %v3269 = vunpack.c.l.b16 %v3195
  %v3270 = vunpack.c.h.b16 %v3195
  %v3271 = vunpack.c.l.b16 %v3196
  %v3272 = vunpack.c.h.b16 %v3196
  %v3273 = vunpack.c.l.b16 %v3197
  %v3274 = vunpack.c.h.b16 %v3197
  %v3275 = vunpack.c.l.b16 %v3198
  %v3276 = vunpack.c.h.b16 %v3198
  %v3277 = vunpack.c.l.b16 %v3199
  %v3278 = vunpack.c.h.b16 %v3199
  %v3279 = vunpack.c.l.b16 %v3200
  %v3280 = vunpack.c.h.b16 %v3200
  %v3281 = vunpack.c.l.b16 %v3201
  %v3282 = vunpack.c.h.b16 %v3201
  %v3283 = vunpack.c.l.b16 %v3202
  %v3284 = vunpack.c.h.b16 %v3202
  %v3285 = vunpack.c.l.b16 %v3203
  %v3286 = vunpack.c.h.b16 %v3203
  %v3287 = vunpack.c.l.b16 %v3204
  %v3288 = vunpack.c.h.b16 %v3204
  %v3289 = vunpack.c.l.b16 %v3205
  %v3290 = vunpack.c.h.b16 %v3205
  %v3291 = vunpack.c.l.b16 %v3206
  %v3292 = vunpack.c.h.b16 %v3206
  %v3293 = vunpack.c.l.b16 %v3207
  %v3294 = vunpack.c.h.b16 %v3207
  %v3295 = vunpack.c.l.b16 %v3208
  %v3296 = vunpack.c.h.b16 %v3208
  %v3297 = vunpack.c.l.b16 %v3209
  %v3298 = vunpack.c.h.b16 %v3209
  %v3299 = vunpack.c.l.b16 %v3210
  %v3300 = vunpack.c.h.b16 %v3210
  %v3301 = vunpack.c.l.b16 %v3211
  %v3302 = vunpack.c.h.b16 %v3211
  %v3303 = vunpack.c.l.b16 %v3212
  %v3304 = vunpack.c.h.b16 %v3212
  %v3305 = vunpack.c.l.b16 %v3213
  %v3306 = vunpack.c.h.b16 %v3213
  %v3307 = vunpack.c.l.b16 %v3214
  %v3308 = vunpack.c.h.b16 %v3214
  %v3309 = vunpack.c.l.b16 %v3215
  %v3310 = vunpack.c.h.b16 %v3215
  %v3311 = vunpack.c.l.b16 %v3216
  %v3312 = vunpack.c.h.b16 %v3216
  %v3313 = vpack.c.b16 %v3253, %v3249
  %v3314 = vpack.c.b16 %v3254, %v3250
  %v3315 = vpack.c.b16 %v3255, %v3251
  %v3316 = vpack.c.b16 %v3256, %v3252
  %v3317 = vpack.c.b16 %v3261, %v3257
  %v3318 = vpack.c.b16 %v3262, %v3258
  %v3319 = vpack.c.b16 %v3263, %v3259
  %v3320 = vpack.c.b16 %v3264, %v3260
  %v3321 = vpack.c.b16 %v3269, %v3265
  %v3322 = vpack.c.b16 %v3270, %v3266
  %v3323 = vpack.c.b16 %v3271, %v3267
  %v3324 = vpack.c.b16 %v3272, %v3268
  %v3325 = vpack.c.b16 %v3277, %v3273
  %v3326 = vpack.c.b16 %v3278, %v3274
  %v3327 = vpack.c.b16 %v3279, %v3275
  %v3328 = vpack.c.b16 %v3280, %v3276
  %v3329 = vpack.c.b16 %v3285, %v3281
  %v3330 = vpack.c.b16 %v3286, %v3282
  %v3331 = vpack.c.b16 %v3287, %v3283
  %v3332 = vpack.c.b16 %v3288, %v3284
  %v3333 = vpack.c.b16 %v3293, %v3289
  %v3334 = vpack.c.b16 %v3294, %v3290
  %v3335 = vpack.c.b16 %v3295, %v3291
  %v3336 = vpack.c.b16 %v3296, %v3292
  %v3337 = vpack.c.b16 %v3301, %v3297
  %v3338 = vpack.c.b16 %v3302, %v3298
  %v3339 = vpack.c.b16 %v3303, %v3299
  %v3340 = vpack.c.b16 %v3304, %v3300
  %v3341 = vpack.c.b16 %v3309, %v3305
  %v3342 = vpack.c.b16 %v3310, %v3306
  %v3343 = vpack.c.b16 %v3311, %v3307
  %v3344 = vpack.c.b16 %v3312, %v3308
  %3377 = vmatpush.bf16.msra.mxu0 %v3341
  %3378 = vmatpush.bf16.msra.mxu0 %v3337
  %3379 = vmatpush.bf16.msra.mxu0 %v3333
  %3380 = vmatpush.bf16.msra.mxu0 %v3329
  %3381 = vmatpush.bf16.msra.mxu0 %v3325
  %3382 = vmatpush.bf16.msra.mxu0 %v3321
  %3383 = vmatpush.bf16.msra.mxu0 %v3317
  %3384 = vmatpush.bf16.msra.mxu0 %v3313
  %3385 = vmatmul.bf16.gmra.mxu0 %v3183
  %v3386 = vpop.f32.mrf.mxu0
  %v3387 = vadd.f32 0.0, %v3386
  %v3388 = vpop.f32.mrf.mxu0
  %3389 = vdwg.mxu0
  %3390 = vmatpush.bf16.msra.mxu0 %v3342
  %3391 = vmatpush.bf16.msra.mxu0 %v3338
  %3392 = vmatpush.bf16.msra.mxu0 %v3334
  %3393 = vmatpush.bf16.msra.mxu0 %v3330
  %3394 = vmatpush.bf16.msra.mxu0 %v3326
  %3395 = vmatpush.bf16.msra.mxu0 %v3322
  %3396 = vmatpush.bf16.msra.mxu0 %v3318
  %3397 = vmatpush.bf16.msra.mxu0 %v3314
  %3398 = vmatmul.bf16.gmra.mxu0 %v3183
  %v3399 = vpop.f32.mrf.mxu0
  %v3400 = vadd.f32 0.0, %v3399
  %v3401 = vpop.f32.mrf.mxu0
  %3402 = vdwg.mxu0
  %3403 = vmatpush.bf16.msra.mxu0 %v3343
  %3404 = vmatpush.bf16.msra.mxu0 %v3339
  %3405 = vmatpush.bf16.msra.mxu0 %v3335
  %3406 = vmatpush.bf16.msra.mxu0 %v3331
  %3407 = vmatpush.bf16.msra.mxu0 %v3327
  %3408 = vmatpush.bf16.msra.mxu0 %v3323
  %3409 = vmatpush.bf16.msra.mxu0 %v3319
  %3410 = vmatpush.bf16.msra.mxu0 %v3315
  %3411 = vmatmul.bf16.gmra.mxu0 %v3183
  %v3412 = vpop.f32.mrf.mxu0
  %v3413 = vadd.f32 0.0, %v3412
  %v3414 = vpop.f32.mrf.mxu0
  %3415 = vdwg.mxu0
  %3416 = vmatpush.bf16.msra.mxu0 %v3344
  %3417 = vmatpush.bf16.msra.mxu0 %v3340
  %3418 = vmatpush.bf16.msra.mxu0 %v3336
  %3419 = vmatpush.bf16.msra.mxu0 %v3332
  %3420 = vmatpush.bf16.msra.mxu0 %v3328
  %3421 = vmatpush.bf16.msra.mxu0 %v3324
  %3422 = vmatpush.bf16.msra.mxu0 %v3320
  %3423 = vmatpush.bf16.msra.mxu0 %v3316
  %3424 = vmatmul.bf16.gmra.mxu0 %v3183
  %v3425 = vpop.f32.mrf.mxu0
  %v3426 = vadd.f32 0.0, %v3425
  %v3427 = vpop.f32.mrf.mxu0
  %3428 = vdwg.mxu0
  %v3429 = vadd.f32 %v3140, %v3387
  %v3430 = vadd.f32 %v3153, %v3400
  %v3431 = vadd.f32 %v3166, %v3413
  %v3432 = vadd.f32 %v3179, %v3426
  %v3433 = vxor.u32 %v3429, 2147483648
  %v3434 = vmul.f32 %v3433, 1.442695
  %v3435 = vpow.pop %v3434
  %v3436 = vadd.f32 %v3435, 1.0
  %v3437 = vrcp.pop %v3436
  %v3438 = vmul.f32 %v3436, %v3437
  %v3439 = vsub.f32 1.0, %v3438
  %v3440 = vmul.f32 %v3437, %v3439
  %v3441 = vadd.f32 %v3437, %v3440
  %vm3442 = vweird.f32 %v3436
  %vm3443 = vweird.f32 %v3437
  %vm3444 = vmor %vm3442, %vm3443
  %v3445 = vsel %vm3444, %v3437, %v3441
  %v3446 = vand.u32 2147483647, %v3436
  %vm3447 = vcmp.eq.f32.partialorder %v3446, 8.507059e+37
  %v3448 = vand.u32 %v3436, 2147483648
  %v3449 = vor.u32 1.1754944e-38, %v3448
  %v3450 = vsel %vm3447, %v3449, %v3445
  %v3451 = vmul.f32 1.0, %v3450
  %v3452 = vxor.u32 %v3430, 2147483648
  %v3453 = vmul.f32 %v3452, 1.442695
  %v3454 = vpow.pop %v3453
  %v3455 = vadd.f32 %v3454, 1.0
  %v3456 = vrcp.pop %v3455
  %v3457 = vmul.f32 %v3455, %v3456
  %v3458 = vsub.f32 1.0, %v3457
  %v3459 = vmul.f32 %v3456, %v3458
  %v3460 = vadd.f32 %v3456, %v3459
  %vm3461 = vweird.f32 %v3455
  %vm3462 = vweird.f32 %v3456
  %vm3463 = vmor %vm3461, %vm3462
  %v3464 = vsel %vm3463, %v3456, %v3460
  %v3465 = vand.u32 2147483647, %v3455
  %vm3466 = vcmp.eq.f32.partialorder %v3465, 8.507059e+37
  %v3467 = vand.u32 %v3455, 2147483648
  %v3468 = vor.u32 1.1754944e-38, %v3467
  %v3469 = vsel %vm3466, %v3468, %v3464
  %v3470 = vmul.f32 1.0, %v3469
  %v3471 = vtanh.pop %v3431
  %v3472 = vxor.u32 %v3432, 2147483648
  %v3473 = vmul.f32 %v3472, 1.442695
  %v3474 = vpow.pop %v3473
  %v3475 = vadd.f32 %v3474, 1.0
  %v3476 = vrcp.pop %v3475
  %v3477 = vmul.f32 %v3475, %v3476
  %v3478 = vsub.f32 1.0, %v3477
  %v3479 = vmul.f32 %v3476, %v3478
  %v3480 = vadd.f32 %v3476, %v3479
  %vm3481 = vweird.f32 %v3475
  %vm3482 = vweird.f32 %v3476
  %vm3483 = vmor %vm3481, %vm3482
  %v3484 = vsel %vm3483, %v3476, %v3480
  %v3485 = vand.u32 2147483647, %v3475
  %vm3486 = vcmp.eq.f32.partialorder %v3485, 8.507059e+37
  %v3487 = vand.u32 %v3475, 2147483648
  %v3488 = vor.u32 1.1754944e-38, %v3487
  %v3489 = vsel %vm3486, %v3488, %v3484
  %v3490 = vmul.f32 1.0, %v3489
  %v3491 = vld [vmem:[#allocation3] sm:$0xff]
  %v3492 = vmul.f32 %v3470, %v3491
  %v3493 = vmul.f32 %v3451, %v3471
  %v3494 = vadd.f32 %v3492, %v3493
  %v3495 = vtanh.pop %v3494
  %v3496 = vmul.f32 %v3490, %v3495
  %3497 = vst [vmem:[#allocation3] sm:$0xff] %v3494
  %3498 = vst [vmem:[#allocation2] sm:$0xff] %v3496
  %3499 = vst [vmem:[%s4] sm:$0xff] %v3496
  %v3500 = vld [vmem:[%s661] sm:$0xff]
  %v3501 = vpack.c.bf16 %v3500, %v3500
  %v3502 = vld [vmem:[%s2] sm:$0xff]
  %v3503 = vld [vmem:[%s2 + $0x8] sm:$0xff]
  %v3504 = vld [vmem:[%s2 + $0x10] sm:$0xff]
  %v3505 = vld [vmem:[%s2 + $0x18] sm:$0xff]
  %v3506 = vld [vmem:[%s2 + $0x20] sm:$0xff]
  %v3507 = vld [vmem:[%s2 + $0x28] sm:$0xff]
  %v3508 = vld [vmem:[%s2 + $0x30] sm:$0xff]
  %v3509 = vld [vmem:[%s2 + $0x38] sm:$0xff]
  %v3510 = vld [vmem:[%s2 + $0x40] sm:$0xff]
  %v3511 = vld [vmem:[%s2 + $0x48] sm:$0xff]
  %v3512 = vld [vmem:[%s2 + $0x50] sm:$0xff]
  %v3513 = vld [vmem:[%s2 + $0x58] sm:$0xff]
  %v3514 = vld [vmem:[%s2 + $0x60] sm:$0xff]
  %v3515 = vld [vmem:[%s2 + $0x68] sm:$0xff]
  %v3516 = vld [vmem:[%s2 + $0x70] sm:$0xff]
  %v3517 = vld [vmem:[%s2 + $0x78] sm:$0xff]
  %v3518 = vld [vmem:[%s2 + $0x80] sm:$0xff]
  %v3519 = vld [vmem:[%s2 + $0x88] sm:$0xff]
  %v3520 = vld [vmem:[%s2 + $0x90] sm:$0xff]
  %v3521 = vld [vmem:[%s2 + $0x98] sm:$0xff]
  %v3522 = vld [vmem:[%s2 + $0xa0] sm:$0xff]
  %v3523 = vld [vmem:[%s2 + $0xa8] sm:$0xff]
  %v3524 = vld [vmem:[%s2 + $0xb0] sm:$0xff]
  %v3525 = vld [vmem:[%s2 + $0xb8] sm:$0xff]
  %v3526 = vld [vmem:[%s2 + $0xc0] sm:$0xff]
  %v3527 = vld [vmem:[%s2 + $0xc8] sm:$0xff]
  %v3528 = vld [vmem:[%s2 + $0xd0] sm:$0xff]
  %v3529 = vld [vmem:[%s2 + $0xd8] sm:$0xff]
  %v3530 = vld [vmem:[%s2 + $0xe0] sm:$0xff]
  %v3531 = vld [vmem:[%s2 + $0xe8] sm:$0xff]
  %v3532 = vld [vmem:[%s2 + $0xf0] sm:$0xff]
  %v3533 = vld [vmem:[%s2 + $0xf8] sm:$0xff]
  %v3534 = vld [vmem:[%s3] sm:$0xf]
  %v3536 = vperm.slane %v3534, 0
  %v3537 = vperm.slane %v3534, 1
  %v3538 = vperm.slane %v3534, 2
  %v3539 = vperm.slane %v3534, 3
  %v3576 = vunpack.c.l.b16 %v3502
  %v3577 = vunpack.c.h.b16 %v3502
  %v3578 = vunpack.c.l.b16 %v3503
  %v3579 = vunpack.c.h.b16 %v3503
  %v3580 = vunpack.c.l.b16 %v3504
  %v3581 = vunpack.c.h.b16 %v3504
  %v3582 = vunpack.c.l.b16 %v3505
  %v3583 = vunpack.c.h.b16 %v3505
  %v3584 = vunpack.c.l.b16 %v3506
  %v3585 = vunpack.c.h.b16 %v3506
  %v3586 = vunpack.c.l.b16 %v3507
  %v3587 = vunpack.c.h.b16 %v3507
  %v3588 = vunpack.c.l.b16 %v3508
  %v3589 = vunpack.c.h.b16 %v3508
  %v3590 = vunpack.c.l.b16 %v3509
  %v3591 = vunpack.c.h.b16 %v3509
  %v3592 = vunpack.c.l.b16 %v3510
  %v3593 = vunpack.c.h.b16 %v3510
  %v3594 = vunpack.c.l.b16 %v3511
  %v3595 = vunpack.c.h.b16 %v3511
  %v3596 = vunpack.c.l.b16 %v3512
  %v3597 = vunpack.c.h.b16 %v3512
  %v3598 = vunpack.c.l.b16 %v3513
  %v3599 = vunpack.c.h.b16 %v3513
  %v3600 = vunpack.c.l.b16 %v3514
  %v3601 = vunpack.c.h.b16 %v3514
  %v3602 = vunpack.c.l.b16 %v3515
  %v3603 = vunpack.c.h.b16 %v3515
  %v3604 = vunpack.c.l.b16 %v3516
  %v3605 = vunpack.c.h.b16 %v3516
  %v3606 = vunpack.c.l.b16 %v3517
  %v3607 = vunpack.c.h.b16 %v3517
  %v3608 = vunpack.c.l.b16 %v3518
  %v3609 = vunpack.c.h.b16 %v3518
  %v3610 = vunpack.c.l.b16 %v3519
  %v3611 = vunpack.c.h.b16 %v3519
  %v3612 = vunpack.c.l.b16 %v3520
  %v3613 = vunpack.c.h.b16 %v3520
  %v3614 = vunpack.c.l.b16 %v3521
  %v3615 = vunpack.c.h.b16 %v3521
  %v3616 = vunpack.c.l.b16 %v3522
  %v3617 = vunpack.c.h.b16 %v3522
  %v3618 = vunpack.c.l.b16 %v3523
  %v3619 = vunpack.c.h.b16 %v3523
  %v3620 = vunpack.c.l.b16 %v3524
  %v3621 = vunpack.c.h.b16 %v3524
  %v3622 = vunpack.c.l.b16 %v3525
  %v3623 = vunpack.c.h.b16 %v3525
  %v3624 = vunpack.c.l.b16 %v3526
  %v3625 = vunpack.c.h.b16 %v3526
  %v3626 = vunpack.c.l.b16 %v3527
  %v3627 = vunpack.c.h.b16 %v3527
  %v3628 = vunpack.c.l.b16 %v3528
  %v3629 = vunpack.c.h.b16 %v3528
  %v3630 = vunpack.c.l.b16 %v3529
  %v3631 = vunpack.c.h.b16 %v3529
  %v3632 = vunpack.c.l.b16 %v3530
  %v3633 = vunpack.c.h.b16 %v3530
  %v3634 = vunpack.c.l.b16 %v3531
  %v3635 = vunpack.c.h.b16 %v3531
  %v3636 = vunpack.c.l.b16 %v3532
  %v3637 = vunpack.c.h.b16 %v3532
  %v3638 = vunpack.c.l.b16 %v3533
  %v3639 = vunpack.c.h.b16 %v3533
  %v3640 = vpack.c.b16 %v3580, %v3576
  %v3641 = vpack.c.b16 %v3581, %v3577
  %v3642 = vpack.c.b16 %v3582, %v3578
  %v3643 = vpack.c.b16 %v3583, %v3579
  %v3644 = vpack.c.b16 %v3588, %v3584
  %v3645 = vpack.c.b16 %v3589, %v3585
  %v3646 = vpack.c.b16 %v3590, %v3586
  %v3647 = vpack.c.b16 %v3591, %v3587
  %v3648 = vpack.c.b16 %v3596, %v3592
  %v3649 = vpack.c.b16 %v3597, %v3593
  %v3650 = vpack.c.b16 %v3598, %v3594
  %v3651 = vpack.c.b16 %v3599, %v3595
  %v3652 = vpack.c.b16 %v3604, %v3600
  %v3653 = vpack.c.b16 %v3605, %v3601
  %v3654 = vpack.c.b16 %v3606, %v3602
  %v3655 = vpack.c.b16 %v3607, %v3603
  %v3656 = vpack.c.b16 %v3612, %v3608
  %v3657 = vpack.c.b16 %v3613, %v3609
  %v3658 = vpack.c.b16 %v3614, %v3610
  %v3659 = vpack.c.b16 %v3615, %v3611
  %v3660 = vpack.c.b16 %v3620, %v3616
  %v3661 = vpack.c.b16 %v3621, %v3617
  %v3662 = vpack.c.b16 %v3622, %v3618
  %v3663 = vpack.c.b16 %v3623, %v3619
  %v3664 = vpack.c.b16 %v3628, %v3624
  %v3665 = vpack.c.b16 %v3629, %v3625
  %v3666 = vpack.c.b16 %v3630, %v3626
  %v3667 = vpack.c.b16 %v3631, %v3627
  %v3668 = vpack.c.b16 %v3636, %v3632
  %v3669 = vpack.c.b16 %v3637, %v3633
  %v3670 = vpack.c.b16 %v3638, %v3634
  %v3671 = vpack.c.b16 %v3639, %v3635
  %3704 = vmatpush.bf16.msra.mxu0 %v3668
  %3705 = vmatpush.bf16.msra.mxu0 %v3664
  %3706 = vmatpush.bf16.msra.mxu0 %v3660
  %3707 = vmatpush.bf16.msra.mxu0 %v3656
  %3708 = vmatpush.bf16.msra.mxu0 %v3652
  %3709 = vmatpush.bf16.msra.mxu0 %v3648
  %3710 = vmatpush.bf16.msra.mxu0 %v3644
  %3711 = vmatpush.bf16.msra.mxu0 %v3640
  %3712 = vmatmul.bf16.gmra.mxu0 %v3501
  %v3713 = vpop.f32.mrf.mxu0
  %v3714 = vadd.f32 %v3536, %v3713
  %v3715 = vpop.f32.mrf.mxu0
  %3716 = vdwg.mxu0
  %3717 = vmatpush.bf16.msra.mxu0 %v3669
  %3718 = vmatpush.bf16.msra.mxu0 %v3665
  %3719 = vmatpush.bf16.msra.mxu0 %v3661
  %3720 = vmatpush.bf16.msra.mxu0 %v3657
  %3721 = vmatpush.bf16.msra.mxu0 %v3653
  %3722 = vmatpush.bf16.msra.mxu0 %v3649
  %3723 = vmatpush.bf16.msra.mxu0 %v3645
  %3724 = vmatpush.bf16.msra.mxu0 %v3641
  %3725 = vmatmul.bf16.gmra.mxu0 %v3501
  %v3726 = vpop.f32.mrf.mxu0
  %v3727 = vadd.f32 %v3537, %v3726
  %v3728 = vpop.f32.mrf.mxu0
  %3729 = vdwg.mxu0
  %3730 = vmatpush.bf16.msra.mxu0 %v3670
  %3731 = vmatpush.bf16.msra.mxu0 %v3666
  %3732 = vmatpush.bf16.msra.mxu0 %v3662
  %3733 = vmatpush.bf16.msra.mxu0 %v3658
  %3734 = vmatpush.bf16.msra.mxu0 %v3654
  %3735 = vmatpush.bf16.msra.mxu0 %v3650
  %3736 = vmatpush.bf16.msra.mxu0 %v3646
  %3737 = vmatpush.bf16.msra.mxu0 %v3642
  %3738 = vmatmul.bf16.gmra.mxu0 %v3501
  %v3739 = vpop.f32.mrf.mxu0
  %v3740 = vadd.f32 %v3538, %v3739
  %v3741 = vpop.f32.mrf.mxu0
  %3742 = vdwg.mxu0
  %3743 = vmatpush.bf16.msra.mxu0 %v3671
  %3744 = vmatpush.bf16.msra.mxu0 %v3667
  %3745 = vmatpush.bf16.msra.mxu0 %v3663
  %3746 = vmatpush.bf16.msra.mxu0 %v3659
  %3747 = vmatpush.bf16.msra.mxu0 %v3655
  %3748 = vmatpush.bf16.msra.mxu0 %v3651
  %3749 = vmatpush.bf16.msra.mxu0 %v3647
  %3750 = vmatpush.bf16.msra.mxu0 %v3643
  %3751 = vmatmul.bf16.gmra.mxu0 %v3501
  %v3752 = vpop.f32.mrf.mxu0
  %v3753 = vadd.f32 %v3539, %v3752
  %v3754 = vpop.f32.mrf.mxu0
  %3755 = vdwg.mxu0
  %v3756 = vld [vmem:[#allocation2] sm:$0xff]
  %v3757 = vpack.c.bf16 %v3756, %v3756
  %v3758 = vld [vmem:[%s3184] sm:$0xff]
  %v3759 = vld [vmem:[%s3184 + $0x8] sm:$0xff]
  %v3760 = vld [vmem:[%s3184 + $0x10] sm:$0xff]
  %v3761 = vld [vmem:[%s3184 + $0x18] sm:$0xff]
  %v3762 = vld [vmem:[%s3184 + $0x20] sm:$0xff]
  %v3763 = vld [vmem:[%s3184 + $0x28] sm:$0xff]
  %v3764 = vld [vmem:[%s3184 + $0x30] sm:$0xff]
  %v3765 = vld [vmem:[%s3184 + $0x38] sm:$0xff]
  %v3766 = vld [vmem:[%s3184 + $0x40] sm:$0xff]
  %v3767 = vld [vmem:[%s3184 + $0x48] sm:$0xff]
  %v3768 = vld [vmem:[%s3184 + $0x50] sm:$0xff]
  %v3769 = vld [vmem:[%s3184 + $0x58] sm:$0xff]
  %v3770 = vld [vmem:[%s3184 + $0x60] sm:$0xff]
  %v3771 = vld [vmem:[%s3184 + $0x68] sm:$0xff]
  %v3772 = vld [vmem:[%s3184 + $0x70] sm:$0xff]
  %v3773 = vld [vmem:[%s3184 + $0x78] sm:$0xff]
  %v3774 = vld [vmem:[%s3184 + $0x80] sm:$0xff]
  %v3775 = vld [vmem:[%s3184 + $0x88] sm:$0xff]
  %v3776 = vld [vmem:[%s3184 + $0x90] sm:$0xff]
  %v3777 = vld [vmem:[%s3184 + $0x98] sm:$0xff]
  %v3778 = vld [vmem:[%s3184 + $0xa0] sm:$0xff]
  %v3779 = vld [vmem:[%s3184 + $0xa8] sm:$0xff]
  %v3780 = vld [vmem:[%s3184 + $0xb0] sm:$0xff]
  %v3781 = vld [vmem:[%s3184 + $0xb8] sm:$0xff]
  %v3782 = vld [vmem:[%s3184 + $0xc0] sm:$0xff]
  %v3783 = vld [vmem:[%s3184 + $0xc8] sm:$0xff]
  %v3784 = vld [vmem:[%s3184 + $0xd0] sm:$0xff]
  %v3785 = vld [vmem:[%s3184 + $0xd8] sm:$0xff]
  %v3786 = vld [vmem:[%s3184 + $0xe0] sm:$0xff]
  %v3787 = vld [vmem:[%s3184 + $0xe8] sm:$0xff]
  %v3788 = vld [vmem:[%s3184 + $0xf0] sm:$0xff]
  %v3789 = vld [vmem:[%s3184 + $0xf8] sm:$0xff]
  %v3822 = vunpack.c.l.b16 %v3758
  %v3823 = vunpack.c.h.b16 %v3758
  %v3824 = vunpack.c.l.b16 %v3759
  %v3825 = vunpack.c.h.b16 %v3759
  %v3826 = vunpack.c.l.b16 %v3760
  %v3827 = vunpack.c.h.b16 %v3760
  %v3828 = vunpack.c.l.b16 %v3761
  %v3829 = vunpack.c.h.b16 %v3761
  %v3830 = vunpack.c.l.b16 %v3762
  %v3831 = vunpack.c.h.b16 %v3762
  %v3832 = vunpack.c.l.b16 %v3763
  %v3833 = vunpack.c.h.b16 %v3763
  %v3834 = vunpack.c.l.b16 %v3764
  %v3835 = vunpack.c.h.b16 %v3764
  %v3836 = vunpack.c.l.b16 %v3765
  %v3837 = vunpack.c.h.b16 %v3765
  %v3838 = vunpack.c.l.b16 %v3766
  %v3839 = vunpack.c.h.b16 %v3766
  %v3840 = vunpack.c.l.b16 %v3767
  %v3841 = vunpack.c.h.b16 %v3767
  %v3842 = vunpack.c.l.b16 %v3768
  %v3843 = vunpack.c.h.b16 %v3768
  %v3844 = vunpack.c.l.b16 %v3769
  %v3845 = vunpack.c.h.b16 %v3769
  %v3846 = vunpack.c.l.b16 %v3770
  %v3847 = vunpack.c.h.b16 %v3770
  %v3848 = vunpack.c.l.b16 %v3771
  %v3849 = vunpack.c.h.b16 %v3771
  %v3850 = vunpack.c.l.b16 %v3772
  %v3851 = vunpack.c.h.b16 %v3772
  %v3852 = vunpack.c.l.b16 %v3773
  %v3853 = vunpack.c.h.b16 %v3773
  %v3854 = vunpack.c.l.b16 %v3774
  %v3855 = vunpack.c.h.b16 %v3774
  %v3856 = vunpack.c.l.b16 %v3775
  %v3857 = vunpack.c.h.b16 %v3775
  %v3858 = vunpack.c.l.b16 %v3776
  %v3859 = vunpack.c.h.b16 %v3776
  %v3860 = vunpack.c.l.b16 %v3777
  %v3861 = vunpack.c.h.b16 %v3777
  %v3862 = vunpack.c.l.b16 %v3778
  %v3863 = vunpack.c.h.b16 %v3778
  %v3864 = vunpack.c.l.b16 %v3779
  %v3865 = vunpack.c.h.b16 %v3779
  %v3866 = vunpack.c.l.b16 %v3780
  %v3867 = vunpack.c.h.b16 %v3780
  %v3868 = vunpack.c.l.b16 %v3781
  %v3869 = vunpack.c.h.b16 %v3781
  %v3870 = vunpack.c.l.b16 %v3782
  %v3871 = vunpack.c.h.b16 %v3782
  %v3872 = vunpack.c.l.b16 %v3783
  %v3873 = vunpack.c.h.b16 %v3783
  %v3874 = vunpack.c.l.b16 %v3784
  %v3875 = vunpack.c.h.b16 %v3784
  %v3876 = vunpack.c.l.b16 %v3785
  %v3877 = vunpack.c.h.b16 %v3785
  %v3878 = vunpack.c.l.b16 %v3786
  %v3879 = vunpack.c.h.b16 %v3786
  %v3880 = vunpack.c.l.b16 %v3787
  %v3881 = vunpack.c.h.b16 %v3787
  %v3882 = vunpack.c.l.b16 %v3788
  %v3883 = vunpack.c.h.b16 %v3788
  %v3884 = vunpack.c.l.b16 %v3789
  %v3885 = vunpack.c.h.b16 %v3789
  %v3886 = vpack.c.b16 %v3826, %v3822
  %v3887 = vpack.c.b16 %v3827, %v3823
  %v3888 = vpack.c.b16 %v3828, %v3824
  %v3889 = vpack.c.b16 %v3829, %v3825
  %v3890 = vpack.c.b16 %v3834, %v3830
  %v3891 = vpack.c.b16 %v3835, %v3831
  %v3892 = vpack.c.b16 %v3836, %v3832
  %v3893 = vpack.c.b16 %v3837, %v3833
  %v3894 = vpack.c.b16 %v3842, %v3838
  %v3895 = vpack.c.b16 %v3843, %v3839
  %v3896 = vpack.c.b16 %v3844, %v3840
  %v3897 = vpack.c.b16 %v3845, %v3841
  %v3898 = vpack.c.b16 %v3850, %v3846
  %v3899 = vpack.c.b16 %v3851, %v3847
  %v3900 = vpack.c.b16 %v3852, %v3848
  %v3901 = vpack.c.b16 %v3853, %v3849
  %v3902 = vpack.c.b16 %v3858, %v3854
  %v3903 = vpack.c.b16 %v3859, %v3855
  %v3904 = vpack.c.b16 %v3860, %v3856
  %v3905 = vpack.c.b16 %v3861, %v3857
  %v3906 = vpack.c.b16 %v3866, %v3862
  %v3907 = vpack.c.b16 %v3867, %v3863
  %v3908 = vpack.c.b16 %v3868, %v3864
  %v3909 = vpack.c.b16 %v3869, %v3865
  %v3910 = vpack.c.b16 %v3874, %v3870
  %v3911 = vpack.c.b16 %v3875, %v3871
  %v3912 = vpack.c.b16 %v3876, %v3872
  %v3913 = vpack.c.b16 %v3877, %v3873
  %v3914 = vpack.c.b16 %v3882, %v3878
  %v3915 = vpack.c.b16 %v3883, %v3879
  %v3916 = vpack.c.b16 %v3884, %v3880
  %v3917 = vpack.c.b16 %v3885, %v3881
  %3950 = vmatpush.bf16.msra.mxu0 %v3914
  %3951 = vmatpush.bf16.msra.mxu0 %v3910
  %3952 = vmatpush.bf16.msra.mxu0 %v3906
  %3953 = vmatpush.bf16.msra.mxu0 %v3902
  %3954 = vmatpush.bf16.msra.mxu0 %v3898
  %3955 = vmatpush.bf16.msra.mxu0 %v3894
  %3956 = vmatpush.bf16.msra.mxu0 %v3890
  %3957 = vmatpush.bf16.msra.mxu0 %v3886
  %3958 = vmatmul.bf16.gmra.mxu0 %v3757
  %v3959 = vpop.f32.mrf.mxu0
  %v3960 = vadd.f32 0.0, %v3959
  %v3961 = vpop.f32.mrf.mxu0
  %3962 = vdwg.mxu0
  %3963 = vmatpush.bf16.msra.mxu0 %v3915
  %3964 = vmatpush.bf16.msra.mxu0 %v3911
  %3965 = vmatpush.bf16.msra.mxu0 %v3907
  %3966 = vmatpush.bf16.msra.mxu0 %v3903
  %3967 = vmatpush.bf16.msra.mxu0 %v3899
  %3968 = vmatpush.bf16.msra.mxu0 %v3895
  %3969 = vmatpush.bf16.msra.mxu0 %v3891
  %3970 = vmatpush.bf16.msra.mxu0 %v3887
  %3971 = vmatmul.bf16.gmra.mxu0 %v3757
  %v3972 = vpop.f32.mrf.mxu0
  %v3973 = vadd.f32 0.0, %v3972
  %v3974 = vpop.f32.mrf.mxu0
  %3975 = vdwg.mxu0
  %3976 = vmatpush.bf16.msra.mxu0 %v3916
  %3977 = vmatpush.bf16.msra.mxu0 %v3912
  %3978 = vmatpush.bf16.msra.mxu0 %v3908
  %3979 = vmatpush.bf16.msra.mxu0 %v3904
  %3980 = vmatpush.bf16.msra.mxu0 %v3900
  %3981 = vmatpush.bf16.msra.mxu0 %v3896
  %3982 = vmatpush.bf16.msra.mxu0 %v3892
  %3983 = vmatpush.bf16.msra.mxu0 %v3888
  %3984 = vmatmul.bf16.gmra.mxu0 %v3757
  %v3985 = vpop.f32.mrf.mxu0
  %v3986 = vadd.f32 0.0, %v3985
  %v3987 = vpop.f32.mrf.mxu0
  %3988 = vdwg.mxu0
  %3989 = vmatpush.bf16.msra.mxu0 %v3917
  %3990 = vmatpush.bf16.msra.mxu0 %v3913
  %3991 = vmatpush.bf16.msra.mxu0 %v3909
  %3992 = vmatpush.bf16.msra.mxu0 %v3905
  %3993 = vmatpush.bf16.msra.mxu0 %v3901
  %3994 = vmatpush.bf16.msra.mxu0 %v3897
  %3995 = vmatpush.bf16.msra.mxu0 %v3893
  %3996 = vmatpush.bf16.msra.mxu0 %v3889
  %3997 = vmatmul.bf16.gmra.mxu0 %v3757
  %v3998 = vpop.f32.mrf.mxu0
  %v3999 = vadd.f32 0.0, %v3998
  %v4000 = vpop.f32.mrf.mxu0
  %4001 = vdwg.mxu0
  %v4002 = vadd.f32 %v3714, %v3960
  %v4003 = vadd.f32 %v3727, %v3973
  %v4004 = vadd.f32 %v3740, %v3986
  %v4005 = vadd.f32 %v3753, %v3999
  %v4006 = vxor.u32 %v4002, 2147483648
  %v4007 = vmul.f32 %v4006, 1.442695
  %v4008 = vpow.pop %v4007
  %v4009 = vadd.f32 %v4008, 1.0
  %v4010 = vrcp.pop %v4009
  %v4011 = vmul.f32 %v4009, %v4010
  %v4012 = vsub.f32 1.0, %v4011
  %v4013 = vmul.f32 %v4010, %v4012
  %v4014 = vadd.f32 %v4010, %v4013
  %vm4015 = vweird.f32 %v4009
  %vm4016 = vweird.f32 %v4010
  %vm4017 = vmor %vm4015, %vm4016
  %v4018 = vsel %vm4017, %v4010, %v4014
  %v4019 = vand.u32 2147483647, %v4009
  %vm4020 = vcmp.eq.f32.partialorder %v4019, 8.507059e+37
  %v4021 = vand.u32 %v4009, 2147483648
  %v4022 = vor.u32 1.1754944e-38, %v4021
  %v4023 = vsel %vm4020, %v4022, %v4018
  %v4024 = vmul.f32 1.0, %v4023
  %v4025 = vxor.u32 %v4003, 2147483648
  %v4026 = vmul.f32 %v4025, 1.442695
  %v4027 = vpow.pop %v4026
  %v4028 = vadd.f32 %v4027, 1.0
  %v4029 = vrcp.pop %v4028
  %v4030 = vmul.f32 %v4028, %v4029
  %v4031 = vsub.f32 1.0, %v4030
  %v4032 = vmul.f32 %v4029, %v4031
  %v4033 = vadd.f32 %v4029, %v4032
  %vm4034 = vweird.f32 %v4028
  %vm4035 = vweird.f32 %v4029
  %vm4036 = vmor %vm4034, %vm4035
  %v4037 = vsel %vm4036, %v4029, %v4033
  %v4038 = vand.u32 2147483647, %v4028
  %vm4039 = vcmp.eq.f32.partialorder %v4038, 8.507059e+37
  %v4040 = vand.u32 %v4028, 2147483648
  %v4041 = vor.u32 1.1754944e-38, %v4040
  %v4042 = vsel %vm4039, %v4041, %v4037
  %v4043 = vmul.f32 1.0, %v4042
  %v4044 = vtanh.pop %v4004
  %v4045 = vxor.u32 %v4005, 2147483648
  %v4046 = vmul.f32 %v4045, 1.442695
  %v4047 = vpow.pop %v4046
  %v4048 = vadd.f32 %v4047, 1.0
  %v4049 = vrcp.pop %v4048
  %v4050 = vmul.f32 %v4048, %v4049
  %v4051 = vsub.f32 1.0, %v4050
  %v4052 = vmul.f32 %v4049, %v4051
  %v4053 = vadd.f32 %v4049, %v4052
  %vm4054 = vweird.f32 %v4048
  %vm4055 = vweird.f32 %v4049
  %vm4056 = vmor %vm4054, %vm4055
  %v4057 = vsel %vm4056, %v4049, %v4053
  %v4058 = vand.u32 2147483647, %v4048
  %vm4059 = vcmp.eq.f32.partialorder %v4058, 8.507059e+37
  %v4060 = vand.u32 %v4048, 2147483648
  %v4061 = vor.u32 1.1754944e-38, %v4060
  %v4062 = vsel %vm4059, %v4061, %v4057
  %v4063 = vmul.f32 1.0, %v4062
  %v4064 = vld [vmem:[#allocation3] sm:$0xff]
  %v4065 = vmul.f32 %v4043, %v4064
  %v4066 = vmul.f32 %v4024, %v4044
  %v4067 = vadd.f32 %v4065, %v4066
  %v4068 = vtanh.pop %v4067
  %v4069 = vmul.f32 %v4063, %v4068
  %4070 = vst [vmem:[#allocation3] sm:$0xff] %v4067
  %4071 = vst [vmem:[#allocation2] sm:$0xff] %v4069
  %4072 = vst [vmem:[%s661] sm:$0xff] %v4069
  %v4073 = vld [vmem:[%s984] sm:$0xff]
  %v4074 = vpack.c.bf16 %v4073, %v4073
  %v4075 = vld [vmem:[%s2] sm:$0xff]
  %v4076 = vld [vmem:[%s2 + $0x8] sm:$0xff]
  %v4077 = vld [vmem:[%s2 + $0x10] sm:$0xff]
  %v4078 = vld [vmem:[%s2 + $0x18] sm:$0xff]
  %v4079 = vld [vmem:[%s2 + $0x20] sm:$0xff]
  %v4080 = vld [vmem:[%s2 + $0x28] sm:$0xff]
  %v4081 = vld [vmem:[%s2 + $0x30] sm:$0xff]
  %v4082 = vld [vmem:[%s2 + $0x38] sm:$0xff]
  %v4083 = vld [vmem:[%s2 + $0x40] sm:$0xff]
  %v4084 = vld [vmem:[%s2 + $0x48] sm:$0xff]
  %v4085 = vld [vmem:[%s2 + $0x50] sm:$0xff]
  %v4086 = vld [vmem:[%s2 + $0x58] sm:$0xff]
  %v4087 = vld [vmem:[%s2 + $0x60] sm:$0xff]
  %v4088 = vld [vmem:[%s2 + $0x68] sm:$0xff]
  %v4089 = vld [vmem:[%s2 + $0x70] sm:$0xff]
  %v4090 = vld [vmem:[%s2 + $0x78] sm:$0xff]
  %v4091 = vld [vmem:[%s2 + $0x80] sm:$0xff]
  %v4092 = vld [vmem:[%s2 + $0x88] sm:$0xff]
  %v4093 = vld [vmem:[%s2 + $0x90] sm:$0xff]
  %v4094 = vld [vmem:[%s2 + $0x98] sm:$0xff]
  %v4095 = vld [vmem:[%s2 + $0xa0] sm:$0xff]
  %v4096 = vld [vmem:[%s2 + $0xa8] sm:$0xff]
  %v4097 = vld [vmem:[%s2 + $0xb0] sm:$0xff]
  %v4098 = vld [vmem:[%s2 + $0xb8] sm:$0xff]
  %v4099 = vld [vmem:[%s2 + $0xc0] sm:$0xff]
  %v4100 = vld [vmem:[%s2 + $0xc8] sm:$0xff]
  %v4101 = vld [vmem:[%s2 + $0xd0] sm:$0xff]
  %v4102 = vld [vmem:[%s2 + $0xd8] sm:$0xff]
  %v4103 = vld [vmem:[%s2 + $0xe0] sm:$0xff]
  %v4104 = vld [vmem:[%s2 + $0xe8] sm:$0xff]
  %v4105 = vld [vmem:[%s2 + $0xf0] sm:$0xff]
  %v4106 = vld [vmem:[%s2 + $0xf8] sm:$0xff]
  %v4107 = vld [vmem:[%s3] sm:$0xf]
  %v4109 = vperm.slane %v4107, 0
  %v4110 = vperm.slane %v4107, 1
  %v4111 = vperm.slane %v4107, 2
  %v4112 = vperm.slane %v4107, 3
  %v4149 = vunpack.c.l.b16 %v4075
  %v4150 = vunpack.c.h.b16 %v4075
  %v4151 = vunpack.c.l.b16 %v4076
  %v4152 = vunpack.c.h.b16 %v4076
  %v4153 = vunpack.c.l.b16 %v4077
  %v4154 = vunpack.c.h.b16 %v4077
  %v4155 = vunpack.c.l.b16 %v4078
  %v4156 = vunpack.c.h.b16 %v4078
  %v4157 = vunpack.c.l.b16 %v4079
  %v4158 = vunpack.c.h.b16 %v4079
  %v4159 = vunpack.c.l.b16 %v4080
  %v4160 = vunpack.c.h.b16 %v4080
  %v4161 = vunpack.c.l.b16 %v4081
  %v4162 = vunpack.c.h.b16 %v4081
  %v4163 = vunpack.c.l.b16 %v4082
  %v4164 = vunpack.c.h.b16 %v4082
  %v4165 = vunpack.c.l.b16 %v4083
  %v4166 = vunpack.c.h.b16 %v4083
  %v4167 = vunpack.c.l.b16 %v4084
  %v4168 = vunpack.c.h.b16 %v4084
  %v4169 = vunpack.c.l.b16 %v4085
  %v4170 = vunpack.c.h.b16 %v4085
  %v4171 = vunpack.c.l.b16 %v4086
  %v4172 = vunpack.c.h.b16 %v4086
  %v4173 = vunpack.c.l.b16 %v4087
  %v4174 = vunpack.c.h.b16 %v4087
  %v4175 = vunpack.c.l.b16 %v4088
  %v4176 = vunpack.c.h.b16 %v4088
  %v4177 = vunpack.c.l.b16 %v4089
  %v4178 = vunpack.c.h.b16 %v4089
  %v4179 = vunpack.c.l.b16 %v4090
  %v4180 = vunpack.c.h.b16 %v4090
  %v4181 = vunpack.c.l.b16 %v4091
  %v4182 = vunpack.c.h.b16 %v4091
  %v4183 = vunpack.c.l.b16 %v4092
  %v4184 = vunpack.c.h.b16 %v4092
  %v4185 = vunpack.c.l.b16 %v4093
  %v4186 = vunpack.c.h.b16 %v4093
  %v4187 = vunpack.c.l.b16 %v4094
  %v4188 = vunpack.c.h.b16 %v4094
  %v4189 = vunpack.c.l.b16 %v4095
  %v4190 = vunpack.c.h.b16 %v4095
  %v4191 = vunpack.c.l.b16 %v4096
  %v4192 = vunpack.c.h.b16 %v4096
  %v4193 = vunpack.c.l.b16 %v4097
  %v4194 = vunpack.c.h.b16 %v4097
  %v4195 = vunpack.c.l.b16 %v4098
  %v4196 = vunpack.c.h.b16 %v4098
  %v4197 = vunpack.c.l.b16 %v4099
  %v4198 = vunpack.c.h.b16 %v4099
  %v4199 = vunpack.c.l.b16 %v4100
  %v4200 = vunpack.c.h.b16 %v4100
  %v4201 = vunpack.c.l.b16 %v4101
  %v4202 = vunpack.c.h.b16 %v4101
  %v4203 = vunpack.c.l.b16 %v4102
  %v4204 = vunpack.c.h.b16 %v4102
  %v4205 = vunpack.c.l.b16 %v4103
  %v4206 = vunpack.c.h.b16 %v4103
  %v4207 = vunpack.c.l.b16 %v4104
  %v4208 = vunpack.c.h.b16 %v4104
  %v4209 = vunpack.c.l.b16 %v4105
  %v4210 = vunpack.c.h.b16 %v4105
  %v4211 = vunpack.c.l.b16 %v4106
  %v4212 = vunpack.c.h.b16 %v4106
  %v4213 = vpack.c.b16 %v4153, %v4149
  %v4214 = vpack.c.b16 %v4154, %v4150
  %v4215 = vpack.c.b16 %v4155, %v4151
  %v4216 = vpack.c.b16 %v4156, %v4152
  %v4217 = vpack.c.b16 %v4161, %v4157
  %v4218 = vpack.c.b16 %v4162, %v4158
  %v4219 = vpack.c.b16 %v4163, %v4159
  %v4220 = vpack.c.b16 %v4164, %v4160
  %v4221 = vpack.c.b16 %v4169, %v4165
  %v4222 = vpack.c.b16 %v4170, %v4166
  %v4223 = vpack.c.b16 %v4171, %v4167
  %v4224 = vpack.c.b16 %v4172, %v4168
  %v4225 = vpack.c.b16 %v4177, %v4173
  %v4226 = vpack.c.b16 %v4178, %v4174
  %v4227 = vpack.c.b16 %v4179, %v4175
  %v4228 = vpack.c.b16 %v4180, %v4176
  %v4229 = vpack.c.b16 %v4185, %v4181
  %v4230 = vpack.c.b16 %v4186, %v4182
  %v4231 = vpack.c.b16 %v4187, %v4183
  %v4232 = vpack.c.b16 %v4188, %v4184
  %v4233 = vpack.c.b16 %v4193, %v4189
  %v4234 = vpack.c.b16 %v4194, %v4190
  %v4235 = vpack.c.b16 %v4195, %v4191
  %v4236 = vpack.c.b16 %v4196, %v4192
  %v4237 = vpack.c.b16 %v4201, %v4197
  %v4238 = vpack.c.b16 %v4202, %v4198
  %v4239 = vpack.c.b16 %v4203, %v4199
  %v4240 = vpack.c.b16 %v4204, %v4200
  %v4241 = vpack.c.b16 %v4209, %v4205
  %v4242 = vpack.c.b16 %v4210, %v4206
  %v4243 = vpack.c.b16 %v4211, %v4207
  %v4244 = vpack.c.b16 %v4212, %v4208
  %4277 = vmatpush.bf16.msra.mxu0 %v4241
  %4278 = vmatpush.bf16.msra.mxu0 %v4237
  %4279 = vmatpush.bf16.msra.mxu0 %v4233
  %4280 = vmatpush.bf16.msra.mxu0 %v4229
  %4281 = vmatpush.bf16.msra.mxu0 %v4225
  %4282 = vmatpush.bf16.msra.mxu0 %v4221
  %4283 = vmatpush.bf16.msra.mxu0 %v4217
  %4284 = vmatpush.bf16.msra.mxu0 %v4213
  %4285 = vmatmul.bf16.gmra.mxu0 %v4074
  %v4286 = vpop.f32.mrf.mxu0
  %v4287 = vadd.f32 %v4109, %v4286
  %v4288 = vpop.f32.mrf.mxu0
  %4289 = vdwg.mxu0
  %4290 = vmatpush.bf16.msra.mxu0 %v4242
  %4291 = vmatpush.bf16.msra.mxu0 %v4238
  %4292 = vmatpush.bf16.msra.mxu0 %v4234
  %4293 = vmatpush.bf16.msra.mxu0 %v4230
  %4294 = vmatpush.bf16.msra.mxu0 %v4226
  %4295 = vmatpush.bf16.msra.mxu0 %v4222
  %4296 = vmatpush.bf16.msra.mxu0 %v4218
  %4297 = vmatpush.bf16.msra.mxu0 %v4214
  %4298 = vmatmul.bf16.gmra.mxu0 %v4074
  %v4299 = vpop.f32.mrf.mxu0
  %v4300 = vadd.f32 %v4110, %v4299
  %v4301 = vpop.f32.mrf.mxu0
  %4302 = vdwg.mxu0
  %4303 = vmatpush.bf16.msra.mxu0 %v4243
  %4304 = vmatpush.bf16.msra.mxu0 %v4239
  %4305 = vmatpush.bf16.msra.mxu0 %v4235
  %4306 = vmatpush.bf16.msra.mxu0 %v4231
  %4307 = vmatpush.bf16.msra.mxu0 %v4227
  %4308 = vmatpush.bf16.msra.mxu0 %v4223
  %4309 = vmatpush.bf16.msra.mxu0 %v4219
  %4310 = vmatpush.bf16.msra.mxu0 %v4215
  %4311 = vmatmul.bf16.gmra.mxu0 %v4074
  %v4312 = vpop.f32.mrf.mxu0
  %v4313 = vadd.f32 %v4111, %v4312
  %v4314 = vpop.f32.mrf.mxu0
  %4315 = vdwg.mxu0
  %4316 = vmatpush.bf16.msra.mxu0 %v4244
  %4317 = vmatpush.bf16.msra.mxu0 %v4240
  %4318 = vmatpush.bf16.msra.mxu0 %v4236
  %4319 = vmatpush.bf16.msra.mxu0 %v4232
  %4320 = vmatpush.bf16.msra.mxu0 %v4228
  %4321 = vmatpush.bf16.msra.mxu0 %v4224
  %4322 = vmatpush.bf16.msra.mxu0 %v4220
  %4323 = vmatpush.bf16.msra.mxu0 %v4216
  %4324 = vmatmul.bf16.gmra.mxu0 %v4074
  %v4325 = vpop.f32.mrf.mxu0
  %v4326 = vadd.f32 %v4112, %v4325
  %v4327 = vpop.f32.mrf.mxu0
  %4328 = vdwg.mxu0
  %v4329 = vld [vmem:[#allocation2] sm:$0xff]
  %v4330 = vpack.c.bf16 %v4329, %v4329
  %v4331 = vld [vmem:[%s3184] sm:$0xff]
  %v4332 = vld [vmem:[%s3184 + $0x8] sm:$0xff]
  %v4333 = vld [vmem:[%s3184 + $0x10] sm:$0xff]
  %v4334 = vld [vmem:[%s3184 + $0x18] sm:$0xff]
  %v4335 = vld [vmem:[%s3184 + $0x20] sm:$0xff]
  %v4336 = vld [vmem:[%s3184 + $0x28] sm:$0xff]
  %v4337 = vld [vmem:[%s3184 + $0x30] sm:$0xff]
  %v4338 = vld [vmem:[%s3184 + $0x38] sm:$0xff]
  %v4339 = vld [vmem:[%s3184 + $0x40] sm:$0xff]
  %v4340 = vld [vmem:[%s3184 + $0x48] sm:$0xff]
  %v4341 = vld [vmem:[%s3184 + $0x50] sm:$0xff]
  %v4342 = vld [vmem:[%s3184 + $0x58] sm:$0xff]
  %v4343 = vld [vmem:[%s3184 + $0x60] sm:$0xff]
  %v4344 = vld [vmem:[%s3184 + $0x68] sm:$0xff]
  %v4345 = vld [vmem:[%s3184 + $0x70] sm:$0xff]
  %v4346 = vld [vmem:[%s3184 + $0x78] sm:$0xff]
  %v4347 = vld [vmem:[%s3184 + $0x80] sm:$0xff]
  %v4348 = vld [vmem:[%s3184 + $0x88] sm:$0xff]
  %v4349 = vld [vmem:[%s3184 + $0x90] sm:$0xff]
  %v4350 = vld [vmem:[%s3184 + $0x98] sm:$0xff]
  %v4351 = vld [vmem:[%s3184 + $0xa0] sm:$0xff]
  %v4352 = vld [vmem:[%s3184 + $0xa8] sm:$0xff]
  %v4353 = vld [vmem:[%s3184 + $0xb0] sm:$0xff]
  %v4354 = vld [vmem:[%s3184 + $0xb8] sm:$0xff]
  %v4355 = vld [vmem:[%s3184 + $0xc0] sm:$0xff]
  %v4356 = vld [vmem:[%s3184 + $0xc8] sm:$0xff]
  %v4357 = vld [vmem:[%s3184 + $0xd0] sm:$0xff]
  %v4358 = vld [vmem:[%s3184 + $0xd8] sm:$0xff]
  %v4359 = vld [vmem:[%s3184 + $0xe0] sm:$0xff]
  %v4360 = vld [vmem:[%s3184 + $0xe8] sm:$0xff]
  %v4361 = vld [vmem:[%s3184 + $0xf0] sm:$0xff]
  %v4362 = vld [vmem:[%s3184 + $0xf8] sm:$0xff]
  %v4395 = vunpack.c.l.b16 %v4331
  %v4396 = vunpack.c.h.b16 %v4331
  %v4397 = vunpack.c.l.b16 %v4332
  %v4398 = vunpack.c.h.b16 %v4332
  %v4399 = vunpack.c.l.b16 %v4333
  %v4400 = vunpack.c.h.b16 %v4333
  %v4401 = vunpack.c.l.b16 %v4334
  %v4402 = vunpack.c.h.b16 %v4334
  %v4403 = vunpack.c.l.b16 %v4335
  %v4404 = vunpack.c.h.b16 %v4335
  %v4405 = vunpack.c.l.b16 %v4336
  %v4406 = vunpack.c.h.b16 %v4336
  %v4407 = vunpack.c.l.b16 %v4337
  %v4408 = vunpack.c.h.b16 %v4337
  %v4409 = vunpack.c.l.b16 %v4338
  %v4410 = vunpack.c.h.b16 %v4338
  %v4411 = vunpack.c.l.b16 %v4339
  %v4412 = vunpack.c.h.b16 %v4339
  %v4413 = vunpack.c.l.b16 %v4340
  %v4414 = vunpack.c.h.b16 %v4340
  %v4415 = vunpack.c.l.b16 %v4341
  %v4416 = vunpack.c.h.b16 %v4341
  %v4417 = vunpack.c.l.b16 %v4342
  %v4418 = vunpack.c.h.b16 %v4342
  %v4419 = vunpack.c.l.b16 %v4343
  %v4420 = vunpack.c.h.b16 %v4343
  %v4421 = vunpack.c.l.b16 %v4344
  %v4422 = vunpack.c.h.b16 %v4344
  %v4423 = vunpack.c.l.b16 %v4345
  %v4424 = vunpack.c.h.b16 %v4345
  %v4425 = vunpack.c.l.b16 %v4346
  %v4426 = vunpack.c.h.b16 %v4346
  %v4427 = vunpack.c.l.b16 %v4347
  %v4428 = vunpack.c.h.b16 %v4347
  %v4429 = vunpack.c.l.b16 %v4348
  %v4430 = vunpack.c.h.b16 %v4348
  %v4431 = vunpack.c.l.b16 %v4349
  %v4432 = vunpack.c.h.b16 %v4349
  %v4433 = vunpack.c.l.b16 %v4350
  %v4434 = vunpack.c.h.b16 %v4350
  %v4435 = vunpack.c.l.b16 %v4351
  %v4436 = vunpack.c.h.b16 %v4351
  %v4437 = vunpack.c.l.b16 %v4352
  %v4438 = vunpack.c.h.b16 %v4352
  %v4439 = vunpack.c.l.b16 %v4353
  %v4440 = vunpack.c.h.b16 %v4353
  %v4441 = vunpack.c.l.b16 %v4354
  %v4442 = vunpack.c.h.b16 %v4354
  %v4443 = vunpack.c.l.b16 %v4355
  %v4444 = vunpack.c.h.b16 %v4355
  %v4445 = vunpack.c.l.b16 %v4356
  %v4446 = vunpack.c.h.b16 %v4356
  %v4447 = vunpack.c.l.b16 %v4357
  %v4448 = vunpack.c.h.b16 %v4357
  %v4449 = vunpack.c.l.b16 %v4358
  %v4450 = vunpack.c.h.b16 %v4358
  %v4451 = vunpack.c.l.b16 %v4359
  %v4452 = vunpack.c.h.b16 %v4359
  %v4453 = vunpack.c.l.b16 %v4360
  %v4454 = vunpack.c.h.b16 %v4360
  %v4455 = vunpack.c.l.b16 %v4361
  %v4456 = vunpack.c.h.b16 %v4361
  %v4457 = vunpack.c.l.b16 %v4362
  %v4458 = vunpack.c.h.b16 %v4362
  %v4459 = vpack.c.b16 %v4399, %v4395
  %v4460 = vpack.c.b16 %v4400, %v4396
  %v4461 = vpack.c.b16 %v4401, %v4397
  %v4462 = vpack.c.b16 %v4402, %v4398
  %v4463 = vpack.c.b16 %v4407, %v4403
  %v4464 = vpack.c.b16 %v4408, %v4404
  %v4465 = vpack.c.b16 %v4409, %v4405
  %v4466 = vpack.c.b16 %v4410, %v4406
  %v4467 = vpack.c.b16 %v4415, %v4411
  %v4468 = vpack.c.b16 %v4416, %v4412
  %v4469 = vpack.c.b16 %v4417, %v4413
  %v4470 = vpack.c.b16 %v4418, %v4414
  %v4471 = vpack.c.b16 %v4423, %v4419
  %v4472 = vpack.c.b16 %v4424, %v4420
  %v4473 = vpack.c.b16 %v4425, %v4421
  %v4474 = vpack.c.b16 %v4426, %v4422
  %v4475 = vpack.c.b16 %v4431, %v4427
  %v4476 = vpack.c.b16 %v4432, %v4428
  %v4477 = vpack.c.b16 %v4433, %v4429
  %v4478 = vpack.c.b16 %v4434, %v4430
  %v4479 = vpack.c.b16 %v4439, %v4435
  %v4480 = vpack.c.b16 %v4440, %v4436
  %v4481 = vpack.c.b16 %v4441, %v4437
  %v4482 = vpack.c.b16 %v4442, %v4438
  %v4483 = vpack.c.b16 %v4447, %v4443
  %v4484 = vpack.c.b16 %v4448, %v4444
  %v4485 = vpack.c.b16 %v4449, %v4445
  %v4486 = vpack.c.b16 %v4450, %v4446
  %v4487 = vpack.c.b16 %v4455, %v4451
  %v4488 = vpack.c.b16 %v4456, %v4452
  %v4489 = vpack.c.b16 %v4457, %v4453
  %v4490 = vpack.c.b16 %v4458, %v4454
  %4523 = vmatpush.bf16.msra.mxu0 %v4487
  %4524 = vmatpush.bf16.msra.mxu0 %v4483
  %4525 = vmatpush.bf16.msra.mxu0 %v4479
  %4526 = vmatpush.bf16.msra.mxu0 %v4475
  %4527 = vmatpush.bf16.msra.mxu0 %v4471
  %4528 = vmatpush.bf16.msra.mxu0 %v4467
  %4529 = vmatpush.bf16.msra.mxu0 %v4463
  %4530 = vmatpush.bf16.msra.mxu0 %v4459
  %4531 = vmatmul.bf16.gmra.mxu0 %v4330
  %v4532 = vpop.f32.mrf.mxu0
  %v4533 = vadd.f32 0.0, %v4532
  %v4534 = vpop.f32.mrf.mxu0
  %4535 = vdwg.mxu0
  %4536 = vmatpush.bf16.msra.mxu0 %v4488
  %4537 = vmatpush.bf16.msra.mxu0 %v4484
  %4538 = vmatpush.bf16.msra.mxu0 %v4480
  %4539 = vmatpush.bf16.msra.mxu0 %v4476
  %4540 = vmatpush.bf16.msra.mxu0 %v4472
  %4541 = vmatpush.bf16.msra.mxu0 %v4468
  %4542 = vmatpush.bf16.msra.mxu0 %v4464
  %4543 = vmatpush.bf16.msra.mxu0 %v4460
  %4544 = vmatmul.bf16.gmra.mxu0 %v4330
  %v4545 = vpop.f32.mrf.mxu0
  %v4546 = vadd.f32 0.0, %v4545
  %v4547 = vpop.f32.mrf.mxu0
  %4548 = vdwg.mxu0
  %4549 = vmatpush.bf16.msra.mxu0 %v4489
  %4550 = vmatpush.bf16.msra.mxu0 %v4485
  %4551 = vmatpush.bf16.msra.mxu0 %v4481
  %4552 = vmatpush.bf16.msra.mxu0 %v4477
  %4553 = vmatpush.bf16.msra.mxu0 %v4473
  %4554 = vmatpush.bf16.msra.mxu0 %v4469
  %4555 = vmatpush.bf16.msra.mxu0 %v4465
  %4556 = vmatpush.bf16.msra.mxu0 %v4461
  %4557 = vmatmul.bf16.gmra.mxu0 %v4330
  %v4558 = vpop.f32.mrf.mxu0
  %v4559 = vadd.f32 0.0, %v4558
  %v4560 = vpop.f32.mrf.mxu0
  %4561 = vdwg.mxu0
  %4562 = vmatpush.bf16.msra.mxu0 %v4490
  %4563 = vmatpush.bf16.msra.mxu0 %v4486
  %4564 = vmatpush.bf16.msra.mxu0 %v4482
  %4565 = vmatpush.bf16.msra.mxu0 %v4478
  %4566 = vmatpush.bf16.msra.mxu0 %v4474
  %4567 = vmatpush.bf16.msra.mxu0 %v4470
  %4568 = vmatpush.bf16.msra.mxu0 %v4466
  %4569 = vmatpush.bf16.msra.mxu0 %v4462
  %4570 = vmatmul.bf16.gmra.mxu0 %v4330
  %v4571 = vpop.f32.mrf.mxu0
  %v4572 = vadd.f32 0.0, %v4571
  %v4573 = vpop.f32.mrf.mxu0
  %4574 = vdwg.mxu0
  %v4575 = vadd.f32 %v4287, %v4533
  %v4576 = vadd.f32 %v4300, %v4546
  %v4577 = vadd.f32 %v4313, %v4559
  %v4578 = vadd.f32 %v4326, %v4572
  %v4579 = vxor.u32 %v4575, 2147483648
  %v4580 = vmul.f32 %v4579, 1.442695
  %v4581 = vpow.pop %v4580
  %v4582 = vadd.f32 %v4581, 1.0
  %v4583 = vrcp.pop %v4582
  %v4584 = vmul.f32 %v4582, %v4583
  %v4585 = vsub.f32 1.0, %v4584
  %v4586 = vmul.f32 %v4583, %v4585
  %v4587 = vadd.f32 %v4583, %v4586
  %vm4588 = vweird.f32 %v4582
  %vm4589 = vweird.f32 %v4583
  %vm4590 = vmor %vm4588, %vm4589
  %v4591 = vsel %vm4590, %v4583, %v4587
  %v4592 = vand.u32 2147483647, %v4582
  %vm4593 = vcmp.eq.f32.partialorder %v4592, 8.507059e+37
  %v4594 = vand.u32 %v4582, 2147483648
  %v4595 = vor.u32 1.1754944e-38, %v4594
  %v4596 = vsel %vm4593, %v4595, %v4591
  %v4597 = vmul.f32 1.0, %v4596
  %v4598 = vxor.u32 %v4576, 2147483648
  %v4599 = vmul.f32 %v4598, 1.442695
  %v4600 = vpow.pop %v4599
  %v4601 = vadd.f32 %v4600, 1.0
  %v4602 = vrcp.pop %v4601
  %v4603 = vmul.f32 %v4601, %v4602
  %v4604 = vsub.f32 1.0, %v4603
  %v4605 = vmul.f32 %v4602, %v4604
  %v4606 = vadd.f32 %v4602, %v4605
  %vm4607 = vweird.f32 %v4601
  %vm4608 = vweird.f32 %v4602
  %vm4609 = vmor %vm4607, %vm4608
  %v4610 = vsel %vm4609, %v4602, %v4606
  %v4611 = vand.u32 2147483647, %v4601
  %vm4612 = vcmp.eq.f32.partialorder %v4611, 8.507059e+37
  %v4613 = vand.u32 %v4601, 2147483648
  %v4614 = vor.u32 1.1754944e-38, %v4613
  %v4615 = vsel %vm4612, %v4614, %v4610
  %v4616 = vmul.f32 1.0, %v4615
  %v4617 = vtanh.pop %v4577
  %v4618 = vxor.u32 %v4578, 2147483648
  %v4619 = vmul.f32 %v4618, 1.442695
  %v4620 = vpow.pop %v4619
  %v4621 = vadd.f32 %v4620, 1.0
  %v4622 = vrcp.pop %v4621
  %v4623 = vmul.f32 %v4621, %v4622
  %v4624 = vsub.f32 1.0, %v4623
  %v4625 = vmul.f32 %v4622, %v4624
  %v4626 = vadd.f32 %v4622, %v4625
  %vm4627 = vweird.f32 %v4621
  %vm4628 = vweird.f32 %v4622
  %vm4629 = vmor %vm4627, %vm4628
  %v4630 = vsel %vm4629, %v4622, %v4626
  %v4631 = vand.u32 2147483647, %v4621
  %vm4632 = vcmp.eq.f32.partialorder %v4631, 8.507059e+37
  %v4633 = vand.u32 %v4621, 2147483648
  %v4634 = vor.u32 1.1754944e-38, %v4633
  %v4635 = vsel %vm4632, %v4634, %v4630
  %v4636 = vmul.f32 1.0, %v4635
  %v4637 = vld [vmem:[#allocation3] sm:$0xff]
  %v4638 = vmul.f32 %v4616, %v4637
  %v4639 = vmul.f32 %v4597, %v4617
  %v4640 = vadd.f32 %v4638, %v4639
  %v4641 = vtanh.pop %v4640
  %v4642 = vmul.f32 %v4636, %v4641
  %4643 = vst [vmem:[#allocation3] sm:$0xff] %v4640
  %4644 = vst [vmem:[#allocation2] sm:$0xff] %v4642
  %4645 = vst [vmem:[%s984] sm:$0xff] %v4642
  %v4646 = vld [vmem:[%s1307] sm:$0xff]
  %v4647 = vpack.c.bf16 %v4646, %v4646
  %v4648 = vld [vmem:[%s2] sm:$0xff]
  %v4649 = vld [vmem:[%s2 + $0x8] sm:$0xff]
  %v4650 = vld [vmem:[%s2 + $0x10] sm:$0xff]
  %v4651 = vld [vmem:[%s2 + $0x18] sm:$0xff]
  %v4652 = vld [vmem:[%s2 + $0x20] sm:$0xff]
  %v4653 = vld [vmem:[%s2 + $0x28] sm:$0xff]
  %v4654 = vld [vmem:[%s2 + $0x30] sm:$0xff]
  %v4655 = vld [vmem:[%s2 + $0x38] sm:$0xff]
  %v4656 = vld [vmem:[%s2 + $0x40] sm:$0xff]
  %v4657 = vld [vmem:[%s2 + $0x48] sm:$0xff]
  %v4658 = vld [vmem:[%s2 + $0x50] sm:$0xff]
  %v4659 = vld [vmem:[%s2 + $0x58] sm:$0xff]
  %v4660 = vld [vmem:[%s2 + $0x60] sm:$0xff]
  %v4661 = vld [vmem:[%s2 + $0x68] sm:$0xff]
  %v4662 = vld [vmem:[%s2 + $0x70] sm:$0xff]
  %v4663 = vld [vmem:[%s2 + $0x78] sm:$0xff]
  %v4664 = vld [vmem:[%s2 + $0x80] sm:$0xff]
  %v4665 = vld [vmem:[%s2 + $0x88] sm:$0xff]
  %v4666 = vld [vmem:[%s2 + $0x90] sm:$0xff]
  %v4667 = vld [vmem:[%s2 + $0x98] sm:$0xff]
  %v4668 = vld [vmem:[%s2 + $0xa0] sm:$0xff]
  %v4669 = vld [vmem:[%s2 + $0xa8] sm:$0xff]
  %v4670 = vld [vmem:[%s2 + $0xb0] sm:$0xff]
  %v4671 = vld [vmem:[%s2 + $0xb8] sm:$0xff]
  %v4672 = vld [vmem:[%s2 + $0xc0] sm:$0xff]
  %v4673 = vld [vmem:[%s2 + $0xc8] sm:$0xff]
  %v4674 = vld [vmem:[%s2 + $0xd0] sm:$0xff]
  %v4675 = vld [vmem:[%s2 + $0xd8] sm:$0xff]
  %v4676 = vld [vmem:[%s2 + $0xe0] sm:$0xff]
  %v4677 = vld [vmem:[%s2 + $0xe8] sm:$0xff]
  %v4678 = vld [vmem:[%s2 + $0xf0] sm:$0xff]
  %v4679 = vld [vmem:[%s2 + $0xf8] sm:$0xff]
  %v4680 = vld [vmem:[%s3] sm:$0xf]
  %v4682 = vperm.slane %v4680, 0
  %v4683 = vperm.slane %v4680, 1
  %v4684 = vperm.slane %v4680, 2
  %v4685 = vperm.slane %v4680, 3
  %v4722 = vunpack.c.l.b16 %v4648
  %v4723 = vunpack.c.h.b16 %v4648
  %v4724 = vunpack.c.l.b16 %v4649
  %v4725 = vunpack.c.h.b16 %v4649
  %v4726 = vunpack.c.l.b16 %v4650
  %v4727 = vunpack.c.h.b16 %v4650
  %v4728 = vunpack.c.l.b16 %v4651
  %v4729 = vunpack.c.h.b16 %v4651
  %v4730 = vunpack.c.l.b16 %v4652
  %v4731 = vunpack.c.h.b16 %v4652
  %v4732 = vunpack.c.l.b16 %v4653
  %v4733 = vunpack.c.h.b16 %v4653
  %v4734 = vunpack.c.l.b16 %v4654
  %v4735 = vunpack.c.h.b16 %v4654
  %v4736 = vunpack.c.l.b16 %v4655
  %v4737 = vunpack.c.h.b16 %v4655
  %v4738 = vunpack.c.l.b16 %v4656
  %v4739 = vunpack.c.h.b16 %v4656
  %v4740 = vunpack.c.l.b16 %v4657
  %v4741 = vunpack.c.h.b16 %v4657
  %v4742 = vunpack.c.l.b16 %v4658
  %v4743 = vunpack.c.h.b16 %v4658
  %v4744 = vunpack.c.l.b16 %v4659
  %v4745 = vunpack.c.h.b16 %v4659
  %v4746 = vunpack.c.l.b16 %v4660
  %v4747 = vunpack.c.h.b16 %v4660
  %v4748 = vunpack.c.l.b16 %v4661
  %v4749 = vunpack.c.h.b16 %v4661
  %v4750 = vunpack.c.l.b16 %v4662
  %v4751 = vunpack.c.h.b16 %v4662
  %v4752 = vunpack.c.l.b16 %v4663
  %v4753 = vunpack.c.h.b16 %v4663
  %v4754 = vunpack.c.l.b16 %v4664
  %v4755 = vunpack.c.h.b16 %v4664
  %v4756 = vunpack.c.l.b16 %v4665
  %v4757 = vunpack.c.h.b16 %v4665
  %v4758 = vunpack.c.l.b16 %v4666
  %v4759 = vunpack.c.h.b16 %v4666
  %v4760 = vunpack.c.l.b16 %v4667
  %v4761 = vunpack.c.h.b16 %v4667
  %v4762 = vunpack.c.l.b16 %v4668
  %v4763 = vunpack.c.h.b16 %v4668
  %v4764 = vunpack.c.l.b16 %v4669
  %v4765 = vunpack.c.h.b16 %v4669
  %v4766 = vunpack.c.l.b16 %v4670
  %v4767 = vunpack.c.h.b16 %v4670
  %v4768 = vunpack.c.l.b16 %v4671
  %v4769 = vunpack.c.h.b16 %v4671
  %v4770 = vunpack.c.l.b16 %v4672
  %v4771 = vunpack.c.h.b16 %v4672
  %v4772 = vunpack.c.l.b16 %v4673
  %v4773 = vunpack.c.h.b16 %v4673
  %v4774 = vunpack.c.l.b16 %v4674
  %v4775 = vunpack.c.h.b16 %v4674
  %v4776 = vunpack.c.l.b16 %v4675
  %v4777 = vunpack.c.h.b16 %v4675
  %v4778 = vunpack.c.l.b16 %v4676
  %v4779 = vunpack.c.h.b16 %v4676
  %v4780 = vunpack.c.l.b16 %v4677
  %v4781 = vunpack.c.h.b16 %v4677
  %v4782 = vunpack.c.l.b16 %v4678
  %v4783 = vunpack.c.h.b16 %v4678
  %v4784 = vunpack.c.l.b16 %v4679
  %v4785 = vunpack.c.h.b16 %v4679
  %v4786 = vpack.c.b16 %v4726, %v4722
  %v4787 = vpack.c.b16 %v4727, %v4723
  %v4788 = vpack.c.b16 %v4728, %v4724
  %v4789 = vpack.c.b16 %v4729, %v4725
  %v4790 = vpack.c.b16 %v4734, %v4730
  %v4791 = vpack.c.b16 %v4735, %v4731
  %v4792 = vpack.c.b16 %v4736, %v4732
  %v4793 = vpack.c.b16 %v4737, %v4733
  %v4794 = vpack.c.b16 %v4742, %v4738
  %v4795 = vpack.c.b16 %v4743, %v4739
  %v4796 = vpack.c.b16 %v4744, %v4740
  %v4797 = vpack.c.b16 %v4745, %v4741
  %v4798 = vpack.c.b16 %v4750, %v4746
  %v4799 = vpack.c.b16 %v4751, %v4747
  %v4800 = vpack.c.b16 %v4752, %v4748
  %v4801 = vpack.c.b16 %v4753, %v4749
  %v4802 = vpack.c.b16 %v4758, %v4754
  %v4803 = vpack.c.b16 %v4759, %v4755
  %v4804 = vpack.c.b16 %v4760, %v4756
  %v4805 = vpack.c.b16 %v4761, %v4757
  %v4806 = vpack.c.b16 %v4766, %v4762
  %v4807 = vpack.c.b16 %v4767, %v4763
  %v4808 = vpack.c.b16 %v4768, %v4764
  %v4809 = vpack.c.b16 %v4769, %v4765
  %v4810 = vpack.c.b16 %v4774, %v4770
  %v4811 = vpack.c.b16 %v4775, %v4771
  %v4812 = vpack.c.b16 %v4776, %v4772
  %v4813 = vpack.c.b16 %v4777, %v4773
  %v4814 = vpack.c.b16 %v4782, %v4778
  %v4815 = vpack.c.b16 %v4783, %v4779
  %v4816 = vpack.c.b16 %v4784, %v4780
  %v4817 = vpack.c.b16 %v4785, %v4781
  %4850 = vmatpush.bf16.msra.mxu0 %v4814
  %4851 = vmatpush.bf16.msra.mxu0 %v4810
  %4852 = vmatpush.bf16.msra.mxu0 %v4806
  %4853 = vmatpush.bf16.msra.mxu0 %v4802
  %4854 = vmatpush.bf16.msra.mxu0 %v4798
  %4855 = vmatpush.bf16.msra.mxu0 %v4794
  %4856 = vmatpush.bf16.msra.mxu0 %v4790
  %4857 = vmatpush.bf16.msra.mxu0 %v4786
  %4858 = vmatmul.bf16.gmra.mxu0 %v4647
  %v4859 = vpop.f32.mrf.mxu0
  %v4860 = vadd.f32 %v4682, %v4859
  %v4861 = vpop.f32.mrf.mxu0
  %4862 = vdwg.mxu0
  %4863 = vmatpush.bf16.msra.mxu0 %v4815
  %4864 = vmatpush.bf16.msra.mxu0 %v4811
  %4865 = vmatpush.bf16.msra.mxu0 %v4807
  %4866 = vmatpush.bf16.msra.mxu0 %v4803
  %4867 = vmatpush.bf16.msra.mxu0 %v4799
  %4868 = vmatpush.bf16.msra.mxu0 %v4795
  %4869 = vmatpush.bf16.msra.mxu0 %v4791
  %4870 = vmatpush.bf16.msra.mxu0 %v4787
  %4871 = vmatmul.bf16.gmra.mxu0 %v4647
  %v4872 = vpop.f32.mrf.mxu0
  %v4873 = vadd.f32 %v4683, %v4872
  %v4874 = vpop.f32.mrf.mxu0
  %4875 = vdwg.mxu0
  %4876 = vmatpush.bf16.msra.mxu0 %v4816
  %4877 = vmatpush.bf16.msra.mxu0 %v4812
  %4878 = vmatpush.bf16.msra.mxu0 %v4808
  %4879 = vmatpush.bf16.msra.mxu0 %v4804
  %4880 = vmatpush.bf16.msra.mxu0 %v4800
  %4881 = vmatpush.bf16.msra.mxu0 %v4796
  %4882 = vmatpush.bf16.msra.mxu0 %v4792
  %4883 = vmatpush.bf16.msra.mxu0 %v4788
  %4884 = vmatmul.bf16.gmra.mxu0 %v4647
  %v4885 = vpop.f32.mrf.mxu0
  %v4886 = vadd.f32 %v4684, %v4885
  %v4887 = vpop.f32.mrf.mxu0
  %4888 = vdwg.mxu0
  %4889 = vmatpush.bf16.msra.mxu0 %v4817
  %4890 = vmatpush.bf16.msra.mxu0 %v4813
  %4891 = vmatpush.bf16.msra.mxu0 %v4809
  %4892 = vmatpush.bf16.msra.mxu0 %v4805
  %4893 = vmatpush.bf16.msra.mxu0 %v4801
  %4894 = vmatpush.bf16.msra.mxu0 %v4797
  %4895 = vmatpush.bf16.msra.mxu0 %v4793
  %4896 = vmatpush.bf16.msra.mxu0 %v4789
  %4897 = vmatmul.bf16.gmra.mxu0 %v4647
  %v4898 = vpop.f32.mrf.mxu0
  %v4899 = vadd.f32 %v4685, %v4898
  %v4900 = vpop.f32.mrf.mxu0
  %4901 = vdwg.mxu0
  %v4902 = vld [vmem:[#allocation2] sm:$0xff]
  %v4903 = vpack.c.bf16 %v4902, %v4902
  %v4904 = vld [vmem:[%s3184] sm:$0xff]
  %v4905 = vld [vmem:[%s3184 + $0x8] sm:$0xff]
  %v4906 = vld [vmem:[%s3184 + $0x10] sm:$0xff]
  %v4907 = vld [vmem:[%s3184 + $0x18] sm:$0xff]
  %v4908 = vld [vmem:[%s3184 + $0x20] sm:$0xff]
  %v4909 = vld [vmem:[%s3184 + $0x28] sm:$0xff]
  %v4910 = vld [vmem:[%s3184 + $0x30] sm:$0xff]
  %v4911 = vld [vmem:[%s3184 + $0x38] sm:$0xff]
  %v4912 = vld [vmem:[%s3184 + $0x40] sm:$0xff]
  %v4913 = vld [vmem:[%s3184 + $0x48] sm:$0xff]
  %v4914 = vld [vmem:[%s3184 + $0x50] sm:$0xff]
  %v4915 = vld [vmem:[%s3184 + $0x58] sm:$0xff]
  %v4916 = vld [vmem:[%s3184 + $0x60] sm:$0xff]
  %v4917 = vld [vmem:[%s3184 + $0x68] sm:$0xff]
  %v4918 = vld [vmem:[%s3184 + $0x70] sm:$0xff]
  %v4919 = vld [vmem:[%s3184 + $0x78] sm:$0xff]
  %v4920 = vld [vmem:[%s3184 + $0x80] sm:$0xff]
  %v4921 = vld [vmem:[%s3184 + $0x88] sm:$0xff]
  %v4922 = vld [vmem:[%s3184 + $0x90] sm:$0xff]
  %v4923 = vld [vmem:[%s3184 + $0x98] sm:$0xff]
  %v4924 = vld [vmem:[%s3184 + $0xa0] sm:$0xff]
  %v4925 = vld [vmem:[%s3184 + $0xa8] sm:$0xff]
  %v4926 = vld [vmem:[%s3184 + $0xb0] sm:$0xff]
  %v4927 = vld [vmem:[%s3184 + $0xb8] sm:$0xff]
  %v4928 = vld [vmem:[%s3184 + $0xc0] sm:$0xff]
  %v4929 = vld [vmem:[%s3184 + $0xc8] sm:$0xff]
  %v4930 = vld [vmem:[%s3184 + $0xd0] sm:$0xff]
  %v4931 = vld [vmem:[%s3184 + $0xd8] sm:$0xff]
  %v4932 = vld [vmem:[%s3184 + $0xe0] sm:$0xff]
  %v4933 = vld [vmem:[%s3184 + $0xe8] sm:$0xff]
  %v4934 = vld [vmem:[%s3184 + $0xf0] sm:$0xff]
  %v4935 = vld [vmem:[%s3184 + $0xf8] sm:$0xff]
  %v4968 = vunpack.c.l.b16 %v4904
  %v4969 = vunpack.c.h.b16 %v4904
  %v4970 = vunpack.c.l.b16 %v4905
  %v4971 = vunpack.c.h.b16 %v4905
  %v4972 = vunpack.c.l.b16 %v4906
  %v4973 = vunpack.c.h.b16 %v4906
  %v4974 = vunpack.c.l.b16 %v4907
  %v4975 = vunpack.c.h.b16 %v4907
  %v4976 = vunpack.c.l.b16 %v4908
  %v4977 = vunpack.c.h.b16 %v4908
  %v4978 = vunpack.c.l.b16 %v4909
  %v4979 = vunpack.c.h.b16 %v4909
  %v4980 = vunpack.c.l.b16 %v4910
  %v4981 = vunpack.c.h.b16 %v4910
  %v4982 = vunpack.c.l.b16 %v4911
  %v4983 = vunpack.c.h.b16 %v4911
  %v4984 = vunpack.c.l.b16 %v4912
  %v4985 = vunpack.c.h.b16 %v4912
  %v4986 = vunpack.c.l.b16 %v4913
  %v4987 = vunpack.c.h.b16 %v4913
  %v4988 = vunpack.c.l.b16 %v4914
  %v4989 = vunpack.c.h.b16 %v4914
  %v4990 = vunpack.c.l.b16 %v4915
  %v4991 = vunpack.c.h.b16 %v4915
  %v4992 = vunpack.c.l.b16 %v4916
  %v4993 = vunpack.c.h.b16 %v4916
  %v4994 = vunpack.c.l.b16 %v4917
  %v4995 = vunpack.c.h.b16 %v4917
  %v4996 = vunpack.c.l.b16 %v4918
  %v4997 = vunpack.c.h.b16 %v4918
  %v4998 = vunpack.c.l.b16 %v4919
  %v4999 = vunpack.c.h.b16 %v4919
  %v5000 = vunpack.c.l.b16 %v4920
  %v5001 = vunpack.c.h.b16 %v4920
  %v5002 = vunpack.c.l.b16 %v4921
  %v5003 = vunpack.c.h.b16 %v4921
  %v5004 = vunpack.c.l.b16 %v4922
  %v5005 = vunpack.c.h.b16 %v4922
  %v5006 = vunpack.c.l.b16 %v4923
  %v5007 = vunpack.c.h.b16 %v4923
  %v5008 = vunpack.c.l.b16 %v4924
  %v5009 = vunpack.c.h.b16 %v4924
  %v5010 = vunpack.c.l.b16 %v4925
  %v5011 = vunpack.c.h.b16 %v4925
  %v5012 = vunpack.c.l.b16 %v4926
  %v5013 = vunpack.c.h.b16 %v4926
  %v5014 = vunpack.c.l.b16 %v4927
  %v5015 = vunpack.c.h.b16 %v4927
  %v5016 = vunpack.c.l.b16 %v4928
  %v5017 = vunpack.c.h.b16 %v4928
  %v5018 = vunpack.c.l.b16 %v4929
  %v5019 = vunpack.c.h.b16 %v4929
  %v5020 = vunpack.c.l.b16 %v4930
  %v5021 = vunpack.c.h.b16 %v4930
  %v5022 = vunpack.c.l.b16 %v4931
  %v5023 = vunpack.c.h.b16 %v4931
  %v5024 = vunpack.c.l.b16 %v4932
  %v5025 = vunpack.c.h.b16 %v4932
  %v5026 = vunpack.c.l.b16 %v4933
  %v5027 = vunpack.c.h.b16 %v4933
  %v5028 = vunpack.c.l.b16 %v4934
  %v5029 = vunpack.c.h.b16 %v4934
  %v5030 = vunpack.c.l.b16 %v4935
  %v5031 = vunpack.c.h.b16 %v4935
  %v5032 = vpack.c.b16 %v4972, %v4968
  %v5033 = vpack.c.b16 %v4973, %v4969
  %v5034 = vpack.c.b16 %v4974, %v4970
  %v5035 = vpack.c.b16 %v4975, %v4971
  %v5036 = vpack.c.b16 %v4980, %v4976
  %v5037 = vpack.c.b16 %v4981, %v4977
  %v5038 = vpack.c.b16 %v4982, %v4978
  %v5039 = vpack.c.b16 %v4983, %v4979
  %v5040 = vpack.c.b16 %v4988, %v4984
  %v5041 = vpack.c.b16 %v4989, %v4985
  %v5042 = vpack.c.b16 %v4990, %v4986
  %v5043 = vpack.c.b16 %v4991, %v4987
  %v5044 = vpack.c.b16 %v4996, %v4992
  %v5045 = vpack.c.b16 %v4997, %v4993
  %v5046 = vpack.c.b16 %v4998, %v4994
  %v5047 = vpack.c.b16 %v4999, %v4995
  %v5048 = vpack.c.b16 %v5004, %v5000
  %v5049 = vpack.c.b16 %v5005, %v5001
  %v5050 = vpack.c.b16 %v5006, %v5002
  %v5051 = vpack.c.b16 %v5007, %v5003
  %v5052 = vpack.c.b16 %v5012, %v5008
  %v5053 = vpack.c.b16 %v5013, %v5009
  %v5054 = vpack.c.b16 %v5014, %v5010
  %v5055 = vpack.c.b16 %v5015, %v5011
  %v5056 = vpack.c.b16 %v5020, %v5016
  %v5057 = vpack.c.b16 %v5021, %v5017
  %v5058 = vpack.c.b16 %v5022, %v5018
  %v5059 = vpack.c.b16 %v5023, %v5019
  %v5060 = vpack.c.b16 %v5028, %v5024
  %v5061 = vpack.c.b16 %v5029, %v5025
  %v5062 = vpack.c.b16 %v5030, %v5026
  %v5063 = vpack.c.b16 %v5031, %v5027
  %5096 = vmatpush.bf16.msra.mxu0 %v5060
  %5097 = vmatpush.bf16.msra.mxu0 %v5056
  %5098 = vmatpush.bf16.msra.mxu0 %v5052
  %5099 = vmatpush.bf16.msra.mxu0 %v5048
  %5100 = vmatpush.bf16.msra.mxu0 %v5044
  %5101 = vmatpush.bf16.msra.mxu0 %v5040
  %5102 = vmatpush.bf16.msra.mxu0 %v5036
  %5103 = vmatpush.bf16.msra.mxu0 %v5032
  %5104 = vmatmul.bf16.gmra.mxu0 %v4903
  %v5105 = vpop.f32.mrf.mxu0
  %v5106 = vadd.f32 0.0, %v5105
  %v5107 = vpop.f32.mrf.mxu0
  %5108 = vdwg.mxu0
  %5109 = vmatpush.bf16.msra.mxu0 %v5061
  %5110 = vmatpush.bf16.msra.mxu0 %v5057
  %5111 = vmatpush.bf16.msra.mxu0 %v5053
  %5112 = vmatpush.bf16.msra.mxu0 %v5049
  %5113 = vmatpush.bf16.msra.mxu0 %v5045
  %5114 = vmatpush.bf16.msra.mxu0 %v5041
  %5115 = vmatpush.bf16.msra.mxu0 %v5037
  %5116 = vmatpush.bf16.msra.mxu0 %v5033
  %5117 = vmatmul.bf16.gmra.mxu0 %v4903
  %v5118 = vpop.f32.mrf.mxu0
  %v5119 = vadd.f32 0.0, %v5118
  %v5120 = vpop.f32.mrf.mxu0
  %5121 = vdwg.mxu0
  %5122 = vmatpush.bf16.msra.mxu0 %v5062
  %5123 = vmatpush.bf16.msra.mxu0 %v5058
  %5124 = vmatpush.bf16.msra.mxu0 %v5054
  %5125 = vmatpush.bf16.msra.mxu0 %v5050
  %5126 = vmatpush.bf16.msra.mxu0 %v5046
  %5127 = vmatpush.bf16.msra.mxu0 %v5042
  %5128 = vmatpush.bf16.msra.mxu0 %v5038
  %5129 = vmatpush.bf16.msra.mxu0 %v5034
  %5130 = vmatmul.bf16.gmra.mxu0 %v4903
  %v5131 = vpop.f32.mrf.mxu0
  %v5132 = vadd.f32 0.0, %v5131
  %v5133 = vpop.f32.mrf.mxu0
  %5134 = vdwg.mxu0
  %5135 = vmatpush.bf16.msra.mxu0 %v5063
  %5136 = vmatpush.bf16.msra.mxu0 %v5059
  %5137 = vmatpush.bf16.msra.mxu0 %v5055
  %5138 = vmatpush.bf16.msra.mxu0 %v5051
  %5139 = vmatpush.bf16.msra.mxu0 %v5047
  %5140 = vmatpush.bf16.msra.mxu0 %v5043
  %5141 = vmatpush.bf16.msra.mxu0 %v5039
  %5142 = vmatpush.bf16.msra.mxu0 %v5035
  %5143 = vmatmul.bf16.gmra.mxu0 %v4903
  %v5144 = vpop.f32.mrf.mxu0
  %v5145 = vadd.f32 0.0, %v5144
  %v5146 = vpop.f32.mrf.mxu0
  %5147 = vdwg.mxu0
  %v5148 = vadd.f32 %v4860, %v5106
  %v5149 = vadd.f32 %v4873, %v5119
  %v5150 = vadd.f32 %v4886, %v5132
  %v5151 = vadd.f32 %v4899, %v5145
  %v5152 = vxor.u32 %v5148, 2147483648
  %v5153 = vmul.f32 %v5152, 1.442695
  %v5154 = vpow.pop %v5153
  %v5155 = vadd.f32 %v5154, 1.0
  %v5156 = vrcp.pop %v5155
  %v5157 = vmul.f32 %v5155, %v5156
  %v5158 = vsub.f32 1.0, %v5157
  %v5159 = vmul.f32 %v5156, %v5158
  %v5160 = vadd.f32 %v5156, %v5159
  %vm5161 = vweird.f32 %v5155
  %vm5162 = vweird.f32 %v5156
  %vm5163 = vmor %vm5161, %vm5162
  %v5164 = vsel %vm5163, %v5156, %v5160
  %v5165 = vand.u32 2147483647, %v5155
  %vm5166 = vcmp.eq.f32.partialorder %v5165, 8.507059e+37
  %v5167 = vand.u32 %v5155, 2147483648
  %v5168 = vor.u32 1.1754944e-38, %v5167
  %v5169 = vsel %vm5166, %v5168, %v5164
  %v5170 = vmul.f32 1.0, %v5169
  %v5171 = vxor.u32 %v5149, 2147483648
  %v5172 = vmul.f32 %v5171, 1.442695
  %v5173 = vpow.pop %v5172
  %v5174 = vadd.f32 %v5173, 1.0
  %v5175 = vrcp.pop %v5174
  %v5176 = vmul.f32 %v5174, %v5175
  %v5177 = vsub.f32 1.0, %v5176
  %v5178 = vmul.f32 %v5175, %v5177
  %v5179 = vadd.f32 %v5175, %v5178
  %vm5180 = vweird.f32 %v5174
  %vm5181 = vweird.f32 %v5175
  %vm5182 = vmor %vm5180, %vm5181
  %v5183 = vsel %vm5182, %v5175, %v5179
  %v5184 = vand.u32 2147483647, %v5174
  %vm5185 = vcmp.eq.f32.partialorder %v5184, 8.507059e+37
  %v5186 = vand.u32 %v5174, 2147483648
  %v5187 = vor.u32 1.1754944e-38, %v5186
  %v5188 = vsel %vm5185, %v5187, %v5183
  %v5189 = vmul.f32 1.0, %v5188
  %v5190 = vtanh.pop %v5150
  %v5191 = vxor.u32 %v5151, 2147483648
  %v5192 = vmul.f32 %v5191, 1.442695
  %v5193 = vpow.pop %v5192
  %v5194 = vadd.f32 %v5193, 1.0
  %v5195 = vrcp.pop %v5194
  %v5196 = vmul.f32 %v5194, %v5195
  %v5197 = vsub.f32 1.0, %v5196
  %v5198 = vmul.f32 %v5195, %v5197
  %v5199 = vadd.f32 %v5195, %v5198
  %vm5200 = vweird.f32 %v5194
  %vm5201 = vweird.f32 %v5195
  %vm5202 = vmor %vm5200, %vm5201
  %v5203 = vsel %vm5202, %v5195, %v5199
  %v5204 = vand.u32 2147483647, %v5194
  %vm5205 = vcmp.eq.f32.partialorder %v5204, 8.507059e+37
  %v5206 = vand.u32 %v5194, 2147483648
  %v5207 = vor.u32 1.1754944e-38, %v5206
  %v5208 = vsel %vm5205, %v5207, %v5203
  %v5209 = vmul.f32 1.0, %v5208
  %v5210 = vld [vmem:[#allocation3] sm:$0xff]
  %v5211 = vmul.f32 %v5189, %v5210
  %v5212 = vmul.f32 %v5170, %v5190
  %v5213 = vadd.f32 %v5211, %v5212
  %v5214 = vtanh.pop %v5213
  %v5215 = vmul.f32 %v5209, %v5214
  %5216 = vst [vmem:[#allocation3] sm:$0xff] %v5213
  %5217 = vst [vmem:[#allocation2] sm:$0xff] %v5215
  %5218 = vst [vmem:[%s1307] sm:$0xff] %v5215
  %v5219 = vld [vmem:[%s1630] sm:$0xff]
  %v5220 = vpack.c.bf16 %v5219, %v5219
  %v5221 = vld [vmem:[%s2] sm:$0xff]
  %v5222 = vld [vmem:[%s2 + $0x8] sm:$0xff]
  %v5223 = vld [vmem:[%s2 + $0x10] sm:$0xff]
  %v5224 = vld [vmem:[%s2 + $0x18] sm:$0xff]
  %v5225 = vld [vmem:[%s2 + $0x20] sm:$0xff]
  %v5226 = vld [vmem:[%s2 + $0x28] sm:$0xff]
  %v5227 = vld [vmem:[%s2 + $0x30] sm:$0xff]
  %v5228 = vld [vmem:[%s2 + $0x38] sm:$0xff]
  %v5229 = vld [vmem:[%s2 + $0x40] sm:$0xff]
  %v5230 = vld [vmem:[%s2 + $0x48] sm:$0xff]
  %v5231 = vld [vmem:[%s2 + $0x50] sm:$0xff]
  %v5232 = vld [vmem:[%s2 + $0x58] sm:$0xff]
  %v5233 = vld [vmem:[%s2 + $0x60] sm:$0xff]
  %v5234 = vld [vmem:[%s2 + $0x68] sm:$0xff]
  %v5235 = vld [vmem:[%s2 + $0x70] sm:$0xff]
  %v5236 = vld [vmem:[%s2 + $0x78] sm:$0xff]
  %v5237 = vld [vmem:[%s2 + $0x80] sm:$0xff]
  %v5238 = vld [vmem:[%s2 + $0x88] sm:$0xff]
  %v5239 = vld [vmem:[%s2 + $0x90] sm:$0xff]
  %v5240 = vld [vmem:[%s2 + $0x98] sm:$0xff]
  %v5241 = vld [vmem:[%s2 + $0xa0] sm:$0xff]
  %v5242 = vld [vmem:[%s2 + $0xa8] sm:$0xff]
  %v5243 = vld [vmem:[%s2 + $0xb0] sm:$0xff]
  %v5244 = vld [vmem:[%s2 + $0xb8] sm:$0xff]
  %v5245 = vld [vmem:[%s2 + $0xc0] sm:$0xff]
  %v5246 = vld [vmem:[%s2 + $0xc8] sm:$0xff]
  %v5247 = vld [vmem:[%s2 + $0xd0] sm:$0xff]
  %v5248 = vld [vmem:[%s2 + $0xd8] sm:$0xff]
  %v5249 = vld [vmem:[%s2 + $0xe0] sm:$0xff]
  %v5250 = vld [vmem:[%s2 + $0xe8] sm:$0xff]
  %v5251 = vld [vmem:[%s2 + $0xf0] sm:$0xff]
  %v5252 = vld [vmem:[%s2 + $0xf8] sm:$0xff]
  %v5253 = vld [vmem:[%s3] sm:$0xf]
  %v5255 = vperm.slane %v5253, 0
  %v5256 = vperm.slane %v5253, 1
  %v5257 = vperm.slane %v5253, 2
  %v5258 = vperm.slane %v5253, 3
  %v5295 = vunpack.c.l.b16 %v5221
  %v5296 = vunpack.c.h.b16 %v5221
  %v5297 = vunpack.c.l.b16 %v5222
  %v5298 = vunpack.c.h.b16 %v5222
  %v5299 = vunpack.c.l.b16 %v5223
  %v5300 = vunpack.c.h.b16 %v5223
  %v5301 = vunpack.c.l.b16 %v5224
  %v5302 = vunpack.c.h.b16 %v5224
  %v5303 = vunpack.c.l.b16 %v5225
  %v5304 = vunpack.c.h.b16 %v5225
  %v5305 = vunpack.c.l.b16 %v5226
  %v5306 = vunpack.c.h.b16 %v5226
  %v5307 = vunpack.c.l.b16 %v5227
  %v5308 = vunpack.c.h.b16 %v5227
  %v5309 = vunpack.c.l.b16 %v5228
  %v5310 = vunpack.c.h.b16 %v5228
  %v5311 = vunpack.c.l.b16 %v5229
  %v5312 = vunpack.c.h.b16 %v5229
  %v5313 = vunpack.c.l.b16 %v5230
  %v5314 = vunpack.c.h.b16 %v5230
  %v5315 = vunpack.c.l.b16 %v5231
  %v5316 = vunpack.c.h.b16 %v5231
  %v5317 = vunpack.c.l.b16 %v5232
  %v5318 = vunpack.c.h.b16 %v5232
  %v5319 = vunpack.c.l.b16 %v5233
  %v5320 = vunpack.c.h.b16 %v5233
  %v5321 = vunpack.c.l.b16 %v5234
  %v5322 = vunpack.c.h.b16 %v5234
  %v5323 = vunpack.c.l.b16 %v5235
  %v5324 = vunpack.c.h.b16 %v5235
  %v5325 = vunpack.c.l.b16 %v5236
  %v5326 = vunpack.c.h.b16 %v5236
  %v5327 = vunpack.c.l.b16 %v5237
  %v5328 = vunpack.c.h.b16 %v5237
  %v5329 = vunpack.c.l.b16 %v5238
  %v5330 = vunpack.c.h.b16 %v5238
  %v5331 = vunpack.c.l.b16 %v5239
  %v5332 = vunpack.c.h.b16 %v5239
  %v5333 = vunpack.c.l.b16 %v5240
  %v5334 = vunpack.c.h.b16 %v5240
  %v5335 = vunpack.c.l.b16 %v5241
  %v5336 = vunpack.c.h.b16 %v5241
  %v5337 = vunpack.c.l.b16 %v5242
  %v5338 = vunpack.c.h.b16 %v5242
  %v5339 = vunpack.c.l.b16 %v5243
  %v5340 = vunpack.c.h.b16 %v5243
  %v5341 = vunpack.c.l.b16 %v5244
  %v5342 = vunpack.c.h.b16 %v5244
  %v5343 = vunpack.c.l.b16 %v5245
  %v5344 = vunpack.c.h.b16 %v5245
  %v5345 = vunpack.c.l.b16 %v5246
  %v5346 = vunpack.c.h.b16 %v5246
  %v5347 = vunpack.c.l.b16 %v5247
  %v5348 = vunpack.c.h.b16 %v5247
  %v5349 = vunpack.c.l.b16 %v5248
  %v5350 = vunpack.c.h.b16 %v5248
  %v5351 = vunpack.c.l.b16 %v5249
  %v5352 = vunpack.c.h.b16 %v5249
  %v5353 = vunpack.c.l.b16 %v5250
  %v5354 = vunpack.c.h.b16 %v5250
  %v5355 = vunpack.c.l.b16 %v5251
  %v5356 = vunpack.c.h.b16 %v5251
  %v5357 = vunpack.c.l.b16 %v5252
  %v5358 = vunpack.c.h.b16 %v5252
  %v5359 = vpack.c.b16 %v5299, %v5295
  %v5360 = vpack.c.b16 %v5300, %v5296
  %v5361 = vpack.c.b16 %v5301, %v5297
  %v5362 = vpack.c.b16 %v5302, %v5298
  %v5363 = vpack.c.b16 %v5307, %v5303
  %v5364 = vpack.c.b16 %v5308, %v5304
  %v5365 = vpack.c.b16 %v5309, %v5305
  %v5366 = vpack.c.b16 %v5310, %v5306
  %v5367 = vpack.c.b16 %v5315, %v5311
  %v5368 = vpack.c.b16 %v5316, %v5312
  %v5369 = vpack.c.b16 %v5317, %v5313
  %v5370 = vpack.c.b16 %v5318, %v5314
  %v5371 = vpack.c.b16 %v5323, %v5319
  %v5372 = vpack.c.b16 %v5324, %v5320
  %v5373 = vpack.c.b16 %v5325, %v5321
  %v5374 = vpack.c.b16 %v5326, %v5322
  %v5375 = vpack.c.b16 %v5331, %v5327
  %v5376 = vpack.c.b16 %v5332, %v5328
  %v5377 = vpack.c.b16 %v5333, %v5329
  %v5378 = vpack.c.b16 %v5334, %v5330
  %v5379 = vpack.c.b16 %v5339, %v5335
  %v5380 = vpack.c.b16 %v5340, %v5336
  %v5381 = vpack.c.b16 %v5341, %v5337
  %v5382 = vpack.c.b16 %v5342, %v5338
  %v5383 = vpack.c.b16 %v5347, %v5343
  %v5384 = vpack.c.b16 %v5348, %v5344
  %v5385 = vpack.c.b16 %v5349, %v5345
  %v5386 = vpack.c.b16 %v5350, %v5346
  %v5387 = vpack.c.b16 %v5355, %v5351
  %v5388 = vpack.c.b16 %v5356, %v5352
  %v5389 = vpack.c.b16 %v5357, %v5353
  %v5390 = vpack.c.b16 %v5358, %v5354
  %5423 = vmatpush.bf16.msra.mxu0 %v5387
  %5424 = vmatpush.bf16.msra.mxu0 %v5383
  %5425 = vmatpush.bf16.msra.mxu0 %v5379
  %5426 = vmatpush.bf16.msra.mxu0 %v5375
  %5427 = vmatpush.bf16.msra.mxu0 %v5371
  %5428 = vmatpush.bf16.msra.mxu0 %v5367
  %5429 = vmatpush.bf16.msra.mxu0 %v5363
  %5430 = vmatpush.bf16.msra.mxu0 %v5359
  %5431 = vmatmul.bf16.gmra.mxu0 %v5220
  %v5432 = vpop.f32.mrf.mxu0
  %v5433 = vadd.f32 %v5255, %v5432
  %v5434 = vpop.f32.mrf.mxu0
  %5435 = vdwg.mxu0
  %5436 = vmatpush.bf16.msra.mxu0 %v5388
  %5437 = vmatpush.bf16.msra.mxu0 %v5384
  %5438 = vmatpush.bf16.msra.mxu0 %v5380
  %5439 = vmatpush.bf16.msra.mxu0 %v5376
  %5440 = vmatpush.bf16.msra.mxu0 %v5372
  %5441 = vmatpush.bf16.msra.mxu0 %v5368
  %5442 = vmatpush.bf16.msra.mxu0 %v5364
  %5443 = vmatpush.bf16.msra.mxu0 %v5360
  %5444 = vmatmul.bf16.gmra.mxu0 %v5220
  %v5445 = vpop.f32.mrf.mxu0
  %v5446 = vadd.f32 %v5256, %v5445
  %v5447 = vpop.f32.mrf.mxu0
  %5448 = vdwg.mxu0
  %5449 = vmatpush.bf16.msra.mxu0 %v5389
  %5450 = vmatpush.bf16.msra.mxu0 %v5385
  %5451 = vmatpush.bf16.msra.mxu0 %v5381
  %5452 = vmatpush.bf16.msra.mxu0 %v5377
  %5453 = vmatpush.bf16.msra.mxu0 %v5373
  %5454 = vmatpush.bf16.msra.mxu0 %v5369
  %5455 = vmatpush.bf16.msra.mxu0 %v5365
  %5456 = vmatpush.bf16.msra.mxu0 %v5361
  %5457 = vmatmul.bf16.gmra.mxu0 %v5220
  %v5458 = vpop.f32.mrf.mxu0
  %v5459 = vadd.f32 %v5257, %v5458
  %v5460 = vpop.f32.mrf.mxu0
  %5461 = vdwg.mxu0
  %5462 = vmatpush.bf16.msra.mxu0 %v5390
  %5463 = vmatpush.bf16.msra.mxu0 %v5386
  %5464 = vmatpush.bf16.msra.mxu0 %v5382
  %5465 = vmatpush.bf16.msra.mxu0 %v5378
  %5466 = vmatpush.bf16.msra.mxu0 %v5374
  %5467 = vmatpush.bf16.msra.mxu0 %v5370
  %5468 = vmatpush.bf16.msra.mxu0 %v5366
  %5469 = vmatpush.bf16.msra.mxu0 %v5362
  %5470 = vmatmul.bf16.gmra.mxu0 %v5220
  %v5471 = vpop.f32.mrf.mxu0
  %v5472 = vadd.f32 %v5258, %v5471
  %v5473 = vpop.f32.mrf.mxu0
  %5474 = vdwg.mxu0
  %v5475 = vld [vmem:[#allocation2] sm:$0xff]
  %v5476 = vpack.c.bf16 %v5475, %v5475
  %v5477 = vld [vmem:[%s3184] sm:$0xff]
  %v5478 = vld [vmem:[%s3184 + $0x8] sm:$0xff]
  %v5479 = vld [vmem:[%s3184 + $0x10] sm:$0xff]
  %v5480 = vld [vmem:[%s3184 + $0x18] sm:$0xff]
  %v5481 = vld [vmem:[%s3184 + $0x20] sm:$0xff]
  %v5482 = vld [vmem:[%s3184 + $0x28] sm:$0xff]
  %v5483 = vld [vmem:[%s3184 + $0x30] sm:$0xff]
  %v5484 = vld [vmem:[%s3184 + $0x38] sm:$0xff]
  %v5485 = vld [vmem:[%s3184 + $0x40] sm:$0xff]
  %v5486 = vld [vmem:[%s3184 + $0x48] sm:$0xff]
  %v5487 = vld [vmem:[%s3184 + $0x50] sm:$0xff]
  %v5488 = vld [vmem:[%s3184 + $0x58] sm:$0xff]
  %v5489 = vld [vmem:[%s3184 + $0x60] sm:$0xff]
  %v5490 = vld [vmem:[%s3184 + $0x68] sm:$0xff]
  %v5491 = vld [vmem:[%s3184 + $0x70] sm:$0xff]
  %v5492 = vld [vmem:[%s3184 + $0x78] sm:$0xff]
  %v5493 = vld [vmem:[%s3184 + $0x80] sm:$0xff]
  %v5494 = vld [vmem:[%s3184 + $0x88] sm:$0xff]
  %v5495 = vld [vmem:[%s3184 + $0x90] sm:$0xff]
  %v5496 = vld [vmem:[%s3184 + $0x98] sm:$0xff]
  %v5497 = vld [vmem:[%s3184 + $0xa0] sm:$0xff]
  %v5498 = vld [vmem:[%s3184 + $0xa8] sm:$0xff]
  %v5499 = vld [vmem:[%s3184 + $0xb0] sm:$0xff]
  %v5500 = vld [vmem:[%s3184 + $0xb8] sm:$0xff]
  %v5501 = vld [vmem:[%s3184 + $0xc0] sm:$0xff]
  %v5502 = vld [vmem:[%s3184 + $0xc8] sm:$0xff]
  %v5503 = vld [vmem:[%s3184 + $0xd0] sm:$0xff]
  %v5504 = vld [vmem:[%s3184 + $0xd8] sm:$0xff]
  %v5505 = vld [vmem:[%s3184 + $0xe0] sm:$0xff]
  %v5506 = vld [vmem:[%s3184 + $0xe8] sm:$0xff]
  %v5507 = vld [vmem:[%s3184 + $0xf0] sm:$0xff]
  %v5508 = vld [vmem:[%s3184 + $0xf8] sm:$0xff]
  %v5541 = vunpack.c.l.b16 %v5477
  %v5542 = vunpack.c.h.b16 %v5477
  %v5543 = vunpack.c.l.b16 %v5478
  %v5544 = vunpack.c.h.b16 %v5478
  %v5545 = vunpack.c.l.b16 %v5479
  %v5546 = vunpack.c.h.b16 %v5479
  %v5547 = vunpack.c.l.b16 %v5480
  %v5548 = vunpack.c.h.b16 %v5480
  %v5549 = vunpack.c.l.b16 %v5481
  %v5550 = vunpack.c.h.b16 %v5481
  %v5551 = vunpack.c.l.b16 %v5482
  %v5552 = vunpack.c.h.b16 %v5482
  %v5553 = vunpack.c.l.b16 %v5483
  %v5554 = vunpack.c.h.b16 %v5483
  %v5555 = vunpack.c.l.b16 %v5484
  %v5556 = vunpack.c.h.b16 %v5484
  %v5557 = vunpack.c.l.b16 %v5485
  %v5558 = vunpack.c.h.b16 %v5485
  %v5559 = vunpack.c.l.b16 %v5486
  %v5560 = vunpack.c.h.b16 %v5486
  %v5561 = vunpack.c.l.b16 %v5487
  %v5562 = vunpack.c.h.b16 %v5487
  %v5563 = vunpack.c.l.b16 %v5488
  %v5564 = vunpack.c.h.b16 %v5488
  %v5565 = vunpack.c.l.b16 %v5489
  %v5566 = vunpack.c.h.b16 %v5489
  %v5567 = vunpack.c.l.b16 %v5490
  %v5568 = vunpack.c.h.b16 %v5490
  %v5569 = vunpack.c.l.b16 %v5491
  %v5570 = vunpack.c.h.b16 %v5491
  %v5571 = vunpack.c.l.b16 %v5492
  %v5572 = vunpack.c.h.b16 %v5492
  %v5573 = vunpack.c.l.b16 %v5493
  %v5574 = vunpack.c.h.b16 %v5493
  %v5575 = vunpack.c.l.b16 %v5494
  %v5576 = vunpack.c.h.b16 %v5494
  %v5577 = vunpack.c.l.b16 %v5495
  %v5578 = vunpack.c.h.b16 %v5495
  %v5579 = vunpack.c.l.b16 %v5496
  %v5580 = vunpack.c.h.b16 %v5496
  %v5581 = vunpack.c.l.b16 %v5497
  %v5582 = vunpack.c.h.b16 %v5497
  %v5583 = vunpack.c.l.b16 %v5498
  %v5584 = vunpack.c.h.b16 %v5498
  %v5585 = vunpack.c.l.b16 %v5499
  %v5586 = vunpack.c.h.b16 %v5499
  %v5587 = vunpack.c.l.b16 %v5500
  %v5588 = vunpack.c.h.b16 %v5500
  %v5589 = vunpack.c.l.b16 %v5501
  %v5590 = vunpack.c.h.b16 %v5501
  %v5591 = vunpack.c.l.b16 %v5502
  %v5592 = vunpack.c.h.b16 %v5502
  %v5593 = vunpack.c.l.b16 %v5503
  %v5594 = vunpack.c.h.b16 %v5503
  %v5595 = vunpack.c.l.b16 %v5504
  %v5596 = vunpack.c.h.b16 %v5504
  %v5597 = vunpack.c.l.b16 %v5505
  %v5598 = vunpack.c.h.b16 %v5505
  %v5599 = vunpack.c.l.b16 %v5506
  %v5600 = vunpack.c.h.b16 %v5506
  %v5601 = vunpack.c.l.b16 %v5507
  %v5602 = vunpack.c.h.b16 %v5507
  %v5603 = vunpack.c.l.b16 %v5508
  %v5604 = vunpack.c.h.b16 %v5508
  %v5605 = vpack.c.b16 %v5545, %v5541
  %v5606 = vpack.c.b16 %v5546, %v5542
  %v5607 = vpack.c.b16 %v5547, %v5543
  %v5608 = vpack.c.b16 %v5548, %v5544
  %v5609 = vpack.c.b16 %v5553, %v5549
  %v5610 = vpack.c.b16 %v5554, %v5550
  %v5611 = vpack.c.b16 %v5555, %v5551
  %v5612 = vpack.c.b16 %v5556, %v5552
  %v5613 = vpack.c.b16 %v5561, %v5557
  %v5614 = vpack.c.b16 %v5562, %v5558
  %v5615 = vpack.c.b16 %v5563, %v5559
  %v5616 = vpack.c.b16 %v5564, %v5560
  %v5617 = vpack.c.b16 %v5569, %v5565
  %v5618 = vpack.c.b16 %v5570, %v5566
  %v5619 = vpack.c.b16 %v5571, %v5567
  %v5620 = vpack.c.b16 %v5572, %v5568
  %v5621 = vpack.c.b16 %v5577, %v5573
  %v5622 = vpack.c.b16 %v5578, %v5574
  %v5623 = vpack.c.b16 %v5579, %v5575
  %v5624 = vpack.c.b16 %v5580, %v5576
  %v5625 = vpack.c.b16 %v5585, %v5581
  %v5626 = vpack.c.b16 %v5586, %v5582
  %v5627 = vpack.c.b16 %v5587, %v5583
  %v5628 = vpack.c.b16 %v5588, %v5584
  %v5629 = vpack.c.b16 %v5593, %v5589
  %v5630 = vpack.c.b16 %v5594, %v5590
  %v5631 = vpack.c.b16 %v5595, %v5591
  %v5632 = vpack.c.b16 %v5596, %v5592
  %v5633 = vpack.c.b16 %v5601, %v5597
  %v5634 = vpack.c.b16 %v5602, %v5598
  %v5635 = vpack.c.b16 %v5603, %v5599
  %v5636 = vpack.c.b16 %v5604, %v5600
  %5669 = vmatpush.bf16.msra.mxu0 %v5633
  %5670 = vmatpush.bf16.msra.mxu0 %v5629
  %5671 = vmatpush.bf16.msra.mxu0 %v5625
  %5672 = vmatpush.bf16.msra.mxu0 %v5621
  %5673 = vmatpush.bf16.msra.mxu0 %v5617
  %5674 = vmatpush.bf16.msra.mxu0 %v5613
  %5675 = vmatpush.bf16.msra.mxu0 %v5609
  %5676 = vmatpush.bf16.msra.mxu0 %v5605
  %5677 = vmatmul.bf16.gmra.mxu0 %v5476
  %v5678 = vpop.f32.mrf.mxu0
  %v5679 = vadd.f32 0.0, %v5678
  %v5680 = vpop.f32.mrf.mxu0
  %5681 = vdwg.mxu0
  %5682 = vmatpush.bf16.msra.mxu0 %v5634
  %5683 = vmatpush.bf16.msra.mxu0 %v5630
  %5684 = vmatpush.bf16.msra.mxu0 %v5626
  %5685 = vmatpush.bf16.msra.mxu0 %v5622
  %5686 = vmatpush.bf16.msra.mxu0 %v5618
  %5687 = vmatpush.bf16.msra.mxu0 %v5614
  %5688 = vmatpush.bf16.msra.mxu0 %v5610
  %5689 = vmatpush.bf16.msra.mxu0 %v5606
  %5690 = vmatmul.bf16.gmra.mxu0 %v5476
  %v5691 = vpop.f32.mrf.mxu0
  %v5692 = vadd.f32 0.0, %v5691
  %v5693 = vpop.f32.mrf.mxu0
  %5694 = vdwg.mxu0
  %5695 = vmatpush.bf16.msra.mxu0 %v5635
  %5696 = vmatpush.bf16.msra.mxu0 %v5631
  %5697 = vmatpush.bf16.msra.mxu0 %v5627
  %5698 = vmatpush.bf16.msra.mxu0 %v5623
  %5699 = vmatpush.bf16.msra.mxu0 %v5619
  %5700 = vmatpush.bf16.msra.mxu0 %v5615
  %5701 = vmatpush.bf16.msra.mxu0 %v5611
  %5702 = vmatpush.bf16.msra.mxu0 %v5607
  %5703 = vmatmul.bf16.gmra.mxu0 %v5476
  %v5704 = vpop.f32.mrf.mxu0
  %v5705 = vadd.f32 0.0, %v5704
  %v5706 = vpop.f32.mrf.mxu0
  %5707 = vdwg.mxu0
  %5708 = vmatpush.bf16.msra.mxu0 %v5636
  %5709 = vmatpush.bf16.msra.mxu0 %v5632
  %5710 = vmatpush.bf16.msra.mxu0 %v5628
  %5711 = vmatpush.bf16.msra.mxu0 %v5624
  %5712 = vmatpush.bf16.msra.mxu0 %v5620
  %5713 = vmatpush.bf16.msra.mxu0 %v5616
  %5714 = vmatpush.bf16.msra.mxu0 %v5612
  %5715 = vmatpush.bf16.msra.mxu0 %v5608
  %5716 = vmatmul.bf16.gmra.mxu0 %v5476
  %v5717 = vpop.f32.mrf.mxu0
  %v5718 = vadd.f32 0.0, %v5717
  %v5719 = vpop.f32.mrf.mxu0
  %5720 = vdwg.mxu0
  %v5721 = vadd.f32 %v5433, %v5679
  %v5722 = vadd.f32 %v5446, %v5692
  %v5723 = vadd.f32 %v5459, %v5705
  %v5724 = vadd.f32 %v5472, %v5718
  %v5725 = vxor.u32 %v5721, 2147483648
  %v5726 = vmul.f32 %v5725, 1.442695
  %v5727 = vpow.pop %v5726
  %v5728 = vadd.f32 %v5727, 1.0
  %v5729 = vrcp.pop %v5728
  %v5730 = vmul.f32 %v5728, %v5729
  %v5731 = vsub.f32 1.0, %v5730
  %v5732 = vmul.f32 %v5729, %v5731
  %v5733 = vadd.f32 %v5729, %v5732
  %vm5734 = vweird.f32 %v5728
  %vm5735 = vweird.f32 %v5729
  %vm5736 = vmor %vm5734, %vm5735
  %v5737 = vsel %vm5736, %v5729, %v5733
  %v5738 = vand.u32 2147483647, %v5728
  %vm5739 = vcmp.eq.f32.partialorder %v5738, 8.507059e+37
  %v5740 = vand.u32 %v5728, 2147483648
  %v5741 = vor.u32 1.1754944e-38, %v5740
  %v5742 = vsel %vm5739, %v5741, %v5737
  %v5743 = vmul.f32 1.0, %v5742
  %v5744 = vxor.u32 %v5722, 2147483648
  %v5745 = vmul.f32 %v5744, 1.442695
  %v5746 = vpow.pop %v5745
  %v5747 = vadd.f32 %v5746, 1.0
  %v5748 = vrcp.pop %v5747
  %v5749 = vmul.f32 %v5747, %v5748
  %v5750 = vsub.f32 1.0, %v5749
  %v5751 = vmul.f32 %v5748, %v5750
  %v5752 = vadd.f32 %v5748, %v5751
  %vm5753 = vweird.f32 %v5747
  %vm5754 = vweird.f32 %v5748
  %vm5755 = vmor %vm5753, %vm5754
  %v5756 = vsel %vm5755, %v5748, %v5752
  %v5757 = vand.u32 2147483647, %v5747
  %vm5758 = vcmp.eq.f32.partialorder %v5757, 8.507059e+37
  %v5759 = vand.u32 %v5747, 2147483648
  %v5760 = vor.u32 1.1754944e-38, %v5759
  %v5761 = vsel %vm5758, %v5760, %v5756
  %v5762 = vmul.f32 1.0, %v5761
  %v5763 = vtanh.pop %v5723
  %v5764 = vxor.u32 %v5724, 2147483648
  %v5765 = vmul.f32 %v5764, 1.442695
  %v5766 = vpow.pop %v5765
  %v5767 = vadd.f32 %v5766, 1.0
  %v5768 = vrcp.pop %v5767
  %v5769 = vmul.f32 %v5767, %v5768
  %v5770 = vsub.f32 1.0, %v5769
  %v5771 = vmul.f32 %v5768, %v5770
  %v5772 = vadd.f32 %v5768, %v5771
  %vm5773 = vweird.f32 %v5767
  %vm5774 = vweird.f32 %v5768
  %vm5775 = vmor %vm5773, %vm5774
  %v5776 = vsel %vm5775, %v5768, %v5772
  %v5777 = vand.u32 2147483647, %v5767
  %vm5778 = vcmp.eq.f32.partialorder %v5777, 8.507059e+37
  %v5779 = vand.u32 %v5767, 2147483648
  %v5780 = vor.u32 1.1754944e-38, %v5779
  %v5781 = vsel %vm5778, %v5780, %v5776
  %v5782 = vmul.f32 1.0, %v5781
  %v5783 = vld [vmem:[#allocation3] sm:$0xff]
  %v5784 = vmul.f32 %v5762, %v5783
  %v5785 = vmul.f32 %v5743, %v5763
  %v5786 = vadd.f32 %v5784, %v5785
  %v5787 = vtanh.pop %v5786
  %v5788 = vmul.f32 %v5782, %v5787
  %5789 = vst [vmem:[#allocation3] sm:$0xff] %v5786
  %5790 = vst [vmem:[#allocation2] sm:$0xff] %v5788
  %5791 = vst [vmem:[%s1630] sm:$0xff] %v5788
  %v5792 = vld [vmem:[%s1953] sm:$0xff]
  %v5793 = vpack.c.bf16 %v5792, %v5792
  %v5794 = vld [vmem:[%s2] sm:$0xff]
  %v5795 = vld [vmem:[%s2 + $0x8] sm:$0xff]
  %v5796 = vld [vmem:[%s2 + $0x10] sm:$0xff]
  %v5797 = vld [vmem:[%s2 + $0x18] sm:$0xff]
  %v5798 = vld [vmem:[%s2 + $0x20] sm:$0xff]
  %v5799 = vld [vmem:[%s2 + $0x28] sm:$0xff]
  %v5800 = vld [vmem:[%s2 + $0x30] sm:$0xff]
  %v5801 = vld [vmem:[%s2 + $0x38] sm:$0xff]
  %v5802 = vld [vmem:[%s2 + $0x40] sm:$0xff]
  %v5803 = vld [vmem:[%s2 + $0x48] sm:$0xff]
  %v5804 = vld [vmem:[%s2 + $0x50] sm:$0xff]
  %v5805 = vld [vmem:[%s2 + $0x58] sm:$0xff]
  %v5806 = vld [vmem:[%s2 + $0x60] sm:$0xff]
  %v5807 = vld [vmem:[%s2 + $0x68] sm:$0xff]
  %v5808 = vld [vmem:[%s2 + $0x70] sm:$0xff]
  %v5809 = vld [vmem:[%s2 + $0x78] sm:$0xff]
  %v5810 = vld [vmem:[%s2 + $0x80] sm:$0xff]
  %v5811 = vld [vmem:[%s2 + $0x88] sm:$0xff]
  %v5812 = vld [vmem:[%s2 + $0x90] sm:$0xff]
  %v5813 = vld [vmem:[%s2 + $0x98] sm:$0xff]
  %v5814 = vld [vmem:[%s2 + $0xa0] sm:$0xff]
  %v5815 = vld [vmem:[%s2 + $0xa8] sm:$0xff]
  %v5816 = vld [vmem:[%s2 + $0xb0] sm:$0xff]
  %v5817 = vld [vmem:[%s2 + $0xb8] sm:$0xff]
  %v5818 = vld [vmem:[%s2 + $0xc0] sm:$0xff]
  %v5819 = vld [vmem:[%s2 + $0xc8] sm:$0xff]
  %v5820 = vld [vmem:[%s2 + $0xd0] sm:$0xff]
  %v5821 = vld [vmem:[%s2 + $0xd8] sm:$0xff]
  %v5822 = vld [vmem:[%s2 + $0xe0] sm:$0xff]
  %v5823 = vld [vmem:[%s2 + $0xe8] sm:$0xff]
  %v5824 = vld [vmem:[%s2 + $0xf0] sm:$0xff]
  %v5825 = vld [vmem:[%s2 + $0xf8] sm:$0xff]
  %v5826 = vld [vmem:[%s3] sm:$0xf]
  %v5828 = vperm.slane %v5826, 0
  %v5829 = vperm.slane %v5826, 1
  %v5830 = vperm.slane %v5826, 2
  %v5831 = vperm.slane %v5826, 3
  %v5868 = vunpack.c.l.b16 %v5794
  %v5869 = vunpack.c.h.b16 %v5794
  %v5870 = vunpack.c.l.b16 %v5795
  %v5871 = vunpack.c.h.b16 %v5795
  %v5872 = vunpack.c.l.b16 %v5796
  %v5873 = vunpack.c.h.b16 %v5796
  %v5874 = vunpack.c.l.b16 %v5797
  %v5875 = vunpack.c.h.b16 %v5797
  %v5876 = vunpack.c.l.b16 %v5798
  %v5877 = vunpack.c.h.b16 %v5798
  %v5878 = vunpack.c.l.b16 %v5799
  %v5879 = vunpack.c.h.b16 %v5799
  %v5880 = vunpack.c.l.b16 %v5800
  %v5881 = vunpack.c.h.b16 %v5800
  %v5882 = vunpack.c.l.b16 %v5801
  %v5883 = vunpack.c.h.b16 %v5801
  %v5884 = vunpack.c.l.b16 %v5802
  %v5885 = vunpack.c.h.b16 %v5802
  %v5886 = vunpack.c.l.b16 %v5803
  %v5887 = vunpack.c.h.b16 %v5803
  %v5888 = vunpack.c.l.b16 %v5804
  %v5889 = vunpack.c.h.b16 %v5804
  %v5890 = vunpack.c.l.b16 %v5805
  %v5891 = vunpack.c.h.b16 %v5805
  %v5892 = vunpack.c.l.b16 %v5806
  %v5893 = vunpack.c.h.b16 %v5806
  %v5894 = vunpack.c.l.b16 %v5807
  %v5895 = vunpack.c.h.b16 %v5807
  %v5896 = vunpack.c.l.b16 %v5808
  %v5897 = vunpack.c.h.b16 %v5808
  %v5898 = vunpack.c.l.b16 %v5809
  %v5899 = vunpack.c.h.b16 %v5809
  %v5900 = vunpack.c.l.b16 %v5810
  %v5901 = vunpack.c.h.b16 %v5810
  %v5902 = vunpack.c.l.b16 %v5811
  %v5903 = vunpack.c.h.b16 %v5811
  %v5904 = vunpack.c.l.b16 %v5812
  %v5905 = vunpack.c.h.b16 %v5812
  %v5906 = vunpack.c.l.b16 %v5813
  %v5907 = vunpack.c.h.b16 %v5813
  %v5908 = vunpack.c.l.b16 %v5814
  %v5909 = vunpack.c.h.b16 %v5814
  %v5910 = vunpack.c.l.b16 %v5815
  %v5911 = vunpack.c.h.b16 %v5815
  %v5912 = vunpack.c.l.b16 %v5816
  %v5913 = vunpack.c.h.b16 %v5816
  %v5914 = vunpack.c.l.b16 %v5817
  %v5915 = vunpack.c.h.b16 %v5817
  %v5916 = vunpack.c.l.b16 %v5818
  %v5917 = vunpack.c.h.b16 %v5818
  %v5918 = vunpack.c.l.b16 %v5819
  %v5919 = vunpack.c.h.b16 %v5819
  %v5920 = vunpack.c.l.b16 %v5820
  %v5921 = vunpack.c.h.b16 %v5820
  %v5922 = vunpack.c.l.b16 %v5821
  %v5923 = vunpack.c.h.b16 %v5821
  %v5924 = vunpack.c.l.b16 %v5822
  %v5925 = vunpack.c.h.b16 %v5822
  %v5926 = vunpack.c.l.b16 %v5823
  %v5927 = vunpack.c.h.b16 %v5823
  %v5928 = vunpack.c.l.b16 %v5824
  %v5929 = vunpack.c.h.b16 %v5824
  %v5930 = vunpack.c.l.b16 %v5825
  %v5931 = vunpack.c.h.b16 %v5825
  %v5932 = vpack.c.b16 %v5872, %v5868
  %v5933 = vpack.c.b16 %v5873, %v5869
  %v5934 = vpack.c.b16 %v5874, %v5870
  %v5935 = vpack.c.b16 %v5875, %v5871
  %v5936 = vpack.c.b16 %v5880, %v5876
  %v5937 = vpack.c.b16 %v5881, %v5877
  %v5938 = vpack.c.b16 %v5882, %v5878
  %v5939 = vpack.c.b16 %v5883, %v5879
  %v5940 = vpack.c.b16 %v5888, %v5884
  %v5941 = vpack.c.b16 %v5889, %v5885
  %v5942 = vpack.c.b16 %v5890, %v5886
  %v5943 = vpack.c.b16 %v5891, %v5887
  %v5944 = vpack.c.b16 %v5896, %v5892
  %v5945 = vpack.c.b16 %v5897, %v5893
  %v5946 = vpack.c.b16 %v5898, %v5894
  %v5947 = vpack.c.b16 %v5899, %v5895
  %v5948 = vpack.c.b16 %v5904, %v5900
  %v5949 = vpack.c.b16 %v5905, %v5901
  %v5950 = vpack.c.b16 %v5906, %v5902
  %v5951 = vpack.c.b16 %v5907, %v5903
  %v5952 = vpack.c.b16 %v5912, %v5908
  %v5953 = vpack.c.b16 %v5913, %v5909
  %v5954 = vpack.c.b16 %v5914, %v5910
  %v5955 = vpack.c.b16 %v5915, %v5911
  %v5956 = vpack.c.b16 %v5920, %v5916
  %v5957 = vpack.c.b16 %v5921, %v5917
  %v5958 = vpack.c.b16 %v5922, %v5918
  %v5959 = vpack.c.b16 %v5923, %v5919
  %v5960 = vpack.c.b16 %v5928, %v5924
  %v5961 = vpack.c.b16 %v5929, %v5925
  %v5962 = vpack.c.b16 %v5930, %v5926
  %v5963 = vpack.c.b16 %v5931, %v5927
  %5996 = vmatpush.bf16.msra.mxu0 %v5960
  %5997 = vmatpush.bf16.msra.mxu0 %v5956
  %5998 = vmatpush.bf16.msra.mxu0 %v5952
  %5999 = vmatpush.bf16.msra.mxu0 %v5948
  %6000 = vmatpush.bf16.msra.mxu0 %v5944
  %6001 = vmatpush.bf16.msra.mxu0 %v5940
  %6002 = vmatpush.bf16.msra.mxu0 %v5936
  %6003 = vmatpush.bf16.msra.mxu0 %v5932
  %6004 = vmatmul.bf16.gmra.mxu0 %v5793
  %v6005 = vpop.f32.mrf.mxu0
  %v6006 = vadd.f32 %v5828, %v6005
  %v6007 = vpop.f32.mrf.mxu0
  %6008 = vdwg.mxu0
  %6009 = vmatpush.bf16.msra.mxu0 %v5961
  %6010 = vmatpush.bf16.msra.mxu0 %v5957
  %6011 = vmatpush.bf16.msra.mxu0 %v5953
  %6012 = vmatpush.bf16.msra.mxu0 %v5949
  %6013 = vmatpush.bf16.msra.mxu0 %v5945
  %6014 = vmatpush.bf16.msra.mxu0 %v5941
  %6015 = vmatpush.bf16.msra.mxu0 %v5937
  %6016 = vmatpush.bf16.msra.mxu0 %v5933
  %6017 = vmatmul.bf16.gmra.mxu0 %v5793
  %v6018 = vpop.f32.mrf.mxu0
  %v6019 = vadd.f32 %v5829, %v6018
  %v6020 = vpop.f32.mrf.mxu0
  %6021 = vdwg.mxu0
  %6022 = vmatpush.bf16.msra.mxu0 %v5962
  %6023 = vmatpush.bf16.msra.mxu0 %v5958
  %6024 = vmatpush.bf16.msra.mxu0 %v5954
  %6025 = vmatpush.bf16.msra.mxu0 %v5950
  %6026 = vmatpush.bf16.msra.mxu0 %v5946
  %6027 = vmatpush.bf16.msra.mxu0 %v5942
  %6028 = vmatpush.bf16.msra.mxu0 %v5938
  %6029 = vmatpush.bf16.msra.mxu0 %v5934
  %6030 = vmatmul.bf16.gmra.mxu0 %v5793
  %v6031 = vpop.f32.mrf.mxu0
  %v6032 = vadd.f32 %v5830, %v6031
  %v6033 = vpop.f32.mrf.mxu0
  %6034 = vdwg.mxu0
  %6035 = vmatpush.bf16.msra.mxu0 %v5963
  %6036 = vmatpush.bf16.msra.mxu0 %v5959
  %6037 = vmatpush.bf16.msra.mxu0 %v5955
  %6038 = vmatpush.bf16.msra.mxu0 %v5951
  %6039 = vmatpush.bf16.msra.mxu0 %v5947
  %6040 = vmatpush.bf16.msra.mxu0 %v5943
  %6041 = vmatpush.bf16.msra.mxu0 %v5939
  %6042 = vmatpush.bf16.msra.mxu0 %v5935
  %6043 = vmatmul.bf16.gmra.mxu0 %v5793
  %v6044 = vpop.f32.mrf.mxu0
  %v6045 = vadd.f32 %v5831, %v6044
  %v6046 = vpop.f32.mrf.mxu0
  %6047 = vdwg.mxu0
  %v6048 = vld [vmem:[#allocation2] sm:$0xff]
  %v6049 = vpack.c.bf16 %v6048, %v6048
  %v6050 = vld [vmem:[%s3184] sm:$0xff]
  %v6051 = vld [vmem:[%s3184 + $0x8] sm:$0xff]
  %v6052 = vld [vmem:[%s3184 + $0x10] sm:$0xff]
  %v6053 = vld [vmem:[%s3184 + $0x18] sm:$0xff]
  %v6054 = vld [vmem:[%s3184 + $0x20] sm:$0xff]
  %v6055 = vld [vmem:[%s3184 + $0x28] sm:$0xff]
  %v6056 = vld [vmem:[%s3184 + $0x30] sm:$0xff]
  %v6057 = vld [vmem:[%s3184 + $0x38] sm:$0xff]
  %v6058 = vld [vmem:[%s3184 + $0x40] sm:$0xff]
  %v6059 = vld [vmem:[%s3184 + $0x48] sm:$0xff]
  %v6060 = vld [vmem:[%s3184 + $0x50] sm:$0xff]
  %v6061 = vld [vmem:[%s3184 + $0x58] sm:$0xff]
  %v6062 = vld [vmem:[%s3184 + $0x60] sm:$0xff]
  %v6063 = vld [vmem:[%s3184 + $0x68] sm:$0xff]
  %v6064 = vld [vmem:[%s3184 + $0x70] sm:$0xff]
  %v6065 = vld [vmem:[%s3184 + $0x78] sm:$0xff]
  %v6066 = vld [vmem:[%s3184 + $0x80] sm:$0xff]
  %v6067 = vld [vmem:[%s3184 + $0x88] sm:$0xff]
  %v6068 = vld [vmem:[%s3184 + $0x90] sm:$0xff]
  %v6069 = vld [vmem:[%s3184 + $0x98] sm:$0xff]
  %v6070 = vld [vmem:[%s3184 + $0xa0] sm:$0xff]
  %v6071 = vld [vmem:[%s3184 + $0xa8] sm:$0xff]
  %v6072 = vld [vmem:[%s3184 + $0xb0] sm:$0xff]
  %v6073 = vld [vmem:[%s3184 + $0xb8] sm:$0xff]
  %v6074 = vld [vmem:[%s3184 + $0xc0] sm:$0xff]
  %v6075 = vld [vmem:[%s3184 + $0xc8] sm:$0xff]
  %v6076 = vld [vmem:[%s3184 + $0xd0] sm:$0xff]
  %v6077 = vld [vmem:[%s3184 + $0xd8] sm:$0xff]
  %v6078 = vld [vmem:[%s3184 + $0xe0] sm:$0xff]
  %v6079 = vld [vmem:[%s3184 + $0xe8] sm:$0xff]
  %v6080 = vld [vmem:[%s3184 + $0xf0] sm:$0xff]
  %v6081 = vld [vmem:[%s3184 + $0xf8] sm:$0xff]
  %v6114 = vunpack.c.l.b16 %v6050
  %v6115 = vunpack.c.h.b16 %v6050
  %v6116 = vunpack.c.l.b16 %v6051
  %v6117 = vunpack.c.h.b16 %v6051
  %v6118 = vunpack.c.l.b16 %v6052
  %v6119 = vunpack.c.h.b16 %v6052
  %v6120 = vunpack.c.l.b16 %v6053
  %v6121 = vunpack.c.h.b16 %v6053
  %v6122 = vunpack.c.l.b16 %v6054
  %v6123 = vunpack.c.h.b16 %v6054
  %v6124 = vunpack.c.l.b16 %v6055
  %v6125 = vunpack.c.h.b16 %v6055
  %v6126 = vunpack.c.l.b16 %v6056
  %v6127 = vunpack.c.h.b16 %v6056
  %v6128 = vunpack.c.l.b16 %v6057
  %v6129 = vunpack.c.h.b16 %v6057
  %v6130 = vunpack.c.l.b16 %v6058
  %v6131 = vunpack.c.h.b16 %v6058
  %v6132 = vunpack.c.l.b16 %v6059
  %v6133 = vunpack.c.h.b16 %v6059
  %v6134 = vunpack.c.l.b16 %v6060
  %v6135 = vunpack.c.h.b16 %v6060
  %v6136 = vunpack.c.l.b16 %v6061
  %v6137 = vunpack.c.h.b16 %v6061
  %v6138 = vunpack.c.l.b16 %v6062
  %v6139 = vunpack.c.h.b16 %v6062
  %v6140 = vunpack.c.l.b16 %v6063
  %v6141 = vunpack.c.h.b16 %v6063
  %v6142 = vunpack.c.l.b16 %v6064
  %v6143 = vunpack.c.h.b16 %v6064
  %v6144 = vunpack.c.l.b16 %v6065
  %v6145 = vunpack.c.h.b16 %v6065
  %v6146 = vunpack.c.l.b16 %v6066
  %v6147 = vunpack.c.h.b16 %v6066
  %v6148 = vunpack.c.l.b16 %v6067
  %v6149 = vunpack.c.h.b16 %v6067
  %v6150 = vunpack.c.l.b16 %v6068
  %v6151 = vunpack.c.h.b16 %v6068
  %v6152 = vunpack.c.l.b16 %v6069
  %v6153 = vunpack.c.h.b16 %v6069
  %v6154 = vunpack.c.l.b16 %v6070
  %v6155 = vunpack.c.h.b16 %v6070
  %v6156 = vunpack.c.l.b16 %v6071
  %v6157 = vunpack.c.h.b16 %v6071
  %v6158 = vunpack.c.l.b16 %v6072
  %v6159 = vunpack.c.h.b16 %v6072
  %v6160 = vunpack.c.l.b16 %v6073
  %v6161 = vunpack.c.h.b16 %v6073
  %v6162 = vunpack.c.l.b16 %v6074
  %v6163 = vunpack.c.h.b16 %v6074
  %v6164 = vunpack.c.l.b16 %v6075
  %v6165 = vunpack.c.h.b16 %v6075
  %v6166 = vunpack.c.l.b16 %v6076
  %v6167 = vunpack.c.h.b16 %v6076
  %v6168 = vunpack.c.l.b16 %v6077
  %v6169 = vunpack.c.h.b16 %v6077
  %v6170 = vunpack.c.l.b16 %v6078
  %v6171 = vunpack.c.h.b16 %v6078
  %v6172 = vunpack.c.l.b16 %v6079
  %v6173 = vunpack.c.h.b16 %v6079
  %v6174 = vunpack.c.l.b16 %v6080
  %v6175 = vunpack.c.h.b16 %v6080
  %v6176 = vunpack.c.l.b16 %v6081
  %v6177 = vunpack.c.h.b16 %v6081
  %v6178 = vpack.c.b16 %v6118, %v6114
  %v6179 = vpack.c.b16 %v6119, %v6115
  %v6180 = vpack.c.b16 %v6120, %v6116
  %v6181 = vpack.c.b16 %v6121, %v6117
  %v6182 = vpack.c.b16 %v6126, %v6122
  %v6183 = vpack.c.b16 %v6127, %v6123
  %v6184 = vpack.c.b16 %v6128, %v6124
  %v6185 = vpack.c.b16 %v6129, %v6125
  %v6186 = vpack.c.b16 %v6134, %v6130
  %v6187 = vpack.c.b16 %v6135, %v6131
  %v6188 = vpack.c.b16 %v6136, %v6132
  %v6189 = vpack.c.b16 %v6137, %v6133
  %v6190 = vpack.c.b16 %v6142, %v6138
  %v6191 = vpack.c.b16 %v6143, %v6139
  %v6192 = vpack.c.b16 %v6144, %v6140
  %v6193 = vpack.c.b16 %v6145, %v6141
  %v6194 = vpack.c.b16 %v6150, %v6146
  %v6195 = vpack.c.b16 %v6151, %v6147
  %v6196 = vpack.c.b16 %v6152, %v6148
  %v6197 = vpack.c.b16 %v6153, %v6149
  %v6198 = vpack.c.b16 %v6158, %v6154
  %v6199 = vpack.c.b16 %v6159, %v6155
  %v6200 = vpack.c.b16 %v6160, %v6156
  %v6201 = vpack.c.b16 %v6161, %v6157
  %v6202 = vpack.c.b16 %v6166, %v6162
  %v6203 = vpack.c.b16 %v6167, %v6163
  %v6204 = vpack.c.b16 %v6168, %v6164
  %v6205 = vpack.c.b16 %v6169, %v6165
  %v6206 = vpack.c.b16 %v6174, %v6170
  %v6207 = vpack.c.b16 %v6175, %v6171
  %v6208 = vpack.c.b16 %v6176, %v6172
  %v6209 = vpack.c.b16 %v6177, %v6173
  %6242 = vmatpush.bf16.msra.mxu0 %v6206
  %6243 = vmatpush.bf16.msra.mxu0 %v6202
  %6244 = vmatpush.bf16.msra.mxu0 %v6198
  %6245 = vmatpush.bf16.msra.mxu0 %v6194
  %6246 = vmatpush.bf16.msra.mxu0 %v6190
  %6247 = vmatpush.bf16.msra.mxu0 %v6186
  %6248 = vmatpush.bf16.msra.mxu0 %v6182
  %6249 = vmatpush.bf16.msra.mxu0 %v6178
  %6250 = vmatmul.bf16.gmra.mxu0 %v6049
  %v6251 = vpop.f32.mrf.mxu0
  %v6252 = vadd.f32 0.0, %v6251
  %v6253 = vpop.f32.mrf.mxu0
  %6254 = vdwg.mxu0
  %6255 = vmatpush.bf16.msra.mxu0 %v6207
  %6256 = vmatpush.bf16.msra.mxu0 %v6203
  %6257 = vmatpush.bf16.msra.mxu0 %v6199
  %6258 = vmatpush.bf16.msra.mxu0 %v6195
  %6259 = vmatpush.bf16.msra.mxu0 %v6191
  %6260 = vmatpush.bf16.msra.mxu0 %v6187
  %6261 = vmatpush.bf16.msra.mxu0 %v6183
  %6262 = vmatpush.bf16.msra.mxu0 %v6179
  %6263 = vmatmul.bf16.gmra.mxu0 %v6049
  %v6264 = vpop.f32.mrf.mxu0
  %v6265 = vadd.f32 0.0, %v6264
  %v6266 = vpop.f32.mrf.mxu0
  %6267 = vdwg.mxu0
  %6268 = vmatpush.bf16.msra.mxu0 %v6208
  %6269 = vmatpush.bf16.msra.mxu0 %v6204
  %6270 = vmatpush.bf16.msra.mxu0 %v6200
  %6271 = vmatpush.bf16.msra.mxu0 %v6196
  %6272 = vmatpush.bf16.msra.mxu0 %v6192
  %6273 = vmatpush.bf16.msra.mxu0 %v6188
  %6274 = vmatpush.bf16.msra.mxu0 %v6184
  %6275 = vmatpush.bf16.msra.mxu0 %v6180
  %6276 = vmatmul.bf16.gmra.mxu0 %v6049
  %v6277 = vpop.f32.mrf.mxu0
  %v6278 = vadd.f32 0.0, %v6277
  %v6279 = vpop.f32.mrf.mxu0
  %6280 = vdwg.mxu0
  %6281 = vmatpush.bf16.msra.mxu0 %v6209
  %6282 = vmatpush.bf16.msra.mxu0 %v6205
  %6283 = vmatpush.bf16.msra.mxu0 %v6201
  %6284 = vmatpush.bf16.msra.mxu0 %v6197
  %6285 = vmatpush.bf16.msra.mxu0 %v6193
  %6286 = vmatpush.bf16.msra.mxu0 %v6189
  %6287 = vmatpush.bf16.msra.mxu0 %v6185
  %6288 = vmatpush.bf16.msra.mxu0 %v6181
  %6289 = vmatmul.bf16.gmra.mxu0 %v6049
  %v6290 = vpop.f32.mrf.mxu0
  %v6291 = vadd.f32 0.0, %v6290
  %v6292 = vpop.f32.mrf.mxu0
  %6293 = vdwg.mxu0
  %v6294 = vadd.f32 %v6006, %v6252
  %v6295 = vadd.f32 %v6019, %v6265
  %v6296 = vadd.f32 %v6032, %v6278
  %v6297 = vadd.f32 %v6045, %v6291
  %v6298 = vxor.u32 %v6294, 2147483648
  %v6299 = vmul.f32 %v6298, 1.442695
  %v6300 = vpow.pop %v6299
  %v6301 = vadd.f32 %v6300, 1.0
  %v6302 = vrcp.pop %v6301
  %v6303 = vmul.f32 %v6301, %v6302
  %v6304 = vsub.f32 1.0, %v6303
  %v6305 = vmul.f32 %v6302, %v6304
  %v6306 = vadd.f32 %v6302, %v6305
  %vm6307 = vweird.f32 %v6301
  %vm6308 = vweird.f32 %v6302
  %vm6309 = vmor %vm6307, %vm6308
  %v6310 = vsel %vm6309, %v6302, %v6306
  %v6311 = vand.u32 2147483647, %v6301
  %vm6312 = vcmp.eq.f32.partialorder %v6311, 8.507059e+37
  %v6313 = vand.u32 %v6301, 2147483648
  %v6314 = vor.u32 1.1754944e-38, %v6313
  %v6315 = vsel %vm6312, %v6314, %v6310
  %v6316 = vmul.f32 1.0, %v6315
  %v6317 = vxor.u32 %v6295, 2147483648
  %v6318 = vmul.f32 %v6317, 1.442695
  %v6319 = vpow.pop %v6318
  %v6320 = vadd.f32 %v6319, 1.0
  %v6321 = vrcp.pop %v6320
  %v6322 = vmul.f32 %v6320, %v6321
  %v6323 = vsub.f32 1.0, %v6322
  %v6324 = vmul.f32 %v6321, %v6323
  %v6325 = vadd.f32 %v6321, %v6324
  %vm6326 = vweird.f32 %v6320
  %vm6327 = vweird.f32 %v6321
  %vm6328 = vmor %vm6326, %vm6327
  %v6329 = vsel %vm6328, %v6321, %v6325
  %v6330 = vand.u32 2147483647, %v6320
  %vm6331 = vcmp.eq.f32.partialorder %v6330, 8.507059e+37
  %v6332 = vand.u32 %v6320, 2147483648
  %v6333 = vor.u32 1.1754944e-38, %v6332
  %v6334 = vsel %vm6331, %v6333, %v6329
  %v6335 = vmul.f32 1.0, %v6334
  %v6336 = vtanh.pop %v6296
  %v6337 = vxor.u32 %v6297, 2147483648
  %v6338 = vmul.f32 %v6337, 1.442695
  %v6339 = vpow.pop %v6338
  %v6340 = vadd.f32 %v6339, 1.0
  %v6341 = vrcp.pop %v6340
  %v6342 = vmul.f32 %v6340, %v6341
  %v6343 = vsub.f32 1.0, %v6342
  %v6344 = vmul.f32 %v6341, %v6343
  %v6345 = vadd.f32 %v6341, %v6344
  %vm6346 = vweird.f32 %v6340
  %vm6347 = vweird.f32 %v6341
  %vm6348 = vmor %vm6346, %vm6347
  %v6349 = vsel %vm6348, %v6341, %v6345
  %v6350 = vand.u32 2147483647, %v6340
  %vm6351 = vcmp.eq.f32.partialorder %v6350, 8.507059e+37
  %v6352 = vand.u32 %v6340, 2147483648
  %v6353 = vor.u32 1.1754944e-38, %v6352
  %v6354 = vsel %vm6351, %v6353, %v6349
  %v6355 = vmul.f32 1.0, %v6354
  %v6356 = vld [vmem:[#allocation3] sm:$0xff]
  %v6357 = vmul.f32 %v6335, %v6356
  %v6358 = vmul.f32 %v6316, %v6336
  %v6359 = vadd.f32 %v6357, %v6358
  %v6360 = vtanh.pop %v6359
  %v6361 = vmul.f32 %v6355, %v6360
  %6362 = vst [vmem:[#allocation3] sm:$0xff] %v6359
  %6363 = vst [vmem:[#allocation2] sm:$0xff] %v6361
  %6364 = vst [vmem:[%s1953] sm:$0xff] %v6361
  %v6365 = vld [vmem:[%s2276] sm:$0xff]
  %v6366 = vpack.c.bf16 %v6365, %v6365
  %v6367 = vld [vmem:[%s2] sm:$0xff]
  %v6368 = vld [vmem:[%s2 + $0x8] sm:$0xff]
  %v6369 = vld [vmem:[%s2 + $0x10] sm:$0xff]
  %v6370 = vld [vmem:[%s2 + $0x18] sm:$0xff]
  %v6371 = vld [vmem:[%s2 + $0x20] sm:$0xff]
  %v6372 = vld [vmem:[%s2 + $0x28] sm:$0xff]
  %v6373 = vld [vmem:[%s2 + $0x30] sm:$0xff]
  %v6374 = vld [vmem:[%s2 + $0x38] sm:$0xff]
  %v6375 = vld [vmem:[%s2 + $0x40] sm:$0xff]
  %v6376 = vld [vmem:[%s2 + $0x48] sm:$0xff]
  %v6377 = vld [vmem:[%s2 + $0x50] sm:$0xff]
  %v6378 = vld [vmem:[%s2 + $0x58] sm:$0xff]
  %v6379 = vld [vmem:[%s2 + $0x60] sm:$0xff]
  %v6380 = vld [vmem:[%s2 + $0x68] sm:$0xff]
  %v6381 = vld [vmem:[%s2 + $0x70] sm:$0xff]
  %v6382 = vld [vmem:[%s2 + $0x78] sm:$0xff]
  %v6383 = vld [vmem:[%s2 + $0x80] sm:$0xff]
  %v6384 = vld [vmem:[%s2 + $0x88] sm:$0xff]
  %v6385 = vld [vmem:[%s2 + $0x90] sm:$0xff]
  %v6386 = vld [vmem:[%s2 + $0x98] sm:$0xff]
  %v6387 = vld [vmem:[%s2 + $0xa0] sm:$0xff]
  %v6388 = vld [vmem:[%s2 + $0xa8] sm:$0xff]
  %v6389 = vld [vmem:[%s2 + $0xb0] sm:$0xff]
  %v6390 = vld [vmem:[%s2 + $0xb8] sm:$0xff]
  %v6391 = vld [vmem:[%s2 + $0xc0] sm:$0xff]
  %v6392 = vld [vmem:[%s2 + $0xc8] sm:$0xff]
  %v6393 = vld [vmem:[%s2 + $0xd0] sm:$0xff]
  %v6394 = vld [vmem:[%s2 + $0xd8] sm:$0xff]
  %v6395 = vld [vmem:[%s2 + $0xe0] sm:$0xff]
  %v6396 = vld [vmem:[%s2 + $0xe8] sm:$0xff]
  %v6397 = vld [vmem:[%s2 + $0xf0] sm:$0xff]
  %v6398 = vld [vmem:[%s2 + $0xf8] sm:$0xff]
  %v6399 = vld [vmem:[%s3] sm:$0xf]
  %v6401 = vperm.slane %v6399, 0
  %v6402 = vperm.slane %v6399, 1
  %v6403 = vperm.slane %v6399, 2
  %v6404 = vperm.slane %v6399, 3
  %v6441 = vunpack.c.l.b16 %v6367
  %v6442 = vunpack.c.h.b16 %v6367
  %v6443 = vunpack.c.l.b16 %v6368
  %v6444 = vunpack.c.h.b16 %v6368
  %v6445 = vunpack.c.l.b16 %v6369
  %v6446 = vunpack.c.h.b16 %v6369
  %v6447 = vunpack.c.l.b16 %v6370
  %v6448 = vunpack.c.h.b16 %v6370
  %v6449 = vunpack.c.l.b16 %v6371
  %v6450 = vunpack.c.h.b16 %v6371
  %v6451 = vunpack.c.l.b16 %v6372
  %v6452 = vunpack.c.h.b16 %v6372
  %v6453 = vunpack.c.l.b16 %v6373
  %v6454 = vunpack.c.h.b16 %v6373
  %v6455 = vunpack.c.l.b16 %v6374
  %v6456 = vunpack.c.h.b16 %v6374
  %v6457 = vunpack.c.l.b16 %v6375
  %v6458 = vunpack.c.h.b16 %v6375
  %v6459 = vunpack.c.l.b16 %v6376
  %v6460 = vunpack.c.h.b16 %v6376
  %v6461 = vunpack.c.l.b16 %v6377
  %v6462 = vunpack.c.h.b16 %v6377
  %v6463 = vunpack.c.l.b16 %v6378
  %v6464 = vunpack.c.h.b16 %v6378
  %v6465 = vunpack.c.l.b16 %v6379
  %v6466 = vunpack.c.h.b16 %v6379
  %v6467 = vunpack.c.l.b16 %v6380
  %v6468 = vunpack.c.h.b16 %v6380
  %v6469 = vunpack.c.l.b16 %v6381
  %v6470 = vunpack.c.h.b16 %v6381
  %v6471 = vunpack.c.l.b16 %v6382
  %v6472 = vunpack.c.h.b16 %v6382
  %v6473 = vunpack.c.l.b16 %v6383
  %v6474 = vunpack.c.h.b16 %v6383
  %v6475 = vunpack.c.l.b16 %v6384
  %v6476 = vunpack.c.h.b16 %v6384
  %v6477 = vunpack.c.l.b16 %v6385
  %v6478 = vunpack.c.h.b16 %v6385
  %v6479 = vunpack.c.l.b16 %v6386
  %v6480 = vunpack.c.h.b16 %v6386
  %v6481 = vunpack.c.l.b16 %v6387
  %v6482 = vunpack.c.h.b16 %v6387
  %v6483 = vunpack.c.l.b16 %v6388
  %v6484 = vunpack.c.h.b16 %v6388
  %v6485 = vunpack.c.l.b16 %v6389
  %v6486 = vunpack.c.h.b16 %v6389
  %v6487 = vunpack.c.l.b16 %v6390
  %v6488 = vunpack.c.h.b16 %v6390
  %v6489 = vunpack.c.l.b16 %v6391
  %v6490 = vunpack.c.h.b16 %v6391
  %v6491 = vunpack.c.l.b16 %v6392
  %v6492 = vunpack.c.h.b16 %v6392
  %v6493 = vunpack.c.l.b16 %v6393
  %v6494 = vunpack.c.h.b16 %v6393
  %v6495 = vunpack.c.l.b16 %v6394
  %v6496 = vunpack.c.h.b16 %v6394
  %v6497 = vunpack.c.l.b16 %v6395
  %v6498 = vunpack.c.h.b16 %v6395
  %v6499 = vunpack.c.l.b16 %v6396
  %v6500 = vunpack.c.h.b16 %v6396
  %v6501 = vunpack.c.l.b16 %v6397
  %v6502 = vunpack.c.h.b16 %v6397
  %v6503 = vunpack.c.l.b16 %v6398
  %v6504 = vunpack.c.h.b16 %v6398
  %v6505 = vpack.c.b16 %v6445, %v6441
  %v6506 = vpack.c.b16 %v6446, %v6442
  %v6507 = vpack.c.b16 %v6447, %v6443
  %v6508 = vpack.c.b16 %v6448, %v6444
  %v6509 = vpack.c.b16 %v6453, %v6449
  %v6510 = vpack.c.b16 %v6454, %v6450
  %v6511 = vpack.c.b16 %v6455, %v6451
  %v6512 = vpack.c.b16 %v6456, %v6452
  %v6513 = vpack.c.b16 %v6461, %v6457
  %v6514 = vpack.c.b16 %v6462, %v6458
  %v6515 = vpack.c.b16 %v6463, %v6459
  %v6516 = vpack.c.b16 %v6464, %v6460
  %v6517 = vpack.c.b16 %v6469, %v6465
  %v6518 = vpack.c.b16 %v6470, %v6466
  %v6519 = vpack.c.b16 %v6471, %v6467
  %v6520 = vpack.c.b16 %v6472, %v6468
  %v6521 = vpack.c.b16 %v6477, %v6473
  %v6522 = vpack.c.b16 %v6478, %v6474
  %v6523 = vpack.c.b16 %v6479, %v6475
  %v6524 = vpack.c.b16 %v6480, %v6476
  %v6525 = vpack.c.b16 %v6485, %v6481
  %v6526 = vpack.c.b16 %v6486, %v6482
  %v6527 = vpack.c.b16 %v6487, %v6483
  %v6528 = vpack.c.b16 %v6488, %v6484
  %v6529 = vpack.c.b16 %v6493, %v6489
  %v6530 = vpack.c.b16 %v6494, %v6490
  %v6531 = vpack.c.b16 %v6495, %v6491
  %v6532 = vpack.c.b16 %v6496, %v6492
  %v6533 = vpack.c.b16 %v6501, %v6497
  %v6534 = vpack.c.b16 %v6502, %v6498
  %v6535 = vpack.c.b16 %v6503, %v6499
  %v6536 = vpack.c.b16 %v6504, %v6500
  %6569 = vmatpush.bf16.msra.mxu0 %v6533
  %6570 = vmatpush.bf16.msra.mxu0 %v6529
  %6571 = vmatpush.bf16.msra.mxu0 %v6525
  %6572 = vmatpush.bf16.msra.mxu0 %v6521
  %6573 = vmatpush.bf16.msra.mxu0 %v6517
  %6574 = vmatpush.bf16.msra.mxu0 %v6513
  %6575 = vmatpush.bf16.msra.mxu0 %v6509
  %6576 = vmatpush.bf16.msra.mxu0 %v6505
  %6577 = vmatmul.bf16.gmra.mxu0 %v6366
  %v6578 = vpop.f32.mrf.mxu0
  %v6579 = vadd.f32 %v6401, %v6578
  %v6580 = vpop.f32.mrf.mxu0
  %6581 = vdwg.mxu0
  %6582 = vmatpush.bf16.msra.mxu0 %v6534
  %6583 = vmatpush.bf16.msra.mxu0 %v6530
  %6584 = vmatpush.bf16.msra.mxu0 %v6526
  %6585 = vmatpush.bf16.msra.mxu0 %v6522
  %6586 = vmatpush.bf16.msra.mxu0 %v6518
  %6587 = vmatpush.bf16.msra.mxu0 %v6514
  %6588 = vmatpush.bf16.msra.mxu0 %v6510
  %6589 = vmatpush.bf16.msra.mxu0 %v6506
  %6590 = vmatmul.bf16.gmra.mxu0 %v6366
  %v6591 = vpop.f32.mrf.mxu0
  %v6592 = vadd.f32 %v6402, %v6591
  %v6593 = vpop.f32.mrf.mxu0
  %6594 = vdwg.mxu0
  %6595 = vmatpush.bf16.msra.mxu0 %v6535
  %6596 = vmatpush.bf16.msra.mxu0 %v6531
  %6597 = vmatpush.bf16.msra.mxu0 %v6527
  %6598 = vmatpush.bf16.msra.mxu0 %v6523
  %6599 = vmatpush.bf16.msra.mxu0 %v6519
  %6600 = vmatpush.bf16.msra.mxu0 %v6515
  %6601 = vmatpush.bf16.msra.mxu0 %v6511
  %6602 = vmatpush.bf16.msra.mxu0 %v6507
  %6603 = vmatmul.bf16.gmra.mxu0 %v6366
  %v6604 = vpop.f32.mrf.mxu0
  %v6605 = vadd.f32 %v6403, %v6604
  %v6606 = vpop.f32.mrf.mxu0
  %6607 = vdwg.mxu0
  %6608 = vmatpush.bf16.msra.mxu0 %v6536
  %6609 = vmatpush.bf16.msra.mxu0 %v6532
  %6610 = vmatpush.bf16.msra.mxu0 %v6528
  %6611 = vmatpush.bf16.msra.mxu0 %v6524
  %6612 = vmatpush.bf16.msra.mxu0 %v6520
  %6613 = vmatpush.bf16.msra.mxu0 %v6516
  %6614 = vmatpush.bf16.msra.mxu0 %v6512
  %6615 = vmatpush.bf16.msra.mxu0 %v6508
  %6616 = vmatmul.bf16.gmra.mxu0 %v6366
  %v6617 = vpop.f32.mrf.mxu0
  %v6618 = vadd.f32 %v6404, %v6617
  %v6619 = vpop.f32.mrf.mxu0
  %6620 = vdwg.mxu0
  %v6621 = vld [vmem:[#allocation2] sm:$0xff]
  %v6622 = vpack.c.bf16 %v6621, %v6621
  %v6623 = vld [vmem:[%s3184] sm:$0xff]
  %v6624 = vld [vmem:[%s3184 + $0x8] sm:$0xff]
  %v6625 = vld [vmem:[%s3184 + $0x10] sm:$0xff]
  %v6626 = vld [vmem:[%s3184 + $0x18] sm:$0xff]
  %v6627 = vld [vmem:[%s3184 + $0x20] sm:$0xff]
  %v6628 = vld [vmem:[%s3184 + $0x28] sm:$0xff]
  %v6629 = vld [vmem:[%s3184 + $0x30] sm:$0xff]
  %v6630 = vld [vmem:[%s3184 + $0x38] sm:$0xff]
  %v6631 = vld [vmem:[%s3184 + $0x40] sm:$0xff]
  %v6632 = vld [vmem:[%s3184 + $0x48] sm:$0xff]
  %v6633 = vld [vmem:[%s3184 + $0x50] sm:$0xff]
  %v6634 = vld [vmem:[%s3184 + $0x58] sm:$0xff]
  %v6635 = vld [vmem:[%s3184 + $0x60] sm:$0xff]
  %v6636 = vld [vmem:[%s3184 + $0x68] sm:$0xff]
  %v6637 = vld [vmem:[%s3184 + $0x70] sm:$0xff]
  %v6638 = vld [vmem:[%s3184 + $0x78] sm:$0xff]
  %v6639 = vld [vmem:[%s3184 + $0x80] sm:$0xff]
  %v6640 = vld [vmem:[%s3184 + $0x88] sm:$0xff]
  %v6641 = vld [vmem:[%s3184 + $0x90] sm:$0xff]
  %v6642 = vld [vmem:[%s3184 + $0x98] sm:$0xff]
  %v6643 = vld [vmem:[%s3184 + $0xa0] sm:$0xff]
  %v6644 = vld [vmem:[%s3184 + $0xa8] sm:$0xff]
  %v6645 = vld [vmem:[%s3184 + $0xb0] sm:$0xff]
  %v6646 = vld [vmem:[%s3184 + $0xb8] sm:$0xff]
  %v6647 = vld [vmem:[%s3184 + $0xc0] sm:$0xff]
  %v6648 = vld [vmem:[%s3184 + $0xc8] sm:$0xff]
  %v6649 = vld [vmem:[%s3184 + $0xd0] sm:$0xff]
  %v6650 = vld [vmem:[%s3184 + $0xd8] sm:$0xff]
  %v6651 = vld [vmem:[%s3184 + $0xe0] sm:$0xff]
  %v6652 = vld [vmem:[%s3184 + $0xe8] sm:$0xff]
  %v6653 = vld [vmem:[%s3184 + $0xf0] sm:$0xff]
  %v6654 = vld [vmem:[%s3184 + $0xf8] sm:$0xff]
  %v6687 = vunpack.c.l.b16 %v6623
  %v6688 = vunpack.c.h.b16 %v6623
  %v6689 = vunpack.c.l.b16 %v6624
  %v6690 = vunpack.c.h.b16 %v6624
  %v6691 = vunpack.c.l.b16 %v6625
  %v6692 = vunpack.c.h.b16 %v6625
  %v6693 = vunpack.c.l.b16 %v6626
  %v6694 = vunpack.c.h.b16 %v6626
  %v6695 = vunpack.c.l.b16 %v6627
  %v6696 = vunpack.c.h.b16 %v6627
  %v6697 = vunpack.c.l.b16 %v6628
  %v6698 = vunpack.c.h.b16 %v6628
  %v6699 = vunpack.c.l.b16 %v6629
  %v6700 = vunpack.c.h.b16 %v6629
  %v6701 = vunpack.c.l.b16 %v6630
  %v6702 = vunpack.c.h.b16 %v6630
  %v6703 = vunpack.c.l.b16 %v6631
  %v6704 = vunpack.c.h.b16 %v6631
  %v6705 = vunpack.c.l.b16 %v6632
  %v6706 = vunpack.c.h.b16 %v6632
  %v6707 = vunpack.c.l.b16 %v6633
  %v6708 = vunpack.c.h.b16 %v6633
  %v6709 = vunpack.c.l.b16 %v6634
  %v6710 = vunpack.c.h.b16 %v6634
  %v6711 = vunpack.c.l.b16 %v6635
  %v6712 = vunpack.c.h.b16 %v6635
  %v6713 = vunpack.c.l.b16 %v6636
  %v6714 = vunpack.c.h.b16 %v6636
  %v6715 = vunpack.c.l.b16 %v6637
  %v6716 = vunpack.c.h.b16 %v6637
  %v6717 = vunpack.c.l.b16 %v6638
  %v6718 = vunpack.c.h.b16 %v6638
  %v6719 = vunpack.c.l.b16 %v6639
  %v6720 = vunpack.c.h.b16 %v6639
  %v6721 = vunpack.c.l.b16 %v6640
  %v6722 = vunpack.c.h.b16 %v6640
  %v6723 = vunpack.c.l.b16 %v6641
  %v6724 = vunpack.c.h.b16 %v6641
  %v6725 = vunpack.c.l.b16 %v6642
  %v6726 = vunpack.c.h.b16 %v6642
  %v6727 = vunpack.c.l.b16 %v6643
  %v6728 = vunpack.c.h.b16 %v6643
  %v6729 = vunpack.c.l.b16 %v6644
  %v6730 = vunpack.c.h.b16 %v6644
  %v6731 = vunpack.c.l.b16 %v6645
  %v6732 = vunpack.c.h.b16 %v6645
  %v6733 = vunpack.c.l.b16 %v6646
  %v6734 = vunpack.c.h.b16 %v6646
  %v6735 = vunpack.c.l.b16 %v6647
  %v6736 = vunpack.c.h.b16 %v6647
  %v6737 = vunpack.c.l.b16 %v6648
  %v6738 = vunpack.c.h.b16 %v6648
  %v6739 = vunpack.c.l.b16 %v6649
  %v6740 = vunpack.c.h.b16 %v6649
  %v6741 = vunpack.c.l.b16 %v6650
  %v6742 = vunpack.c.h.b16 %v6650
  %v6743 = vunpack.c.l.b16 %v6651
  %v6744 = vunpack.c.h.b16 %v6651
  %v6745 = vunpack.c.l.b16 %v6652
  %v6746 = vunpack.c.h.b16 %v6652
  %v6747 = vunpack.c.l.b16 %v6653
  %v6748 = vunpack.c.h.b16 %v6653
  %v6749 = vunpack.c.l.b16 %v6654
  %v6750 = vunpack.c.h.b16 %v6654
  %v6751 = vpack.c.b16 %v6691, %v6687
  %v6752 = vpack.c.b16 %v6692, %v6688
  %v6753 = vpack.c.b16 %v6693, %v6689
  %v6754 = vpack.c.b16 %v6694, %v6690
  %v6755 = vpack.c.b16 %v6699, %v6695
  %v6756 = vpack.c.b16 %v6700, %v6696
  %v6757 = vpack.c.b16 %v6701, %v6697
  %v6758 = vpack.c.b16 %v6702, %v6698
  %v6759 = vpack.c.b16 %v6707, %v6703
  %v6760 = vpack.c.b16 %v6708, %v6704
  %v6761 = vpack.c.b16 %v6709, %v6705
  %v6762 = vpack.c.b16 %v6710, %v6706
  %v6763 = vpack.c.b16 %v6715, %v6711
  %v6764 = vpack.c.b16 %v6716, %v6712
  %v6765 = vpack.c.b16 %v6717, %v6713
  %v6766 = vpack.c.b16 %v6718, %v6714
  %v6767 = vpack.c.b16 %v6723, %v6719
  %v6768 = vpack.c.b16 %v6724, %v6720
  %v6769 = vpack.c.b16 %v6725, %v6721
  %v6770 = vpack.c.b16 %v6726, %v6722
  %v6771 = vpack.c.b16 %v6731, %v6727
  %v6772 = vpack.c.b16 %v6732, %v6728
  %v6773 = vpack.c.b16 %v6733, %v6729
  %v6774 = vpack.c.b16 %v6734, %v6730
  %v6775 = vpack.c.b16 %v6739, %v6735
  %v6776 = vpack.c.b16 %v6740, %v6736
  %v6777 = vpack.c.b16 %v6741, %v6737
  %v6778 = vpack.c.b16 %v6742, %v6738
  %v6779 = vpack.c.b16 %v6747, %v6743
  %v6780 = vpack.c.b16 %v6748, %v6744
  %v6781 = vpack.c.b16 %v6749, %v6745
  %v6782 = vpack.c.b16 %v6750, %v6746
  %6815 = vmatpush.bf16.msra.mxu0 %v6779
  %6816 = vmatpush.bf16.msra.mxu0 %v6775
  %6817 = vmatpush.bf16.msra.mxu0 %v6771
  %6818 = vmatpush.bf16.msra.mxu0 %v6767
  %6819 = vmatpush.bf16.msra.mxu0 %v6763
  %6820 = vmatpush.bf16.msra.mxu0 %v6759
  %6821 = vmatpush.bf16.msra.mxu0 %v6755
  %6822 = vmatpush.bf16.msra.mxu0 %v6751
  %6823 = vmatmul.bf16.gmra.mxu0 %v6622
  %v6824 = vpop.f32.mrf.mxu0
  %v6825 = vadd.f32 0.0, %v6824
  %v6826 = vpop.f32.mrf.mxu0
  %6827 = vdwg.mxu0
  %6828 = vmatpush.bf16.msra.mxu0 %v6780
  %6829 = vmatpush.bf16.msra.mxu0 %v6776
  %6830 = vmatpush.bf16.msra.mxu0 %v6772
  %6831 = vmatpush.bf16.msra.mxu0 %v6768
  %6832 = vmatpush.bf16.msra.mxu0 %v6764
  %6833 = vmatpush.bf16.msra.mxu0 %v6760
  %6834 = vmatpush.bf16.msra.mxu0 %v6756
  %6835 = vmatpush.bf16.msra.mxu0 %v6752
  %6836 = vmatmul.bf16.gmra.mxu0 %v6622
  %v6837 = vpop.f32.mrf.mxu0
  %v6838 = vadd.f32 0.0, %v6837
  %v6839 = vpop.f32.mrf.mxu0
  %6840 = vdwg.mxu0
  %6841 = vmatpush.bf16.msra.mxu0 %v6781
  %6842 = vmatpush.bf16.msra.mxu0 %v6777
  %6843 = vmatpush.bf16.msra.mxu0 %v6773
  %6844 = vmatpush.bf16.msra.mxu0 %v6769
  %6845 = vmatpush.bf16.msra.mxu0 %v6765
  %6846 = vmatpush.bf16.msra.mxu0 %v6761
  %6847 = vmatpush.bf16.msra.mxu0 %v6757
  %6848 = vmatpush.bf16.msra.mxu0 %v6753
  %6849 = vmatmul.bf16.gmra.mxu0 %v6622
  %v6850 = vpop.f32.mrf.mxu0
  %v6851 = vadd.f32 0.0, %v6850
  %v6852 = vpop.f32.mrf.mxu0
  %6853 = vdwg.mxu0
  %6854 = vmatpush.bf16.msra.mxu0 %v6782
  %6855 = vmatpush.bf16.msra.mxu0 %v6778
  %6856 = vmatpush.bf16.msra.mxu0 %v6774
  %6857 = vmatpush.bf16.msra.mxu0 %v6770
  %6858 = vmatpush.bf16.msra.mxu0 %v6766
  %6859 = vmatpush.bf16.msra.mxu0 %v6762
  %6860 = vmatpush.bf16.msra.mxu0 %v6758
  %6861 = vmatpush.bf16.msra.mxu0 %v6754
  %6862 = vmatmul.bf16.gmra.mxu0 %v6622
  %v6863 = vpop.f32.mrf.mxu0
  %v6864 = vadd.f32 0.0, %v6863
  %v6865 = vpop.f32.mrf.mxu0
  %6866 = vdwg.mxu0
  %v6867 = vadd.f32 %v6579, %v6825
  %v6868 = vadd.f32 %v6592, %v6838
  %v6869 = vadd.f32 %v6605, %v6851
  %v6870 = vadd.f32 %v6618, %v6864
  %v6871 = vxor.u32 %v6867, 2147483648
  %v6872 = vmul.f32 %v6871, 1.442695
  %v6873 = vpow.pop %v6872
  %v6874 = vadd.f32 %v6873, 1.0
  %v6875 = vrcp.pop %v6874
  %v6876 = vmul.f32 %v6874, %v6875
  %v6877 = vsub.f32 1.0, %v6876
  %v6878 = vmul.f32 %v6875, %v6877
  %v6879 = vadd.f32 %v6875, %v6878
  %vm6880 = vweird.f32 %v6874
  %vm6881 = vweird.f32 %v6875
  %vm6882 = vmor %vm6880, %vm6881
  %v6883 = vsel %vm6882, %v6875, %v6879
  %v6884 = vand.u32 2147483647, %v6874
  %vm6885 = vcmp.eq.f32.partialorder %v6884, 8.507059e+37
  %v6886 = vand.u32 %v6874, 2147483648
  %v6887 = vor.u32 1.1754944e-38, %v6886
  %v6888 = vsel %vm6885, %v6887, %v6883
  %v6889 = vmul.f32 1.0, %v6888
  %v6890 = vxor.u32 %v6868, 2147483648
  %v6891 = vmul.f32 %v6890, 1.442695
  %v6892 = vpow.pop %v6891
  %v6893 = vadd.f32 %v6892, 1.0
  %v6894 = vrcp.pop %v6893
  %v6895 = vmul.f32 %v6893, %v6894
  %v6896 = vsub.f32 1.0, %v6895
  %v6897 = vmul.f32 %v6894, %v6896
  %v6898 = vadd.f32 %v6894, %v6897
  %vm6899 = vweird.f32 %v6893
  %vm6900 = vweird.f32 %v6894
  %vm6901 = vmor %vm6899, %vm6900
  %v6902 = vsel %vm6901, %v6894, %v6898
  %v6903 = vand.u32 2147483647, %v6893
  %vm6904 = vcmp.eq.f32.partialorder %v6903, 8.507059e+37
  %v6905 = vand.u32 %v6893, 2147483648
  %v6906 = vor.u32 1.1754944e-38, %v6905
  %v6907 = vsel %vm6904, %v6906, %v6902
  %v6908 = vmul.f32 1.0, %v6907
  %v6909 = vtanh.pop %v6869
  %v6910 = vxor.u32 %v6870, 2147483648
  %v6911 = vmul.f32 %v6910, 1.442695
  %v6912 = vpow.pop %v6911
  %v6913 = vadd.f32 %v6912, 1.0
  %v6914 = vrcp.pop %v6913
  %v6915 = vmul.f32 %v6913, %v6914
  %v6916 = vsub.f32 1.0, %v6915
  %v6917 = vmul.f32 %v6914, %v6916
  %v6918 = vadd.f32 %v6914, %v6917
  %vm6919 = vweird.f32 %v6913
  %vm6920 = vweird.f32 %v6914
  %vm6921 = vmor %vm6919, %vm6920
  %v6922 = vsel %vm6921, %v6914, %v6918
  %v6923 = vand.u32 2147483647, %v6913
  %vm6924 = vcmp.eq.f32.partialorder %v6923, 8.507059e+37
  %v6925 = vand.u32 %v6913, 2147483648
  %v6926 = vor.u32 1.1754944e-38, %v6925
  %v6927 = vsel %vm6924, %v6926, %v6922
  %v6928 = vmul.f32 1.0, %v6927
  %v6929 = vld [vmem:[#allocation3] sm:$0xff]
  %v6930 = vmul.f32 %v6908, %v6929
  %v6931 = vmul.f32 %v6889, %v6909
  %v6932 = vadd.f32 %v6930, %v6931
  %v6933 = vtanh.pop %v6932
  %v6934 = vmul.f32 %v6928, %v6933
  %6935 = vst [vmem:[#allocation3] sm:$0xff] %v6932
  %6936 = vst [vmem:[#allocation2] sm:$0xff] %v6934
  %6937 = vst [vmem:[%s2276] sm:$0xff] %v6934
  %v6938 = vld [vmem:[%s2599] sm:$0xff]
  %v6939 = vpack.c.bf16 %v6938, %v6938
  %v6940 = vld [vmem:[%s2] sm:$0xff]
  %v6941 = vld [vmem:[%s2 + $0x8] sm:$0xff]
  %v6942 = vld [vmem:[%s2 + $0x10] sm:$0xff]
  %v6943 = vld [vmem:[%s2 + $0x18] sm:$0xff]
  %v6944 = vld [vmem:[%s2 + $0x20] sm:$0xff]
  %v6945 = vld [vmem:[%s2 + $0x28] sm:$0xff]
  %v6946 = vld [vmem:[%s2 + $0x30] sm:$0xff]
  %v6947 = vld [vmem:[%s2 + $0x38] sm:$0xff]
  %v6948 = vld [vmem:[%s2 + $0x40] sm:$0xff]
  %v6949 = vld [vmem:[%s2 + $0x48] sm:$0xff]
  %v6950 = vld [vmem:[%s2 + $0x50] sm:$0xff]
  %v6951 = vld [vmem:[%s2 + $0x58] sm:$0xff]
  %v6952 = vld [vmem:[%s2 + $0x60] sm:$0xff]
  %v6953 = vld [vmem:[%s2 + $0x68] sm:$0xff]
  %v6954 = vld [vmem:[%s2 + $0x70] sm:$0xff]
  %v6955 = vld [vmem:[%s2 + $0x78] sm:$0xff]
  %v6956 = vld [vmem:[%s2 + $0x80] sm:$0xff]
  %v6957 = vld [vmem:[%s2 + $0x88] sm:$0xff]
  %v6958 = vld [vmem:[%s2 + $0x90] sm:$0xff]
  %v6959 = vld [vmem:[%s2 + $0x98] sm:$0xff]
  %v6960 = vld [vmem:[%s2 + $0xa0] sm:$0xff]
  %v6961 = vld [vmem:[%s2 + $0xa8] sm:$0xff]
  %v6962 = vld [vmem:[%s2 + $0xb0] sm:$0xff]
  %v6963 = vld [vmem:[%s2 + $0xb8] sm:$0xff]
  %v6964 = vld [vmem:[%s2 + $0xc0] sm:$0xff]
  %v6965 = vld [vmem:[%s2 + $0xc8] sm:$0xff]
  %v6966 = vld [vmem:[%s2 + $0xd0] sm:$0xff]
  %v6967 = vld [vmem:[%s2 + $0xd8] sm:$0xff]
  %v6968 = vld [vmem:[%s2 + $0xe0] sm:$0xff]
  %v6969 = vld [vmem:[%s2 + $0xe8] sm:$0xff]
  %v6970 = vld [vmem:[%s2 + $0xf0] sm:$0xff]
  %v6971 = vld [vmem:[%s2 + $0xf8] sm:$0xff]
  %v6972 = vld [vmem:[%s3] sm:$0xf]
  %v6974 = vperm.slane %v6972, 0
  %v6975 = vperm.slane %v6972, 1
  %v6976 = vperm.slane %v6972, 2
  %v6977 = vperm.slane %v6972, 3
  %v7014 = vunpack.c.l.b16 %v6940
  %v7015 = vunpack.c.h.b16 %v6940
  %v7016 = vunpack.c.l.b16 %v6941
  %v7017 = vunpack.c.h.b16 %v6941
  %v7018 = vunpack.c.l.b16 %v6942
  %v7019 = vunpack.c.h.b16 %v6942
  %v7020 = vunpack.c.l.b16 %v6943
  %v7021 = vunpack.c.h.b16 %v6943
  %v7022 = vunpack.c.l.b16 %v6944
  %v7023 = vunpack.c.h.b16 %v6944
  %v7024 = vunpack.c.l.b16 %v6945
  %v7025 = vunpack.c.h.b16 %v6945
  %v7026 = vunpack.c.l.b16 %v6946
  %v7027 = vunpack.c.h.b16 %v6946
  %v7028 = vunpack.c.l.b16 %v6947
  %v7029 = vunpack.c.h.b16 %v6947
  %v7030 = vunpack.c.l.b16 %v6948
  %v7031 = vunpack.c.h.b16 %v6948
  %v7032 = vunpack.c.l.b16 %v6949
  %v7033 = vunpack.c.h.b16 %v6949
  %v7034 = vunpack.c.l.b16 %v6950
  %v7035 = vunpack.c.h.b16 %v6950
  %v7036 = vunpack.c.l.b16 %v6951
  %v7037 = vunpack.c.h.b16 %v6951
  %v7038 = vunpack.c.l.b16 %v6952
  %v7039 = vunpack.c.h.b16 %v6952
  %v7040 = vunpack.c.l.b16 %v6953
  %v7041 = vunpack.c.h.b16 %v6953
  %v7042 = vunpack.c.l.b16 %v6954
  %v7043 = vunpack.c.h.b16 %v6954
  %v7044 = vunpack.c.l.b16 %v6955
  %v7045 = vunpack.c.h.b16 %v6955
  %v7046 = vunpack.c.l.b16 %v6956
  %v7047 = vunpack.c.h.b16 %v6956
  %v7048 = vunpack.c.l.b16 %v6957
  %v7049 = vunpack.c.h.b16 %v6957
  %v7050 = vunpack.c.l.b16 %v6958
  %v7051 = vunpack.c.h.b16 %v6958
  %v7052 = vunpack.c.l.b16 %v6959
  %v7053 = vunpack.c.h.b16 %v6959
  %v7054 = vunpack.c.l.b16 %v6960
  %v7055 = vunpack.c.h.b16 %v6960
  %v7056 = vunpack.c.l.b16 %v6961
  %v7057 = vunpack.c.h.b16 %v6961
  %v7058 = vunpack.c.l.b16 %v6962
  %v7059 = vunpack.c.h.b16 %v6962
  %v7060 = vunpack.c.l.b16 %v6963
  %v7061 = vunpack.c.h.b16 %v6963
  %v7062 = vunpack.c.l.b16 %v6964
  %v7063 = vunpack.c.h.b16 %v6964
  %v7064 = vunpack.c.l.b16 %v6965
  %v7065 = vunpack.c.h.b16 %v6965
  %v7066 = vunpack.c.l.b16 %v6966
  %v7067 = vunpack.c.h.b16 %v6966
  %v7068 = vunpack.c.l.b16 %v6967
  %v7069 = vunpack.c.h.b16 %v6967
  %v7070 = vunpack.c.l.b16 %v6968
  %v7071 = vunpack.c.h.b16 %v6968
  %v7072 = vunpack.c.l.b16 %v6969
  %v7073 = vunpack.c.h.b16 %v6969
  %v7074 = vunpack.c.l.b16 %v6970
  %v7075 = vunpack.c.h.b16 %v6970
  %v7076 = vunpack.c.l.b16 %v6971
  %v7077 = vunpack.c.h.b16 %v6971
  %v7078 = vpack.c.b16 %v7018, %v7014
  %v7079 = vpack.c.b16 %v7019, %v7015
  %v7080 = vpack.c.b16 %v7020, %v7016
  %v7081 = vpack.c.b16 %v7021, %v7017
  %v7082 = vpack.c.b16 %v7026, %v7022
  %v7083 = vpack.c.b16 %v7027, %v7023
  %v7084 = vpack.c.b16 %v7028, %v7024
  %v7085 = vpack.c.b16 %v7029, %v7025
  %v7086 = vpack.c.b16 %v7034, %v7030
  %v7087 = vpack.c.b16 %v7035, %v7031
  %v7088 = vpack.c.b16 %v7036, %v7032
  %v7089 = vpack.c.b16 %v7037, %v7033
  %v7090 = vpack.c.b16 %v7042, %v7038
  %v7091 = vpack.c.b16 %v7043, %v7039
  %v7092 = vpack.c.b16 %v7044, %v7040
  %v7093 = vpack.c.b16 %v7045, %v7041
  %v7094 = vpack.c.b16 %v7050, %v7046
  %v7095 = vpack.c.b16 %v7051, %v7047
  %v7096 = vpack.c.b16 %v7052, %v7048
  %v7097 = vpack.c.b16 %v7053, %v7049
  %v7098 = vpack.c.b16 %v7058, %v7054
  %v7099 = vpack.c.b16 %v7059, %v7055
  %v7100 = vpack.c.b16 %v7060, %v7056
  %v7101 = vpack.c.b16 %v7061, %v7057
  %v7102 = vpack.c.b16 %v7066, %v7062
  %v7103 = vpack.c.b16 %v7067, %v7063
  %v7104 = vpack.c.b16 %v7068, %v7064
  %v7105 = vpack.c.b16 %v7069, %v7065
  %v7106 = vpack.c.b16 %v7074, %v7070
  %v7107 = vpack.c.b16 %v7075, %v7071
  %v7108 = vpack.c.b16 %v7076, %v7072
  %v7109 = vpack.c.b16 %v7077, %v7073
  %7142 = vmatpush.bf16.msra.mxu0 %v7106
  %7143 = vmatpush.bf16.msra.mxu0 %v7102
  %7144 = vmatpush.bf16.msra.mxu0 %v7098
  %7145 = vmatpush.bf16.msra.mxu0 %v7094
  %7146 = vmatpush.bf16.msra.mxu0 %v7090
  %7147 = vmatpush.bf16.msra.mxu0 %v7086
  %7148 = vmatpush.bf16.msra.mxu0 %v7082
  %7149 = vmatpush.bf16.msra.mxu0 %v7078
  %7150 = vmatmul.bf16.gmra.mxu0 %v6939
  %v7151 = vpop.f32.mrf.mxu0
  %v7152 = vadd.f32 %v6974, %v7151
  %v7153 = vpop.f32.mrf.mxu0
  %7154 = vdwg.mxu0
  %7155 = vmatpush.bf16.msra.mxu0 %v7107
  %7156 = vmatpush.bf16.msra.mxu0 %v7103
  %7157 = vmatpush.bf16.msra.mxu0 %v7099
  %7158 = vmatpush.bf16.msra.mxu0 %v7095
  %7159 = vmatpush.bf16.msra.mxu0 %v7091
  %7160 = vmatpush.bf16.msra.mxu0 %v7087
  %7161 = vmatpush.bf16.msra.mxu0 %v7083
  %7162 = vmatpush.bf16.msra.mxu0 %v7079
  %7163 = vmatmul.bf16.gmra.mxu0 %v6939
  %v7164 = vpop.f32.mrf.mxu0
  %v7165 = vadd.f32 %v6975, %v7164
  %v7166 = vpop.f32.mrf.mxu0
  %7167 = vdwg.mxu0
  %7168 = vmatpush.bf16.msra.mxu0 %v7108
  %7169 = vmatpush.bf16.msra.mxu0 %v7104
  %7170 = vmatpush.bf16.msra.mxu0 %v7100
  %7171 = vmatpush.bf16.msra.mxu0 %v7096
  %7172 = vmatpush.bf16.msra.mxu0 %v7092
  %7173 = vmatpush.bf16.msra.mxu0 %v7088
  %7174 = vmatpush.bf16.msra.mxu0 %v7084
  %7175 = vmatpush.bf16.msra.mxu0 %v7080
  %7176 = vmatmul.bf16.gmra.mxu0 %v6939
  %v7177 = vpop.f32.mrf.mxu0
  %v7178 = vadd.f32 %v6976, %v7177
  %v7179 = vpop.f32.mrf.mxu0
  %7180 = vdwg.mxu0
  %7181 = vmatpush.bf16.msra.mxu0 %v7109
  %7182 = vmatpush.bf16.msra.mxu0 %v7105
  %7183 = vmatpush.bf16.msra.mxu0 %v7101
  %7184 = vmatpush.bf16.msra.mxu0 %v7097
  %7185 = vmatpush.bf16.msra.mxu0 %v7093
  %7186 = vmatpush.bf16.msra.mxu0 %v7089
  %7187 = vmatpush.bf16.msra.mxu0 %v7085
  %7188 = vmatpush.bf16.msra.mxu0 %v7081
  %7189 = vmatmul.bf16.gmra.mxu0 %v6939
  %v7190 = vpop.f32.mrf.mxu0
  %v7191 = vadd.f32 %v6977, %v7190
  %v7192 = vpop.f32.mrf.mxu0
  %7193 = vdwg.mxu0
  %v7194 = vld [vmem:[#allocation2] sm:$0xff]
  %v7195 = vpack.c.bf16 %v7194, %v7194
  %v7196 = vld [vmem:[%s3184] sm:$0xff]
  %v7197 = vld [vmem:[%s3184 + $0x8] sm:$0xff]
  %v7198 = vld [vmem:[%s3184 + $0x10] sm:$0xff]
  %v7199 = vld [vmem:[%s3184 + $0x18] sm:$0xff]
  %v7200 = vld [vmem:[%s3184 + $0x20] sm:$0xff]
  %v7201 = vld [vmem:[%s3184 + $0x28] sm:$0xff]
  %v7202 = vld [vmem:[%s3184 + $0x30] sm:$0xff]
  %v7203 = vld [vmem:[%s3184 + $0x38] sm:$0xff]
  %v7204 = vld [vmem:[%s3184 + $0x40] sm:$0xff]
  %v7205 = vld [vmem:[%s3184 + $0x48] sm:$0xff]
  %v7206 = vld [vmem:[%s3184 + $0x50] sm:$0xff]
  %v7207 = vld [vmem:[%s3184 + $0x58] sm:$0xff]
  %v7208 = vld [vmem:[%s3184 + $0x60] sm:$0xff]
  %v7209 = vld [vmem:[%s3184 + $0x68] sm:$0xff]
  %v7210 = vld [vmem:[%s3184 + $0x70] sm:$0xff]
  %v7211 = vld [vmem:[%s3184 + $0x78] sm:$0xff]
  %v7212 = vld [vmem:[%s3184 + $0x80] sm:$0xff]
  %v7213 = vld [vmem:[%s3184 + $0x88] sm:$0xff]
  %v7214 = vld [vmem:[%s3184 + $0x90] sm:$0xff]
  %v7215 = vld [vmem:[%s3184 + $0x98] sm:$0xff]
  %v7216 = vld [vmem:[%s3184 + $0xa0] sm:$0xff]
  %v7217 = vld [vmem:[%s3184 + $0xa8] sm:$0xff]
  %v7218 = vld [vmem:[%s3184 + $0xb0] sm:$0xff]
  %v7219 = vld [vmem:[%s3184 + $0xb8] sm:$0xff]
  %v7220 = vld [vmem:[%s3184 + $0xc0] sm:$0xff]
  %v7221 = vld [vmem:[%s3184 + $0xc8] sm:$0xff]
  %v7222 = vld [vmem:[%s3184 + $0xd0] sm:$0xff]
  %v7223 = vld [vmem:[%s3184 + $0xd8] sm:$0xff]
  %v7224 = vld [vmem:[%s3184 + $0xe0] sm:$0xff]
  %v7225 = vld [vmem:[%s3184 + $0xe8] sm:$0xff]
  %v7226 = vld [vmem:[%s3184 + $0xf0] sm:$0xff]
  %v7227 = vld [vmem:[%s3184 + $0xf8] sm:$0xff]
  %v7260 = vunpack.c.l.b16 %v7196
  %v7261 = vunpack.c.h.b16 %v7196
  %v7262 = vunpack.c.l.b16 %v7197
  %v7263 = vunpack.c.h.b16 %v7197
  %v7264 = vunpack.c.l.b16 %v7198
  %v7265 = vunpack.c.h.b16 %v7198
  %v7266 = vunpack.c.l.b16 %v7199
  %v7267 = vunpack.c.h.b16 %v7199
  %v7268 = vunpack.c.l.b16 %v7200
  %v7269 = vunpack.c.h.b16 %v7200
  %v7270 = vunpack.c.l.b16 %v7201
  %v7271 = vunpack.c.h.b16 %v7201
  %v7272 = vunpack.c.l.b16 %v7202
  %v7273 = vunpack.c.h.b16 %v7202
  %v7274 = vunpack.c.l.b16 %v7203
  %v7275 = vunpack.c.h.b16 %v7203
  %v7276 = vunpack.c.l.b16 %v7204
  %v7277 = vunpack.c.h.b16 %v7204
  %v7278 = vunpack.c.l.b16 %v7205
  %v7279 = vunpack.c.h.b16 %v7205
  %v7280 = vunpack.c.l.b16 %v7206
  %v7281 = vunpack.c.h.b16 %v7206
  %v7282 = vunpack.c.l.b16 %v7207
  %v7283 = vunpack.c.h.b16 %v7207
  %v7284 = vunpack.c.l.b16 %v7208
  %v7285 = vunpack.c.h.b16 %v7208
  %v7286 = vunpack.c.l.b16 %v7209
  %v7287 = vunpack.c.h.b16 %v7209
  %v7288 = vunpack.c.l.b16 %v7210
  %v7289 = vunpack.c.h.b16 %v7210
  %v7290 = vunpack.c.l.b16 %v7211
  %v7291 = vunpack.c.h.b16 %v7211
  %v7292 = vunpack.c.l.b16 %v7212
  %v7293 = vunpack.c.h.b16 %v7212
  %v7294 = vunpack.c.l.b16 %v7213
  %v7295 = vunpack.c.h.b16 %v7213
  %v7296 = vunpack.c.l.b16 %v7214
  %v7297 = vunpack.c.h.b16 %v7214
  %v7298 = vunpack.c.l.b16 %v7215
  %v7299 = vunpack.c.h.b16 %v7215
  %v7300 = vunpack.c.l.b16 %v7216
  %v7301 = vunpack.c.h.b16 %v7216
  %v7302 = vunpack.c.l.b16 %v7217
  %v7303 = vunpack.c.h.b16 %v7217
  %v7304 = vunpack.c.l.b16 %v7218
  %v7305 = vunpack.c.h.b16 %v7218
  %v7306 = vunpack.c.l.b16 %v7219
  %v7307 = vunpack.c.h.b16 %v7219
  %v7308 = vunpack.c.l.b16 %v7220
  %v7309 = vunpack.c.h.b16 %v7220
  %v7310 = vunpack.c.l.b16 %v7221
  %v7311 = vunpack.c.h.b16 %v7221
  %v7312 = vunpack.c.l.b16 %v7222
  %v7313 = vunpack.c.h.b16 %v7222
  %v7314 = vunpack.c.l.b16 %v7223
  %v7315 = vunpack.c.h.b16 %v7223
  %v7316 = vunpack.c.l.b16 %v7224
  %v7317 = vunpack.c.h.b16 %v7224
  %v7318 = vunpack.c.l.b16 %v7225
  %v7319 = vunpack.c.h.b16 %v7225
  %v7320 = vunpack.c.l.b16 %v7226
  %v7321 = vunpack.c.h.b16 %v7226
  %v7322 = vunpack.c.l.b16 %v7227
  %v7323 = vunpack.c.h.b16 %v7227
  %v7324 = vpack.c.b16 %v7264, %v7260
  %v7325 = vpack.c.b16 %v7265, %v7261
  %v7326 = vpack.c.b16 %v7266, %v7262
  %v7327 = vpack.c.b16 %v7267, %v7263
  %v7328 = vpack.c.b16 %v7272, %v7268
  %v7329 = vpack.c.b16 %v7273, %v7269
  %v7330 = vpack.c.b16 %v7274, %v7270
  %v7331 = vpack.c.b16 %v7275, %v7271
  %v7332 = vpack.c.b16 %v7280, %v7276
  %v7333 = vpack.c.b16 %v7281, %v7277
  %v7334 = vpack.c.b16 %v7282, %v7278
  %v7335 = vpack.c.b16 %v7283, %v7279
  %v7336 = vpack.c.b16 %v7288, %v7284
  %v7337 = vpack.c.b16 %v7289, %v7285
  %v7338 = vpack.c.b16 %v7290, %v7286
  %v7339 = vpack.c.b16 %v7291, %v7287
  %v7340 = vpack.c.b16 %v7296, %v7292
  %v7341 = vpack.c.b16 %v7297, %v7293
  %v7342 = vpack.c.b16 %v7298, %v7294
  %v7343 = vpack.c.b16 %v7299, %v7295
  %v7344 = vpack.c.b16 %v7304, %v7300
  %v7345 = vpack.c.b16 %v7305, %v7301
  %v7346 = vpack.c.b16 %v7306, %v7302
  %v7347 = vpack.c.b16 %v7307, %v7303
  %v7348 = vpack.c.b16 %v7312, %v7308
  %v7349 = vpack.c.b16 %v7313, %v7309
  %v7350 = vpack.c.b16 %v7314, %v7310
  %v7351 = vpack.c.b16 %v7315, %v7311
  %v7352 = vpack.c.b16 %v7320, %v7316
  %v7353 = vpack.c.b16 %v7321, %v7317
  %v7354 = vpack.c.b16 %v7322, %v7318
  %v7355 = vpack.c.b16 %v7323, %v7319
  %7388 = vmatpush.bf16.msra.mxu0 %v7352
  %7389 = vmatpush.bf16.msra.mxu0 %v7348
  %7390 = vmatpush.bf16.msra.mxu0 %v7344
  %7391 = vmatpush.bf16.msra.mxu0 %v7340
  %7392 = vmatpush.bf16.msra.mxu0 %v7336
  %7393 = vmatpush.bf16.msra.mxu0 %v7332
  %7394 = vmatpush.bf16.msra.mxu0 %v7328
  %7395 = vmatpush.bf16.msra.mxu0 %v7324
  %7396 = vmatmul.bf16.gmra.mxu0 %v7195
  %v7397 = vpop.f32.mrf.mxu0
  %v7398 = vadd.f32 0.0, %v7397
  %v7399 = vpop.f32.mrf.mxu0
  %7400 = vdwg.mxu0
  %7401 = vmatpush.bf16.msra.mxu0 %v7353
  %7402 = vmatpush.bf16.msra.mxu0 %v7349
  %7403 = vmatpush.bf16.msra.mxu0 %v7345
  %7404 = vmatpush.bf16.msra.mxu0 %v7341
  %7405 = vmatpush.bf16.msra.mxu0 %v7337
  %7406 = vmatpush.bf16.msra.mxu0 %v7333
  %7407 = vmatpush.bf16.msra.mxu0 %v7329
  %7408 = vmatpush.bf16.msra.mxu0 %v7325
  %7409 = vmatmul.bf16.gmra.mxu0 %v7195
  %v7410 = vpop.f32.mrf.mxu0
  %v7411 = vadd.f32 0.0, %v7410
  %v7412 = vpop.f32.mrf.mxu0
  %7413 = vdwg.mxu0
  %7414 = vmatpush.bf16.msra.mxu0 %v7354
  %7415 = vmatpush.bf16.msra.mxu0 %v7350
  %7416 = vmatpush.bf16.msra.mxu0 %v7346
  %7417 = vmatpush.bf16.msra.mxu0 %v7342
  %7418 = vmatpush.bf16.msra.mxu0 %v7338
  %7419 = vmatpush.bf16.msra.mxu0 %v7334
  %7420 = vmatpush.bf16.msra.mxu0 %v7330
  %7421 = vmatpush.bf16.msra.mxu0 %v7326
  %7422 = vmatmul.bf16.gmra.mxu0 %v7195
  %v7423 = vpop.f32.mrf.mxu0
  %v7424 = vadd.f32 0.0, %v7423
  %v7425 = vpop.f32.mrf.mxu0
  %7426 = vdwg.mxu0
  %7427 = vmatpush.bf16.msra.mxu0 %v7355
  %7428 = vmatpush.bf16.msra.mxu0 %v7351
  %7429 = vmatpush.bf16.msra.mxu0 %v7347
  %7430 = vmatpush.bf16.msra.mxu0 %v7343
  %7431 = vmatpush.bf16.msra.mxu0 %v7339
  %7432 = vmatpush.bf16.msra.mxu0 %v7335
  %7433 = vmatpush.bf16.msra.mxu0 %v7331
  %7434 = vmatpush.bf16.msra.mxu0 %v7327
  %7435 = vmatmul.bf16.gmra.mxu0 %v7195
  %v7436 = vpop.f32.mrf.mxu0
  %v7437 = vadd.f32 0.0, %v7436
  %v7438 = vpop.f32.mrf.mxu0
  %7439 = vdwg.mxu0
  %v7440 = vadd.f32 %v7152, %v7398
  %v7441 = vadd.f32 %v7165, %v7411
  %v7442 = vadd.f32 %v7178, %v7424
  %v7443 = vadd.f32 %v7191, %v7437
  %v7444 = vxor.u32 %v7440, 2147483648
  %v7445 = vmul.f32 %v7444, 1.442695
  %v7446 = vpow.pop %v7445
  %v7447 = vadd.f32 %v7446, 1.0
  %v7448 = vrcp.pop %v7447
  %v7449 = vmul.f32 %v7447, %v7448
  %v7450 = vsub.f32 1.0, %v7449
  %v7451 = vmul.f32 %v7448, %v7450
  %v7452 = vadd.f32 %v7448, %v7451
  %vm7453 = vweird.f32 %v7447
  %vm7454 = vweird.f32 %v7448
  %vm7455 = vmor %vm7453, %vm7454
  %v7456 = vsel %vm7455, %v7448, %v7452
  %v7457 = vand.u32 2147483647, %v7447
  %vm7458 = vcmp.eq.f32.partialorder %v7457, 8.507059e+37
  %v7459 = vand.u32 %v7447, 2147483648
  %v7460 = vor.u32 1.1754944e-38, %v7459
  %v7461 = vsel %vm7458, %v7460, %v7456
  %v7462 = vmul.f32 1.0, %v7461
  %v7463 = vxor.u32 %v7441, 2147483648
  %v7464 = vmul.f32 %v7463, 1.442695
  %v7465 = vpow.pop %v7464
  %v7466 = vadd.f32 %v7465, 1.0
  %v7467 = vrcp.pop %v7466
  %v7468 = vmul.f32 %v7466, %v7467
  %v7469 = vsub.f32 1.0, %v7468
  %v7470 = vmul.f32 %v7467, %v7469
  %v7471 = vadd.f32 %v7467, %v7470
  %vm7472 = vweird.f32 %v7466
  %vm7473 = vweird.f32 %v7467
  %vm7474 = vmor %vm7472, %vm7473
  %v7475 = vsel %vm7474, %v7467, %v7471
  %v7476 = vand.u32 2147483647, %v7466
  %vm7477 = vcmp.eq.f32.partialorder %v7476, 8.507059e+37
  %v7478 = vand.u32 %v7466, 2147483648
  %v7479 = vor.u32 1.1754944e-38, %v7478
  %v7480 = vsel %vm7477, %v7479, %v7475
  %v7481 = vmul.f32 1.0, %v7480
  %v7482 = vtanh.pop %v7442
  %v7483 = vxor.u32 %v7443, 2147483648
  %v7484 = vmul.f32 %v7483, 1.442695
  %v7485 = vpow.pop %v7484
  %v7486 = vadd.f32 %v7485, 1.0
  %v7487 = vrcp.pop %v7486
  %v7488 = vmul.f32 %v7486, %v7487
  %v7489 = vsub.f32 1.0, %v7488
  %v7490 = vmul.f32 %v7487, %v7489
  %v7491 = vadd.f32 %v7487, %v7490
  %vm7492 = vweird.f32 %v7486
  %vm7493 = vweird.f32 %v7487
  %vm7494 = vmor %vm7492, %vm7493
  %v7495 = vsel %vm7494, %v7487, %v7491
  %v7496 = vand.u32 2147483647, %v7486
  %vm7497 = vcmp.eq.f32.partialorder %v7496, 8.507059e+37
  %v7498 = vand.u32 %v7486, 2147483648
  %v7499 = vor.u32 1.1754944e-38, %v7498
  %v7500 = vsel %vm7497, %v7499, %v7495
  %v7501 = vmul.f32 1.0, %v7500
  %v7502 = vld [vmem:[#allocation3] sm:$0xff]
  %v7503 = vmul.f32 %v7481, %v7502
  %v7504 = vmul.f32 %v7462, %v7482
  %v7505 = vadd.f32 %v7503, %v7504
  %v7506 = vtanh.pop %v7505
  %v7507 = vmul.f32 %v7501, %v7506
  %7508 = vst [vmem:[#allocation3] sm:$0xff] %v7505
  %7509 = vst [vmem:[#allocation2] sm:$0xff] %v7507
  %7510 = vst [vmem:[%s2599] sm:$0xff] %v7507
  %v7511 = vld [vmem:[%s2922] sm:$0xff]
  %v7512 = vpack.c.bf16 %v7511, %v7511
  %v7513 = vld [vmem:[%s2] sm:$0xff]
  %v7514 = vld [vmem:[%s2 + $0x8] sm:$0xff]
  %v7515 = vld [vmem:[%s2 + $0x10] sm:$0xff]
  %v7516 = vld [vmem:[%s2 + $0x18] sm:$0xff]
  %v7517 = vld [vmem:[%s2 + $0x20] sm:$0xff]
  %v7518 = vld [vmem:[%s2 + $0x28] sm:$0xff]
  %v7519 = vld [vmem:[%s2 + $0x30] sm:$0xff]
  %v7520 = vld [vmem:[%s2 + $0x38] sm:$0xff]
  %v7521 = vld [vmem:[%s2 + $0x40] sm:$0xff]
  %v7522 = vld [vmem:[%s2 + $0x48] sm:$0xff]
  %v7523 = vld [vmem:[%s2 + $0x50] sm:$0xff]
  %v7524 = vld [vmem:[%s2 + $0x58] sm:$0xff]
  %v7525 = vld [vmem:[%s2 + $0x60] sm:$0xff]
  %v7526 = vld [vmem:[%s2 + $0x68] sm:$0xff]
  %v7527 = vld [vmem:[%s2 + $0x70] sm:$0xff]
  %v7528 = vld [vmem:[%s2 + $0x78] sm:$0xff]
  %v7529 = vld [vmem:[%s2 + $0x80] sm:$0xff]
  %v7530 = vld [vmem:[%s2 + $0x88] sm:$0xff]
  %v7531 = vld [vmem:[%s2 + $0x90] sm:$0xff]
  %v7532 = vld [vmem:[%s2 + $0x98] sm:$0xff]
  %v7533 = vld [vmem:[%s2 + $0xa0] sm:$0xff]
  %v7534 = vld [vmem:[%s2 + $0xa8] sm:$0xff]
  %v7535 = vld [vmem:[%s2 + $0xb0] sm:$0xff]
  %v7536 = vld [vmem:[%s2 + $0xb8] sm:$0xff]
  %v7537 = vld [vmem:[%s2 + $0xc0] sm:$0xff]
  %v7538 = vld [vmem:[%s2 + $0xc8] sm:$0xff]
  %v7539 = vld [vmem:[%s2 + $0xd0] sm:$0xff]
  %v7540 = vld [vmem:[%s2 + $0xd8] sm:$0xff]
  %v7541 = vld [vmem:[%s2 + $0xe0] sm:$0xff]
  %v7542 = vld [vmem:[%s2 + $0xe8] sm:$0xff]
  %v7543 = vld [vmem:[%s2 + $0xf0] sm:$0xff]
  %v7544 = vld [vmem:[%s2 + $0xf8] sm:$0xff]
  %v7545 = vld [vmem:[%s3] sm:$0xf]
  %v7547 = vperm.slane %v7545, 0
  %v7548 = vperm.slane %v7545, 1
  %v7549 = vperm.slane %v7545, 2
  %v7550 = vperm.slane %v7545, 3
  %v7587 = vunpack.c.l.b16 %v7513
  %v7588 = vunpack.c.h.b16 %v7513
  %v7589 = vunpack.c.l.b16 %v7514
  %v7590 = vunpack.c.h.b16 %v7514
  %v7591 = vunpack.c.l.b16 %v7515
  %v7592 = vunpack.c.h.b16 %v7515
  %v7593 = vunpack.c.l.b16 %v7516
  %v7594 = vunpack.c.h.b16 %v7516
  %v7595 = vunpack.c.l.b16 %v7517
  %v7596 = vunpack.c.h.b16 %v7517
  %v7597 = vunpack.c.l.b16 %v7518
  %v7598 = vunpack.c.h.b16 %v7518
  %v7599 = vunpack.c.l.b16 %v7519
  %v7600 = vunpack.c.h.b16 %v7519
  %v7601 = vunpack.c.l.b16 %v7520
  %v7602 = vunpack.c.h.b16 %v7520
  %v7603 = vunpack.c.l.b16 %v7521
  %v7604 = vunpack.c.h.b16 %v7521
  %v7605 = vunpack.c.l.b16 %v7522
  %v7606 = vunpack.c.h.b16 %v7522
  %v7607 = vunpack.c.l.b16 %v7523
  %v7608 = vunpack.c.h.b16 %v7523
  %v7609 = vunpack.c.l.b16 %v7524
  %v7610 = vunpack.c.h.b16 %v7524
  %v7611 = vunpack.c.l.b16 %v7525
  %v7612 = vunpack.c.h.b16 %v7525
  %v7613 = vunpack.c.l.b16 %v7526
  %v7614 = vunpack.c.h.b16 %v7526
  %v7615 = vunpack.c.l.b16 %v7527
  %v7616 = vunpack.c.h.b16 %v7527
  %v7617 = vunpack.c.l.b16 %v7528
  %v7618 = vunpack.c.h.b16 %v7528
  %v7619 = vunpack.c.l.b16 %v7529
  %v7620 = vunpack.c.h.b16 %v7529
  %v7621 = vunpack.c.l.b16 %v7530
  %v7622 = vunpack.c.h.b16 %v7530
  %v7623 = vunpack.c.l.b16 %v7531
  %v7624 = vunpack.c.h.b16 %v7531
  %v7625 = vunpack.c.l.b16 %v7532
  %v7626 = vunpack.c.h.b16 %v7532
  %v7627 = vunpack.c.l.b16 %v7533
  %v7628 = vunpack.c.h.b16 %v7533
  %v7629 = vunpack.c.l.b16 %v7534
  %v7630 = vunpack.c.h.b16 %v7534
  %v7631 = vunpack.c.l.b16 %v7535
  %v7632 = vunpack.c.h.b16 %v7535
  %v7633 = vunpack.c.l.b16 %v7536
  %v7634 = vunpack.c.h.b16 %v7536
  %v7635 = vunpack.c.l.b16 %v7537
  %v7636 = vunpack.c.h.b16 %v7537
  %v7637 = vunpack.c.l.b16 %v7538
  %v7638 = vunpack.c.h.b16 %v7538
  %v7639 = vunpack.c.l.b16 %v7539
  %v7640 = vunpack.c.h.b16 %v7539
  %v7641 = vunpack.c.l.b16 %v7540
  %v7642 = vunpack.c.h.b16 %v7540
  %v7643 = vunpack.c.l.b16 %v7541
  %v7644 = vunpack.c.h.b16 %v7541
  %v7645 = vunpack.c.l.b16 %v7542
  %v7646 = vunpack.c.h.b16 %v7542
  %v7647 = vunpack.c.l.b16 %v7543
  %v7648 = vunpack.c.h.b16 %v7543
  %v7649 = vunpack.c.l.b16 %v7544
  %v7650 = vunpack.c.h.b16 %v7544
  %v7651 = vpack.c.b16 %v7591, %v7587
  %v7652 = vpack.c.b16 %v7592, %v7588
  %v7653 = vpack.c.b16 %v7593, %v7589
  %v7654 = vpack.c.b16 %v7594, %v7590
  %v7655 = vpack.c.b16 %v7599, %v7595
  %v7656 = vpack.c.b16 %v7600, %v7596
  %v7657 = vpack.c.b16 %v7601, %v7597
  %v7658 = vpack.c.b16 %v7602, %v7598
  %v7659 = vpack.c.b16 %v7607, %v7603
  %v7660 = vpack.c.b16 %v7608, %v7604
  %v7661 = vpack.c.b16 %v7609, %v7605
  %v7662 = vpack.c.b16 %v7610, %v7606
  %v7663 = vpack.c.b16 %v7615, %v7611
  %v7664 = vpack.c.b16 %v7616, %v7612
  %v7665 = vpack.c.b16 %v7617, %v7613
  %v7666 = vpack.c.b16 %v7618, %v7614
  %v7667 = vpack.c.b16 %v7623, %v7619
  %v7668 = vpack.c.b16 %v7624, %v7620
  %v7669 = vpack.c.b16 %v7625, %v7621
  %v7670 = vpack.c.b16 %v7626, %v7622
  %v7671 = vpack.c.b16 %v7631, %v7627
  %v7672 = vpack.c.b16 %v7632, %v7628
  %v7673 = vpack.c.b16 %v7633, %v7629
  %v7674 = vpack.c.b16 %v7634, %v7630
  %v7675 = vpack.c.b16 %v7639, %v7635
  %v7676 = vpack.c.b16 %v7640, %v7636
  %v7677 = vpack.c.b16 %v7641, %v7637
  %v7678 = vpack.c.b16 %v7642, %v7638
  %v7679 = vpack.c.b16 %v7647, %v7643
  %v7680 = vpack.c.b16 %v7648, %v7644
  %v7681 = vpack.c.b16 %v7649, %v7645
  %v7682 = vpack.c.b16 %v7650, %v7646
  %7715 = vmatpush.bf16.msra.mxu0 %v7679
  %7716 = vmatpush.bf16.msra.mxu0 %v7675
  %7717 = vmatpush.bf16.msra.mxu0 %v7671
  %7718 = vmatpush.bf16.msra.mxu0 %v7667
  %7719 = vmatpush.bf16.msra.mxu0 %v7663
  %7720 = vmatpush.bf16.msra.mxu0 %v7659
  %7721 = vmatpush.bf16.msra.mxu0 %v7655
  %7722 = vmatpush.bf16.msra.mxu0 %v7651
  %7723 = vmatmul.bf16.gmra.mxu0 %v7512
  %v7724 = vpop.f32.mrf.mxu0
  %v7725 = vadd.f32 %v7547, %v7724
  %v7726 = vpop.f32.mrf.mxu0
  %7727 = vdwg.mxu0
  %7728 = vmatpush.bf16.msra.mxu0 %v7680
  %7729 = vmatpush.bf16.msra.mxu0 %v7676
  %7730 = vmatpush.bf16.msra.mxu0 %v7672
  %7731 = vmatpush.bf16.msra.mxu0 %v7668
  %7732 = vmatpush.bf16.msra.mxu0 %v7664
  %7733 = vmatpush.bf16.msra.mxu0 %v7660
  %7734 = vmatpush.bf16.msra.mxu0 %v7656
  %7735 = vmatpush.bf16.msra.mxu0 %v7652
  %7736 = vmatmul.bf16.gmra.mxu0 %v7512
  %v7737 = vpop.f32.mrf.mxu0
  %v7738 = vadd.f32 %v7548, %v7737
  %v7739 = vpop.f32.mrf.mxu0
  %7740 = vdwg.mxu0
  %7741 = vmatpush.bf16.msra.mxu0 %v7681
  %7742 = vmatpush.bf16.msra.mxu0 %v7677
  %7743 = vmatpush.bf16.msra.mxu0 %v7673
  %7744 = vmatpush.bf16.msra.mxu0 %v7669
  %7745 = vmatpush.bf16.msra.mxu0 %v7665
  %7746 = vmatpush.bf16.msra.mxu0 %v7661
  %7747 = vmatpush.bf16.msra.mxu0 %v7657
  %7748 = vmatpush.bf16.msra.mxu0 %v7653
  %7749 = vmatmul.bf16.gmra.mxu0 %v7512
  %v7750 = vpop.f32.mrf.mxu0
  %v7751 = vadd.f32 %v7549, %v7750
  %v7752 = vpop.f32.mrf.mxu0
  %7753 = vdwg.mxu0
  %7754 = vmatpush.bf16.msra.mxu0 %v7682
  %7755 = vmatpush.bf16.msra.mxu0 %v7678
  %7756 = vmatpush.bf16.msra.mxu0 %v7674
  %7757 = vmatpush.bf16.msra.mxu0 %v7670
  %7758 = vmatpush.bf16.msra.mxu0 %v7666
  %7759 = vmatpush.bf16.msra.mxu0 %v7662
  %7760 = vmatpush.bf16.msra.mxu0 %v7658
  %7761 = vmatpush.bf16.msra.mxu0 %v7654
  %7762 = vmatmul.bf16.gmra.mxu0 %v7512
  %v7763 = vpop.f32.mrf.mxu0
  %v7764 = vadd.f32 %v7550, %v7763
  %v7765 = vpop.f32.mrf.mxu0
  %7766 = vdwg.mxu0
  %v7767 = vld [vmem:[#allocation2] sm:$0xff]
  %v7768 = vpack.c.bf16 %v7767, %v7767
  %v7769 = vld [vmem:[%s3184] sm:$0xff]
  %v7770 = vld [vmem:[%s3184 + $0x8] sm:$0xff]
  %v7771 = vld [vmem:[%s3184 + $0x10] sm:$0xff]
  %v7772 = vld [vmem:[%s3184 + $0x18] sm:$0xff]
  %v7773 = vld [vmem:[%s3184 + $0x20] sm:$0xff]
  %v7774 = vld [vmem:[%s3184 + $0x28] sm:$0xff]
  %v7775 = vld [vmem:[%s3184 + $0x30] sm:$0xff]
  %v7776 = vld [vmem:[%s3184 + $0x38] sm:$0xff]
  %v7777 = vld [vmem:[%s3184 + $0x40] sm:$0xff]
  %v7778 = vld [vmem:[%s3184 + $0x48] sm:$0xff]
  %v7779 = vld [vmem:[%s3184 + $0x50] sm:$0xff]
  %v7780 = vld [vmem:[%s3184 + $0x58] sm:$0xff]
  %v7781 = vld [vmem:[%s3184 + $0x60] sm:$0xff]
  %v7782 = vld [vmem:[%s3184 + $0x68] sm:$0xff]
  %v7783 = vld [vmem:[%s3184 + $0x70] sm:$0xff]
  %v7784 = vld [vmem:[%s3184 + $0x78] sm:$0xff]
  %v7785 = vld [vmem:[%s3184 + $0x80] sm:$0xff]
  %v7786 = vld [vmem:[%s3184 + $0x88] sm:$0xff]
  %v7787 = vld [vmem:[%s3184 + $0x90] sm:$0xff]
  %v7788 = vld [vmem:[%s3184 + $0x98] sm:$0xff]
  %v7789 = vld [vmem:[%s3184 + $0xa0] sm:$0xff]
  %v7790 = vld [vmem:[%s3184 + $0xa8] sm:$0xff]
  %v7791 = vld [vmem:[%s3184 + $0xb0] sm:$0xff]
  %v7792 = vld [vmem:[%s3184 + $0xb8] sm:$0xff]
  %v7793 = vld [vmem:[%s3184 + $0xc0] sm:$0xff]
  %v7794 = vld [vmem:[%s3184 + $0xc8] sm:$0xff]
  %v7795 = vld [vmem:[%s3184 + $0xd0] sm:$0xff]
  %v7796 = vld [vmem:[%s3184 + $0xd8] sm:$0xff]
  %v7797 = vld [vmem:[%s3184 + $0xe0] sm:$0xff]
  %v7798 = vld [vmem:[%s3184 + $0xe8] sm:$0xff]
  %v7799 = vld [vmem:[%s3184 + $0xf0] sm:$0xff]
  %v7800 = vld [vmem:[%s3184 + $0xf8] sm:$0xff]
  %v7833 = vunpack.c.l.b16 %v7769
  %v7834 = vunpack.c.h.b16 %v7769
  %v7835 = vunpack.c.l.b16 %v7770
  %v7836 = vunpack.c.h.b16 %v7770
  %v7837 = vunpack.c.l.b16 %v7771
  %v7838 = vunpack.c.h.b16 %v7771
  %v7839 = vunpack.c.l.b16 %v7772
  %v7840 = vunpack.c.h.b16 %v7772
  %v7841 = vunpack.c.l.b16 %v7773
  %v7842 = vunpack.c.h.b16 %v7773
  %v7843 = vunpack.c.l.b16 %v7774
  %v7844 = vunpack.c.h.b16 %v7774
  %v7845 = vunpack.c.l.b16 %v7775
  %v7846 = vunpack.c.h.b16 %v7775
  %v7847 = vunpack.c.l.b16 %v7776
  %v7848 = vunpack.c.h.b16 %v7776
  %v7849 = vunpack.c.l.b16 %v7777
  %v7850 = vunpack.c.h.b16 %v7777
  %v7851 = vunpack.c.l.b16 %v7778
  %v7852 = vunpack.c.h.b16 %v7778
  %v7853 = vunpack.c.l.b16 %v7779
  %v7854 = vunpack.c.h.b16 %v7779
  %v7855 = vunpack.c.l.b16 %v7780
  %v7856 = vunpack.c.h.b16 %v7780
  %v7857 = vunpack.c.l.b16 %v7781
  %v7858 = vunpack.c.h.b16 %v7781
  %v7859 = vunpack.c.l.b16 %v7782
  %v7860 = vunpack.c.h.b16 %v7782
  %v7861 = vunpack.c.l.b16 %v7783
  %v7862 = vunpack.c.h.b16 %v7783
  %v7863 = vunpack.c.l.b16 %v7784
  %v7864 = vunpack.c.h.b16 %v7784
  %v7865 = vunpack.c.l.b16 %v7785
  %v7866 = vunpack.c.h.b16 %v7785
  %v7867 = vunpack.c.l.b16 %v7786
  %v7868 = vunpack.c.h.b16 %v7786
  %v7869 = vunpack.c.l.b16 %v7787
  %v7870 = vunpack.c.h.b16 %v7787
  %v7871 = vunpack.c.l.b16 %v7788
  %v7872 = vunpack.c.h.b16 %v7788
  %v7873 = vunpack.c.l.b16 %v7789
  %v7874 = vunpack.c.h.b16 %v7789
  %v7875 = vunpack.c.l.b16 %v7790
  %v7876 = vunpack.c.h.b16 %v7790
  %v7877 = vunpack.c.l.b16 %v7791
  %v7878 = vunpack.c.h.b16 %v7791
  %v7879 = vunpack.c.l.b16 %v7792
  %v7880 = vunpack.c.h.b16 %v7792
  %v7881 = vunpack.c.l.b16 %v7793
  %v7882 = vunpack.c.h.b16 %v7793
  %v7883 = vunpack.c.l.b16 %v7794
  %v7884 = vunpack.c.h.b16 %v7794
  %v7885 = vunpack.c.l.b16 %v7795
  %v7886 = vunpack.c.h.b16 %v7795
  %v7887 = vunpack.c.l.b16 %v7796
  %v7888 = vunpack.c.h.b16 %v7796
  %v7889 = vunpack.c.l.b16 %v7797
  %v7890 = vunpack.c.h.b16 %v7797
  %v7891 = vunpack.c.l.b16 %v7798
  %v7892 = vunpack.c.h.b16 %v7798
  %v7893 = vunpack.c.l.b16 %v7799
  %v7894 = vunpack.c.h.b16 %v7799
  %v7895 = vunpack.c.l.b16 %v7800
  %v7896 = vunpack.c.h.b16 %v7800
  %v7897 = vpack.c.b16 %v7837, %v7833
  %v7898 = vpack.c.b16 %v7838, %v7834
  %v7899 = vpack.c.b16 %v7839, %v7835
  %v7900 = vpack.c.b16 %v7840, %v7836
  %v7901 = vpack.c.b16 %v7845, %v7841
  %v7902 = vpack.c.b16 %v7846, %v7842
  %v7903 = vpack.c.b16 %v7847, %v7843
  %v7904 = vpack.c.b16 %v7848, %v7844
  %v7905 = vpack.c.b16 %v7853, %v7849
  %v7906 = vpack.c.b16 %v7854, %v7850
  %v7907 = vpack.c.b16 %v7855, %v7851
  %v7908 = vpack.c.b16 %v7856, %v7852
  %v7909 = vpack.c.b16 %v7861, %v7857
  %v7910 = vpack.c.b16 %v7862, %v7858
  %v7911 = vpack.c.b16 %v7863, %v7859
  %v7912 = vpack.c.b16 %v7864, %v7860
  %v7913 = vpack.c.b16 %v7869, %v7865
  %v7914 = vpack.c.b16 %v7870, %v7866
  %v7915 = vpack.c.b16 %v7871, %v7867
  %v7916 = vpack.c.b16 %v7872, %v7868
  %v7917 = vpack.c.b16 %v7877, %v7873
  %v7918 = vpack.c.b16 %v7878, %v7874
  %v7919 = vpack.c.b16 %v7879, %v7875
  %v7920 = vpack.c.b16 %v7880, %v7876
  %v7921 = vpack.c.b16 %v7885, %v7881
  %v7922 = vpack.c.b16 %v7886, %v7882
  %v7923 = vpack.c.b16 %v7887, %v7883
  %v7924 = vpack.c.b16 %v7888, %v7884
  %v7925 = vpack.c.b16 %v7893, %v7889
  %v7926 = vpack.c.b16 %v7894, %v7890
  %v7927 = vpack.c.b16 %v7895, %v7891
  %v7928 = vpack.c.b16 %v7896, %v7892
  %7961 = vmatpush.bf16.msra.mxu0 %v7925
  %7962 = vmatpush.bf16.msra.mxu0 %v7921
  %7963 = vmatpush.bf16.msra.mxu0 %v7917
  %7964 = vmatpush.bf16.msra.mxu0 %v7913
  %7965 = vmatpush.bf16.msra.mxu0 %v7909
  %7966 = vmatpush.bf16.msra.mxu0 %v7905
  %7967 = vmatpush.bf16.msra.mxu0 %v7901
  %7968 = vmatpush.bf16.msra.mxu0 %v7897
  %7969 = vmatmul.bf16.gmra.mxu0 %v7768
  %v7970 = vpop.f32.mrf.mxu0
  %v7971 = vadd.f32 0.0, %v7970
  %v7972 = vpop.f32.mrf.mxu0
  %7973 = vdwg.mxu0
  %7974 = vmatpush.bf16.msra.mxu0 %v7926
  %7975 = vmatpush.bf16.msra.mxu0 %v7922
  %7976 = vmatpush.bf16.msra.mxu0 %v7918
  %7977 = vmatpush.bf16.msra.mxu0 %v7914
  %7978 = vmatpush.bf16.msra.mxu0 %v7910
  %7979 = vmatpush.bf16.msra.mxu0 %v7906
  %7980 = vmatpush.bf16.msra.mxu0 %v7902
  %7981 = vmatpush.bf16.msra.mxu0 %v7898
  %7982 = vmatmul.bf16.gmra.mxu0 %v7768
  %v7983 = vpop.f32.mrf.mxu0
  %v7984 = vadd.f32 0.0, %v7983
  %v7985 = vpop.f32.mrf.mxu0
  %7986 = vdwg.mxu0
  %7987 = vmatpush.bf16.msra.mxu0 %v7927
  %7988 = vmatpush.bf16.msra.mxu0 %v7923
  %7989 = vmatpush.bf16.msra.mxu0 %v7919
  %7990 = vmatpush.bf16.msra.mxu0 %v7915
  %7991 = vmatpush.bf16.msra.mxu0 %v7911
  %7992 = vmatpush.bf16.msra.mxu0 %v7907
  %7993 = vmatpush.bf16.msra.mxu0 %v7903
  %7994 = vmatpush.bf16.msra.mxu0 %v7899
  %7995 = vmatmul.bf16.gmra.mxu0 %v7768
  %v7996 = vpop.f32.mrf.mxu0
  %v7997 = vadd.f32 0.0, %v7996
  %v7998 = vpop.f32.mrf.mxu0
  %7999 = vdwg.mxu0
  %8000 = vmatpush.bf16.msra.mxu0 %v7928
  %8001 = vmatpush.bf16.msra.mxu0 %v7924
  %8002 = vmatpush.bf16.msra.mxu0 %v7920
  %8003 = vmatpush.bf16.msra.mxu0 %v7916
  %8004 = vmatpush.bf16.msra.mxu0 %v7912
  %8005 = vmatpush.bf16.msra.mxu0 %v7908
  %8006 = vmatpush.bf16.msra.mxu0 %v7904
  %8007 = vmatpush.bf16.msra.mxu0 %v7900
  %8008 = vmatmul.bf16.gmra.mxu0 %v7768
  %v8009 = vpop.f32.mrf.mxu0
  %v8010 = vadd.f32 0.0, %v8009
  %v8011 = vpop.f32.mrf.mxu0
  %8012 = vdwg.mxu0
  %v8013 = vadd.f32 %v7725, %v7971
  %v8014 = vadd.f32 %v7738, %v7984
  %v8015 = vadd.f32 %v7751, %v7997
  %v8016 = vadd.f32 %v7764, %v8010
  %v8017 = vxor.u32 %v8013, 2147483648
  %v8018 = vmul.f32 %v8017, 1.442695
  %v8019 = vpow.pop %v8018
  %v8020 = vadd.f32 %v8019, 1.0
  %v8021 = vrcp.pop %v8020
  %v8022 = vmul.f32 %v8020, %v8021
  %v8023 = vsub.f32 1.0, %v8022
  %v8024 = vmul.f32 %v8021, %v8023
  %v8025 = vadd.f32 %v8021, %v8024
  %vm8026 = vweird.f32 %v8020
  %vm8027 = vweird.f32 %v8021
  %vm8028 = vmor %vm8026, %vm8027
  %v8029 = vsel %vm8028, %v8021, %v8025
  %v8030 = vand.u32 2147483647, %v8020
  %vm8031 = vcmp.eq.f32.partialorder %v8030, 8.507059e+37
  %v8032 = vand.u32 %v8020, 2147483648
  %v8033 = vor.u32 1.1754944e-38, %v8032
  %v8034 = vsel %vm8031, %v8033, %v8029
  %v8035 = vmul.f32 1.0, %v8034
  %v8036 = vxor.u32 %v8014, 2147483648
  %v8037 = vmul.f32 %v8036, 1.442695
  %v8038 = vpow.pop %v8037
  %v8039 = vadd.f32 %v8038, 1.0
  %v8040 = vrcp.pop %v8039
  %v8041 = vmul.f32 %v8039, %v8040
  %v8042 = vsub.f32 1.0, %v8041
  %v8043 = vmul.f32 %v8040, %v8042
  %v8044 = vadd.f32 %v8040, %v8043
  %vm8045 = vweird.f32 %v8039
  %vm8046 = vweird.f32 %v8040
  %vm8047 = vmor %vm8045, %vm8046
  %v8048 = vsel %vm8047, %v8040, %v8044
  %v8049 = vand.u32 2147483647, %v8039
  %vm8050 = vcmp.eq.f32.partialorder %v8049, 8.507059e+37
  %v8051 = vand.u32 %v8039, 2147483648
  %v8052 = vor.u32 1.1754944e-38, %v8051
  %v8053 = vsel %vm8050, %v8052, %v8048
  %v8054 = vmul.f32 1.0, %v8053
  %v8055 = vtanh.pop %v8015
  %v8056 = vxor.u32 %v8016, 2147483648
  %v8057 = vmul.f32 %v8056, 1.442695
  %v8058 = vpow.pop %v8057
  %v8059 = vadd.f32 %v8058, 1.0
  %v8060 = vrcp.pop %v8059
  %v8061 = vmul.f32 %v8059, %v8060
  %v8062 = vsub.f32 1.0, %v8061
  %v8063 = vmul.f32 %v8060, %v8062
  %v8064 = vadd.f32 %v8060, %v8063
  %vm8065 = vweird.f32 %v8059
  %vm8066 = vweird.f32 %v8060
  %vm8067 = vmor %vm8065, %vm8066
  %v8068 = vsel %vm8067, %v8060, %v8064
  %v8069 = vand.u32 2147483647, %v8059
  %vm8070 = vcmp.eq.f32.partialorder %v8069, 8.507059e+37
  %v8071 = vand.u32 %v8059, 2147483648
  %v8072 = vor.u32 1.1754944e-38, %v8071
  %v8073 = vsel %vm8070, %v8072, %v8068
  %v8074 = vmul.f32 1.0, %v8073
  %v8075 = vld [vmem:[#allocation3] sm:$0xff]
  %v8076 = vmul.f32 %v8054, %v8075
  %v8077 = vmul.f32 %v8035, %v8055
  %v8078 = vadd.f32 %v8076, %v8077
  %v8079 = vtanh.pop %v8078
  %v8080 = vmul.f32 %v8074, %v8079
  %8081 = vst [vmem:[#allocation3] sm:$0xff] %v8078
  %8082 = vst [vmem:[#allocation2] sm:$0xff] %v8080
  %8083 = vst [vmem:[%s2922] sm:$0xff] %v8080
  // Predicated region
  $region18: #{cnn_to_rnn_forward.8} parent=0 // pred_check
    _
  $region19: #{cnn_to_rnn_forward.8} parent=0 // pred_check_branch
    %8085 = sbr.rel (0) target = $region21
  $region20: #{cnn_to_rnn_forward.8} parent=0 // pred_region
    _
  $region21: #{cnn_to_rnn_forward.8} parent=0 // pred_fallthru
    _
  // Predicated region
  $region22: #{cnn_to_rnn_forward.8} parent=0 // pred_check
    _
  $region23: #{cnn_to_rnn_forward.8} parent=0 // pred_check_branch
    %8087 = sbr.rel (0) target = $region25
  $region24: #{cnn_to_rnn_forward.8} parent=0 // pred_region
    _
  $region25: #{cnn_to_rnn_forward.8} parent=0 // pred_fallthru
    _

</llo_original>
